<compile_context>
chip_gen: v5e
topology: v5e:2x2
jax: 0.10.0
libtpu: 0.0.40
codegen_flags: <defaults>
</compile_context>

<pallas_src>
import functools
import math

import jax
import jax.numpy as jnp
from jax import lax
from jax.experimental import pallas as pl
from jax.experimental.pallas import tpu as pltpu


_VMEM_LIMIT = 32 * 1024 * 1024   # fits default scoped VMEM on v5e/v6e/v7x


# ----------------------------- small helpers -------------------------------

def _pick_block(n, cap):
    """Largest divisor of n that is <= cap (n itself if n <= cap)."""
    if n <= cap:
        return n
    for t in range(cap, 0, -1):
        if n % t == 0:
            return t
    return n


def _pick_row_block(m, cap=512):
    """Row tile for 2-D (rows, feat) arrays: multiple of 8 divisor, else full."""
    if m <= cap:
        return m
    for t in range(cap - cap % 8, 0, -8):
        if m % t == 0:
            return t
    return m


def _silu(x):
    return x * (1.0 / (1.0 + jnp.exp(-x)))


def _gelu_tanh(x):
    c = math.sqrt(2.0 / math.pi)
    return 0.5 * x * (1.0 + jnp.tanh(c * (x + 0.044715 * x * x * x)))


def _erf(x):
    # Abramowitz & Stegun 7.1.26 (|err| < 1.5e-7): keeps PyTorch's exact-erf
    # GELU semantics fully in-kernel (no reliance on a Mosaic erf lowering).
    a1, a2, a3, a4, a5 = 0.254829592, -0.284496736, 1.421413741, -1.453152027, 1.061405429
    p = 0.3275911
    sgn = jnp.where(x >= 0.0, 1.0, -1.0)
    ax = jnp.abs(x)
    t = 1.0 / (1.0 + p * ax)
    poly = ((((a5 * t + a4) * t + a3) * t + a2) * t + a1) * t
    return sgn * (1.0 - poly * jnp.exp(-ax * ax))


def _gelu_exact(x):
    return 0.5 * x * (1.0 + _erf(x * (1.0 / math.sqrt(2.0))))


def _layernorm(x, eps):
    mean = jnp.mean(x, axis=-1, keepdims=True)
    xc = x - mean
    var = jnp.mean(xc * xc, axis=-1, keepdims=True)
    return xc * lax.rsqrt(var + eps)


def _softmax_rows(s):
    s = s - jnp.max(s, axis=-1, keepdims=True)
    p = jnp.exp(s)
    return p * pl.reciprocal(jnp.sum(p, axis=-1, keepdims=True), approx=True)


# ----------------------------- Pallas kernels ------------------------------

def _tstep_kernel(emb_ref, w0_ref, b0_ref, w2_ref, b2_ref, o_ref):
    """TimestepEmbedder MLP: Linear -> SiLU -> Linear, fused."""
    h = jnp.dot(emb_ref[...].astype(jnp.bfloat16), w0_ref[...],
                preferred_element_type=jnp.float32) + b0_ref[...]
    h = _silu(h)
    y = jnp.dot(h.astype(jnp.bfloat16), w2_ref[...],
                preferred_element_type=jnp.float32) + b2_ref[...]
    o_ref[...] = y.astype(o_ref.dtype)


def _ctrl_head_kernel(x_ref, pe_ref, w_ref, b_ref, o_ref):
    """control_blocks head: Linear(cond_dim -> d_model) + positional encoding."""
    y = jnp.dot(x_ref[...].astype(jnp.bfloat16), w_ref[...],
                preferred_element_type=jnp.float32)
    o_ref[...] = (y + b_ref[...] + pe_ref[...]).astype(o_ref.dtype)


def _enc_attn_kernel(h_ref, wqkv_ref, bqkv_ref, wo_ref, bo_ref, g1_ref, bt1_ref,
                     o_ref, *, nhead):
    """Encoder layer, attention half: qkv + MHA + out-proj + residual + LN1."""
    nb, L, E = h_ref.shape
    dh = E // nhead
    scale = 1.0 / math.sqrt(dh)
    for j in range(nb):                                  # unrolled attention batch
        x = h_ref[j]                                     # (L, E) bf16
        xf = x.astype(jnp.float32)
        qkv = jnp.dot(x, wqkv_ref[...],
                      preferred_element_type=jnp.float32) + bqkv_ref[...]   # (L, 3E)
        attn = jnp.zeros((L, E), jnp.float32)
        for hd in range(nhead):                          # unrolled heads
            lo, hi = hd * dh, (hd + 1) * dh
            q = qkv[:, lo:hi] * scale
            k = qkv[:, E + lo:E + hi]
            v = qkv[:, 2 * E + lo:2 * E + hi]
            s = lax.dot_general(q, k, (((1,), (1,)), ((), ())),
                                preferred_element_type=jnp.float32)         # (L, L)
            p = _softmax_rows(s)
            o_h = jnp.dot(p, v, preferred_element_type=jnp.float32)         # (L, dh)
            # concat(heads) @ Wo  ==  sum_h o_h @ Wo[h*dh:(h+1)*dh, :]
            attn = attn + jnp.dot(o_h, wo_ref[lo:hi, :].astype(jnp.float32),
                                  preferred_element_type=jnp.float32)
        attn = attn + bo_ref[...]
        h1 = _layernorm(xf + attn, 1e-5) * g1_ref[...] + bt1_ref[...]
        o_ref[j] = h1.astype(o_ref.dtype)


def _enc_ffn_kernel(h_ref, w1_ref, b1_ref, w2_ref, b2_ref, g2_ref, bt2_ref, o_ref):
    """Encoder layer, FFN half: lin1 + exact GELU + lin2 + residual + LN2."""
    x = h_ref[...]                                       # (tm, E) bf16
    xf = x.astype(jnp.float32)
    f = jnp.dot(x, w1_ref[...], preferred_element_type=jnp.float32) + b1_ref[...]
    f = _gelu_exact(f)
    f = jnp.dot(f.astype(jnp.bfloat16), w2_ref[...],
                preferred_element_type=jnp.float32) + b2_ref[...]
    y = _layernorm(xf + f, 1e-5) * g2_ref[...] + bt2_ref[...]
    o_ref[...] = y.astype(o_ref.dtype)


def _ctrl_tail_kernel(h_ref, wout_ref, bout_ref, upw_ref, upb_ref,
                      wz_ref, bz_ref, o_ref):
    """control_blocks tail: Linear(d_model->latent) -> Conv1d(seq,1,1) -> Linear."""
    N, L, _ = h_ref.shape
    Ld = wout_ref.shape[1]
    acc = jnp.zeros((L, Ld), jnp.float32)
    for n in range(N):                                   # unrolled over seq channels
        y = jnp.dot(h_ref[n], wout_ref[...],
                    preferred_element_type=jnp.float32) + bout_ref[...]
        acc = acc + upw_ref[0, n] * y
    acc = acc + upb_ref[0, 0]
    g = jnp.dot(acc.astype(jnp.bfloat16), wz_ref[...],
                preferred_element_type=jnp.float32) + bz_ref[...]
    o_ref[...] = g


def _input_head_kernel(sc_ref, nl_ref, upw_ref, scal_ref, dwa_ref, dwb_ref, db_ref,
                       o_ref):
    """sparse_up_conv + align_net + concat + down_dim, fused (body branch)."""
    B = sc_ref.shape[0]
    up_b = scal_ref[0, 0]
    al_w = scal_ref[0, 1]
    al_b = scal_ref[0, 2]
    for b in range(B):
        sc_b = sc_ref[b].astype(jnp.float32)             # (S, E)
        cond_up = jnp.dot(upw_ref[...], sc_b,
                          preferred_element_type=jnp.float32) + up_b        # (1, E)
        nl = nl_ref[b].astype(jnp.float32) * al_w + al_b                    # (1, Ld)
        # down_dim(concat([cond_up, nl])) == cond_up @ Wd[:E] + nl @ Wd[E:]
        y = (jnp.dot(cond_up.astype(jnp.bfloat16), dwa_ref[...],
                     preferred_element_type=jnp.float32)
             + jnp.dot(nl.astype(jnp.bfloat16), dwb_ref[...],
                       preferred_element_type=jnp.float32)
             + db_ref[...])
        o_ref[b] = y.astype(o_ref.dtype)


def _dit_block_kernel(x_ref, c_ref, qkvw_ref, qkvb_ref, pw_ref, pb_ref,
                      f1w_ref, f1b_ref, f2w_ref, f2b_ref, aw_ref, ab_ref,
                      o_ref, *, nhead):
    """Full DiT block: adaLN modulation + attention half + MLP half, fused."""
    bb, T, C = x_ref.shape
    dh = C // nhead
    scale = 1.0 / math.sqrt(dh)
    for j in range(bb):                                  # unrolled batch
        xf = x_ref[j].astype(jnp.float32)                # (T, C)
        cf = c_ref[j].astype(jnp.float32)                # (1, C)
        mod = jnp.dot(_silu(cf).astype(jnp.bfloat16), aw_ref[...],
                      preferred_element_type=jnp.float32) + ab_ref[...]     # (1, 6C)
        sh_msa = mod[:, 0:C]
        sc_msa = mod[:, C:2 * C]
        g_msa = mod[:, 2 * C:3 * C]
        sh_mlp = mod[:, 3 * C:4 * C]
        sc_mlp = mod[:, 4 * C:5 * C]
        g_mlp = mod[:, 5 * C:6 * C]

        # attention half
        h = _layernorm(xf, 1e-6) * (1.0 + sc_msa) + sh_msa
        qkv = jnp.dot(h.astype(jnp.bfloat16), qkvw_ref[...],
                      preferred_element_type=jnp.float32) + qkvb_ref[...]   # (T, 3C)
        attn = jnp.zeros((T, C), jnp.float32)
        for hd in range(nhead):
            lo, hi = hd * dh, (hd + 1) * dh
            q = qkv[:, lo:hi] * scale
            k = qkv[:, C + lo:C + hi]
            v = qkv[:, 2 * C + lo:2 * C + hi]
            s = lax.dot_general(q, k, (((1,), (1,)), ((), ())),
                                preferred_element_type=jnp.float32)
            p = _softmax_rows(s)
            o_h = jnp.dot(p, v, preferred_element_type=jnp.float32)
            attn = attn + jnp.dot(o_h, pw_ref[lo:hi, :].astype(jnp.float32),
                                  preferred_element_type=jnp.float32)
        attn = attn + pb_ref[...]
        xf = xf + g_msa * attn

        # MLP half (DiT uses tanh-approx GELU)
        h = _layernorm(xf, 1e-6) * (1.0 + sc_mlp) + sh_mlp
        f = _gelu_tanh(jnp.dot(h.astype(jnp.bfloat16), f1w_ref[...],
                               preferred_element_type=jnp.float32) + f1b_ref[...])
        f = jnp.dot(f.astype(jnp.bfloat16), f2w_ref[...],
                    preferred_element_type=jnp.float32) + f2b_ref[...]
        xf = xf + g_mlp * f
        o_ref[j] = xf.astype(o_ref.dtype)


def _final_kernel(x_ref, g_ref, w_ref, b_ref, o_ref):
    """x += guided_cond; zero_block(x)."""
    xs = x_ref[...].astype(jnp.float32) + g_ref[...]
    y = jnp.dot(xs.astype(jnp.bfloat16), w_ref[...],
                preferred_element_type=jnp.float32) + b_ref[...]
    o_ref[...] = y


# ----------------------------- pallas_call wrappers ------------------------

def _vm():
    return pl.BlockSpec(memory_space=pltpu.MemorySpace.VMEM)


def _sm():
    return pl.BlockSpec(memory_space=pltpu.MemorySpace.SMEM)


def _full(a):
    return pl.BlockSpec(a.shape, lambda i: tuple(0 for _ in a.shape))


def timestep_embed(t, p, freq_dim=256, max_period=10000.0):
    half = freq_dim // 2
    freqs = jnp.exp(-math.log(max_period)
                    * jnp.arange(half, dtype=jnp.float32) / half)
    args = t.astype(jnp.float32)[:, None] * freqs[None, :]
    emb = jnp.concatenate([jnp.cos(args), jnp.sin(args)], axis=-1)   # (B, 256)
    B = emb.shape[0]
    latent = p["mlp2_w"].shape[1]
    return pl.pallas_call(
        _tstep_kernel,
        out_shape=jax.ShapeDtypeStruct((B, latent), jnp.bfloat16),
        in_specs=[_vm()] * 5,
        out_specs=_vm(),
        compiler_params=pltpu.CompilerParams(vmem_limit_bytes=_VMEM_LIMIT),
    )(emb, p["mlp0_w"], p["mlp0_b"], p["mlp2_w"], p["mlp2_b"])


def ctrl_head(nc2, pe_rows, w, b):
    M = nc2.shape[0]
    Dm = w.shape[1]
    return pl.pallas_call(
        _ctrl_head_kernel,
        out_shape=jax.ShapeDtypeStruct((M, Dm), jnp.bfloat16),
        in_specs=[_vm()] * 4,
        out_specs=_vm(),
        compiler_params=pltpu.CompilerParams(vmem_limit_bytes=_VMEM_LIMIT),
    )(nc2, pe_rows, w, b)


def encoder_attention(h3, lp, nhead):
    N, L, E = h3.shape
    nb = _pick_block(N, 8)
    return pl.pallas_call(
        functools.partial(_enc_attn_kernel, nhead=nhead),
        out_shape=jax.ShapeDtypeStruct((N, L, E), jnp.bfloat16),
        grid=(N // nb,),
        in_specs=[pl.BlockSpec((nb, L, E), lambda i: (i, 0, 0)),
                  _full(lp["in_proj_w"]), _full(lp["in_proj_b"]),
                  _full(lp["out_proj_w"]), _full(lp["out_proj_b"]),
                  _full(lp["norm1_g"]), _full(lp["norm1_b"])],
        out_specs=pl.BlockSpec((nb, L, E), lambda i: (i, 0, 0)),
        compiler_params=pltpu.CompilerParams(
            dimension_semantics=("parallel",), vmem_limit_bytes=_VMEM_LIMIT),
    )(h3, lp["in_proj_w"], lp["in_proj_b"], lp["out_proj_w"], lp["out_proj_b"],
      lp["norm1_g"], lp["norm1_b"])


def encoder_ffn(h2, lp):
    M, E = h2.shape
    tm = _pick_row_block(M)
    return pl.pallas_call(
        _enc_ffn_kernel,
        out_shape=jax.ShapeDtypeStruct((M, E), jnp.bfloat16),
        grid=(M // tm,),
        in_specs=[pl.BlockSpec((tm, E), lambda i: (i, 0)),
                  _full(lp["lin1_w"]), _full(lp["lin1_b"]),
                  _full(lp["lin2_w"]), _full(lp["lin2_b"]),
                  _full(lp["norm2_g"]), _full(lp["norm2_b"])],
        out_specs=pl.BlockSpec((tm, E), lambda i: (i, 0)),
        compiler_params=pltpu.CompilerParams(
            dimension_semantics=("parallel",), vmem_limit_bytes=_VMEM_LIMIT),
    )(h2, lp["lin1_w"], lp["lin1_b"], lp["lin2_w"], lp["lin2_b"],
      lp["norm2_g"], lp["norm2_b"])


def ctrl_tail(h3, p):
    _, L, _ = h3.shape
    Ld = p["ctrl_out_w"].shape[1]
    return pl.pallas_call(
        _ctrl_tail_kernel,
        out_shape=jax.ShapeDtypeStruct((L, Ld), jnp.float32),
        in_specs=[_vm(), _vm(), _vm(), _sm(), _sm(), _vm(), _vm()],
        out_specs=_vm(),
        compiler_params=pltpu.CompilerParams(vmem_limit_bytes=_VMEM_LIMIT),
    )(h3, p["ctrl_out_w"], p["ctrl_out_b"], p["up_w"], p["up_b"],
      p["ctrl_zero_w"], p["ctrl_zero_b"])


def input_head(sparse_cond, noisy_latents, p):
    B, _, E = sparse_cond.shape
    Ld = p["down_b"].shape[1]
    scal = jnp.concatenate([p["up_b"], p["align_w"], p["align_b"]], axis=1)  # (1, 3)
    dwa = p["down_w"][:E]
    dwb = p["down_w"][E:]
    return pl.pallas_call(
        _input_head_kernel,
        out_shape=jax.ShapeDtypeStruct((B, 1, Ld), jnp.bfloat16),
        in_specs=[_vm(), _vm(), _vm(), _sm(), _vm(), _vm(), _vm()],
        out_specs=_vm(),
        compiler_params=pltpu.CompilerParams(vmem_limit_bytes=_VMEM_LIMIT),
    )(sparse_cond, noisy_latents, p["up_w"], scal, dwa, dwb, p["down_b"])


def dit_block(x, c3, bp, nhead):
    B, T, C = x.shape
    bb = _pick_block(B, 8)
    return pl.pallas_call(
        functools.partial(_dit_block_kernel, nhead=nhead),
        out_shape=jax.ShapeDtypeStruct((B, T, C), jnp.bfloat16),
        grid=(B // bb,),
        in_specs=[pl.BlockSpec((bb, T, C), lambda i: (i, 0, 0)),
                  pl.BlockSpec((bb, 1, C), lambda i: (i, 0, 0)),
                  _full(bp["qkv_w"]), _full(bp["qkv_b"]),
                  _full(bp["proj_w"]), _full(bp["proj_b"]),
                  _full(bp["fc1_w"]), _full(bp["fc1_b"]),
                  _full(bp["fc2_w"]), _full(bp["fc2_b"]),
                  _full(bp["ada_w"]), _full(bp["ada_b"])],
        out_specs=pl.BlockSpec((bb, T, C), lambda i: (i, 0, 0)),
        compiler_params=pltpu.CompilerParams(
            dimension_semantics=("parallel",), vmem_limit_bytes=_VMEM_LIMIT),
    )(x, c3, bp["qkv_w"], bp["qkv_b"], bp["proj_w"], bp["proj_b"],
      bp["fc1_w"], bp["fc1_b"], bp["fc2_w"], bp["fc2_b"], bp["ada_w"], bp["ada_b"])


def final_block(x2, guided, p):
    B, Ld = x2.shape
    return pl.pallas_call(
        _final_kernel,
        out_shape=jax.ShapeDtypeStruct((B, Ld), jnp.float32),
        in_specs=[_vm()] * 4,
        out_specs=_vm(),
        compiler_params=pltpu.CompilerParams(vmem_limit_bytes=_VMEM_LIMIT),
    )(x2, guided, p["zero_w"], p["zero_b"])


# ----------------------------- ControlNet forward --------------------------

def controlnet_forward(params, noisy_latents, new_cond, timesteps, sparse_cond, cfg):
    nhead = cfg["nhead"]
    D = cfg["d_model"]
    latent = cfg["latent_dim"]
    bs, seq, _ = new_cond.shape

    # t_emb = TimestepEmbedder(latent_dim)(timesteps)
    t_emb = timestep_embed(timesteps, params["t_emb"])                    # (bs, latent)

    # guided_cond = control_blocks(new_cond); the encoder runs in the original
    # batch_first=False quirk: attention over the bs dim, "batch" = seq dim.
    nc2 = jnp.transpose(new_cond, (1, 0, 2)).reshape(seq * bs, -1)        # (seq*bs, cond)
    pe_rows = jnp.tile(params["pe"][:bs], (seq, 1))                       # PE indexed by bs (quirk)
    h2 = ctrl_head(nc2, pe_rows, params["ctrl_in_w"], params["ctrl_in_b"])  # (seq*bs, D)
    for lp in params["enc_layers"]:
        h3 = encoder_attention(h2.reshape(seq, bs, D), lp, nhead)         # attn + LN1
        h2 = encoder_ffn(h3.reshape(seq * bs, D), lp)                     # FFN + LN2
    guided = ctrl_tail(h2.reshape(seq, bs, D), params)                    # (bs, latent) f32

    # body branch: sparse_up_conv + align_net + concat + down_dim (fused)
    x = input_head(sparse_cond, noisy_latents, params)                    # (bs, 1, latent)

    # DiT blocks with adaLN conditioning on t_emb
    c3 = t_emb[:, None, :]                                                # (bs, 1, latent)
    for bp in params["dit_blocks"]:
        x = dit_block(x, c3, bp, nhead)

    # x += guided_cond; zero_block(x)
    out = final_block(x.reshape(bs, latent), guided, params)              # (bs, latent) f32
    return out[:, None, :]


# ----------------------------- Parameter init ------------------------------

class KeyGen:
    def __init__(self, key):
        self.key = key

    def __call__(self):
        self.key, sub = jax.random.split(self.key)
        return sub


def build_pe(max_len, d_model):
    position = jnp.arange(max_len, dtype=jnp.float32)[:, None]
    div = jnp.exp(jnp.arange(0, d_model, 2, dtype=jnp.float32)
                  * (-math.log(10000.0) / d_model))
    pe = jnp.zeros((max_len, d_model), jnp.float32)
    pe = pe.at[:, 0::2].set(jnp.sin(position * div))
    pe = pe.at[:, 1::2].set(jnp.cos(position * div))
    return pe                                  # (max_len, d_model)


def init_params(key, cfg):
    kg = KeyGen(key)
    Ld = cfg["latent_dim"]; D = cfg["d_model"]; F = cfg["ff_dim"]
    S = cfg["seq_len"]; E = cfg["e_dim"]; C = cfg["cond_dim"]
    zero = cfg["use_zero_module"]

    def w(shape, std=0.02):                    # bf16 weight matrices (MXU operands)
        return (std * jax.random.normal(kg(), shape, jnp.float32)).astype(jnp.bfloat16)

    def wf(shape, std=0.02):                   # small f32 params
        return std * jax.random.normal(kg(), shape, jnp.float32)

    def zf(shape):
        return jnp.zeros(shape, jnp.float32)

    def ones(shape):
        return jnp.ones(shape, jnp.float32)

    p = {}
    p["t_emb"] = dict(mlp0_w=w((256, Ld)), mlp0_b=zf((1, Ld)),
                      mlp2_w=w((Ld, Ld)), mlp2_b=zf((1, Ld)))
    p["pe"] = build_pe(5000, D)
    p["ctrl_in_w"] = w((C, D)); p["ctrl_in_b"] = zf((1, D))
    p["enc_layers"] = [dict(
        in_proj_w=w((D, 3 * D)), in_proj_b=zf((1, 3 * D)),
        out_proj_w=w((D, D)), out_proj_b=zf((1, D)),
        lin1_w=w((D, F)), lin1_b=zf((1, F)),
        lin2_w=w((F, D)), lin2_b=zf((1, D)),
        norm1_g=ones((1, D)), norm1_b=zf((1, D)),
        norm2_g=ones((1, D)), norm2_b=zf((1, D)),
    ) for _ in range(cfg["cond_nlayers"])]
    p["ctrl_out_w"] = w((D, Ld)); p["ctrl_out_b"] = zf((1, Ld))
    p["up_w"] = wf((1, S))                       # Conv1d(seq_len, 1, 1) weight (shared)
    p["up_b"] = zf((1, 1))
    p["ctrl_zero_w"] = jnp.zeros((Ld, Ld), jnp.bfloat16) if zero else w((Ld, Ld))
    p["ctrl_zero_b"] = zf((1, Ld)) if zero else wf((1, Ld))
    p["align_w"] = wf((1, 1)); p["align_b"] = zf((1, 1))   # align_net Conv1d(1,1,1)
    p["down_w"] = w((E + Ld, Ld)); p["down_b"] = zf((1, Ld))
    p["dit_blocks"] = [dict(
        qkv_w=w((Ld, 3 * Ld)), qkv_b=zf((1, 3 * Ld)),
        proj_w=w((Ld, Ld)), proj_b=zf((1, Ld)),
        fc1_w=w((Ld, 4 * Ld)), fc1_b=zf((1, 4 * Ld)),
        fc2_w=w((4 * Ld, Ld)), fc2_b=zf((1, Ld)),
        ada_w=w((Ld, 6 * Ld)), ada_b=zf((1, 6 * Ld)),
    ) for _ in range(cfg["input_nlayers"])]
    p["zero_w"] = jnp.zeros((Ld, Ld), jnp.bfloat16) if zero else w((Ld, Ld))
    p["zero_b"] = zf((1, Ld)) if zero else wf((1, Ld))
    return p


# ----------------------------- Demo ----------------------------------------

if __name__ == "__main__":
    # use_zero_module=False so the end-to-end output is non-trivial (the module's
    # default True zero-inits the final Linear, making the output identically 0).
    cfg = dict(seq_len=8, e_dim=16, cond_dim=16, latent_dim=32,
               input_nlayers=2, cond_nlayers=2, d_model=64, nhead=4,
               ff_dim=128, use_zero_module=False)

    key = jax.random.PRNGKey(0)
    kp, kx = jax.random.split(key)
    params = init_params(kp, cfg)

    bs = 2
    k1, k2, k3 = jax.random.split(kx, 3)
    noisy_latents = jax.random.normal(k1, (bs, 1, cfg["latent_dim"]), jnp.float32)
    new_cond = jax.random.normal(k2, (bs, cfg["seq_len"], cfg["cond_dim"]), jnp.float32)
    sparse_cond = jax.random.normal(k3, (bs, cfg["seq_len"], cfg["e_dim"]), jnp.float32)
    timesteps = jnp.array([3.0, 17.0], jnp.float32)

    fwd = jax.jit(functools.partial(controlnet_forward, cfg=cfg))
    out = fwd(params, noisy_latents, new_cond, timesteps, sparse_cond)
    jax.block_until_ready(out)
    assert out.shape == (bs, 1, cfg["latent_dim"])
    assert bool(jnp.all(jnp.isfinite(out)))
    print("KERNEL_OK")
</pallas_src>

<mosaic_0001>
module attributes {stable_mosaic.version = 11 : i64} {
  func.func @_tstep_kernel(%arg0: memref<2x256xf32, #tpu.memory_space<vmem>>, %arg1: memref<256x32xbf16, #tpu.memory_space<vmem>>, %arg2: memref<1x32xf32, #tpu.memory_space<vmem>>, %arg3: memref<32x32xbf16, #tpu.memory_space<vmem>>, %arg4: memref<1x32xf32, #tpu.memory_space<vmem>>, %arg5: memref<2x32xbf16, #tpu.memory_space<vmem>>) attributes {dimension_semantics = [], scalar_prefetch = 0 : i64, scratch_operands = 0 : i64, tpu.core_type = #tpu.core_type<tc>} {
    %c0 = arith.constant 0 : index
    %c0_0 = arith.constant 0 : index
    %0 = vector.load %arg0[%c0, %c0_0] : memref<2x256xf32, #tpu.memory_space<vmem>>, vector<2x256xf32>
    %1 = arith.truncf %0 : vector<2x256xf32> to vector<2x256xbf16>
    %c0_1 = arith.constant 0 : index
    %c0_2 = arith.constant 0 : index
    %2 = vector.load %arg1[%c0_1, %c0_2] : memref<256x32xbf16, #tpu.memory_space<vmem>>, vector<256x32xbf16>
    %cst = arith.constant dense<0.000000e+00> : vector<2x32xf32>
    %3 = tpu.matmul %1, %2, %cst {dimension_numbers = #tpu.dot_dimension_numbers<[1], [0], [0], [1], [0, 0, 1, 1], [], []>} : vector<2x256xbf16>, vector<256x32xbf16>, vector<2x32xf32> -> vector<2x32xf32>
    %c0_3 = arith.constant 0 : index
    %c0_4 = arith.constant 0 : index
    %4 = vector.load %arg2[%c0_3, %c0_4] : memref<1x32xf32, #tpu.memory_space<vmem>>, vector<1x32xf32>
    %5 = vector.broadcast %4 : vector<1x32xf32> to vector<2x32xf32>
    %6 = arith.addf %3, %5 : vector<2x32xf32>
    %cst_5 = arith.constant 0.000000e+00 : f32
    %7 = vector.broadcast %cst_5 : f32 to vector<2x32xf32>
    %8 = arith.subf %7, %6 : vector<2x32xf32>
    %9 = math.exp %8 : vector<2x32xf32>
    %cst_6 = arith.constant 1.000000e+00 : f32
    %10 = vector.broadcast %cst_6 : f32 to vector<2x32xf32>
    %11 = arith.addf %10, %9 : vector<2x32xf32>
    %cst_7 = arith.constant 1.000000e+00 : f32
    %12 = vector.broadcast %cst_7 : f32 to vector<2x32xf32>
    %13 = arith.divf %12, %11 : vector<2x32xf32>
    %14 = arith.mulf %6, %13 : vector<2x32xf32>
    %15 = arith.truncf %14 : vector<2x32xf32> to vector<2x32xbf16>
    %c0_8 = arith.constant 0 : index
    %c0_9 = arith.constant 0 : index
    %16 = vector.load %arg3[%c0_8, %c0_9] : memref<32x32xbf16, #tpu.memory_space<vmem>>, vector<32x32xbf16>
    %cst_10 = arith.constant dense<0.000000e+00> : vector<2x32xf32>
    %17 = tpu.matmul %15, %16, %cst_10 {dimension_numbers = #tpu.dot_dimension_numbers<[1], [0], [0], [1], [0, 0, 1, 1], [], []>} : vector<2x32xbf16>, vector<32x32xbf16>, vector<2x32xf32> -> vector<2x32xf32>
    %c0_11 = arith.constant 0 : index
    %c0_12 = arith.constant 0 : index
    %18 = vector.load %arg4[%c0_11, %c0_12] : memref<1x32xf32, #tpu.memory_space<vmem>>, vector<1x32xf32>
    %19 = vector.broadcast %18 : vector<1x32xf32> to vector<2x32xf32>
    %20 = arith.addf %17, %19 : vector<2x32xf32>
    %21 = arith.truncf %20 : vector<2x32xf32> to vector<2x32xbf16>
    %c0_13 = arith.constant 0 : index
    %c0_14 = arith.constant 0 : index
    %22 = vector.load %arg5[%c0_13, %c0_14] : memref<2x32xbf16, #tpu.memory_space<vmem>>, vector<2x32xbf16>
    tpu.vector_store %arg5[%c0_13, %c0_14], %21 {strides = array<i32>} : memref<2x32xbf16, #tpu.memory_space<vmem>>, vector<2x32xbf16>,
    return
  }
}

module attributes {stable_mosaic.version = 11 : i64} {
  func.func @_input_head_kernel(%arg0: memref<2x8x16xf32, #tpu.memory_space<vmem>>, %arg1: memref<2x1x32xf32, #tpu.memory_space<vmem>>, %arg2: memref<1x8xf32, #tpu.memory_space<vmem>>, %arg3: memref<1x3xf32, #tpu.memory_space<smem>>, %arg4: memref<16x32xbf16, #tpu.memory_space<vmem>>, %arg5: memref<32x32xbf16, #tpu.memory_space<vmem>>, %arg6: memref<1x32xf32, #tpu.memory_space<vmem>>, %arg7: memref<2x1x32xbf16, #tpu.memory_space<vmem>>) attributes {dimension_semantics = [], scalar_prefetch = 0 : i64, scratch_operands = 0 : i64, tpu.core_type = #tpu.core_type<tc>} {
    %c0 = arith.constant 0 : index
    %c0_0 = arith.constant 0 : index
    %0 = memref.load %arg3[%c0, %c0_0] : memref<1x3xf32, #tpu.memory_space<smem>>
    %c0_1 = arith.constant 0 : index
    %c1 = arith.constant 1 : index
    %1 = memref.load %arg3[%c0_1, %c1] : memref<1x3xf32, #tpu.memory_space<smem>>
    %c0_2 = arith.constant 0 : index
    %c2 = arith.constant 2 : index
    %2 = memref.load %arg3[%c0_2, %c2] : memref<1x3xf32, #tpu.memory_space<smem>>
    %c0_3 = arith.constant 0 : index
    %c0_4 = arith.constant 0 : index
    %c0_5 = arith.constant 0 : index
    %3 = vector.load %arg0[%c0_3, %c0_4, %c0_5] : memref<2x8x16xf32, #tpu.memory_space<vmem>>, vector<1x8x16xf32>
    %4 = vector.shape_cast %3 : vector<1x8x16xf32> to vector<8x16xf32>
    %c0_6 = arith.constant 0 : index
    %c0_7 = arith.constant 0 : index
    %5 = vector.load %arg2[%c0_6, %c0_7] : memref<1x8xf32, #tpu.memory_space<vmem>>, vector<1x8xf32>
    %cst = arith.constant dense<0.000000e+00> : vector<1x16xf32>
    %6 = tpu.matmul %5, %4, %cst {dimension_numbers = #tpu.dot_dimension_numbers<[1], [0], [0], [1], [0, 0, 1, 1], [], []>} : vector<1x8xf32>, vector<8x16xf32>, vector<1x16xf32> -> vector<1x16xf32>
    %7 = vector.broadcast %0 : f32 to vector<1x16xf32>
    %8 = arith.addf %6, %7 : vector<1x16xf32>
    %c0_8 = arith.constant 0 : index
    %c0_9 = arith.constant 0 : index
    %c0_10 = arith.constant 0 : index
    %9 = vector.load %arg1[%c0_8, %c0_9, %c0_10] : memref<2x1x32xf32, #tpu.memory_space<vmem>>, vector<1x1x32xf32>
    %10 = vector.shape_cast %9 : vector<1x1x32xf32> to vector<1x32xf32>
    %11 = vector.broadcast %1 : f32 to vector<1x32xf32>
    %12 = arith.mulf %10, %11 : vector<1x32xf32>
    %13 = vector.broadcast %2 : f32 to vector<1x32xf32>
    %14 = arith.addf %12, %13 : vector<1x32xf32>
    %15 = arith.truncf %8 : vector<1x16xf32> to vector<1x16xbf16>
    %c0_11 = arith.constant 0 : index
    %c0_12 = arith.constant 0 : index
    %16 = vector.load %arg4[%c0_11, %c0_12] : memref<16x32xbf16, #tpu.memory_space<vmem>>, vector<16x32xbf16>
    %cst_13 = arith.constant dense<0.000000e+00> : vector<1x32xf32>
    %17 = tpu.matmul %15, %16, %cst_13 {dimension_numbers = #tpu.dot_dimension_numbers<[1], [0], [0], [1], [0, 0, 1, 1], [], []>} : vector<1x16xbf16>, vector<16x32xbf16>, vector<1x32xf32> -> vector<1x32xf32>
    %18 = arith.truncf %14 : vector<1x32xf32> to vector<1x32xbf16>
    %c0_14 = arith.constant 0 : index
    %c0_15 = arith.constant 0 : index
    %19 = vector.load %arg5[%c0_14, %c0_15] : memref<32x32xbf16, #tpu.memory_space<vmem>>, vector<32x32xbf16>
    %cst_16 = arith.constant dense<0.000000e+00> : vector<1x32xf32>
    %20 = tpu.matmul %18, %19, %cst_16 {dimension_numbers = #tpu.dot_dimension_numbers<[1], [0], [0], [1], [0, 0, 1, 1], [], []>} : vector<1x32xbf16>, vector<32x32xbf16>, vector<1x32xf32> -> vector<1x32xf32>
    %21 = arith.addf %17, %20 : vector<1x32xf32>
    %c0_17 = arith.constant 0 : index
    %c0_18 = arith.constant 0 : index
    %22 = vector.load %arg6[%c0_17, %c0_18] : memref<1x32xf32, #tpu.memory_space<vmem>>, vector<1x32xf32>
    %23 = arith.addf %21, %22 : vector<1x32xf32>
    %24 = arith.truncf %23 : vector<1x32xf32> to vector<1x32xbf16>
    %c0_19 = arith.constant 0 : index
    %c0_20 = arith.constant 0 : index
    %c0_21 = arith.constant 0 : index
    %25 = vector.load %arg7[%c0_19, %c0_20, %c0_21] : memref<2x1x32xbf16, #tpu.memory_space<vmem>>, vector<1x1x32xbf16>
    %26 = vector.shape_cast %25 : vector<1x1x32xbf16> to vector<1x32xbf16>
    %27 = vector.shape_cast %24 : vector<1x32xbf16> to vector<1x1x32xbf16>
    tpu.vector_store %arg7[%c0_19, %c0_20, %c0_21], %27 {strides = array<i32>} : memref<2x1x32xbf16, #tpu.memory_space<vmem>>, vector<1x1x32xbf16>,
    %c1_22 = arith.constant 1 : index
    %c0_23 = arith.constant 0 : index
    %c0_24 = arith.constant 0 : index
    %28 = vector.load %arg0[%c1_22, %c0_23, %c0_24] : memref<2x8x16xf32, #tpu.memory_space<vmem>>, vector<1x8x16xf32>
    %29 = vector.shape_cast %28 : vector<1x8x16xf32> to vector<8x16xf32>
    %c0_25 = arith.constant 0 : index
    %c0_26 = arith.constant 0 : index
    %30 = vector.load %arg2[%c0_25, %c0_26] : memref<1x8xf32, #tpu.memory_space<vmem>>, vector<1x8xf32>
    %cst_27 = arith.constant dense<0.000000e+00> : vector<1x16xf32>
    %31 = tpu.matmul %30, %29, %cst_27 {dimension_numbers = #tpu.dot_dimension_numbers<[1], [0], [0], [1], [0, 0, 1, 1], [], []>} : vector<1x8xf32>, vector<8x16xf32>, vector<1x16xf32> -> vector<1x16xf32>
    %32 = vector.broadcast %0 : f32 to vector<1x16xf32>
    %33 = arith.addf %31, %32 : vector<1x16xf32>
    %c1_28 = arith.constant 1 : index
    %c0_29 = arith.constant 0 : index
    %c0_30 = arith.constant 0 : index
    %34 = vector.load %arg1[%c1_28, %c0_29, %c0_30] : memref<2x1x32xf32, #tpu.memory_space<vmem>>, vector<1x1x32xf32>
    %35 = vector.shape_cast %34 : vector<1x1x32xf32> to vector<1x32xf32>
    %36 = vector.broadcast %1 : f32 to vector<1x32xf32>
    %37 = arith.mulf %35, %36 : vector<1x32xf32>
    %38 = vector.broadcast %2 : f32 to vector<1x32xf32>
    %39 = arith.addf %37, %38 : vector<1x32xf32>
    %40 = arith.truncf %33 : vector<1x16xf32> to vector<1x16xbf16>
    %c0_31 = arith.constant 0 : index
    %c0_32 = arith.constant 0 : index
    %41 = vector.load %arg4[%c0_31, %c0_32] : memref<16x32xbf16, #tpu.memory_space<vmem>>, vector<16x32xbf16>
    %cst_33 = arith.constant dense<0.000000e+00> : vector<1x32xf32>
    %42 = tpu.matmul %40, %41, %cst_33 {dimension_numbers = #tpu.dot_dimension_numbers<[1], [0], [0], [1], [0, 0, 1, 1], [], []>} : vector<1x16xbf16>, vector<16x32xbf16>, vector<1x32xf32> -> vector<1x32xf32>
    %43 = arith.truncf %39 : vector<1x32xf32> to vector<1x32xbf16>
    %c0_34 = arith.constant 0 : index
    %c0_35 = arith.constant 0 : index
    %44 = vector.load %arg5[%c0_34, %c0_35] : memref<32x32xbf16, #tpu.memory_space<vmem>>, vector<32x32xbf16>
    %cst_36 = arith.constant dense<0.000000e+00> : vector<1x32xf32>
    %45 = tpu.matmul %43, %44, %cst_36 {dimension_numbers = #tpu.dot_dimension_numbers<[1], [0], [0], [1], [0, 0, 1, 1], [], []>} : vector<1x32xbf16>, vector<32x32xbf16>, vector<1x32xf32> -> vector<1x32xf32>
    %46 = arith.addf %42, %45 : vector<1x32xf32>
    %c0_37 = arith.constant 0 : index
    %c0_38 = arith.constant 0 : index
    %47 = vector.load %arg6[%c0_37, %c0_38] : memref<1x32xf32, #tpu.memory_space<vmem>>, vector<1x32xf32>
    %48 = arith.addf %46, %47 : vector<1x32xf32>
    %49 = arith.truncf %48 : vector<1x32xf32> to vector<1x32xbf16>
    %c1_39 = arith.constant 1 : index
    %c0_40 = arith.constant 0 : index
    %c0_41 = arith.constant 0 : index
    %50 = vector.load %arg7[%c1_39, %c0_40, %c0_41] : memref<2x1x32xbf16, #tpu.memory_space<vmem>>, vector<1x1x32xbf16>
    %51 = vector.shape_cast %50 : vector<1x1x32xbf16> to vector<1x32xbf16>
    %52 = vector.shape_cast %49 : vector<1x32xbf16> to vector<1x1x32xbf16>
    tpu.vector_store %arg7[%c1_39, %c0_40, %c0_41], %52 {strides = array<i32>} : memref<2x1x32xbf16, #tpu.memory_space<vmem>>, vector<1x1x32xbf16>,
    return
  }
}

module attributes {stable_mosaic.version = 11 : i64} {
  func.func @_dit_block_kernel(%arg0: i32, %arg1: memref<2x1x32xbf16, #tpu.memory_space<vmem>>, %arg2: memref<2x1x32xbf16, #tpu.memory_space<vmem>>, %arg3: memref<32x96xbf16, #tpu.memory_space<vmem>>, %arg4: memref<1x96xf32, #tpu.memory_space<vmem>>, %arg5: memref<32x32xbf16, #tpu.memory_space<vmem>>, %arg6: memref<1x32xf32, #tpu.memory_space<vmem>>, %arg7: memref<32x128xbf16, #tpu.memory_space<vmem>>, %arg8: memref<1x128xf32, #tpu.memory_space<vmem>>, %arg9: memref<128x32xbf16, #tpu.memory_space<vmem>>, %arg10: memref<1x32xf32, #tpu.memory_space<vmem>>, %arg11: memref<32x192xbf16, #tpu.memory_space<vmem>>, %arg12: memref<1x192xf32, #tpu.memory_space<vmem>>, %arg13: memref<2x1x32xbf16, #tpu.memory_space<vmem>>) attributes {dimension_semantics = [#tpu.dimension_semantics<parallel>], iteration_bounds = array<i64: 1>, scalar_prefetch = 0 : i64, scratch_operands = 0 : i64, tpu.core_type = #tpu.core_type<tc>, window_params = [{transform_indices = @transform_0, window_bounds = array<i64: 2, 1, 32>}, {transform_indices = @transform_1, window_bounds = array<i64: 2, 1, 32>}, {pipeline_mode = #tpu.pipeline_mode<synchronous>, transform_indices = @transform_2, window_bounds = array<i64: 32, 96>}, {pipeline_mode = #tpu.pipeline_mode<synchronous>, transform_indices = @transform_3, window_bounds = array<i64: 1, 96>}, {pipeline_mode = #tpu.pipeline_mode<synchronous>, transform_indices = @transform_4, window_bounds = array<i64: 32, 32>}, {pipeline_mode = #tpu.pipeline_mode<synchronous>, transform_indices = @transform_5, window_bounds = array<i64: 1, 32>}, {pipeline_mode = #tpu.pipeline_mode<synchronous>, transform_indices = @transform_6, window_bounds = array<i64: 32, 128>}, {pipeline_mode = #tpu.pipeline_mode<synchronous>, transform_indices = @transform_7, window_bounds = array<i64: 1, 128>}, {pipeline_mode = #tpu.pipeline_mode<synchronous>, transform_indices = @transform_8, window_bounds = array<i64: 128, 32>}, {pipeline_mode = #tpu.pipeline_mode<synchronous>, transform_indices = @transform_9, window_bounds = array<i64: 1, 32>}, {pipeline_mode = #tpu.pipeline_mode<synchronous>, transform_indices = @transform_10, window_bounds = array<i64: 32, 192>}, {pipeline_mode = #tpu.pipeline_mode<synchronous>, transform_indices = @transform_11, window_bounds = array<i64: 1, 192>}, {transform_indices = @transform_12, window_bounds = array<i64: 2, 1, 32>}]} {
    %c0 = arith.constant 0 : index
    %c0_0 = arith.constant 0 : index
    %c0_1 = arith.constant 0 : index
    %0 = vector.load %arg1[%c0, %c0_0, %c0_1] : memref<2x1x32xbf16, #tpu.memory_space<vmem>>, vector<1x1x32xbf16>
    %1 = vector.shape_cast %0 : vector<1x1x32xbf16> to vector<1x32xbf16>
    %2 = arith.extf %1 : vector<1x32xbf16> to vector<1x32xf32>
    %c0_2 = arith.constant 0 : index
    %c0_3 = arith.constant 0 : index
    %c0_4 = arith.constant 0 : index
    %3 = vector.load %arg2[%c0_2, %c0_3, %c0_4] : memref<2x1x32xbf16, #tpu.memory_space<vmem>>, vector<1x1x32xbf16>
    %4 = vector.shape_cast %3 : vector<1x1x32xbf16> to vector<1x32xbf16>
    %5 = arith.extf %4 : vector<1x32xbf16> to vector<1x32xf32>
    %cst = arith.constant 0.000000e+00 : f32
    %6 = vector.broadcast %cst : f32 to vector<1x32xf32>
    %7 = arith.subf %6, %5 : vector<1x32xf32>
    %8 = math.exp %7 : vector<1x32xf32>
    %cst_5 = arith.constant 1.000000e+00 : f32
    %9 = vector.broadcast %cst_5 : f32 to vector<1x32xf32>
    %10 = arith.addf %9, %8 : vector<1x32xf32>
    %cst_6 = arith.constant 1.000000e+00 : f32
    %11 = vector.broadcast %cst_6 : f32 to vector<1x32xf32>
    %12 = arith.divf %11, %10 : vector<1x32xf32>
    %13 = arith.mulf %5, %12 : vector<1x32xf32>
    %14 = arith.truncf %13 : vector<1x32xf32> to vector<1x32xbf16>
    %c0_7 = arith.constant 0 : index
    %c0_8 = arith.constant 0 : index
    %15 = vector.load %arg11[%c0_7, %c0_8] : memref<32x192xbf16, #tpu.memory_space<vmem>>, vector<32x192xbf16>
    %cst_9 = arith.constant dense<0.000000e+00> : vector<1x192xf32>
    %16 = tpu.matmul %14, %15, %cst_9 {dimension_numbers = #tpu.dot_dimension_numbers<[1], [0], [0], [1], [0, 0, 1, 1], [], []>} : vector<1x32xbf16>, vector<32x192xbf16>, vector<1x192xf32> -> vector<1x192xf32>
    %c0_10 = arith.constant 0 : index
    %c0_11 = arith.constant 0 : index
    %17 = vector.load %arg12[%c0_10, %c0_11] : memref<1x192xf32, #tpu.memory_space<vmem>>, vector<1x192xf32>
    %18 = arith.addf %16, %17 : vector<1x192xf32>
    %19 = vector.extract_strided_slice %18 {offsets = [0, 0], sizes = [1, 32], strides = [1, 1]} : vector<1x192xf32> to vector<1x32xf32>
    %20 = vector.extract_strided_slice %18 {offsets = [0, 32], sizes = [1, 32], strides = [1, 1]} : vector<1x192xf32> to vector<1x32xf32>
    %21 = vector.extract_strided_slice %18 {offsets = [0, 64], sizes = [1, 32], strides = [1, 1]} : vector<1x192xf32> to vector<1x32xf32>
    %22 = vector.extract_strided_slice %18 {offsets = [0, 96], sizes = [1, 32], strides = [1, 1]} : vector<1x192xf32> to vector<1x32xf32>
    %23 = vector.extract_strided_slice %18 {offsets = [0, 128], sizes = [1, 32], strides = [1, 1]} : vector<1x192xf32> to vector<1x32xf32>
    %24 = vector.extract_strided_slice %18 {offsets = [0, 160], sizes = [1, 32], strides = [1, 1]} : vector<1x192xf32> to vector<1x32xf32>
    %cst_12 = arith.constant dense<0.000000e+00> : vector<1xf32>
    %25 = vector.multi_reduction <add>, %2, %cst_12 [1] : vector<1x32xf32> to vector<1xf32>
    %26 = vector.shape_cast %25 : vector<1xf32> to vector<1x1xf32>
    %cst_13 = arith.constant 3.200000e+01 : f32
    %27 = vector.broadcast %cst_13 : f32 to vector<1x1xf32>
    %28 = arith.divf %26, %27 : vector<1x1xf32>
    %29 = vector.broadcast %28 : vector<1x1xf32> to vector<1x32xf32>
    %30 = arith.subf %2, %29 : vector<1x32xf32>
    %31 = arith.mulf %30, %30 : vector<1x32xf32>
    %cst_14 = arith.constant dense<0.000000e+00> : vector<1xf32>
    %32 = vector.multi_reduction <add>, %31, %cst_14 [1] : vector<1x32xf32> to vector<1xf32>
    %33 = vector.shape_cast %32 : vector<1xf32> to vector<1x1xf32>
    %cst_15 = arith.constant 3.200000e+01 : f32
    %34 = vector.broadcast %cst_15 : f32 to vector<1x1xf32>
    %35 = arith.divf %33, %34 : vector<1x1xf32>
    %cst_16 = arith.constant 9.99999997E-7 : f32
    %36 = vector.broadcast %cst_16 : f32 to vector<1x1xf32>
    %37 = arith.addf %35, %36 : vector<1x1xf32>
    %38 = math.rsqrt %37 : vector<1x1xf32>
    %39 = vector.broadcast %38 : vector<1x1xf32> to vector<1x32xf32>
    %40 = arith.mulf %30, %39 : vector<1x32xf32>
    %cst_17 = arith.constant 1.000000e+00 : f32
    %41 = vector.broadcast %cst_17 : f32 to vector<1x32xf32>
    %42 = arith.addf %41, %20 : vector<1x32xf32>
    %43 = arith.mulf %40, %42 : vector<1x32xf32>
    %44 = arith.addf %43, %19 : vector<1x32xf32>
    %45 = arith.truncf %44 : vector<1x32xf32> to vector<1x32xbf16>
    %c0_18 = arith.constant 0 : index
    %c0_19 = arith.constant 0 : index
    %46 = vector.load %arg3[%c0_18, %c0_19] : memref<32x96xbf16, #tpu.memory_space<vmem>>, vector<32x96xbf16>
    %cst_20 = arith.constant dense<0.000000e+00> : vector<1x96xf32>
    %47 = tpu.matmul %45, %46, %cst_20 {dimension_numbers = #tpu.dot_dimension_numbers<[1], [0], [0], [1], [0, 0, 1, 1], [], []>} : vector<1x32xbf16>, vector<32x96xbf16>, vector<1x96xf32> -> vector<1x96xf32>
    %c0_21 = arith.constant 0 : index
    %c0_22 = arith.constant 0 : index
    %48 = vector.load %arg4[%c0_21, %c0_22] : memref<1x96xf32, #tpu.memory_space<vmem>>, vector<1x96xf32>
    %49 = arith.addf %47, %48 : vector<1x96xf32>
    %cst_23 = arith.constant 0.000000e+00 : f32
    %50 = vector.broadcast %cst_23 : f32 to vector<1x32xf32>
    %51 = vector.extract_strided_slice %49 {offsets = [0, 0], sizes = [1, 8], strides = [1, 1]} : vector<1x96xf32> to vector<1x8xf32>
    %cst_24 = arith.constant 0.353553385 : f32
    %52 = vector.broadcast %cst_24 : f32 to vector<1x8xf32>
    %53 = arith.mulf %51, %52 : vector<1x8xf32>
    %54 = vector.extract_strided_slice %49 {offsets = [0, 32], sizes = [1, 8], strides = [1, 1]} : vector<1x96xf32> to vector<1x8xf32>
    %55 = vector.extract_strided_slice %49 {offsets = [0, 64], sizes = [1, 8], strides = [1, 1]} : vector<1x96xf32> to vector<1x8xf32>
    %cst_25 = arith.constant dense<0.000000e+00> : vector<1x1xf32>
    %56 = tpu.matmul %53, %54, %cst_25 {dimension_numbers = #tpu.dot_dimension_numbers<[1], [1], [0], [0], [0, 0, 1, 0], [], []>} : vector<1x8xf32>, vector<1x8xf32>, vector<1x1xf32> -> vector<1x1xf32>
    %cst_26 = arith.constant dense<0xFF800000> : vector<1xf32>
    %57 = vector.multi_reduction <maximumf>, %56, %cst_26 [1] : vector<1x1xf32> to vector<1xf32>
    %58 = vector.shape_cast %57 : vector<1xf32> to vector<1x1xf32>
    %59 = arith.subf %56, %58 : vector<1x1xf32>
    %60 = math.exp %59 : vector<1x1xf32>
    %cst_27 = arith.constant dense<0.000000e+00> : vector<1xf32>
    %61 = vector.multi_reduction <add>, %60, %cst_27 [1] : vector<1x1xf32> to vector<1xf32>
    %62 = vector.shape_cast %61 : vector<1xf32> to vector<1x1xf32>
    %63 = tpu.reciprocal %62 {approx = true} : vector<1x1xf32> -> vector<1x1xf32>
    %64 = arith.mulf %60, %63 : vector<1x1xf32>
    %cst_28 = arith.constant dense<0.000000e+00> : vector<1x8xf32>
    %65 = tpu.matmul %64, %55, %cst_28 {dimension_numbers = #tpu.dot_dimension_numbers<[1], [0], [0], [1], [0, 0, 1, 1], [], []>} : vector<1x1xf32>, vector<1x8xf32>, vector<1x8xf32> -> vector<1x8xf32>
    %c0_29 = arith.constant 0 : index
    %c0_30 = arith.constant 0 : index
    %66 = vector.load %arg5[%c0_29, %c0_30] : memref<32x32xbf16, #tpu.memory_space<vmem>>, vector<8x32xbf16>
    %67 = arith.extf %66 : vector<8x32xbf16> to vector<8x32xf32>
    %cst_31 = arith.constant dense<0.000000e+00> : vector<1x32xf32>
    %68 = tpu.matmul %65, %67, %cst_31 {dimension_numbers = #tpu.dot_dimension_numbers<[1], [0], [0], [1], [0, 0, 1, 1], [], []>} : vector<1x8xf32>, vector<8x32xf32>, vector<1x32xf32> -> vector<1x32xf32>
    %69 = arith.addf %50, %68 : vector<1x32xf32>
    %70 = vector.extract_strided_slice %49 {offsets = [0, 8], sizes = [1, 8], strides = [1, 1]} : vector<1x96xf32> to vector<1x8xf32>
    %cst_32 = arith.constant 0.353553385 : f32
    %71 = vector.broadcast %cst_32 : f32 to vector<1x8xf32>
    %72 = arith.mulf %70, %71 : vector<1x8xf32>
    %73 = vector.extract_strided_slice %49 {offsets = [0, 40], sizes = [1, 8], strides = [1, 1]} : vector<1x96xf32> to vector<1x8xf32>
    %74 = vector.extract_strided_slice %49 {offsets = [0, 72], sizes = [1, 8], strides = [1, 1]} : vector<1x96xf32> to vector<1x8xf32>
    %cst_33 = arith.constant dense<0.000000e+00> : vector<1x1xf32>
    %75 = tpu.matmul %72, %73, %cst_33 {dimension_numbers = #tpu.dot_dimension_numbers<[1], [1], [0], [0], [0, 0, 1, 0], [], []>} : vector<1x8xf32>, vector<1x8xf32>, vector<1x1xf32> -> vector<1x1xf32>
    %cst_34 = arith.constant dense<0xFF800000> : vector<1xf32>
    %76 = vector.multi_reduction <maximumf>, %75, %cst_34 [1] : vector<1x1xf32> to vector<1xf32>
    %77 = vector.shape_cast %76 : vector<1xf32> to vector<1x1xf32>
    %78 = arith.subf %75, %77 : vector<1x1xf32>
    %79 = math.exp %78 : vector<1x1xf32>
    %cst_35 = arith.constant dense<0.000000e+00> : vector<1xf32>
    %80 = vector.multi_reduction <add>, %79, %cst_35 [1] : vector<1x1xf32> to vector<1xf32>
    %81 = vector.shape_cast %80 : vector<1xf32> to vector<1x1xf32>
    %82 = tpu.reciprocal %81 {approx = true} : vector<1x1xf32> -> vector<1x1xf32>
    %83 = arith.mulf %79, %82 : vector<1x1xf32>
    %cst_36 = arith.constant dense<0.000000e+00> : vector<1x8xf32>
    %84 = tpu.matmul %83, %74, %cst_36 {dimension_numbers = #tpu.dot_dimension_numbers<[1], [0], [0], [1], [0, 0, 1, 1], [], []>} : vector<1x1xf32>, vector<1x8xf32>, vector<1x8xf32> -> vector<1x8xf32>
    %c8 = arith.constant 8 : index
    %c0_37 = arith.constant 0 : index
    %85 = vector.load %arg5[%c8, %c0_37] : memref<32x32xbf16, #tpu.memory_space<vmem>>, vector<8x32xbf16>
    %86 = arith.extf %85 : vector<8x32xbf16> to vector<8x32xf32>
    %cst_38 = arith.constant dense<0.000000e+00> : vector<1x32xf32>
    %87 = tpu.matmul %84, %86, %cst_38 {dimension_numbers = #tpu.dot_dimension_numbers<[1], [0], [0], [1], [0, 0, 1, 1], [], []>} : vector<1x8xf32>, vector<8x32xf32>, vector<1x32xf32> -> vector<1x32xf32>
    %88 = arith.addf %69, %87 : vector<1x32xf32>
    %89 = vector.extract_strided_slice %49 {offsets = [0, 16], sizes = [1, 8], strides = [1, 1]} : vector<1x96xf32> to vector<1x8xf32>
    %cst_39 = arith.constant 0.353553385 : f32
    %90 = vector.broadcast %cst_39 : f32 to vector<1x8xf32>
    %91 = arith.mulf %89, %90 : vector<1x8xf32>
    %92 = vector.extract_strided_slice %49 {offsets = [0, 48], sizes = [1, 8], strides = [1, 1]} : vector<1x96xf32> to vector<1x8xf32>
    %93 = vector.extract_strided_slice %49 {offsets = [0, 80], sizes = [1, 8], strides = [1, 1]} : vector<1x96xf32> to vector<1x8xf32>
    %cst_40 = arith.constant dense<0.000000e+00> : vector<1x1xf32>
    %94 = tpu.matmul %91, %92, %cst_40 {dimension_numbers = #tpu.dot_dimension_numbers<[1], [1], [0], [0], [0, 0, 1, 0], [], []>} : vector<1x8xf32>, vector<1x8xf32>, vector<1x1xf32> -> vector<1x1xf32>
    %cst_41 = arith.constant dense<0xFF800000> : vector<1xf32>
    %95 = vector.multi_reduction <maximumf>, %94, %cst_41 [1] : vector<1x1xf32> to vector<1xf32>
    %96 = vector.shape_cast %95 : vector<1xf32> to vector<1x1xf32>
    %97 = arith.subf %94, %96 : vector<1x1xf32>
    %98 = math.exp %97 : vector<1x1xf32>
    %cst_42 = arith.constant dense<0.000000e+00> : vector<1xf32>
    %99 = vector.multi_reduction <add>, %98, %cst_42 [1] : vector<1x1xf32> to vector<1xf32>
    %100 = vector.shape_cast %99 : vector<1xf32> to vector<1x1xf32>
    %101 = tpu.reciprocal %100 {approx = true} : vector<1x1xf32> -> vector<1x1xf32>
    %102 = arith.mulf %98, %101 : vector<1x1xf32>
    %cst_43 = arith.constant dense<0.000000e+00> : vector<1x8xf32>
    %103 = tpu.matmul %102, %93, %cst_43 {dimension_numbers = #tpu.dot_dimension_numbers<[1], [0], [0], [1], [0, 0, 1, 1], [], []>} : vector<1x1xf32>, vector<1x8xf32>, vector<1x8xf32> -> vector<1x8xf32>
    %c16 = arith.constant 16 : index
    %c0_44 = arith.constant 0 : index
    %104 = vector.load %arg5[%c16, %c0_44] : memref<32x32xbf16, #tpu.memory_space<vmem>>, vector<8x32xbf16>
    %105 = arith.extf %104 : vector<8x32xbf16> to vector<8x32xf32>
    %cst_45 = arith.constant dense<0.000000e+00> : vector<1x32xf32>
    %106 = tpu.matmul %103, %105, %cst_45 {dimension_numbers = #tpu.dot_dimension_numbers<[1], [0], [0], [1], [0, 0, 1, 1], [], []>} : vector<1x8xf32>, vector<8x32xf32>, vector<1x32xf32> -> vector<1x32xf32>
    %107 = arith.addf %88, %106 : vector<1x32xf32>
    %108 = vector.extract_strided_slice %49 {offsets = [0, 24], sizes = [1, 8], strides = [1, 1]} : vector<1x96xf32> to vector<1x8xf32>
    %cst_46 = arith.constant 0.353553385 : f32
    %109 = vector.broadcast %cst_46 : f32 to vector<1x8xf32>
    %110 = arith.mulf %108, %109 : vector<1x8xf32>
    %111 = vector.extract_strided_slice %49 {offsets = [0, 56], sizes = [1, 8], strides = [1, 1]} : vector<1x96xf32> to vector<1x8xf32>
    %112 = vector.extract_strided_slice %49 {offsets = [0, 88], sizes = [1, 8], strides = [1, 1]} : vector<1x96xf32> to vector<1x8xf32>
    %cst_47 = arith.constant dense<0.000000e+00> : vector<1x1xf32>
    %113 = tpu.matmul %110, %111, %cst_47 {dimension_numbers = #tpu.dot_dimension_numbers<[1], [1], [0], [0], [0, 0, 1, 0], [], []>} : vector<1x8xf32>, vector<1x8xf32>, vector<1x1xf32> -> vector<1x1xf32>
    %cst_48 = arith.constant dense<0xFF800000> : vector<1xf32>
    %114 = vector.multi_reduction <maximumf>, %113, %cst_48 [1] : vector<1x1xf32> to vector<1xf32>
    %115 = vector.shape_cast %114 : vector<1xf32> to vector<1x1xf32>
    %116 = arith.subf %113, %115 : vector<1x1xf32>
    %117 = math.exp %116 : vector<1x1xf32>
    %cst_49 = arith.constant dense<0.000000e+00> : vector<1xf32>
    %118 = vector.multi_reduction <add>, %117, %cst_49 [1] : vector<1x1xf32> to vector<1xf32>
    %119 = vector.shape_cast %118 : vector<1xf32> to vector<1x1xf32>
    %120 = tpu.reciprocal %119 {approx = true} : vector<1x1xf32> -> vector<1x1xf32>
    %121 = arith.mulf %117, %120 : vector<1x1xf32>
    %cst_50 = arith.constant dense<0.000000e+00> : vector<1x8xf32>
    %122 = tpu.matmul %121, %112, %cst_50 {dimension_numbers = #tpu.dot_dimension_numbers<[1], [0], [0], [1], [0, 0, 1, 1], [], []>} : vector<1x1xf32>, vector<1x8xf32>, vector<1x8xf32> -> vector<1x8xf32>
    %c24 = arith.constant 24 : index
    %c0_51 = arith.constant 0 : index
    %123 = vector.load %arg5[%c24, %c0_51] : memref<32x32xbf16, #tpu.memory_space<vmem>>, vector<8x32xbf16>
    %124 = arith.extf %123 : vector<8x32xbf16> to vector<8x32xf32>
    %cst_52 = arith.constant dense<0.000000e+00> : vector<1x32xf32>
    %125 = tpu.matmul %122, %124, %cst_52 {dimension_numbers = #tpu.dot_dimension_numbers<[1], [0], [0], [1], [0, 0, 1, 1], [], []>} : vector<1x8xf32>, vector<8x32xf32>, vector<1x32xf32> -> vector<1x32xf32>
    %126 = arith.addf %107, %125 : vector<1x32xf32>
    %c0_53 = arith.constant 0 : index
    %c0_54 = arith.constant 0 : index
    %127 = vector.load %arg6[%c0_53, %c0_54] : memref<1x32xf32, #tpu.memory_space<vmem>>, vector<1x32xf32>
    %128 = arith.addf %126, %127 : vector<1x32xf32>
    %129 = arith.mulf %21, %128 : vector<1x32xf32>
    %130 = arith.addf %2, %129 : vector<1x32xf32>
    %cst_55 = arith.constant dense<0.000000e+00> : vector<1xf32>
    %131 = vector.multi_reduction <add>, %130, %cst_55 [1] : vector<1x32xf32> to vector<1xf32>
    %132 = vector.shape_cast %131 : vector<1xf32> to vector<1x1xf32>
    %cst_56 = arith.constant 3.200000e+01 : f32
    %133 = vector.broadcast %cst_56 : f32 to vector<1x1xf32>
    %134 = arith.divf %132, %133 : vector<1x1xf32>
    %135 = vector.broadcast %134 : vector<1x1xf32> to vector<1x32xf32>
    %136 = arith.subf %130, %135 : vector<1x32xf32>
    %137 = arith.mulf %136, %136 : vector<1x32xf32>
    %cst_57 = arith.constant dense<0.000000e+00> : vector<1xf32>
    %138 = vector.multi_reduction <add>, %137, %cst_57 [1] : vector<1x32xf32> to vector<1xf32>
    %139 = vector.shape_cast %138 : vector<1xf32> to vector<1x1xf32>
    %cst_58 = arith.constant 3.200000e+01 : f32
    %140 = vector.broadcast %cst_58 : f32 to vector<1x1xf32>
    %141 = arith.divf %139, %140 : vector<1x1xf32>
    %cst_59 = arith.constant 9.99999997E-7 : f32
    %142 = vector.broadcast %cst_59 : f32 to vector<1x1xf32>
    %143 = arith.addf %141, %142 : vector<1x1xf32>
    %144 = math.rsqrt %143 : vector<1x1xf32>
    %145 = vector.broadcast %144 : vector<1x1xf32> to vector<1x32xf32>
    %146 = arith.mulf %136, %145 : vector<1x32xf32>
    %cst_60 = arith.constant 1.000000e+00 : f32
    %147 = vector.broadcast %cst_60 : f32 to vector<1x32xf32>
    %148 = arith.addf %147, %23 : vector<1x32xf32>
    %149 = arith.mulf %146, %148 : vector<1x32xf32>
    %150 = arith.addf %149, %22 : vector<1x32xf32>
    %151 = arith.truncf %150 : vector<1x32xf32> to vector<1x32xbf16>
    %c0_61 = arith.constant 0 : index
    %c0_62 = arith.constant 0 : index
    %152 = vector.load %arg7[%c0_61, %c0_62] : memref<32x128xbf16, #tpu.memory_space<vmem>>, vector<32x128xbf16>
    %cst_63 = arith.constant dense<0.000000e+00> : vector<1x128xf32>
    %153 = tpu.matmul %151, %152, %cst_63 {dimension_numbers = #tpu.dot_dimension_numbers<[1], [0], [0], [1], [0, 0, 1, 1], [], []>} : vector<1x32xbf16>, vector<32x128xbf16>, vector<1x128xf32> -> vector<1x128xf32>
    %c0_64 = arith.constant 0 : index
    %c0_65 = arith.constant 0 : index
    %154 = vector.load %arg8[%c0_64, %c0_65] : memref<1x128xf32, #tpu.memory_space<vmem>>, vector<1x128xf32>
    %155 = arith.addf %153, %154 : vector<1x128xf32>
    %cst_66 = arith.constant 5.000000e-01 : f32
    %156 = vector.broadcast %cst_66 : f32 to vector<1x128xf32>
    %157 = arith.mulf %156, %155 : vector<1x128xf32>
    %cst_67 = arith.constant 4.471500e-02 : f32
    %158 = vector.broadcast %cst_67 : f32 to vector<1x128xf32>
    %159 = arith.mulf %158, %155 : vector<1x128xf32>
    %160 = arith.mulf %159, %155 : vector<1x128xf32>
    %161 = arith.mulf %160, %155 : vector<1x128xf32>
    %162 = arith.addf %155, %161 : vector<1x128xf32>
    %cst_68 = arith.constant 0.797884583 : f32
    %163 = vector.broadcast %cst_68 : f32 to vector<1x128xf32>
    %164 = arith.mulf %163, %162 : vector<1x128xf32>
    %165 = math.tanh %164 : vector<1x128xf32>
    %cst_69 = arith.constant 1.000000e+00 : f32
    %166 = vector.broadcast %cst_69 : f32 to vector<1x128xf32>
    %167 = arith.addf %166, %165 : vector<1x128xf32>
    %168 = arith.mulf %157, %167 : vector<1x128xf32>
    %169 = arith.truncf %168 : vector<1x128xf32> to vector<1x128xbf16>
    %c0_70 = arith.constant 0 : index
    %c0_71 = arith.constant 0 : index
    %170 = vector.load %arg9[%c0_70, %c0_71] : memref<128x32xbf16, #tpu.memory_space<vmem>>, vector<128x32xbf16>
    %cst_72 = arith.constant dense<0.000000e+00> : vector<1x32xf32>
    %171 = tpu.matmul %169, %170, %cst_72 {dimension_numbers = #tpu.dot_dimension_numbers<[1], [0], [0], [1], [0, 0, 1, 1], [], []>} : vector<1x128xbf16>, vector<128x32xbf16>, vector<1x32xf32> -> vector<1x32xf32>
    %c0_73 = arith.constant 0 : index
    %c0_74 = arith.constant 0 : index
    %172 = vector.load %arg10[%c0_73, %c0_74] : memref<1x32xf32, #tpu.memory_space<vmem>>, vector<1x32xf32>
    %173 = arith.addf %171, %172 : vector<1x32xf32>
    %174 = arith.mulf %24, %173 : vector<1x32xf32>
    %175 = arith.addf %130, %174 : vector<1x32xf32>
    %176 = arith.truncf %175 : vector<1x32xf32> to vector<1x32xbf16>
    %c0_75 = arith.constant 0 : index
    %c0_76 = arith.constant 0 : index
    %c0_77 = arith.constant 0 : index
    %177 = vector.load %arg13[%c0_75, %c0_76, %c0_77] : memref<2x1x32xbf16, #tpu.memory_space<vmem>>, vector<1x1x32xbf16>
    %178 = vector.shape_cast %177 : vector<1x1x32xbf16> to vector<1x32xbf16>
    %179 = vector.shape_cast %176 : vector<1x32xbf16> to vector<1x1x32xbf16>
    tpu.vector_store %arg13[%c0_75, %c0_76, %c0_77], %179 {strides = array<i32>} : memref<2x1x32xbf16, #tpu.memory_space<vmem>>, vector<1x1x32xbf16>,
    %c1 = arith.constant 1 : index
    %c0_78 = arith.constant 0 : index
    %c0_79 = arith.constant 0 : index
    %180 = vector.load %arg1[%c1, %c0_78, %c0_79] : memref<2x1x32xbf16, #tpu.memory_space<vmem>>, vector<1x1x32xbf16>
    %181 = vector.shape_cast %180 : vector<1x1x32xbf16> to vector<1x32xbf16>
    %182 = arith.extf %181 : vector<1x32xbf16> to vector<1x32xf32>
    %c1_80 = arith.constant 1 : index
    %c0_81 = arith.constant 0 : index
    %c0_82 = arith.constant 0 : index
    %183 = vector.load %arg2[%c1_80, %c0_81, %c0_82] : memref<2x1x32xbf16, #tpu.memory_space<vmem>>, vector<1x1x32xbf16>
    %184 = vector.shape_cast %183 : vector<1x1x32xbf16> to vector<1x32xbf16>
    %185 = arith.extf %184 : vector<1x32xbf16> to vector<1x32xf32>
    %cst_83 = arith.constant 0.000000e+00 : f32
    %186 = vector.broadcast %cst_83 : f32 to vector<1x32xf32>
    %187 = arith.subf %186, %185 : vector<1x32xf32>
    %188 = math.exp %187 : vector<1x32xf32>
    %cst_84 = arith.constant 1.000000e+00 : f32
    %189 = vector.broadcast %cst_84 : f32 to vector<1x32xf32>
    %190 = arith.addf %189, %188 : vector<1x32xf32>
    %cst_85 = arith.constant 1.000000e+00 : f32
    %191 = vector.broadcast %cst_85 : f32 to vector<1x32xf32>
    %192 = arith.divf %191, %190 : vector<1x32xf32>
    %193 = arith.mulf %185, %192 : vector<1x32xf32>
    %194 = arith.truncf %193 : vector<1x32xf32> to vector<1x32xbf16>
    %c0_86 = arith.constant 0 : index
    %c0_87 = arith.constant 0 : index
    %195 = vector.load %arg11[%c0_86, %c0_87] : memref<32x192xbf16, #tpu.memory_space<vmem>>, vector<32x192xbf16>
    %cst_88 = arith.constant dense<0.000000e+00> : vector<1x192xf32>
    %196 = tpu.matmul %194, %195, %cst_88 {dimension_numbers = #tpu.dot_dimension_numbers<[1], [0], [0], [1], [0, 0, 1, 1], [], []>} : vector<1x32xbf16>, vector<32x192xbf16>, vector<1x192xf32> -> vector<1x192xf32>
    %c0_89 = arith.constant 0 : index
    %c0_90 = arith.constant 0 : index
    %197 = vector.load %arg12[%c0_89, %c0_90] : memref<1x192xf32, #tpu.memory_space<vmem>>, vector<1x192xf32>
    %198 = arith.addf %196, %197 : vector<1x192xf32>
    %199 = vector.extract_strided_slice %198 {offsets = [0, 0], sizes = [1, 32], strides = [1, 1]} : vector<1x192xf32> to vector<1x32xf32>
    %200 = vector.extract_strided_slice %198 {offsets = [0, 32], sizes = [1, 32], strides = [1, 1]} : vector<1x192xf32> to vector<1x32xf32>
    %201 = vector.extract_strided_slice %198 {offsets = [0, 64], sizes = [1, 32], strides = [1, 1]} : vector<1x192xf32> to vector<1x32xf32>
    %202 = vector.extract_strided_slice %198 {offsets = [0, 96], sizes = [1, 32], strides = [1, 1]} : vector<1x192xf32> to vector<1x32xf32>
    %203 = vector.extract_strided_slice %198 {offsets = [0, 128], sizes = [1, 32], strides = [1, 1]} : vector<1x192xf32> to vector<1x32xf32>
    %204 = vector.extract_strided_slice %198 {offsets = [0, 160], sizes = [1, 32], strides = [1, 1]} : vector<1x192xf32> to vector<1x32xf32>
    %cst_91 = arith.constant dense<0.000000e+00> : vector<1xf32>
    %205 = vector.multi_reduction <add>, %182, %cst_91 [1] : vector<1x32xf32> to vector<1xf32>
    %206 = vector.shape_cast %205 : vector<1xf32> to vector<1x1xf32>
    %cst_92 = arith.constant 3.200000e+01 : f32
    %207 = vector.broadcast %cst_92 : f32 to vector<1x1xf32>
    %208 = arith.divf %206, %207 : vector<1x1xf32>
    %209 = vector.broadcast %208 : vector<1x1xf32> to vector<1x32xf32>
    %210 = arith.subf %182, %209 : vector<1x32xf32>
    %211 = arith.mulf %210, %210 : vector<1x32xf32>
    %cst_93 = arith.constant dense<0.000000e+00> : vector<1xf32>
    %212 = vector.multi_reduction <add>, %211, %cst_93 [1] : vector<1x32xf32> to vector<1xf32>
    %213 = vector.shape_cast %212 : vector<1xf32> to vector<1x1xf32>
    %cst_94 = arith.constant 3.200000e+01 : f32
    %214 = vector.broadcast %cst_94 : f32 to vector<1x1xf32>
    %215 = arith.divf %213, %214 : vector<1x1xf32>
    %cst_95 = arith.constant 9.99999997E-7 : f32
    %216 = vector.broadcast %cst_95 : f32 to vector<1x1xf32>
    %217 = arith.addf %215, %216 : vector<1x1xf32>
    %218 = math.rsqrt %217 : vector<1x1xf32>
    %219 = vector.broadcast %218 : vector<1x1xf32> to vector<1x32xf32>
    %220 = arith.mulf %210, %219 : vector<1x32xf32>
    %cst_96 = arith.constant 1.000000e+00 : f32
    %221 = vector.broadcast %cst_96 : f32 to vector<1x32xf32>
    %222 = arith.addf %221, %200 : vector<1x32xf32>
    %223 = arith.mulf %220, %222 : vector<1x32xf32>
    %224 = arith.addf %223, %199 : vector<1x32xf32>
    %225 = arith.truncf %224 : vector<1x32xf32> to vector<1x32xbf16>
    %c0_97 = arith.constant 0 : index
    %c0_98 = arith.constant 0 : index
    %226 = vector.load %arg3[%c0_97, %c0_98] : memref<32x96xbf16, #tpu.memory_space<vmem>>, vector<32x96xbf16>
    %cst_99 = arith.constant dense<0.000000e+00> : vector<1x96xf32>
    %227 = tpu.matmul %225, %226, %cst_99 {dimension_numbers = #tpu.dot_dimension_numbers<[1], [0], [0], [1], [0, 0, 1, 1], [], []>} : vector<1x32xbf16>, vector<32x96xbf16>, vector<1x96xf32> -> vector<1x96xf32>
    %c0_100 = arith.constant 0 : index
    %c0_101 = arith.constant 0 : index
    %228 = vector.load %arg4[%c0_100, %c0_101] : memref<1x96xf32, #tpu.memory_space<vmem>>, vector<1x96xf32>
    %229 = arith.addf %227, %228 : vector<1x96xf32>
    %cst_102 = arith.constant 0.000000e+00 : f32
    %230 = vector.broadcast %cst_102 : f32 to vector<1x32xf32>
    %231 = vector.extract_strided_slice %229 {offsets = [0, 0], sizes = [1, 8], strides = [1, 1]} : vector<1x96xf32> to vector<1x8xf32>
    %cst_103 = arith.constant 0.353553385 : f32
    %232 = vector.broadcast %cst_103 : f32 to vector<1x8xf32>
    %233 = arith.mulf %231, %232 : vector<1x8xf32>
    %234 = vector.extract_strided_slice %229 {offsets = [0, 32], sizes = [1, 8], strides = [1, 1]} : vector<1x96xf32> to vector<1x8xf32>
    %235 = vector.extract_strided_slice %229 {offsets = [0, 64], sizes = [1, 8], strides = [1, 1]} : vector<1x96xf32> to vector<1x8xf32>
    %cst_104 = arith.constant dense<0.000000e+00> : vector<1x1xf32>
    %236 = tpu.matmul %233, %234, %cst_104 {dimension_numbers = #tpu.dot_dimension_numbers<[1], [1], [0], [0], [0, 0, 1, 0], [], []>} : vector<1x8xf32>, vector<1x8xf32>, vector<1x1xf32> -> vector<1x1xf32>
    %cst_105 = arith.constant dense<0xFF800000> : vector<1xf32>
    %237 = vector.multi_reduction <maximumf>, %236, %cst_105 [1] : vector<1x1xf32> to vector<1xf32>
    %238 = vector.shape_cast %237 : vector<1xf32> to vector<1x1xf32>
    %239 = arith.subf %236, %238 : vector<1x1xf32>
    %240 = math.exp %239 : vector<1x1xf32>
    %cst_106 = arith.constant dense<0.000000e+00> : vector<1xf32>
    %241 = vector.multi_reduction <add>, %240, %cst_106 [1] : vector<1x1xf32> to vector<1xf32>
    %242 = vector.shape_cast %241 : vector<1xf32> to vector<1x1xf32>
    %243 = tpu.reciprocal %242 {approx = true} : vector<1x1xf32> -> vector<1x1xf32>
    %244 = arith.mulf %240, %243 : vector<1x1xf32>
    %cst_107 = arith.constant dense<0.000000e+00> : vector<1x8xf32>
    %245 = tpu.matmul %244, %235, %cst_107 {dimension_numbers = #tpu.dot_dimension_numbers<[1], [0], [0], [1], [0, 0, 1, 1], [], []>} : vector<1x1xf32>, vector<1x8xf32>, vector<1x8xf32> -> vector<1x8xf32>
    %c0_108 = arith.constant 0 : index
    %c0_109 = arith.constant 0 : index
    %246 = vector.load %arg5[%c0_108, %c0_109] : memref<32x32xbf16, #tpu.memory_space<vmem>>, vector<8x32xbf16>
    %247 = arith.extf %246 : vector<8x32xbf16> to vector<8x32xf32>
    %cst_110 = arith.constant dense<0.000000e+00> : vector<1x32xf32>
    %248 = tpu.matmul %245, %247, %cst_110 {dimension_numbers = #tpu.dot_dimension_numbers<[1], [0], [0], [1], [0, 0, 1, 1], [], []>} : vector<1x8xf32>, vector<8x32xf32>, vector<1x32xf32> -> vector<1x32xf32>
    %249 = arith.addf %230, %248 : vector<1x32xf32>
    %250 = vector.extract_strided_slice %229 {offsets = [0, 8], sizes = [1, 8], strides = [1, 1]} : vector<1x96xf32> to vector<1x8xf32>
    %cst_111 = arith.constant 0.353553385 : f32
    %251 = vector.broadcast %cst_111 : f32 to vector<1x8xf32>
    %252 = arith.mulf %250, %251 : vector<1x8xf32>
    %253 = vector.extract_strided_slice %229 {offsets = [0, 40], sizes = [1, 8], strides = [1, 1]} : vector<1x96xf32> to vector<1x8xf32>
    %254 = vector.extract_strided_slice %229 {offsets = [0, 72], sizes = [1, 8], strides = [1, 1]} : vector<1x96xf32> to vector<1x8xf32>
    %cst_112 = arith.constant dense<0.000000e+00> : vector<1x1xf32>
    %255 = tpu.matmul %252, %253, %cst_112 {dimension_numbers = #tpu.dot_dimension_numbers<[1], [1], [0], [0], [0, 0, 1, 0], [], []>} : vector<1x8xf32>, vector<1x8xf32>, vector<1x1xf32> -> vector<1x1xf32>
    %cst_113 = arith.constant dense<0xFF800000> : vector<1xf32>
    %256 = vector.multi_reduction <maximumf>, %255, %cst_113 [1] : vector<1x1xf32> to vector<1xf32>
    %257 = vector.shape_cast %256 : vector<1xf32> to vector<1x1xf32>
    %258 = arith.subf %255, %257 : vector<1x1xf32>
    %259 = math.exp %258 : vector<1x1xf32>
    %cst_114 = arith.constant dense<0.000000e+00> : vector<1xf32>
    %260 = vector.multi_reduction <add>, %259, %cst_114 [1] : vector<1x1xf32> to vector<1xf32>
    %261 = vector.shape_cast %260 : vector<1xf32> to vector<1x1xf32>
    %262 = tpu.reciprocal %261 {approx = true} : vector<1x1xf32> -> vector<1x1xf32>
    %263 = arith.mulf %259, %262 : vector<1x1xf32>
    %cst_115 = arith.constant dense<0.000000e+00> : vector<1x8xf32>
    %264 = tpu.matmul %263, %254, %cst_115 {dimension_numbers = #tpu.dot_dimension_numbers<[1], [0], [0], [1], [0, 0, 1, 1], [], []>} : vector<1x1xf32>, vector<1x8xf32>, vector<1x8xf32> -> vector<1x8xf32>
    %c8_116 = arith.constant 8 : index
    %c0_117 = arith.constant 0 : index
    %265 = vector.load %arg5[%c8_116, %c0_117] : memref<32x32xbf16, #tpu.memory_space<vmem>>, vector<8x32xbf16>
    %266 = arith.extf %265 : vector<8x32xbf16> to vector<8x32xf32>
    %cst_118 = arith.constant dense<0.000000e+00> : vector<1x32xf32>
    %267 = tpu.matmul %264, %266, %cst_118 {dimension_numbers = #tpu.dot_dimension_numbers<[1], [0], [0], [1], [0, 0, 1, 1], [], []>} : vector<1x8xf32>, vector<8x32xf32>, vector<1x32xf32> -> vector<1x32xf32>
    %268 = arith.addf %249, %267 : vector<1x32xf32>
    %269 = vector.extract_strided_slice %229 {offsets = [0, 16], sizes = [1, 8], strides = [1, 1]} : vector<1x96xf32> to vector<1x8xf32>
    %cst_119 = arith.constant 0.353553385 : f32
    %270 = vector.broadcast %cst_119 : f32 to vector<1x8xf32>
    %271 = arith.mulf %269, %270 : vector<1x8xf32>
    %272 = vector.extract_strided_slice %229 {offsets = [0, 48], sizes = [1, 8], strides = [1, 1]} : vector<1x96xf32> to vector<1x8xf32>
    %273 = vector.extract_strided_slice %229 {offsets = [0, 80], sizes = [1, 8], strides = [1, 1]} : vector<1x96xf32> to vector<1x8xf32>
    %cst_120 = arith.constant dense<0.000000e+00> : vector<1x1xf32>
    %274 = tpu.matmul %271, %272, %cst_120 {dimension_numbers = #tpu.dot_dimension_numbers<[1], [1], [0], [0], [0, 0, 1, 0], [], []>} : vector<1x8xf32>, vector<1x8xf32>, vector<1x1xf32> -> vector<1x1xf32>
    %cst_121 = arith.constant dense<0xFF800000> : vector<1xf32>
    %275 = vector.multi_reduction <maximumf>, %274, %cst_121 [1] : vector<1x1xf32> to vector<1xf32>
    %276 = vector.shape_cast %275 : vector<1xf32> to vector<1x1xf32>
    %277 = arith.subf %274, %276 : vector<1x1xf32>
    %278 = math.exp %277 : vector<1x1xf32>
    %cst_122 = arith.constant dense<0.000000e+00> : vector<1xf32>
    %279 = vector.multi_reduction <add>, %278, %cst_122 [1] : vector<1x1xf32> to vector<1xf32>
    %280 = vector.shape_cast %279 : vector<1xf32> to vector<1x1xf32>
    %281 = tpu.reciprocal %280 {approx = true} : vector<1x1xf32> -> vector<1x1xf32>
    %282 = arith.mulf %278, %281 : vector<1x1xf32>
    %cst_123 = arith.constant dense<0.000000e+00> : vector<1x8xf32>
    %283 = tpu.matmul %282, %273, %cst_123 {dimension_numbers = #tpu.dot_dimension_numbers<[1], [0], [0], [1], [0, 0, 1, 1], [], []>} : vector<1x1xf32>, vector<1x8xf32>, vector<1x8xf32> -> vector<1x8xf32>
    %c16_124 = arith.constant 16 : index
    %c0_125 = arith.constant 0 : index
    %284 = vector.load %arg5[%c16_124, %c0_125] : memref<32x32xbf16, #tpu.memory_space<vmem>>, vector<8x32xbf16>
    %285 = arith.extf %284 : vector<8x32xbf16> to vector<8x32xf32>
    %cst_126 = arith.constant dense<0.000000e+00> : vector<1x32xf32>
    %286 = tpu.matmul %283, %285, %cst_126 {dimension_numbers = #tpu.dot_dimension_numbers<[1], [0], [0], [1], [0, 0, 1, 1], [], []>} : vector<1x8xf32>, vector<8x32xf32>, vector<1x32xf32> -> vector<1x32xf32>
    %287 = arith.addf %268, %286 : vector<1x32xf32>
    %288 = vector.extract_strided_slice %229 {offsets = [0, 24], sizes = [1, 8], strides = [1, 1]} : vector<1x96xf32> to vector<1x8xf32>
    %cst_127 = arith.constant 0.353553385 : f32
    %289 = vector.broadcast %cst_127 : f32 to vector<1x8xf32>
    %290 = arith.mulf %288, %289 : vector<1x8xf32>
    %291 = vector.extract_strided_slice %229 {offsets = [0, 56], sizes = [1, 8], strides = [1, 1]} : vector<1x96xf32> to vector<1x8xf32>
    %292 = vector.extract_strided_slice %229 {offsets = [0, 88], sizes = [1, 8], strides = [1, 1]} : vector<1x96xf32> to vector<1x8xf32>
    %cst_128 = arith.constant dense<0.000000e+00> : vector<1x1xf32>
    %293 = tpu.matmul %290, %291, %cst_128 {dimension_numbers = #tpu.dot_dimension_numbers<[1], [1], [0], [0], [0, 0, 1, 0], [], []>} : vector<1x8xf32>, vector<1x8xf32>, vector<1x1xf32> -> vector<1x1xf32>
    %cst_129 = arith.constant dense<0xFF800000> : vector<1xf32>
    %294 = vector.multi_reduction <maximumf>, %293, %cst_129 [1] : vector<1x1xf32> to vector<1xf32>
    %295 = vector.shape_cast %294 : vector<1xf32> to vector<1x1xf32>
    %296 = arith.subf %293, %295 : vector<1x1xf32>
    %297 = math.exp %296 : vector<1x1xf32>
    %cst_130 = arith.constant dense<0.000000e+00> : vector<1xf32>
    %298 = vector.multi_reduction <add>, %297, %cst_130 [1] : vector<1x1xf32> to vector<1xf32>
    %299 = vector.shape_cast %298 : vector<1xf32> to vector<1x1xf32>
    %300 = tpu.reciprocal %299 {approx = true} : vector<1x1xf32> -> vector<1x1xf32>
    %301 = arith.mulf %297, %300 : vector<1x1xf32>
    %cst_131 = arith.constant dense<0.000000e+00> : vector<1x8xf32>
    %302 = tpu.matmul %301, %292, %cst_131 {dimension_numbers = #tpu.dot_dimension_numbers<[1], [0], [0], [1], [0, 0, 1, 1], [], []>} : vector<1x1xf32>, vector<1x8xf32>, vector<1x8xf32> -> vector<1x8xf32>
    %c24_132 = arith.constant 24 : index
    %c0_133 = arith.constant 0 : index
    %303 = vector.load %arg5[%c24_132, %c0_133] : memref<32x32xbf16, #tpu.memory_space<vmem>>, vector<8x32xbf16>
    %304 = arith.extf %303 : vector<8x32xbf16> to vector<8x32xf32>
    %cst_134 = arith.constant dense<0.000000e+00> : vector<1x32xf32>
    %305 = tpu.matmul %302, %304, %cst_134 {dimension_numbers = #tpu.dot_dimension_numbers<[1], [0], [0], [1], [0, 0, 1, 1], [], []>} : vector<1x8xf32>, vector<8x32xf32>, vector<1x32xf32> -> vector<1x32xf32>
    %306 = arith.addf %287, %305 : vector<1x32xf32>
    %c0_135 = arith.constant 0 : index
    %c0_136 = arith.constant 0 : index
    %307 = vector.load %arg6[%c0_135, %c0_136] : memref<1x32xf32, #tpu.memory_space<vmem>>, vector<1x32xf32>
    %308 = arith.addf %306, %307 : vector<1x32xf32>
    %309 = arith.mulf %201, %308 : vector<1x32xf32>
    %310 = arith.addf %182, %309 : vector<1x32xf32>
    %cst_137 = arith.constant dense<0.000000e+00> : vector<1xf32>
    %311 = vector.multi_reduction <add>, %310, %cst_137 [1] : vector<1x32xf32> to vector<1xf32>
    %312 = vector.shape_cast %311 : vector<1xf32> to vector<1x1xf32>
    %cst_138 = arith.constant 3.200000e+01 : f32
    %313 = vector.broadcast %cst_138 : f32 to vector<1x1xf32>
    %314 = arith.divf %312, %313 : vector<1x1xf32>
    %315 = vector.broadcast %314 : vector<1x1xf32> to vector<1x32xf32>
    %316 = arith.subf %310, %315 : vector<1x32xf32>
    %317 = arith.mulf %316, %316 : vector<1x32xf32>
    %cst_139 = arith.constant dense<0.000000e+00> : vector<1xf32>
    %318 = vector.multi_reduction <add>, %317, %cst_139 [1] : vector<1x32xf32> to vector<1xf32>
    %319 = vector.shape_cast %318 : vector<1xf32> to vector<1x1xf32>
    %cst_140 = arith.constant 3.200000e+01 : f32
    %320 = vector.broadcast %cst_140 : f32 to vector<1x1xf32>
    %321 = arith.divf %319, %320 : vector<1x1xf32>
    %cst_141 = arith.constant 9.99999997E-7 : f32
    %322 = vector.broadcast %cst_141 : f32 to vector<1x1xf32>
    %323 = arith.addf %321, %322 : vector<1x1xf32>
    %324 = math.rsqrt %323 : vector<1x1xf32>
    %325 = vector.broadcast %324 : vector<1x1xf32> to vector<1x32xf32>
    %326 = arith.mulf %316, %325 : vector<1x32xf32>
    %cst_142 = arith.constant 1.000000e+00 : f32
    %327 = vector.broadcast %cst_142 : f32 to vector<1x32xf32>
    %328 = arith.addf %327, %203 : vector<1x32xf32>
    %329 = arith.mulf %326, %328 : vector<1x32xf32>
    %330 = arith.addf %329, %202 : vector<1x32xf32>
    %331 = arith.truncf %330 : vector<1x32xf32> to vector<1x32xbf16>
    %c0_143 = arith.constant 0 : index
    %c0_144 = arith.constant 0 : index
    %332 = vector.load %arg7[%c0_143, %c0_144] : memref<32x128xbf16, #tpu.memory_space<vmem>>, vector<32x128xbf16>
    %cst_145 = arith.constant dense<0.000000e+00> : vector<1x128xf32>
    %333 = tpu.matmul %331, %332, %cst_145 {dimension_numbers = #tpu.dot_dimension_numbers<[1], [0], [0], [1], [0, 0, 1, 1], [], []>} : vector<1x32xbf16>, vector<32x128xbf16>, vector<1x128xf32> -> vector<1x128xf32>
    %c0_146 = arith.constant 0 : index
    %c0_147 = arith.constant 0 : index
    %334 = vector.load %arg8[%c0_146, %c0_147] : memref<1x128xf32, #tpu.memory_space<vmem>>, vector<1x128xf32>
    %335 = arith.addf %333, %334 : vector<1x128xf32>
    %cst_148 = arith.constant 5.000000e-01 : f32
    %336 = vector.broadcast %cst_148 : f32 to vector<1x128xf32>
    %337 = arith.mulf %336, %335 : vector<1x128xf32>
    %cst_149 = arith.constant 4.471500e-02 : f32
    %338 = vector.broadcast %cst_149 : f32 to vector<1x128xf32>
    %339 = arith.mulf %338, %335 : vector<1x128xf32>
    %340 = arith.mulf %339, %335 : vector<1x128xf32>
    %341 = arith.mulf %340, %335 : vector<1x128xf32>
    %342 = arith.addf %335, %341 : vector<1x128xf32>
    %cst_150 = arith.constant 0.797884583 : f32
    %343 = vector.broadcast %cst_150 : f32 to vector<1x128xf32>
    %344 = arith.mulf %343, %342 : vector<1x128xf32>
    %345 = math.tanh %344 : vector<1x128xf32>
    %cst_151 = arith.constant 1.000000e+00 : f32
    %346 = vector.broadcast %cst_151 : f32 to vector<1x128xf32>
    %347 = arith.addf %346, %345 : vector<1x128xf32>
    %348 = arith.mulf %337, %347 : vector<1x128xf32>
    %349 = arith.truncf %348 : vector<1x128xf32> to vector<1x128xbf16>
    %c0_152 = arith.constant 0 : index
    %c0_153 = arith.constant 0 : index
    %350 = vector.load %arg9[%c0_152, %c0_153] : memref<128x32xbf16, #tpu.memory_space<vmem>>, vector<128x32xbf16>
    %cst_154 = arith.constant dense<0.000000e+00> : vector<1x32xf32>
    %351 = tpu.matmul %349, %350, %cst_154 {dimension_numbers = #tpu.dot_dimension_numbers<[1], [0], [0], [1], [0, 0, 1, 1], [], []>} : vector<1x128xbf16>, vector<128x32xbf16>, vector<1x32xf32> -> vector<1x32xf32>
    %c0_155 = arith.constant 0 : index
    %c0_156 = arith.constant 0 : index
    %352 = vector.load %arg10[%c0_155, %c0_156] : memref<1x32xf32, #tpu.memory_space<vmem>>, vector<1x32xf32>
    %353 = arith.addf %351, %352 : vector<1x32xf32>
    %354 = arith.mulf %204, %353 : vector<1x32xf32>
    %355 = arith.addf %310, %354 : vector<1x32xf32>
    %356 = arith.truncf %355 : vector<1x32xf32> to vector<1x32xbf16>
    %c1_157 = arith.constant 1 : index
    %c0_158 = arith.constant 0 : index
    %c0_159 = arith.constant 0 : index
    %357 = vector.load %arg13[%c1_157, %c0_158, %c0_159] : memref<2x1x32xbf16, #tpu.memory_space<vmem>>, vector<1x1x32xbf16>
    %358 = vector.shape_cast %357 : vector<1x1x32xbf16> to vector<1x32xbf16>
    %359 = vector.shape_cast %356 : vector<1x32xbf16> to vector<1x1x32xbf16>
    tpu.vector_store %arg13[%c1_157, %c0_158, %c0_159], %359 {strides = array<i32>} : memref<2x1x32xbf16, #tpu.memory_space<vmem>>, vector<1x1x32xbf16>,
    return
  }
  func.func @transform_0(%arg0: i32) -> (i32, i32, i32) {
    %c0_i32 = arith.constant 0 : i32
    %c0_i32_0 = arith.constant 0 : i32
    %c0_i32_1 = arith.constant 0 : i32
    return %arg0, %c0_i32, %c0_i32_0 : i32, i32, i32
  }
  func.func @transform_1(%arg0: i32) -> (i32, i32, i32) {
    %c0_i32 = arith.constant 0 : i32
    %c0_i32_0 = arith.constant 0 : i32
    %c0_i32_1 = arith.constant 0 : i32
    return %arg0, %c0_i32, %c0_i32_0 : i32, i32, i32
  }
  func.func @transform_2(%arg0: i32) -> (i32, i32) {
    %c0_i32 = arith.constant 0 : i32
    %c0_i32_0 = arith.constant 0 : i32
    %c0_i32_1 = arith.constant 0 : i32
    return %c0_i32, %c0_i32_0 : i32, i32
  }
  func.func @transform_3(%arg0: i32) -> (i32, i32) {
    %c0_i32 = arith.constant 0 : i32
    %c0_i32_0 = arith.constant 0 : i32
    %c0_i32_1 = arith.constant 0 : i32
    return %c0_i32, %c0_i32_0 : i32, i32
  }
  func.func @transform_4(%arg0: i32) -> (i32, i32) {
    %c0_i32 = arith.constant 0 : i32
    %c0_i32_0 = arith.constant 0 : i32
    %c0_i32_1 = arith.constant 0 : i32
    return %c0_i32, %c0_i32_0 : i32, i32
  }
  func.func @transform_5(%arg0: i32) -> (i32, i32) {
    %c0_i32 = arith.constant 0 : i32
    %c0_i32_0 = arith.constant 0 : i32
    %c0_i32_1 = arith.constant 0 : i32
    return %c0_i32, %c0_i32_0 : i32, i32
  }
  func.func @transform_6(%arg0: i32) -> (i32, i32) {
    %c0_i32 = arith.constant 0 : i32
    %c0_i32_0 = arith.constant 0 : i32
    %c0_i32_1 = arith.constant 0 : i32
    return %c0_i32, %c0_i32_0 : i32, i32
  }
  func.func @transform_7(%arg0: i32) -> (i32, i32) {
    %c0_i32 = arith.constant 0 : i32
    %c0_i32_0 = arith.constant 0 : i32
    %c0_i32_1 = arith.constant 0 : i32
    return %c0_i32, %c0_i32_0 : i32, i32
  }
  func.func @transform_8(%arg0: i32) -> (i32, i32) {
    %c0_i32 = arith.constant 0 : i32
    %c0_i32_0 = arith.constant 0 : i32
    %c0_i32_1 = arith.constant 0 : i32
    return %c0_i32, %c0_i32_0 : i32, i32
  }
  func.func @transform_9(%arg0: i32) -> (i32, i32) {
    %c0_i32 = arith.constant 0 : i32
    %c0_i32_0 = arith.constant 0 : i32
    %c0_i32_1 = arith.constant 0 : i32
    return %c0_i32, %c0_i32_0 : i32, i32
  }
  func.func @transform_10(%arg0: i32) -> (i32, i32) {
    %c0_i32 = arith.constant 0 : i32
    %c0_i32_0 = arith.constant 0 : i32
    %c0_i32_1 = arith.constant 0 : i32
    return %c0_i32, %c0_i32_0 : i32, i32
  }
  func.func @transform_11(%arg0: i32) -> (i32, i32) {
    %c0_i32 = arith.constant 0 : i32
    %c0_i32_0 = arith.constant 0 : i32
    %c0_i32_1 = arith.constant 0 : i32
    return %c0_i32, %c0_i32_0 : i32, i32
  }
  func.func @transform_12(%arg0: i32) -> (i32, i32, i32) {
    %c0_i32 = arith.constant 0 : i32
    %c0_i32_0 = arith.constant 0 : i32
    %c0_i32_1 = arith.constant 0 : i32
    return %arg0, %c0_i32, %c0_i32_0 : i32, i32, i32
  }
}

module attributes {stable_mosaic.version = 11 : i64} {
  func.func @_ctrl_head_kernel(%arg0: memref<16x16xf32, #tpu.memory_space<vmem>>, %arg1: memref<16x64xf32, #tpu.memory_space<vmem>>, %arg2: memref<16x64xbf16, #tpu.memory_space<vmem>>, %arg3: memref<1x64xf32, #tpu.memory_space<vmem>>, %arg4: memref<16x64xbf16, #tpu.memory_space<vmem>>) attributes {dimension_semantics = [], scalar_prefetch = 0 : i64, scratch_operands = 0 : i64, tpu.core_type = #tpu.core_type<tc>} {
    %c0 = arith.constant 0 : index
    %c0_0 = arith.constant 0 : index
    %0 = vector.load %arg0[%c0, %c0_0] : memref<16x16xf32, #tpu.memory_space<vmem>>, vector<16x16xf32>
    %1 = arith.truncf %0 : vector<16x16xf32> to vector<16x16xbf16>
    %c0_1 = arith.constant 0 : index
    %c0_2 = arith.constant 0 : index
    %2 = vector.load %arg2[%c0_1, %c0_2] : memref<16x64xbf16, #tpu.memory_space<vmem>>, vector<16x64xbf16>
    %cst = arith.constant dense<0.000000e+00> : vector<16x64xf32>
    %3 = tpu.matmul %1, %2, %cst {dimension_numbers = #tpu.dot_dimension_numbers<[1], [0], [0], [1], [0, 0, 1, 1], [], []>} : vector<16x16xbf16>, vector<16x64xbf16>, vector<16x64xf32> -> vector<16x64xf32>
    %c0_3 = arith.constant 0 : index
    %c0_4 = arith.constant 0 : index
    %4 = vector.load %arg3[%c0_3, %c0_4] : memref<1x64xf32, #tpu.memory_space<vmem>>, vector<1x64xf32>
    %5 = vector.broadcast %4 : vector<1x64xf32> to vector<16x64xf32>
    %6 = arith.addf %3, %5 : vector<16x64xf32>
    %c0_5 = arith.constant 0 : index
    %c0_6 = arith.constant 0 : index
    %7 = vector.load %arg1[%c0_5, %c0_6] : memref<16x64xf32, #tpu.memory_space<vmem>>, vector<16x64xf32>
    %8 = arith.addf %6, %7 : vector<16x64xf32>
    %9 = arith.truncf %8 : vector<16x64xf32> to vector<16x64xbf16>
    %c0_7 = arith.constant 0 : index
    %c0_8 = arith.constant 0 : index
    %10 = vector.load %arg4[%c0_7, %c0_8] : memref<16x64xbf16, #tpu.memory_space<vmem>>, vector<16x64xbf16>
    tpu.vector_store %arg4[%c0_7, %c0_8], %9 {strides = array<i32>} : memref<16x64xbf16, #tpu.memory_space<vmem>>, vector<16x64xbf16>,
    return
  }
}

module attributes {stable_mosaic.version = 11 : i64} {
  func.func @_enc_ffn_kernel(%arg0: i32, %arg1: memref<16x64xbf16, #tpu.memory_space<vmem>>, %arg2: memref<64x128xbf16, #tpu.memory_space<vmem>>, %arg3: memref<1x128xf32, #tpu.memory_space<vmem>>, %arg4: memref<128x64xbf16, #tpu.memory_space<vmem>>, %arg5: memref<1x64xf32, #tpu.memory_space<vmem>>, %arg6: memref<1x64xf32, #tpu.memory_space<vmem>>, %arg7: memref<1x64xf32, #tpu.memory_space<vmem>>, %arg8: memref<16x64xbf16, #tpu.memory_space<vmem>>) attributes {dimension_semantics = [#tpu.dimension_semantics<parallel>], iteration_bounds = array<i64: 1>, scalar_prefetch = 0 : i64, scratch_operands = 0 : i64, tpu.core_type = #tpu.core_type<tc>, window_params = [{transform_indices = @transform_0, window_bounds = array<i64: 16, 64>}, {pipeline_mode = #tpu.pipeline_mode<synchronous>, transform_indices = @transform_1, window_bounds = array<i64: 64, 128>}, {pipeline_mode = #tpu.pipeline_mode<synchronous>, transform_indices = @transform_2, window_bounds = array<i64: 1, 128>}, {pipeline_mode = #tpu.pipeline_mode<synchronous>, transform_indices = @transform_3, window_bounds = array<i64: 128, 64>}, {pipeline_mode = #tpu.pipeline_mode<synchronous>, transform_indices = @transform_4, window_bounds = array<i64: 1, 64>}, {pipeline_mode = #tpu.pipeline_mode<synchronous>, transform_indices = @transform_5, window_bounds = array<i64: 1, 64>}, {pipeline_mode = #tpu.pipeline_mode<synchronous>, transform_indices = @transform_6, window_bounds = array<i64: 1, 64>}, {transform_indices = @transform_7, window_bounds = array<i64: 16, 64>}]} {
    %c0 = arith.constant 0 : index
    %c0_0 = arith.constant 0 : index
    %0 = vector.load %arg1[%c0, %c0_0] : memref<16x64xbf16, #tpu.memory_space<vmem>>, vector<16x64xbf16>
    %1 = arith.extf %0 : vector<16x64xbf16> to vector<16x64xf32>
    %c0_1 = arith.constant 0 : index
    %c0_2 = arith.constant 0 : index
    %2 = vector.load %arg2[%c0_1, %c0_2] : memref<64x128xbf16, #tpu.memory_space<vmem>>, vector<64x128xbf16>
    %cst = arith.constant dense<0.000000e+00> : vector<16x128xf32>
    %3 = tpu.matmul %0, %2, %cst {dimension_numbers = #tpu.dot_dimension_numbers<[1], [0], [0], [1], [0, 0, 1, 1], [], []>} : vector<16x64xbf16>, vector<64x128xbf16>, vector<16x128xf32> -> vector<16x128xf32>
    %c0_3 = arith.constant 0 : index
    %c0_4 = arith.constant 0 : index
    %4 = vector.load %arg3[%c0_3, %c0_4] : memref<1x128xf32, #tpu.memory_space<vmem>>, vector<1x128xf32>
    %5 = vector.broadcast %4 : vector<1x128xf32> to vector<16x128xf32>
    %6 = arith.addf %3, %5 : vector<16x128xf32>
    %cst_5 = arith.constant 5.000000e-01 : f32
    %7 = vector.broadcast %cst_5 : f32 to vector<16x128xf32>
    %8 = arith.mulf %7, %6 : vector<16x128xf32>
    %cst_6 = arith.constant 0.707106769 : f32
    %9 = vector.broadcast %cst_6 : f32 to vector<16x128xf32>
    %10 = arith.mulf %6, %9 : vector<16x128xf32>
    %cst_7 = arith.constant 0.000000e+00 : f32
    %11 = vector.broadcast %cst_7 : f32 to vector<16x128xf32>
    %12 = arith.cmpf oge, %10, %11 : vector<16x128xf32>
    %cst_8 = arith.constant 1.000000e+00 : f32
    %cst_9 = arith.constant -1.000000e+00 : f32
    %13 = vector.broadcast %cst_8 : f32 to vector<16x128xf32>
    %14 = vector.broadcast %cst_9 : f32 to vector<16x128xf32>
    %15 = arith.select %12, %13, %14 : vector<16x128xi1>, vector<16x128xf32>
    %16 = math.absf %10 : vector<16x128xf32>
    %cst_10 = arith.constant 0.327591091 : f32
    %17 = vector.broadcast %cst_10 : f32 to vector<16x128xf32>
    %18 = arith.mulf %17, %16 : vector<16x128xf32>
    %cst_11 = arith.constant 1.000000e+00 : f32
    %19 = vector.broadcast %cst_11 : f32 to vector<16x128xf32>
    %20 = arith.addf %19, %18 : vector<16x128xf32>
    %cst_12 = arith.constant 1.000000e+00 : f32
    %21 = vector.broadcast %cst_12 : f32 to vector<16x128xf32>
    %22 = arith.divf %21, %20 : vector<16x128xf32>
    %cst_13 = arith.constant 1.06140542 : f32
    %23 = vector.broadcast %cst_13 : f32 to vector<16x128xf32>
    %24 = arith.mulf %23, %22 : vector<16x128xf32>
    %cst_14 = arith.constant -1.45315206 : f32
    %25 = vector.broadcast %cst_14 : f32 to vector<16x128xf32>
    %26 = arith.addf %24, %25 : vector<16x128xf32>
    %27 = arith.mulf %26, %22 : vector<16x128xf32>
    %cst_15 = arith.constant 1.42141378 : f32
    %28 = vector.broadcast %cst_15 : f32 to vector<16x128xf32>
    %29 = arith.addf %27, %28 : vector<16x128xf32>
    %30 = arith.mulf %29, %22 : vector<16x128xf32>
    %cst_16 = arith.constant -0.284496725 : f32
    %31 = vector.broadcast %cst_16 : f32 to vector<16x128xf32>
    %32 = arith.addf %30, %31 : vector<16x128xf32>
    %33 = arith.mulf %32, %22 : vector<16x128xf32>
    %cst_17 = arith.constant 0.254829586 : f32
    %34 = vector.broadcast %cst_17 : f32 to vector<16x128xf32>
    %35 = arith.addf %33, %34 : vector<16x128xf32>
    %36 = arith.mulf %35, %22 : vector<16x128xf32>
    %cst_18 = arith.constant 0.000000e+00 : f32
    %37 = vector.broadcast %cst_18 : f32 to vector<16x128xf32>
    %38 = arith.subf %37, %16 : vector<16x128xf32>
    %39 = arith.mulf %38, %16 : vector<16x128xf32>
    %40 = math.exp %39 : vector<16x128xf32>
    %41 = arith.mulf %36, %40 : vector<16x128xf32>
    %cst_19 = arith.constant 1.000000e+00 : f32
    %42 = vector.broadcast %cst_19 : f32 to vector<16x128xf32>
    %43 = arith.subf %42, %41 : vector<16x128xf32>
    %44 = arith.mulf %15, %43 : vector<16x128xf32>
    %cst_20 = arith.constant 1.000000e+00 : f32
    %45 = vector.broadcast %cst_20 : f32 to vector<16x128xf32>
    %46 = arith.addf %45, %44 : vector<16x128xf32>
    %47 = arith.mulf %8, %46 : vector<16x128xf32>
    %48 = arith.truncf %47 : vector<16x128xf32> to vector<16x128xbf16>
    %c0_21 = arith.constant 0 : index
    %c0_22 = arith.constant 0 : index
    %49 = vector.load %arg4[%c0_21, %c0_22] : memref<128x64xbf16, #tpu.memory_space<vmem>>, vector<128x64xbf16>
    %cst_23 = arith.constant dense<0.000000e+00> : vector<16x64xf32>
    %50 = tpu.matmul %48, %49, %cst_23 {dimension_numbers = #tpu.dot_dimension_numbers<[1], [0], [0], [1], [0, 0, 1, 1], [], []>} : vector<16x128xbf16>, vector<128x64xbf16>, vector<16x64xf32> -> vector<16x64xf32>
    %c0_24 = arith.constant 0 : index
    %c0_25 = arith.constant 0 : index
    %51 = vector.load %arg5[%c0_24, %c0_25] : memref<1x64xf32, #tpu.memory_space<vmem>>, vector<1x64xf32>
    %52 = vector.broadcast %51 : vector<1x64xf32> to vector<16x64xf32>
    %53 = arith.addf %50, %52 : vector<16x64xf32>
    %54 = arith.addf %1, %53 : vector<16x64xf32>
    %cst_26 = arith.constant dense<0.000000e+00> : vector<16xf32>
    %55 = vector.multi_reduction <add>, %54, %cst_26 [1] : vector<16x64xf32> to vector<16xf32>
    %56 = vector.shape_cast %55 : vector<16xf32> to vector<16x1xf32>
    %cst_27 = arith.constant 6.400000e+01 : f32
    %57 = vector.broadcast %cst_27 : f32 to vector<16x1xf32>
    %58 = arith.divf %56, %57 : vector<16x1xf32>
    %59 = vector.broadcast %58 : vector<16x1xf32> to vector<16x64xf32>
    %60 = arith.subf %54, %59 : vector<16x64xf32>
    %61 = arith.mulf %60, %60 : vector<16x64xf32>
    %cst_28 = arith.constant dense<0.000000e+00> : vector<16xf32>
    %62 = vector.multi_reduction <add>, %61, %cst_28 [1] : vector<16x64xf32> to vector<16xf32>
    %63 = vector.shape_cast %62 : vector<16xf32> to vector<16x1xf32>
    %cst_29 = arith.constant 6.400000e+01 : f32
    %64 = vector.broadcast %cst_29 : f32 to vector<16x1xf32>
    %65 = arith.divf %63, %64 : vector<16x1xf32>
    %cst_30 = arith.constant 9.99999974E-6 : f32
    %66 = vector.broadcast %cst_30 : f32 to vector<16x1xf32>
    %67 = arith.addf %65, %66 : vector<16x1xf32>
    %68 = math.rsqrt %67 : vector<16x1xf32>
    %69 = vector.broadcast %68 : vector<16x1xf32> to vector<16x64xf32>
    %70 = arith.mulf %60, %69 : vector<16x64xf32>
    %c0_31 = arith.constant 0 : index
    %c0_32 = arith.constant 0 : index
    %71 = vector.load %arg6[%c0_31, %c0_32] : memref<1x64xf32, #tpu.memory_space<vmem>>, vector<1x64xf32>
    %72 = vector.broadcast %71 : vector<1x64xf32> to vector<16x64xf32>
    %73 = arith.mulf %70, %72 : vector<16x64xf32>
    %c0_33 = arith.constant 0 : index
    %c0_34 = arith.constant 0 : index
    %74 = vector.load %arg7[%c0_33, %c0_34] : memref<1x64xf32, #tpu.memory_space<vmem>>, vector<1x64xf32>
    %75 = vector.broadcast %74 : vector<1x64xf32> to vector<16x64xf32>
    %76 = arith.addf %73, %75 : vector<16x64xf32>
    %77 = arith.truncf %76 : vector<16x64xf32> to vector<16x64xbf16>
    %c0_35 = arith.constant 0 : index
    %c0_36 = arith.constant 0 : index
    %78 = vector.load %arg8[%c0_35, %c0_36] : memref<16x64xbf16, #tpu.memory_space<vmem>>, vector<16x64xbf16>
    tpu.vector_store %arg8[%c0_35, %c0_36], %77 {strides = array<i32>} : memref<16x64xbf16, #tpu.memory_space<vmem>>, vector<16x64xbf16>,
    return
  }
  func.func @transform_0(%arg0: i32) -> (i32, i32) {
    %c0_i32 = arith.constant 0 : i32
    %c0_i32_0 = arith.constant 0 : i32
    return %arg0, %c0_i32 : i32, i32
  }
  func.func @transform_1(%arg0: i32) -> (i32, i32) {
    %c0_i32 = arith.constant 0 : i32
    %c0_i32_0 = arith.constant 0 : i32
    %c0_i32_1 = arith.constant 0 : i32
    return %c0_i32, %c0_i32_0 : i32, i32
  }
  func.func @transform_2(%arg0: i32) -> (i32, i32) {
    %c0_i32 = arith.constant 0 : i32
    %c0_i32_0 = arith.constant 0 : i32
    %c0_i32_1 = arith.constant 0 : i32
    return %c0_i32, %c0_i32_0 : i32, i32
  }
  func.func @transform_3(%arg0: i32) -> (i32, i32) {
    %c0_i32 = arith.constant 0 : i32
    %c0_i32_0 = arith.constant 0 : i32
    %c0_i32_1 = arith.constant 0 : i32
    return %c0_i32, %c0_i32_0 : i32, i32
  }
  func.func @transform_4(%arg0: i32) -> (i32, i32) {
    %c0_i32 = arith.constant 0 : i32
    %c0_i32_0 = arith.constant 0 : i32
    %c0_i32_1 = arith.constant 0 : i32
    return %c0_i32, %c0_i32_0 : i32, i32
  }
  func.func @transform_5(%arg0: i32) -> (i32, i32) {
    %c0_i32 = arith.constant 0 : i32
    %c0_i32_0 = arith.constant 0 : i32
    %c0_i32_1 = arith.constant 0 : i32
    return %c0_i32, %c0_i32_0 : i32, i32
  }
  func.func @transform_6(%arg0: i32) -> (i32, i32) {
    %c0_i32 = arith.constant 0 : i32
    %c0_i32_0 = arith.constant 0 : i32
    %c0_i32_1 = arith.constant 0 : i32
    return %c0_i32, %c0_i32_0 : i32, i32
  }
  func.func @transform_7(%arg0: i32) -> (i32, i32) {
    %c0_i32 = arith.constant 0 : i32
    %c0_i32_0 = arith.constant 0 : i32
    return %arg0, %c0_i32 : i32, i32
  }
}

module attributes {stable_mosaic.version = 11 : i64} {
  func.func @_enc_attn_kernel(%arg0: i32, %arg1: memref<8x2x64xbf16, #tpu.memory_space<vmem>>, %arg2: memref<64x192xbf16, #tpu.memory_space<vmem>>, %arg3: memref<1x192xf32, #tpu.memory_space<vmem>>, %arg4: memref<64x64xbf16, #tpu.memory_space<vmem>>, %arg5: memref<1x64xf32, #tpu.memory_space<vmem>>, %arg6: memref<1x64xf32, #tpu.memory_space<vmem>>, %arg7: memref<1x64xf32, #tpu.memory_space<vmem>>, %arg8: memref<8x2x64xbf16, #tpu.memory_space<vmem>>) attributes {dimension_semantics = [#tpu.dimension_semantics<parallel>], iteration_bounds = array<i64: 1>, scalar_prefetch = 0 : i64, scratch_operands = 0 : i64, tpu.core_type = #tpu.core_type<tc>, window_params = [{transform_indices = @transform_0, window_bounds = array<i64: 8, 2, 64>}, {pipeline_mode = #tpu.pipeline_mode<synchronous>, transform_indices = @transform_1, window_bounds = array<i64: 64, 192>}, {pipeline_mode = #tpu.pipeline_mode<synchronous>, transform_indices = @transform_2, window_bounds = array<i64: 1, 192>}, {pipeline_mode = #tpu.pipeline_mode<synchronous>, transform_indices = @transform_3, window_bounds = array<i64: 64, 64>}, {pipeline_mode = #tpu.pipeline_mode<synchronous>, transform_indices = @transform_4, window_bounds = array<i64: 1, 64>}, {pipeline_mode = #tpu.pipeline_mode<synchronous>, transform_indices = @transform_5, window_bounds = array<i64: 1, 64>}, {pipeline_mode = #tpu.pipeline_mode<synchronous>, transform_indices = @transform_6, window_bounds = array<i64: 1, 64>}, {transform_indices = @transform_7, window_bounds = array<i64: 8, 2, 64>}]} {
    %c0 = arith.constant 0 : index
    %c0_0 = arith.constant 0 : index
    %c0_1 = arith.constant 0 : index
    %0 = vector.load %arg1[%c0, %c0_0, %c0_1] : memref<8x2x64xbf16, #tpu.memory_space<vmem>>, vector<1x2x64xbf16>
    %1 = vector.shape_cast %0 : vector<1x2x64xbf16> to vector<2x64xbf16>
    %2 = arith.extf %1 : vector<2x64xbf16> to vector<2x64xf32>
    %c0_2 = arith.constant 0 : index
    %c0_3 = arith.constant 0 : index
    %3 = vector.load %arg2[%c0_2, %c0_3] : memref<64x192xbf16, #tpu.memory_space<vmem>>, vector<64x192xbf16>
    %cst = arith.constant dense<0.000000e+00> : vector<2x192xf32>
    %4 = tpu.matmul %1, %3, %cst {dimension_numbers = #tpu.dot_dimension_numbers<[1], [0], [0], [1], [0, 0, 1, 1], [], []>} : vector<2x64xbf16>, vector<64x192xbf16>, vector<2x192xf32> -> vector<2x192xf32>
    %c0_4 = arith.constant 0 : index
    %c0_5 = arith.constant 0 : index
    %5 = vector.load %arg3[%c0_4, %c0_5] : memref<1x192xf32, #tpu.memory_space<vmem>>, vector<1x192xf32>
    %6 = vector.broadcast %5 : vector<1x192xf32> to vector<2x192xf32>
    %7 = arith.addf %4, %6 : vector<2x192xf32>
    %cst_6 = arith.constant 0.000000e+00 : f32
    %8 = vector.broadcast %cst_6 : f32 to vector<2x64xf32>
    %9 = vector.extract_strided_slice %7 {offsets = [0, 0], sizes = [2, 16], strides = [1, 1]} : vector<2x192xf32> to vector<2x16xf32>
    %cst_7 = arith.constant 2.500000e-01 : f32
    %10 = vector.broadcast %cst_7 : f32 to vector<2x16xf32>
    %11 = arith.mulf %9, %10 : vector<2x16xf32>
    %12 = vector.extract_strided_slice %7 {offsets = [0, 64], sizes = [2, 16], strides = [1, 1]} : vector<2x192xf32> to vector<2x16xf32>
    %13 = vector.extract_strided_slice %7 {offsets = [0, 128], sizes = [2, 16], strides = [1, 1]} : vector<2x192xf32> to vector<2x16xf32>
    %cst_8 = arith.constant dense<0.000000e+00> : vector<2x2xf32>
    %14 = tpu.matmul %11, %12, %cst_8 {dimension_numbers = #tpu.dot_dimension_numbers<[1], [1], [0], [0], [0, 0, 1, 0], [], []>} : vector<2x16xf32>, vector<2x16xf32>, vector<2x2xf32> -> vector<2x2xf32>
    %cst_9 = arith.constant dense<0xFF800000> : vector<2xf32>
    %15 = vector.multi_reduction <maximumf>, %14, %cst_9 [1] : vector<2x2xf32> to vector<2xf32>
    %16 = vector.shape_cast %15 : vector<2xf32> to vector<2x1xf32>
    %17 = vector.broadcast %16 : vector<2x1xf32> to vector<2x2xf32>
    %18 = arith.subf %14, %17 : vector<2x2xf32>
    %19 = math.exp %18 : vector<2x2xf32>
    %cst_10 = arith.constant dense<0.000000e+00> : vector<2xf32>
    %20 = vector.multi_reduction <add>, %19, %cst_10 [1] : vector<2x2xf32> to vector<2xf32>
    %21 = vector.shape_cast %20 : vector<2xf32> to vector<2x1xf32>
    %22 = tpu.reciprocal %21 {approx = true} : vector<2x1xf32> -> vector<2x1xf32>
    %23 = vector.broadcast %22 : vector<2x1xf32> to vector<2x2xf32>
    %24 = arith.mulf %19, %23 : vector<2x2xf32>
    %cst_11 = arith.constant dense<0.000000e+00> : vector<2x16xf32>
    %25 = tpu.matmul %24, %13, %cst_11 {dimension_numbers = #tpu.dot_dimension_numbers<[1], [0], [0], [1], [0, 0, 1, 1], [], []>} : vector<2x2xf32>, vector<2x16xf32>, vector<2x16xf32> -> vector<2x16xf32>
    %c0_12 = arith.constant 0 : index
    %c0_13 = arith.constant 0 : index
    %26 = vector.load %arg4[%c0_12, %c0_13] : memref<64x64xbf16, #tpu.memory_space<vmem>>, vector<16x64xbf16>
    %27 = arith.extf %26 : vector<16x64xbf16> to vector<16x64xf32>
    %cst_14 = arith.constant dense<0.000000e+00> : vector<2x64xf32>
    %28 = tpu.matmul %25, %27, %cst_14 {dimension_numbers = #tpu.dot_dimension_numbers<[1], [0], [0], [1], [0, 0, 1, 1], [], []>} : vector<2x16xf32>, vector<16x64xf32>, vector<2x64xf32> -> vector<2x64xf32>
    %29 = arith.addf %8, %28 : vector<2x64xf32>
    %30 = vector.extract_strided_slice %7 {offsets = [0, 16], sizes = [2, 16], strides = [1, 1]} : vector<2x192xf32> to vector<2x16xf32>
    %cst_15 = arith.constant 2.500000e-01 : f32
    %31 = vector.broadcast %cst_15 : f32 to vector<2x16xf32>
    %32 = arith.mulf %30, %31 : vector<2x16xf32>
    %33 = vector.extract_strided_slice %7 {offsets = [0, 80], sizes = [2, 16], strides = [1, 1]} : vector<2x192xf32> to vector<2x16xf32>
    %34 = vector.extract_strided_slice %7 {offsets = [0, 144], sizes = [2, 16], strides = [1, 1]} : vector<2x192xf32> to vector<2x16xf32>
    %cst_16 = arith.constant dense<0.000000e+00> : vector<2x2xf32>
    %35 = tpu.matmul %32, %33, %cst_16 {dimension_numbers = #tpu.dot_dimension_numbers<[1], [1], [0], [0], [0, 0, 1, 0], [], []>} : vector<2x16xf32>, vector<2x16xf32>, vector<2x2xf32> -> vector<2x2xf32>
    %cst_17 = arith.constant dense<0xFF800000> : vector<2xf32>
    %36 = vector.multi_reduction <maximumf>, %35, %cst_17 [1] : vector<2x2xf32> to vector<2xf32>
    %37 = vector.shape_cast %36 : vector<2xf32> to vector<2x1xf32>
    %38 = vector.broadcast %37 : vector<2x1xf32> to vector<2x2xf32>
    %39 = arith.subf %35, %38 : vector<2x2xf32>
    %40 = math.exp %39 : vector<2x2xf32>
    %cst_18 = arith.constant dense<0.000000e+00> : vector<2xf32>
    %41 = vector.multi_reduction <add>, %40, %cst_18 [1] : vector<2x2xf32> to vector<2xf32>
    %42 = vector.shape_cast %41 : vector<2xf32> to vector<2x1xf32>
    %43 = tpu.reciprocal %42 {approx = true} : vector<2x1xf32> -> vector<2x1xf32>
    %44 = vector.broadcast %43 : vector<2x1xf32> to vector<2x2xf32>
    %45 = arith.mulf %40, %44 : vector<2x2xf32>
    %cst_19 = arith.constant dense<0.000000e+00> : vector<2x16xf32>
    %46 = tpu.matmul %45, %34, %cst_19 {dimension_numbers = #tpu.dot_dimension_numbers<[1], [0], [0], [1], [0, 0, 1, 1], [], []>} : vector<2x2xf32>, vector<2x16xf32>, vector<2x16xf32> -> vector<2x16xf32>
    %c16 = arith.constant 16 : index
    %c0_20 = arith.constant 0 : index
    %47 = vector.load %arg4[%c16, %c0_20] : memref<64x64xbf16, #tpu.memory_space<vmem>>, vector<16x64xbf16>
    %48 = arith.extf %47 : vector<16x64xbf16> to vector<16x64xf32>
    %cst_21 = arith.constant dense<0.000000e+00> : vector<2x64xf32>
    %49 = tpu.matmul %46, %48, %cst_21 {dimension_numbers = #tpu.dot_dimension_numbers<[1], [0], [0], [1], [0, 0, 1, 1], [], []>} : vector<2x16xf32>, vector<16x64xf32>, vector<2x64xf32> -> vector<2x64xf32>
    %50 = arith.addf %29, %49 : vector<2x64xf32>
    %51 = vector.extract_strided_slice %7 {offsets = [0, 32], sizes = [2, 16], strides = [1, 1]} : vector<2x192xf32> to vector<2x16xf32>
    %cst_22 = arith.constant 2.500000e-01 : f32
    %52 = vector.broadcast %cst_22 : f32 to vector<2x16xf32>
    %53 = arith.mulf %51, %52 : vector<2x16xf32>
    %54 = vector.extract_strided_slice %7 {offsets = [0, 96], sizes = [2, 16], strides = [1, 1]} : vector<2x192xf32> to vector<2x16xf32>
    %55 = vector.extract_strided_slice %7 {offsets = [0, 160], sizes = [2, 16], strides = [1, 1]} : vector<2x192xf32> to vector<2x16xf32>
    %cst_23 = arith.constant dense<0.000000e+00> : vector<2x2xf32>
    %56 = tpu.matmul %53, %54, %cst_23 {dimension_numbers = #tpu.dot_dimension_numbers<[1], [1], [0], [0], [0, 0, 1, 0], [], []>} : vector<2x16xf32>, vector<2x16xf32>, vector<2x2xf32> -> vector<2x2xf32>
    %cst_24 = arith.constant dense<0xFF800000> : vector<2xf32>
    %57 = vector.multi_reduction <maximumf>, %56, %cst_24 [1] : vector<2x2xf32> to vector<2xf32>
    %58 = vector.shape_cast %57 : vector<2xf32> to vector<2x1xf32>
    %59 = vector.broadcast %58 : vector<2x1xf32> to vector<2x2xf32>
    %60 = arith.subf %56, %59 : vector<2x2xf32>
    %61 = math.exp %60 : vector<2x2xf32>
    %cst_25 = arith.constant dense<0.000000e+00> : vector<2xf32>
    %62 = vector.multi_reduction <add>, %61, %cst_25 [1] : vector<2x2xf32> to vector<2xf32>
    %63 = vector.shape_cast %62 : vector<2xf32> to vector<2x1xf32>
    %64 = tpu.reciprocal %63 {approx = true} : vector<2x1xf32> -> vector<2x1xf32>
    %65 = vector.broadcast %64 : vector<2x1xf32> to vector<2x2xf32>
    %66 = arith.mulf %61, %65 : vector<2x2xf32>
    %cst_26 = arith.constant dense<0.000000e+00> : vector<2x16xf32>
    %67 = tpu.matmul %66, %55, %cst_26 {dimension_numbers = #tpu.dot_dimension_numbers<[1], [0], [0], [1], [0, 0, 1, 1], [], []>} : vector<2x2xf32>, vector<2x16xf32>, vector<2x16xf32> -> vector<2x16xf32>
    %c32 = arith.constant 32 : index
    %c0_27 = arith.constant 0 : index
    %68 = vector.load %arg4[%c32, %c0_27] : memref<64x64xbf16, #tpu.memory_space<vmem>>, vector<16x64xbf16>
    %69 = arith.extf %68 : vector<16x64xbf16> to vector<16x64xf32>
    %cst_28 = arith.constant dense<0.000000e+00> : vector<2x64xf32>
    %70 = tpu.matmul %67, %69, %cst_28 {dimension_numbers = #tpu.dot_dimension_numbers<[1], [0], [0], [1], [0, 0, 1, 1], [], []>} : vector<2x16xf32>, vector<16x64xf32>, vector<2x64xf32> -> vector<2x64xf32>
    %71 = arith.addf %50, %70 : vector<2x64xf32>
    %72 = vector.extract_strided_slice %7 {offsets = [0, 48], sizes = [2, 16], strides = [1, 1]} : vector<2x192xf32> to vector<2x16xf32>
    %cst_29 = arith.constant 2.500000e-01 : f32
    %73 = vector.broadcast %cst_29 : f32 to vector<2x16xf32>
    %74 = arith.mulf %72, %73 : vector<2x16xf32>
    %75 = vector.extract_strided_slice %7 {offsets = [0, 112], sizes = [2, 16], strides = [1, 1]} : vector<2x192xf32> to vector<2x16xf32>
    %76 = vector.extract_strided_slice %7 {offsets = [0, 176], sizes = [2, 16], strides = [1, 1]} : vector<2x192xf32> to vector<2x16xf32>
    %cst_30 = arith.constant dense<0.000000e+00> : vector<2x2xf32>
    %77 = tpu.matmul %74, %75, %cst_30 {dimension_numbers = #tpu.dot_dimension_numbers<[1], [1], [0], [0], [0, 0, 1, 0], [], []>} : vector<2x16xf32>, vector<2x16xf32>, vector<2x2xf32> -> vector<2x2xf32>
    %cst_31 = arith.constant dense<0xFF800000> : vector<2xf32>
    %78 = vector.multi_reduction <maximumf>, %77, %cst_31 [1] : vector<2x2xf32> to vector<2xf32>
    %79 = vector.shape_cast %78 : vector<2xf32> to vector<2x1xf32>
    %80 = vector.broadcast %79 : vector<2x1xf32> to vector<2x2xf32>
    %81 = arith.subf %77, %80 : vector<2x2xf32>
    %82 = math.exp %81 : vector<2x2xf32>
    %cst_32 = arith.constant dense<0.000000e+00> : vector<2xf32>
    %83 = vector.multi_reduction <add>, %82, %cst_32 [1] : vector<2x2xf32> to vector<2xf32>
    %84 = vector.shape_cast %83 : vector<2xf32> to vector<2x1xf32>
    %85 = tpu.reciprocal %84 {approx = true} : vector<2x1xf32> -> vector<2x1xf32>
    %86 = vector.broadcast %85 : vector<2x1xf32> to vector<2x2xf32>
    %87 = arith.mulf %82, %86 : vector<2x2xf32>
    %cst_33 = arith.constant dense<0.000000e+00> : vector<2x16xf32>
    %88 = tpu.matmul %87, %76, %cst_33 {dimension_numbers = #tpu.dot_dimension_numbers<[1], [0], [0], [1], [0, 0, 1, 1], [], []>} : vector<2x2xf32>, vector<2x16xf32>, vector<2x16xf32> -> vector<2x16xf32>
    %c48 = arith.constant 48 : index
    %c0_34 = arith.constant 0 : index
    %89 = vector.load %arg4[%c48, %c0_34] : memref<64x64xbf16, #tpu.memory_space<vmem>>, vector<16x64xbf16>
    %90 = arith.extf %89 : vector<16x64xbf16> to vector<16x64xf32>
    %cst_35 = arith.constant dense<0.000000e+00> : vector<2x64xf32>
    %91 = tpu.matmul %88, %90, %cst_35 {dimension_numbers = #tpu.dot_dimension_numbers<[1], [0], [0], [1], [0, 0, 1, 1], [], []>} : vector<2x16xf32>, vector<16x64xf32>, vector<2x64xf32> -> vector<2x64xf32>
    %92 = arith.addf %71, %91 : vector<2x64xf32>
    %c0_36 = arith.constant 0 : index
    %c0_37 = arith.constant 0 : index
    %93 = vector.load %arg5[%c0_36, %c0_37] : memref<1x64xf32, #tpu.memory_space<vmem>>, vector<1x64xf32>
    %94 = vector.broadcast %93 : vector<1x64xf32> to vector<2x64xf32>
    %95 = arith.addf %92, %94 : vector<2x64xf32>
    %96 = arith.addf %2, %95 : vector<2x64xf32>
    %cst_38 = arith.constant dense<0.000000e+00> : vector<2xf32>
    %97 = vector.multi_reduction <add>, %96, %cst_38 [1] : vector<2x64xf32> to vector<2xf32>
    %98 = vector.shape_cast %97 : vector<2xf32> to vector<2x1xf32>
    %cst_39 = arith.constant 6.400000e+01 : f32
    %99 = vector.broadcast %cst_39 : f32 to vector<2x1xf32>
    %100 = arith.divf %98, %99 : vector<2x1xf32>
    %101 = vector.broadcast %100 : vector<2x1xf32> to vector<2x64xf32>
    %102 = arith.subf %96, %101 : vector<2x64xf32>
    %103 = arith.mulf %102, %102 : vector<2x64xf32>
    %cst_40 = arith.constant dense<0.000000e+00> : vector<2xf32>
    %104 = vector.multi_reduction <add>, %103, %cst_40 [1] : vector<2x64xf32> to vector<2xf32>
    %105 = vector.shape_cast %104 : vector<2xf32> to vector<2x1xf32>
    %cst_41 = arith.constant 6.400000e+01 : f32
    %106 = vector.broadcast %cst_41 : f32 to vector<2x1xf32>
    %107 = arith.divf %105, %106 : vector<2x1xf32>
    %cst_42 = arith.constant 9.99999974E-6 : f32
    %108 = vector.broadcast %cst_42 : f32 to vector<2x1xf32>
    %109 = arith.addf %107, %108 : vector<2x1xf32>
    %110 = math.rsqrt %109 : vector<2x1xf32>
    %111 = vector.broadcast %110 : vector<2x1xf32> to vector<2x64xf32>
    %112 = arith.mulf %102, %111 : vector<2x64xf32>
    %c0_43 = arith.constant 0 : index
    %c0_44 = arith.constant 0 : index
    %113 = vector.load %arg6[%c0_43, %c0_44] : memref<1x64xf32, #tpu.memory_space<vmem>>, vector<1x64xf32>
    %114 = vector.broadcast %113 : vector<1x64xf32> to vector<2x64xf32>
    %115 = arith.mulf %112, %114 : vector<2x64xf32>
    %c0_45 = arith.constant 0 : index
    %c0_46 = arith.constant 0 : index
    %116 = vector.load %arg7[%c0_45, %c0_46] : memref<1x64xf32, #tpu.memory_space<vmem>>, vector<1x64xf32>
    %117 = vector.broadcast %116 : vector<1x64xf32> to vector<2x64xf32>
    %118 = arith.addf %115, %117 : vector<2x64xf32>
    %119 = arith.truncf %118 : vector<2x64xf32> to vector<2x64xbf16>
    %c0_47 = arith.constant 0 : index
    %c0_48 = arith.constant 0 : index
    %c0_49 = arith.constant 0 : index
    %120 = vector.load %arg8[%c0_47, %c0_48, %c0_49] : memref<8x2x64xbf16, #tpu.memory_space<vmem>>, vector<1x2x64xbf16>
    %121 = vector.shape_cast %120 : vector<1x2x64xbf16> to vector<2x64xbf16>
    %122 = vector.shape_cast %119 : vector<2x64xbf16> to vector<1x2x64xbf16>
    tpu.vector_store %arg8[%c0_47, %c0_48, %c0_49], %122 {strides = array<i32>} : memref<8x2x64xbf16, #tpu.memory_space<vmem>>, vector<1x2x64xbf16>,
    %c1 = arith.constant 1 : index
    %c0_50 = arith.constant 0 : index
    %c0_51 = arith.constant 0 : index
    %123 = vector.load %arg1[%c1, %c0_50, %c0_51] : memref<8x2x64xbf16, #tpu.memory_space<vmem>>, vector<1x2x64xbf16>
    %124 = vector.shape_cast %123 : vector<1x2x64xbf16> to vector<2x64xbf16>
    %125 = arith.extf %124 : vector<2x64xbf16> to vector<2x64xf32>
    %c0_52 = arith.constant 0 : index
    %c0_53 = arith.constant 0 : index
    %126 = vector.load %arg2[%c0_52, %c0_53] : memref<64x192xbf16, #tpu.memory_space<vmem>>, vector<64x192xbf16>
    %cst_54 = arith.constant dense<0.000000e+00> : vector<2x192xf32>
    %127 = tpu.matmul %124, %126, %cst_54 {dimension_numbers = #tpu.dot_dimension_numbers<[1], [0], [0], [1], [0, 0, 1, 1], [], []>} : vector<2x64xbf16>, vector<64x192xbf16>, vector<2x192xf32> -> vector<2x192xf32>
    %c0_55 = arith.constant 0 : index
    %c0_56 = arith.constant 0 : index
    %128 = vector.load %arg3[%c0_55, %c0_56] : memref<1x192xf32, #tpu.memory_space<vmem>>, vector<1x192xf32>
    %129 = vector.broadcast %128 : vector<1x192xf32> to vector<2x192xf32>
    %130 = arith.addf %127, %129 : vector<2x192xf32>
    %cst_57 = arith.constant 0.000000e+00 : f32
    %131 = vector.broadcast %cst_57 : f32 to vector<2x64xf32>
    %132 = vector.extract_strided_slice %130 {offsets = [0, 0], sizes = [2, 16], strides = [1, 1]} : vector<2x192xf32> to vector<2x16xf32>
    %cst_58 = arith.constant 2.500000e-01 : f32
    %133 = vector.broadcast %cst_58 : f32 to vector<2x16xf32>
    %134 = arith.mulf %132, %133 : vector<2x16xf32>
    %135 = vector.extract_strided_slice %130 {offsets = [0, 64], sizes = [2, 16], strides = [1, 1]} : vector<2x192xf32> to vector<2x16xf32>
    %136 = vector.extract_strided_slice %130 {offsets = [0, 128], sizes = [2, 16], strides = [1, 1]} : vector<2x192xf32> to vector<2x16xf32>
    %cst_59 = arith.constant dense<0.000000e+00> : vector<2x2xf32>
    %137 = tpu.matmul %134, %135, %cst_59 {dimension_numbers = #tpu.dot_dimension_numbers<[1], [1], [0], [0], [0, 0, 1, 0], [], []>} : vector<2x16xf32>, vector<2x16xf32>, vector<2x2xf32> -> vector<2x2xf32>
    %cst_60 = arith.constant dense<0xFF800000> : vector<2xf32>
    %138 = vector.multi_reduction <maximumf>, %137, %cst_60 [1] : vector<2x2xf32> to vector<2xf32>
    %139 = vector.shape_cast %138 : vector<2xf32> to vector<2x1xf32>
    %140 = vector.broadcast %139 : vector<2x1xf32> to vector<2x2xf32>
    %141 = arith.subf %137, %140 : vector<2x2xf32>
    %142 = math.exp %141 : vector<2x2xf32>
    %cst_61 = arith.constant dense<0.000000e+00> : vector<2xf32>
    %143 = vector.multi_reduction <add>, %142, %cst_61 [1] : vector<2x2xf32> to vector<2xf32>
    %144 = vector.shape_cast %143 : vector<2xf32> to vector<2x1xf32>
    %145 = tpu.reciprocal %144 {approx = true} : vector<2x1xf32> -> vector<2x1xf32>
    %146 = vector.broadcast %145 : vector<2x1xf32> to vector<2x2xf32>
    %147 = arith.mulf %142, %146 : vector<2x2xf32>
    %cst_62 = arith.constant dense<0.000000e+00> : vector<2x16xf32>
    %148 = tpu.matmul %147, %136, %cst_62 {dimension_numbers = #tpu.dot_dimension_numbers<[1], [0], [0], [1], [0, 0, 1, 1], [], []>} : vector<2x2xf32>, vector<2x16xf32>, vector<2x16xf32> -> vector<2x16xf32>
    %c0_63 = arith.constant 0 : index
    %c0_64 = arith.constant 0 : index
    %149 = vector.load %arg4[%c0_63, %c0_64] : memref<64x64xbf16, #tpu.memory_space<vmem>>, vector<16x64xbf16>
    %150 = arith.extf %149 : vector<16x64xbf16> to vector<16x64xf32>
    %cst_65 = arith.constant dense<0.000000e+00> : vector<2x64xf32>
    %151 = tpu.matmul %148, %150, %cst_65 {dimension_numbers = #tpu.dot_dimension_numbers<[1], [0], [0], [1], [0, 0, 1, 1], [], []>} : vector<2x16xf32>, vector<16x64xf32>, vector<2x64xf32> -> vector<2x64xf32>
    %152 = arith.addf %131, %151 : vector<2x64xf32>
    %153 = vector.extract_strided_slice %130 {offsets = [0, 16], sizes = [2, 16], strides = [1, 1]} : vector<2x192xf32> to vector<2x16xf32>
    %cst_66 = arith.constant 2.500000e-01 : f32
    %154 = vector.broadcast %cst_66 : f32 to vector<2x16xf32>
    %155 = arith.mulf %153, %154 : vector<2x16xf32>
    %156 = vector.extract_strided_slice %130 {offsets = [0, 80], sizes = [2, 16], strides = [1, 1]} : vector<2x192xf32> to vector<2x16xf32>
    %157 = vector.extract_strided_slice %130 {offsets = [0, 144], sizes = [2, 16], strides = [1, 1]} : vector<2x192xf32> to vector<2x16xf32>
    %cst_67 = arith.constant dense<0.000000e+00> : vector<2x2xf32>
    %158 = tpu.matmul %155, %156, %cst_67 {dimension_numbers = #tpu.dot_dimension_numbers<[1], [1], [0], [0], [0, 0, 1, 0], [], []>} : vector<2x16xf32>, vector<2x16xf32>, vector<2x2xf32> -> vector<2x2xf32>
    %cst_68 = arith.constant dense<0xFF800000> : vector<2xf32>
    %159 = vector.multi_reduction <maximumf>, %158, %cst_68 [1] : vector<2x2xf32> to vector<2xf32>
    %160 = vector.shape_cast %159 : vector<2xf32> to vector<2x1xf32>
    %161 = vector.broadcast %160 : vector<2x1xf32> to vector<2x2xf32>
    %162 = arith.subf %158, %161 : vector<2x2xf32>
    %163 = math.exp %162 : vector<2x2xf32>
    %cst_69 = arith.constant dense<0.000000e+00> : vector<2xf32>
    %164 = vector.multi_reduction <add>, %163, %cst_69 [1] : vector<2x2xf32> to vector<2xf32>
    %165 = vector.shape_cast %164 : vector<2xf32> to vector<2x1xf32>
    %166 = tpu.reciprocal %165 {approx = true} : vector<2x1xf32> -> vector<2x1xf32>
    %167 = vector.broadcast %166 : vector<2x1xf32> to vector<2x2xf32>
    %168 = arith.mulf %163, %167 : vector<2x2xf32>
    %cst_70 = arith.constant dense<0.000000e+00> : vector<2x16xf32>
    %169 = tpu.matmul %168, %157, %cst_70 {dimension_numbers = #tpu.dot_dimension_numbers<[1], [0], [0], [1], [0, 0, 1, 1], [], []>} : vector<2x2xf32>, vector<2x16xf32>, vector<2x16xf32> -> vector<2x16xf32>
    %c16_71 = arith.constant 16 : index
    %c0_72 = arith.constant 0 : index
    %170 = vector.load %arg4[%c16_71, %c0_72] : memref<64x64xbf16, #tpu.memory_space<vmem>>, vector<16x64xbf16>
    %171 = arith.extf %170 : vector<16x64xbf16> to vector<16x64xf32>
    %cst_73 = arith.constant dense<0.000000e+00> : vector<2x64xf32>
    %172 = tpu.matmul %169, %171, %cst_73 {dimension_numbers = #tpu.dot_dimension_numbers<[1], [0], [0], [1], [0, 0, 1, 1], [], []>} : vector<2x16xf32>, vector<16x64xf32>, vector<2x64xf32> -> vector<2x64xf32>
    %173 = arith.addf %152, %172 : vector<2x64xf32>
    %174 = vector.extract_strided_slice %130 {offsets = [0, 32], sizes = [2, 16], strides = [1, 1]} : vector<2x192xf32> to vector<2x16xf32>
    %cst_74 = arith.constant 2.500000e-01 : f32
    %175 = vector.broadcast %cst_74 : f32 to vector<2x16xf32>
    %176 = arith.mulf %174, %175 : vector<2x16xf32>
    %177 = vector.extract_strided_slice %130 {offsets = [0, 96], sizes = [2, 16], strides = [1, 1]} : vector<2x192xf32> to vector<2x16xf32>
    %178 = vector.extract_strided_slice %130 {offsets = [0, 160], sizes = [2, 16], strides = [1, 1]} : vector<2x192xf32> to vector<2x16xf32>
    %cst_75 = arith.constant dense<0.000000e+00> : vector<2x2xf32>
    %179 = tpu.matmul %176, %177, %cst_75 {dimension_numbers = #tpu.dot_dimension_numbers<[1], [1], [0], [0], [0, 0, 1, 0], [], []>} : vector<2x16xf32>, vector<2x16xf32>, vector<2x2xf32> -> vector<2x2xf32>
    %cst_76 = arith.constant dense<0xFF800000> : vector<2xf32>
    %180 = vector.multi_reduction <maximumf>, %179, %cst_76 [1] : vector<2x2xf32> to vector<2xf32>
    %181 = vector.shape_cast %180 : vector<2xf32> to vector<2x1xf32>
    %182 = vector.broadcast %181 : vector<2x1xf32> to vector<2x2xf32>
    %183 = arith.subf %179, %182 : vector<2x2xf32>
    %184 = math.exp %183 : vector<2x2xf32>
    %cst_77 = arith.constant dense<0.000000e+00> : vector<2xf32>
    %185 = vector.multi_reduction <add>, %184, %cst_77 [1] : vector<2x2xf32> to vector<2xf32>
    %186 = vector.shape_cast %185 : vector<2xf32> to vector<2x1xf32>
    %187 = tpu.reciprocal %186 {approx = true} : vector<2x1xf32> -> vector<2x1xf32>
    %188 = vector.broadcast %187 : vector<2x1xf32> to vector<2x2xf32>
    %189 = arith.mulf %184, %188 : vector<2x2xf32>
    %cst_78 = arith.constant dense<0.000000e+00> : vector<2x16xf32>
    %190 = tpu.matmul %189, %178, %cst_78 {dimension_numbers = #tpu.dot_dimension_numbers<[1], [0], [0], [1], [0, 0, 1, 1], [], []>} : vector<2x2xf32>, vector<2x16xf32>, vector<2x16xf32> -> vector<2x16xf32>
    %c32_79 = arith.constant 32 : index
    %c0_80 = arith.constant 0 : index
    %191 = vector.load %arg4[%c32_79, %c0_80] : memref<64x64xbf16, #tpu.memory_space<vmem>>, vector<16x64xbf16>
    %192 = arith.extf %191 : vector<16x64xbf16> to vector<16x64xf32>
    %cst_81 = arith.constant dense<0.000000e+00> : vector<2x64xf32>
    %193 = tpu.matmul %190, %192, %cst_81 {dimension_numbers = #tpu.dot_dimension_numbers<[1], [0], [0], [1], [0, 0, 1, 1], [], []>} : vector<2x16xf32>, vector<16x64xf32>, vector<2x64xf32> -> vector<2x64xf32>
    %194 = arith.addf %173, %193 : vector<2x64xf32>
    %195 = vector.extract_strided_slice %130 {offsets = [0, 48], sizes = [2, 16], strides = [1, 1]} : vector<2x192xf32> to vector<2x16xf32>
    %cst_82 = arith.constant 2.500000e-01 : f32
    %196 = vector.broadcast %cst_82 : f32 to vector<2x16xf32>
    %197 = arith.mulf %195, %196 : vector<2x16xf32>
    %198 = vector.extract_strided_slice %130 {offsets = [0, 112], sizes = [2, 16], strides = [1, 1]} : vector<2x192xf32> to vector<2x16xf32>
    %199 = vector.extract_strided_slice %130 {offsets = [0, 176], sizes = [2, 16], strides = [1, 1]} : vector<2x192xf32> to vector<2x16xf32>
    %cst_83 = arith.constant dense<0.000000e+00> : vector<2x2xf32>
    %200 = tpu.matmul %197, %198, %cst_83 {dimension_numbers = #tpu.dot_dimension_numbers<[1], [1], [0], [0], [0, 0, 1, 0], [], []>} : vector<2x16xf32>, vector<2x16xf32>, vector<2x2xf32> -> vector<2x2xf32>
    %cst_84 = arith.constant dense<0xFF800000> : vector<2xf32>
    %201 = vector.multi_reduction <maximumf>, %200, %cst_84 [1] : vector<2x2xf32> to vector<2xf32>
    %202 = vector.shape_cast %201 : vector<2xf32> to vector<2x1xf32>
    %203 = vector.broadcast %202 : vector<2x1xf32> to vector<2x2xf32>
    %204 = arith.subf %200, %203 : vector<2x2xf32>
    %205 = math.exp %204 : vector<2x2xf32>
    %cst_85 = arith.constant dense<0.000000e+00> : vector<2xf32>
    %206 = vector.multi_reduction <add>, %205, %cst_85 [1] : vector<2x2xf32> to vector<2xf32>
    %207 = vector.shape_cast %206 : vector<2xf32> to vector<2x1xf32>
    %208 = tpu.reciprocal %207 {approx = true} : vector<2x1xf32> -> vector<2x1xf32>
    %209 = vector.broadcast %208 : vector<2x1xf32> to vector<2x2xf32>
    %210 = arith.mulf %205, %209 : vector<2x2xf32>
    %cst_86 = arith.constant dense<0.000000e+00> : vector<2x16xf32>
    %211 = tpu.matmul %210, %199, %cst_86 {dimension_numbers = #tpu.dot_dimension_numbers<[1], [0], [0], [1], [0, 0, 1, 1], [], []>} : vector<2x2xf32>, vector<2x16xf32>, vector<2x16xf32> -> vector<2x16xf32>
    %c48_87 = arith.constant 48 : index
    %c0_88 = arith.constant 0 : index
    %212 = vector.load %arg4[%c48_87, %c0_88] : memref<64x64xbf16, #tpu.memory_space<vmem>>, vector<16x64xbf16>
    %213 = arith.extf %212 : vector<16x64xbf16> to vector<16x64xf32>
    %cst_89 = arith.constant dense<0.000000e+00> : vector<2x64xf32>
    %214 = tpu.matmul %211, %213, %cst_89 {dimension_numbers = #tpu.dot_dimension_numbers<[1], [0], [0], [1], [0, 0, 1, 1], [], []>} : vector<2x16xf32>, vector<16x64xf32>, vector<2x64xf32> -> vector<2x64xf32>
    %215 = arith.addf %194, %214 : vector<2x64xf32>
    %c0_90 = arith.constant 0 : index
    %c0_91 = arith.constant 0 : index
    %216 = vector.load %arg5[%c0_90, %c0_91] : memref<1x64xf32, #tpu.memory_space<vmem>>, vector<1x64xf32>
    %217 = vector.broadcast %216 : vector<1x64xf32> to vector<2x64xf32>
    %218 = arith.addf %215, %217 : vector<2x64xf32>
    %219 = arith.addf %125, %218 : vector<2x64xf32>
    %cst_92 = arith.constant dense<0.000000e+00> : vector<2xf32>
    %220 = vector.multi_reduction <add>, %219, %cst_92 [1] : vector<2x64xf32> to vector<2xf32>
    %221 = vector.shape_cast %220 : vector<2xf32> to vector<2x1xf32>
    %cst_93 = arith.constant 6.400000e+01 : f32
    %222 = vector.broadcast %cst_93 : f32 to vector<2x1xf32>
    %223 = arith.divf %221, %222 : vector<2x1xf32>
    %224 = vector.broadcast %223 : vector<2x1xf32> to vector<2x64xf32>
    %225 = arith.subf %219, %224 : vector<2x64xf32>
    %226 = arith.mulf %225, %225 : vector<2x64xf32>
    %cst_94 = arith.constant dense<0.000000e+00> : vector<2xf32>
    %227 = vector.multi_reduction <add>, %226, %cst_94 [1] : vector<2x64xf32> to vector<2xf32>
    %228 = vector.shape_cast %227 : vector<2xf32> to vector<2x1xf32>
    %cst_95 = arith.constant 6.400000e+01 : f32
    %229 = vector.broadcast %cst_95 : f32 to vector<2x1xf32>
    %230 = arith.divf %228, %229 : vector<2x1xf32>
    %cst_96 = arith.constant 9.99999974E-6 : f32
    %231 = vector.broadcast %cst_96 : f32 to vector<2x1xf32>
    %232 = arith.addf %230, %231 : vector<2x1xf32>
    %233 = math.rsqrt %232 : vector<2x1xf32>
    %234 = vector.broadcast %233 : vector<2x1xf32> to vector<2x64xf32>
    %235 = arith.mulf %225, %234 : vector<2x64xf32>
    %c0_97 = arith.constant 0 : index
    %c0_98 = arith.constant 0 : index
    %236 = vector.load %arg6[%c0_97, %c0_98] : memref<1x64xf32, #tpu.memory_space<vmem>>, vector<1x64xf32>
    %237 = vector.broadcast %236 : vector<1x64xf32> to vector<2x64xf32>
    %238 = arith.mulf %235, %237 : vector<2x64xf32>
    %c0_99 = arith.constant 0 : index
    %c0_100 = arith.constant 0 : index
    %239 = vector.load %arg7[%c0_99, %c0_100] : memref<1x64xf32, #tpu.memory_space<vmem>>, vector<1x64xf32>
    %240 = vector.broadcast %239 : vector<1x64xf32> to vector<2x64xf32>
    %241 = arith.addf %238, %240 : vector<2x64xf32>
    %242 = arith.truncf %241 : vector<2x64xf32> to vector<2x64xbf16>
    %c1_101 = arith.constant 1 : index
    %c0_102 = arith.constant 0 : index
    %c0_103 = arith.constant 0 : index
    %243 = vector.load %arg8[%c1_101, %c0_102, %c0_103] : memref<8x2x64xbf16, #tpu.memory_space<vmem>>, vector<1x2x64xbf16>
    %244 = vector.shape_cast %243 : vector<1x2x64xbf16> to vector<2x64xbf16>
    %245 = vector.shape_cast %242 : vector<2x64xbf16> to vector<1x2x64xbf16>
    tpu.vector_store %arg8[%c1_101, %c0_102, %c0_103], %245 {strides = array<i32>} : memref<8x2x64xbf16, #tpu.memory_space<vmem>>, vector<1x2x64xbf16>,
    %c2 = arith.constant 2 : index
    %c0_104 = arith.constant 0 : index
    %c0_105 = arith.constant 0 : index
    %246 = vector.load %arg1[%c2, %c0_104, %c0_105] : memref<8x2x64xbf16, #tpu.memory_space<vmem>>, vector<1x2x64xbf16>
    %247 = vector.shape_cast %246 : vector<1x2x64xbf16> to vector<2x64xbf16>
    %248 = arith.extf %247 : vector<2x64xbf16> to vector<2x64xf32>
    %c0_106 = arith.constant 0 : index
    %c0_107 = arith.constant 0 : index
    %249 = vector.load %arg2[%c0_106, %c0_107] : memref<64x192xbf16, #tpu.memory_space<vmem>>, vector<64x192xbf16>
    %cst_108 = arith.constant dense<0.000000e+00> : vector<2x192xf32>
    %250 = tpu.matmul %247, %249, %cst_108 {dimension_numbers = #tpu.dot_dimension_numbers<[1], [0], [0], [1], [0, 0, 1, 1], [], []>} : vector<2x64xbf16>, vector<64x192xbf16>, vector<2x192xf32> -> vector<2x192xf32>
    %c0_109 = arith.constant 0 : index
    %c0_110 = arith.constant 0 : index
    %251 = vector.load %arg3[%c0_109, %c0_110] : memref<1x192xf32, #tpu.memory_space<vmem>>, vector<1x192xf32>
    %252 = vector.broadcast %251 : vector<1x192xf32> to vector<2x192xf32>
    %253 = arith.addf %250, %252 : vector<2x192xf32>
    %cst_111 = arith.constant 0.000000e+00 : f32
    %254 = vector.broadcast %cst_111 : f32 to vector<2x64xf32>
    %255 = vector.extract_strided_slice %253 {offsets = [0, 0], sizes = [2, 16], strides = [1, 1]} : vector<2x192xf32> to vector<2x16xf32>
    %cst_112 = arith.constant 2.500000e-01 : f32
    %256 = vector.broadcast %cst_112 : f32 to vector<2x16xf32>
    %257 = arith.mulf %255, %256 : vector<2x16xf32>
    %258 = vector.extract_strided_slice %253 {offsets = [0, 64], sizes = [2, 16], strides = [1, 1]} : vector<2x192xf32> to vector<2x16xf32>
    %259 = vector.extract_strided_slice %253 {offsets = [0, 128], sizes = [2, 16], strides = [1, 1]} : vector<2x192xf32> to vector<2x16xf32>
    %cst_113 = arith.constant dense<0.000000e+00> : vector<2x2xf32>
    %260 = tpu.matmul %257, %258, %cst_113 {dimension_numbers = #tpu.dot_dimension_numbers<[1], [1], [0], [0], [0, 0, 1, 0], [], []>} : vector<2x16xf32>, vector<2x16xf32>, vector<2x2xf32> -> vector<2x2xf32>
    %cst_114 = arith.constant dense<0xFF800000> : vector<2xf32>
    %261 = vector.multi_reduction <maximumf>, %260, %cst_114 [1] : vector<2x2xf32> to vector<2xf32>
    %262 = vector.shape_cast %261 : vector<2xf32> to vector<2x1xf32>
    %263 = vector.broadcast %262 : vector<2x1xf32> to vector<2x2xf32>
    %264 = arith.subf %260, %263 : vector<2x2xf32>
    %265 = math.exp %264 : vector<2x2xf32>
    %cst_115 = arith.constant dense<0.000000e+00> : vector<2xf32>
    %266 = vector.multi_reduction <add>, %265, %cst_115 [1] : vector<2x2xf32> to vector<2xf32>
    %267 = vector.shape_cast %266 : vector<2xf32> to vector<2x1xf32>
    %268 = tpu.reciprocal %267 {approx = true} : vector<2x1xf32> -> vector<2x1xf32>
    %269 = vector.broadcast %268 : vector<2x1xf32> to vector<2x2xf32>
    %270 = arith.mulf %265, %269 : vector<2x2xf32>
    %cst_116 = arith.constant dense<0.000000e+00> : vector<2x16xf32>
    %271 = tpu.matmul %270, %259, %cst_116 {dimension_numbers = #tpu.dot_dimension_numbers<[1], [0], [0], [1], [0, 0, 1, 1], [], []>} : vector<2x2xf32>, vector<2x16xf32>, vector<2x16xf32> -> vector<2x16xf32>
    %c0_117 = arith.constant 0 : index
    %c0_118 = arith.constant 0 : index
    %272 = vector.load %arg4[%c0_117, %c0_118] : memref<64x64xbf16, #tpu.memory_space<vmem>>, vector<16x64xbf16>
    %273 = arith.extf %272 : vector<16x64xbf16> to vector<16x64xf32>
    %cst_119 = arith.constant dense<0.000000e+00> : vector<2x64xf32>
    %274 = tpu.matmul %271, %273, %cst_119 {dimension_numbers = #tpu.dot_dimension_numbers<[1], [0], [0], [1], [0, 0, 1, 1], [], []>} : vector<2x16xf32>, vector<16x64xf32>, vector<2x64xf32> -> vector<2x64xf32>
    %275 = arith.addf %254, %274 : vector<2x64xf32>
    %276 = vector.extract_strided_slice %253 {offsets = [0, 16], sizes = [2, 16], strides = [1, 1]} : vector<2x192xf32> to vector<2x16xf32>
    %cst_120 = arith.constant 2.500000e-01 : f32
    %277 = vector.broadcast %cst_120 : f32 to vector<2x16xf32>
    %278 = arith.mulf %276, %277 : vector<2x16xf32>
    %279 = vector.extract_strided_slice %253 {offsets = [0, 80], sizes = [2, 16], strides = [1, 1]} : vector<2x192xf32> to vector<2x16xf32>
    %280 = vector.extract_strided_slice %253 {offsets = [0, 144], sizes = [2, 16], strides = [1, 1]} : vector<2x192xf32> to vector<2x16xf32>
    %cst_121 = arith.constant dense<0.000000e+00> : vector<2x2xf32>
    %281 = tpu.matmul %278, %279, %cst_121 {dimension_numbers = #tpu.dot_dimension_numbers<[1], [1], [0], [0], [0, 0, 1, 0], [], []>} : vector<2x16xf32>, vector<2x16xf32>, vector<2x2xf32> -> vector<2x2xf32>
    %cst_122 = arith.constant dense<0xFF800000> : vector<2xf32>
    %282 = vector.multi_reduction <maximumf>, %281, %cst_122 [1] : vector<2x2xf32> to vector<2xf32>
    %283 = vector.shape_cast %282 : vector<2xf32> to vector<2x1xf32>
    %284 = vector.broadcast %283 : vector<2x1xf32> to vector<2x2xf32>
    %285 = arith.subf %281, %284 : vector<2x2xf32>
    %286 = math.exp %285 : vector<2x2xf32>
    %cst_123 = arith.constant dense<0.000000e+00> : vector<2xf32>
    %287 = vector.multi_reduction <add>, %286, %cst_123 [1] : vector<2x2xf32> to vector<2xf32>
    %288 = vector.shape_cast %287 : vector<2xf32> to vector<2x1xf32>
    %289 = tpu.reciprocal %288 {approx = true} : vector<2x1xf32> -> vector<2x1xf32>
    %290 = vector.broadcast %289 : vector<2x1xf32> to vector<2x2xf32>
    %291 = arith.mulf %286, %290 : vector<2x2xf32>
    %cst_124 = arith.constant dense<0.000000e+00> : vector<2x16xf32>
    %292 = tpu.matmul %291, %280, %cst_124 {dimension_numbers = #tpu.dot_dimension_numbers<[1], [0], [0], [1], [0, 0, 1, 1], [], []>} : vector<2x2xf32>, vector<2x16xf32>, vector<2x16xf32> -> vector<2x16xf32>
    %c16_125 = arith.constant 16 : index
    %c0_126 = arith.constant 0 : index
    %293 = vector.load %arg4[%c16_125, %c0_126] : memref<64x64xbf16, #tpu.memory_space<vmem>>, vector<16x64xbf16>
    %294 = arith.extf %293 : vector<16x64xbf16> to vector<16x64xf32>
    %cst_127 = arith.constant dense<0.000000e+00> : vector<2x64xf32>
    %295 = tpu.matmul %292, %294, %cst_127 {dimension_numbers = #tpu.dot_dimension_numbers<[1], [0], [0], [1], [0, 0, 1, 1], [], []>} : vector<2x16xf32>, vector<16x64xf32>, vector<2x64xf32> -> vector<2x64xf32>
    %296 = arith.addf %275, %295 : vector<2x64xf32>
    %297 = vector.extract_strided_slice %253 {offsets = [0, 32], sizes = [2, 16], strides = [1, 1]} : vector<2x192xf32> to vector<2x16xf32>
    %cst_128 = arith.constant 2.500000e-01 : f32
    %298 = vector.broadcast %cst_128 : f32 to vector<2x16xf32>
    %299 = arith.mulf %297, %298 : vector<2x16xf32>
    %300 = vector.extract_strided_slice %253 {offsets = [0, 96], sizes = [2, 16], strides = [1, 1]} : vector<2x192xf32> to vector<2x16xf32>
    %301 = vector.extract_strided_slice %253 {offsets = [0, 160], sizes = [2, 16], strides = [1, 1]} : vector<2x192xf32> to vector<2x16xf32>
    %cst_129 = arith.constant dense<0.000000e+00> : vector<2x2xf32>
    %302 = tpu.matmul %299, %300, %cst_129 {dimension_numbers = #tpu.dot_dimension_numbers<[1], [1], [0], [0], [0, 0, 1, 0], [], []>} : vector<2x16xf32>, vector<2x16xf32>, vector<2x2xf32> -> vector<2x2xf32>
    %cst_130 = arith.constant dense<0xFF800000> : vector<2xf32>
    %303 = vector.multi_reduction <maximumf>, %302, %cst_130 [1] : vector<2x2xf32> to vector<2xf32>
    %304 = vector.shape_cast %303 : vector<2xf32> to vector<2x1xf32>
    %305 = vector.broadcast %304 : vector<2x1xf32> to vector<2x2xf32>
    %306 = arith.subf %302, %305 : vector<2x2xf32>
    %307 = math.exp %306 : vector<2x2xf32>
    %cst_131 = arith.constant dense<0.000000e+00> : vector<2xf32>
    %308 = vector.multi_reduction <add>, %307, %cst_131 [1] : vector<2x2xf32> to vector<2xf32>
    %309 = vector.shape_cast %308 : vector<2xf32> to vector<2x1xf32>
    %310 = tpu.reciprocal %309 {approx = true} : vector<2x1xf32> -> vector<2x1xf32>
    %311 = vector.broadcast %310 : vector<2x1xf32> to vector<2x2xf32>
    %312 = arith.mulf %307, %311 : vector<2x2xf32>
    %cst_132 = arith.constant dense<0.000000e+00> : vector<2x16xf32>
    %313 = tpu.matmul %312, %301, %cst_132 {dimension_numbers = #tpu.dot_dimension_numbers<[1], [0], [0], [1], [0, 0, 1, 1], [], []>} : vector<2x2xf32>, vector<2x16xf32>, vector<2x16xf32> -> vector<2x16xf32>
    %c32_133 = arith.constant 32 : index
    %c0_134 = arith.constant 0 : index
    %314 = vector.load %arg4[%c32_133, %c0_134] : memref<64x64xbf16, #tpu.memory_space<vmem>>, vector<16x64xbf16>
    %315 = arith.extf %314 : vector<16x64xbf16> to vector<16x64xf32>
    %cst_135 = arith.constant dense<0.000000e+00> : vector<2x64xf32>
    %316 = tpu.matmul %313, %315, %cst_135 {dimension_numbers = #tpu.dot_dimension_numbers<[1], [0], [0], [1], [0, 0, 1, 1], [], []>} : vector<2x16xf32>, vector<16x64xf32>, vector<2x64xf32> -> vector<2x64xf32>
    %317 = arith.addf %296, %316 : vector<2x64xf32>
    %318 = vector.extract_strided_slice %253 {offsets = [0, 48], sizes = [2, 16], strides = [1, 1]} : vector<2x192xf32> to vector<2x16xf32>
    %cst_136 = arith.constant 2.500000e-01 : f32
    %319 = vector.broadcast %cst_136 : f32 to vector<2x16xf32>
    %320 = arith.mulf %318, %319 : vector<2x16xf32>
    %321 = vector.extract_strided_slice %253 {offsets = [0, 112], sizes = [2, 16], strides = [1, 1]} : vector<2x192xf32> to vector<2x16xf32>
    %322 = vector.extract_strided_slice %253 {offsets = [0, 176], sizes = [2, 16], strides = [1, 1]} : vector<2x192xf32> to vector<2x16xf32>
    %cst_137 = arith.constant dense<0.000000e+00> : vector<2x2xf32>
    %323 = tpu.matmul %320, %321, %cst_137 {dimension_numbers = #tpu.dot_dimension_numbers<[1], [1], [0], [0], [0, 0, 1, 0], [], []>} : vector<2x16xf32>, vector<2x16xf32>, vector<2x2xf32> -> vector<2x2xf32>
    %cst_138 = arith.constant dense<0xFF800000> : vector<2xf32>
    %324 = vector.multi_reduction <maximumf>, %323, %cst_138 [1] : vector<2x2xf32> to vector<2xf32>
    %325 = vector.shape_cast %324 : vector<2xf32> to vector<2x1xf32>
    %326 = vector.broadcast %325 : vector<2x1xf32> to vector<2x2xf32>
    %327 = arith.subf %323, %326 : vector<2x2xf32>
    %328 = math.exp %327 : vector<2x2xf32>
    %cst_139 = arith.constant dense<0.000000e+00> : vector<2xf32>
    %329 = vector.multi_reduction <add>, %328, %cst_139 [1] : vector<2x2xf32> to vector<2xf32>
    %330 = vector.shape_cast %329 : vector<2xf32> to vector<2x1xf32>
    %331 = tpu.reciprocal %330 {approx = true} : vector<2x1xf32> -> vector<2x1xf32>
    %332 = vector.broadcast %331 : vector<2x1xf32> to vector<2x2xf32>
    %333 = arith.mulf %328, %332 : vector<2x2xf32>
    %cst_140 = arith.constant dense<0.000000e+00> : vector<2x16xf32>
    %334 = tpu.matmul %333, %322, %cst_140 {dimension_numbers = #tpu.dot_dimension_numbers<[1], [0], [0], [1], [0, 0, 1, 1], [], []>} : vector<2x2xf32>, vector<2x16xf32>, vector<2x16xf32> -> vector<2x16xf32>
    %c48_141 = arith.constant 48 : index
    %c0_142 = arith.constant 0 : index
    %335 = vector.load %arg4[%c48_141, %c0_142] : memref<64x64xbf16, #tpu.memory_space<vmem>>, vector<16x64xbf16>
    %336 = arith.extf %335 : vector<16x64xbf16> to vector<16x64xf32>
    %cst_143 = arith.constant dense<0.000000e+00> : vector<2x64xf32>
    %337 = tpu.matmul %334, %336, %cst_143 {dimension_numbers = #tpu.dot_dimension_numbers<[1], [0], [0], [1], [0, 0, 1, 1], [], []>} : vector<2x16xf32>, vector<16x64xf32>, vector<2x64xf32> -> vector<2x64xf32>
    %338 = arith.addf %317, %337 : vector<2x64xf32>
    %c0_144 = arith.constant 0 : index
    %c0_145 = arith.constant 0 : index
    %339 = vector.load %arg5[%c0_144, %c0_145] : memref<1x64xf32, #tpu.memory_space<vmem>>, vector<1x64xf32>
    %340 = vector.broadcast %339 : vector<1x64xf32> to vector<2x64xf32>
    %341 = arith.addf %338, %340 : vector<2x64xf32>
    %342 = arith.addf %248, %341 : vector<2x64xf32>
    %cst_146 = arith.constant dense<0.000000e+00> : vector<2xf32>
    %343 = vector.multi_reduction <add>, %342, %cst_146 [1] : vector<2x64xf32> to vector<2xf32>
    %344 = vector.shape_cast %343 : vector<2xf32> to vector<2x1xf32>
    %cst_147 = arith.constant 6.400000e+01 : f32
    %345 = vector.broadcast %cst_147 : f32 to vector<2x1xf32>
    %346 = arith.divf %344, %345 : vector<2x1xf32>
    %347 = vector.broadcast %346 : vector<2x1xf32> to vector<2x64xf32>
    %348 = arith.subf %342, %347 : vector<2x64xf32>
    %349 = arith.mulf %348, %348 : vector<2x64xf32>
    %cst_148 = arith.constant dense<0.000000e+00> : vector<2xf32>
    %350 = vector.multi_reduction <add>, %349, %cst_148 [1] : vector<2x64xf32> to vector<2xf32>
    %351 = vector.shape_cast %350 : vector<2xf32> to vector<2x1xf32>
    %cst_149 = arith.constant 6.400000e+01 : f32
    %352 = vector.broadcast %cst_149 : f32 to vector<2x1xf32>
    %353 = arith.divf %351, %352 : vector<2x1xf32>
    %cst_150 = arith.constant 9.99999974E-6 : f32
    %354 = vector.broadcast %cst_150 : f32 to vector<2x1xf32>
    %355 = arith.addf %353, %354 : vector<2x1xf32>
    %356 = math.rsqrt %355 : vector<2x1xf32>
    %357 = vector.broadcast %356 : vector<2x1xf32> to vector<2x64xf32>
    %358 = arith.mulf %348, %357 : vector<2x64xf32>
    %c0_151 = arith.constant 0 : index
    %c0_152 = arith.constant 0 : index
    %359 = vector.load %arg6[%c0_151, %c0_152] : memref<1x64xf32, #tpu.memory_space<vmem>>, vector<1x64xf32>
    %360 = vector.broadcast %359 : vector<1x64xf32> to vector<2x64xf32>
    %361 = arith.mulf %358, %360 : vector<2x64xf32>
    %c0_153 = arith.constant 0 : index
    %c0_154 = arith.constant 0 : index
    %362 = vector.load %arg7[%c0_153, %c0_154] : memref<1x64xf32, #tpu.memory_space<vmem>>, vector<1x64xf32>
    %363 = vector.broadcast %362 : vector<1x64xf32> to vector<2x64xf32>
    %364 = arith.addf %361, %363 : vector<2x64xf32>
    %365 = arith.truncf %364 : vector<2x64xf32> to vector<2x64xbf16>
    %c2_155 = arith.constant 2 : index
    %c0_156 = arith.constant 0 : index
    %c0_157 = arith.constant 0 : index
    %366 = vector.load %arg8[%c2_155, %c0_156, %c0_157] : memref<8x2x64xbf16, #tpu.memory_space<vmem>>, vector<1x2x64xbf16>
    %367 = vector.shape_cast %366 : vector<1x2x64xbf16> to vector<2x64xbf16>
    %368 = vector.shape_cast %365 : vector<2x64xbf16> to vector<1x2x64xbf16>
    tpu.vector_store %arg8[%c2_155, %c0_156, %c0_157], %368 {strides = array<i32>} : memref<8x2x64xbf16, #tpu.memory_space<vmem>>, vector<1x2x64xbf16>,
    %c3 = arith.constant 3 : index
    %c0_158 = arith.constant 0 : index
    %c0_159 = arith.constant 0 : index
    %369 = vector.load %arg1[%c3, %c0_158, %c0_159] : memref<8x2x64xbf16, #tpu.memory_space<vmem>>, vector<1x2x64xbf16>
    %370 = vector.shape_cast %369 : vector<1x2x64xbf16> to vector<2x64xbf16>
    %371 = arith.extf %370 : vector<2x64xbf16> to vector<2x64xf32>
    %c0_160 = arith.constant 0 : index
    %c0_161 = arith.constant 0 : index
    %372 = vector.load %arg2[%c0_160, %c0_161] : memref<64x192xbf16, #tpu.memory_space<vmem>>, vector<64x192xbf16>
    %cst_162 = arith.constant dense<0.000000e+00> : vector<2x192xf32>
    %373 = tpu.matmul %370, %372, %cst_162 {dimension_numbers = #tpu.dot_dimension_numbers<[1], [0], [0], [1], [0, 0, 1, 1], [], []>} : vector<2x64xbf16>, vector<64x192xbf16>, vector<2x192xf32> -> vector<2x192xf32>
    %c0_163 = arith.constant 0 : index
    %c0_164 = arith.constant 0 : index
    %374 = vector.load %arg3[%c0_163, %c0_164] : memref<1x192xf32, #tpu.memory_space<vmem>>, vector<1x192xf32>
    %375 = vector.broadcast %374 : vector<1x192xf32> to vector<2x192xf32>
    %376 = arith.addf %373, %375 : vector<2x192xf32>
    %cst_165 = arith.constant 0.000000e+00 : f32
    %377 = vector.broadcast %cst_165 : f32 to vector<2x64xf32>
    %378 = vector.extract_strided_slice %376 {offsets = [0, 0], sizes = [2, 16], strides = [1, 1]} : vector<2x192xf32> to vector<2x16xf32>
    %cst_166 = arith.constant 2.500000e-01 : f32
    %379 = vector.broadcast %cst_166 : f32 to vector<2x16xf32>
    %380 = arith.mulf %378, %379 : vector<2x16xf32>
    %381 = vector.extract_strided_slice %376 {offsets = [0, 64], sizes = [2, 16], strides = [1, 1]} : vector<2x192xf32> to vector<2x16xf32>
    %382 = vector.extract_strided_slice %376 {offsets = [0, 128], sizes = [2, 16], strides = [1, 1]} : vector<2x192xf32> to vector<2x16xf32>
    %cst_167 = arith.constant dense<0.000000e+00> : vector<2x2xf32>
    %383 = tpu.matmul %380, %381, %cst_167 {dimension_numbers = #tpu.dot_dimension_numbers<[1], [1], [0], [0], [0, 0, 1, 0], [], []>} : vector<2x16xf32>, vector<2x16xf32>, vector<2x2xf32> -> vector<2x2xf32>
    %cst_168 = arith.constant dense<0xFF800000> : vector<2xf32>
    %384 = vector.multi_reduction <maximumf>, %383, %cst_168 [1] : vector<2x2xf32> to vector<2xf32>
    %385 = vector.shape_cast %384 : vector<2xf32> to vector<2x1xf32>
    %386 = vector.broadcast %385 : vector<2x1xf32> to vector<2x2xf32>
    %387 = arith.subf %383, %386 : vector<2x2xf32>
    %388 = math.exp %387 : vector<2x2xf32>
    %cst_169 = arith.constant dense<0.000000e+00> : vector<2xf32>
    %389 = vector.multi_reduction <add>, %388, %cst_169 [1] : vector<2x2xf32> to vector<2xf32>
    %390 = vector.shape_cast %389 : vector<2xf32> to vector<2x1xf32>
    %391 = tpu.reciprocal %390 {approx = true} : vector<2x1xf32> -> vector<2x1xf32>
    %392 = vector.broadcast %391 : vector<2x1xf32> to vector<2x2xf32>
    %393 = arith.mulf %388, %392 : vector<2x2xf32>
    %cst_170 = arith.constant dense<0.000000e+00> : vector<2x16xf32>
    %394 = tpu.matmul %393, %382, %cst_170 {dimension_numbers = #tpu.dot_dimension_numbers<[1], [0], [0], [1], [0, 0, 1, 1], [], []>} : vector<2x2xf32>, vector<2x16xf32>, vector<2x16xf32> -> vector<2x16xf32>
    %c0_171 = arith.constant 0 : index
    %c0_172 = arith.constant 0 : index
    %395 = vector.load %arg4[%c0_171, %c0_172] : memref<64x64xbf16, #tpu.memory_space<vmem>>, vector<16x64xbf16>
    %396 = arith.extf %395 : vector<16x64xbf16> to vector<16x64xf32>
    %cst_173 = arith.constant dense<0.000000e+00> : vector<2x64xf32>
    %397 = tpu.matmul %394, %396, %cst_173 {dimension_numbers = #tpu.dot_dimension_numbers<[1], [0], [0], [1], [0, 0, 1, 1], [], []>} : vector<2x16xf32>, vector<16x64xf32>, vector<2x64xf32> -> vector<2x64xf32>
    %398 = arith.addf %377, %397 : vector<2x64xf32>
    %399 = vector.extract_strided_slice %376 {offsets = [0, 16], sizes = [2, 16], strides = [1, 1]} : vector<2x192xf32> to vector<2x16xf32>
    %cst_174 = arith.constant 2.500000e-01 : f32
    %400 = vector.broadcast %cst_174 : f32 to vector<2x16xf32>
    %401 = arith.mulf %399, %400 : vector<2x16xf32>
    %402 = vector.extract_strided_slice %376 {offsets = [0, 80], sizes = [2, 16], strides = [1, 1]} : vector<2x192xf32> to vector<2x16xf32>
    %403 = vector.extract_strided_slice %376 {offsets = [0, 144], sizes = [2, 16], strides = [1, 1]} : vector<2x192xf32> to vector<2x16xf32>
    %cst_175 = arith.constant dense<0.000000e+00> : vector<2x2xf32>
    %404 = tpu.matmul %401, %402, %cst_175 {dimension_numbers = #tpu.dot_dimension_numbers<[1], [1], [0], [0], [0, 0, 1, 0], [], []>} : vector<2x16xf32>, vector<2x16xf32>, vector<2x2xf32> -> vector<2x2xf32>
    %cst_176 = arith.constant dense<0xFF800000> : vector<2xf32>
    %405 = vector.multi_reduction <maximumf>, %404, %cst_176 [1] : vector<2x2xf32> to vector<2xf32>
    %406 = vector.shape_cast %405 : vector<2xf32> to vector<2x1xf32>
    %407 = vector.broadcast %406 : vector<2x1xf32> to vector<2x2xf32>
    %408 = arith.subf %404, %407 : vector<2x2xf32>
    %409 = math.exp %408 : vector<2x2xf32>
    %cst_177 = arith.constant dense<0.000000e+00> : vector<2xf32>
    %410 = vector.multi_reduction <add>, %409, %cst_177 [1] : vector<2x2xf32> to vector<2xf32>
    %411 = vector.shape_cast %410 : vector<2xf32> to vector<2x1xf32>
    %412 = tpu.reciprocal %411 {approx = true} : vector<2x1xf32> -> vector<2x1xf32>
    %413 = vector.broadcast %412 : vector<2x1xf32> to vector<2x2xf32>
    %414 = arith.mulf %409, %413 : vector<2x2xf32>
    %cst_178 = arith.constant dense<0.000000e+00> : vector<2x16xf32>
    %415 = tpu.matmul %414, %403, %cst_178 {dimension_numbers = #tpu.dot_dimension_numbers<[1], [0], [0], [1], [0, 0, 1, 1], [], []>} : vector<2x2xf32>, vector<2x16xf32>, vector<2x16xf32> -> vector<2x16xf32>
    %c16_179 = arith.constant 16 : index
    %c0_180 = arith.constant 0 : index
    %416 = vector.load %arg4[%c16_179, %c0_180] : memref<64x64xbf16, #tpu.memory_space<vmem>>, vector<16x64xbf16>
    %417 = arith.extf %416 : vector<16x64xbf16> to vector<16x64xf32>
    %cst_181 = arith.constant dense<0.000000e+00> : vector<2x64xf32>
    %418 = tpu.matmul %415, %417, %cst_181 {dimension_numbers = #tpu.dot_dimension_numbers<[1], [0], [0], [1], [0, 0, 1, 1], [], []>} : vector<2x16xf32>, vector<16x64xf32>, vector<2x64xf32> -> vector<2x64xf32>
    %419 = arith.addf %398, %418 : vector<2x64xf32>
    %420 = vector.extract_strided_slice %376 {offsets = [0, 32], sizes = [2, 16], strides = [1, 1]} : vector<2x192xf32> to vector<2x16xf32>
    %cst_182 = arith.constant 2.500000e-01 : f32
    %421 = vector.broadcast %cst_182 : f32 to vector<2x16xf32>
    %422 = arith.mulf %420, %421 : vector<2x16xf32>
    %423 = vector.extract_strided_slice %376 {offsets = [0, 96], sizes = [2, 16], strides = [1, 1]} : vector<2x192xf32> to vector<2x16xf32>
    %424 = vector.extract_strided_slice %376 {offsets = [0, 160], sizes = [2, 16], strides = [1, 1]} : vector<2x192xf32> to vector<2x16xf32>
    %cst_183 = arith.constant dense<0.000000e+00> : vector<2x2xf32>
    %425 = tpu.matmul %422, %423, %cst_183 {dimension_numbers = #tpu.dot_dimension_numbers<[1], [1], [0], [0], [0, 0, 1, 0], [], []>} : vector<2x16xf32>, vector<2x16xf32>, vector<2x2xf32> -> vector<2x2xf32>
    %cst_184 = arith.constant dense<0xFF800000> : vector<2xf32>
    %426 = vector.multi_reduction <maximumf>, %425, %cst_184 [1] : vector<2x2xf32> to vector<2xf32>
    %427 = vector.shape_cast %426 : vector<2xf32> to vector<2x1xf32>
    %428 = vector.broadcast %427 : vector<2x1xf32> to vector<2x2xf32>
    %429 = arith.subf %425, %428 : vector<2x2xf32>
    %430 = math.exp %429 : vector<2x2xf32>
    %cst_185 = arith.constant dense<0.000000e+00> : vector<2xf32>
    %431 = vector.multi_reduction <add>, %430, %cst_185 [1] : vector<2x2xf32> to vector<2xf32>
    %432 = vector.shape_cast %431 : vector<2xf32> to vector<2x1xf32>
    %433 = tpu.reciprocal %432 {approx = true} : vector<2x1xf32> -> vector<2x1xf32>
    %434 = vector.broadcast %433 : vector<2x1xf32> to vector<2x2xf32>
    %435 = arith.mulf %430, %434 : vector<2x2xf32>
    %cst_186 = arith.constant dense<0.000000e+00> : vector<2x16xf32>
    %436 = tpu.matmul %435, %424, %cst_186 {dimension_numbers = #tpu.dot_dimension_numbers<[1], [0], [0], [1], [0, 0, 1, 1], [], []>} : vector<2x2xf32>, vector<2x16xf32>, vector<2x16xf32> -> vector<2x16xf32>
    %c32_187 = arith.constant 32 : index
    %c0_188 = arith.constant 0 : index
    %437 = vector.load %arg4[%c32_187, %c0_188] : memref<64x64xbf16, #tpu.memory_space<vmem>>, vector<16x64xbf16>
    %438 = arith.extf %437 : vector<16x64xbf16> to vector<16x64xf32>
    %cst_189 = arith.constant dense<0.000000e+00> : vector<2x64xf32>
    %439 = tpu.matmul %436, %438, %cst_189 {dimension_numbers = #tpu.dot_dimension_numbers<[1], [0], [0], [1], [0, 0, 1, 1], [], []>} : vector<2x16xf32>, vector<16x64xf32>, vector<2x64xf32> -> vector<2x64xf32>
    %440 = arith.addf %419, %439 : vector<2x64xf32>
    %441 = vector.extract_strided_slice %376 {offsets = [0, 48], sizes = [2, 16], strides = [1, 1]} : vector<2x192xf32> to vector<2x16xf32>
    %cst_190 = arith.constant 2.500000e-01 : f32
    %442 = vector.broadcast %cst_190 : f32 to vector<2x16xf32>
    %443 = arith.mulf %441, %442 : vector<2x16xf32>
    %444 = vector.extract_strided_slice %376 {offsets = [0, 112], sizes = [2, 16], strides = [1, 1]} : vector<2x192xf32> to vector<2x16xf32>
    %445 = vector.extract_strided_slice %376 {offsets = [0, 176], sizes = [2, 16], strides = [1, 1]} : vector<2x192xf32> to vector<2x16xf32>
    %cst_191 = arith.constant dense<0.000000e+00> : vector<2x2xf32>
    %446 = tpu.matmul %443, %444, %cst_191 {dimension_numbers = #tpu.dot_dimension_numbers<[1], [1], [0], [0], [0, 0, 1, 0], [], []>} : vector<2x16xf32>, vector<2x16xf32>, vector<2x2xf32> -> vector<2x2xf32>
    %cst_192 = arith.constant dense<0xFF800000> : vector<2xf32>
    %447 = vector.multi_reduction <maximumf>, %446, %cst_192 [1] : vector<2x2xf32> to vector<2xf32>
    %448 = vector.shape_cast %447 : vector<2xf32> to vector<2x1xf32>
    %449 = vector.broadcast %448 : vector<2x1xf32> to vector<2x2xf32>
    %450 = arith.subf %446, %449 : vector<2x2xf32>
    %451 = math.exp %450 : vector<2x2xf32>
    %cst_193 = arith.constant dense<0.000000e+00> : vector<2xf32>
    %452 = vector.multi_reduction <add>, %451, %cst_193 [1] : vector<2x2xf32> to vector<2xf32>
    %453 = vector.shape_cast %452 : vector<2xf32> to vector<2x1xf32>
    %454 = tpu.reciprocal %453 {approx = true} : vector<2x1xf32> -> vector<2x1xf32>
    %455 = vector.broadcast %454 : vector<2x1xf32> to vector<2x2xf32>
    %456 = arith.mulf %451, %455 : vector<2x2xf32>
    %cst_194 = arith.constant dense<0.000000e+00> : vector<2x16xf32>
    %457 = tpu.matmul %456, %445, %cst_194 {dimension_numbers = #tpu.dot_dimension_numbers<[1], [0], [0], [1], [0, 0, 1, 1], [], []>} : vector<2x2xf32>, vector<2x16xf32>, vector<2x16xf32> -> vector<2x16xf32>
    %c48_195 = arith.constant 48 : index
    %c0_196 = arith.constant 0 : index
    %458 = vector.load %arg4[%c48_195, %c0_196] : memref<64x64xbf16, #tpu.memory_space<vmem>>, vector<16x64xbf16>
    %459 = arith.extf %458 : vector<16x64xbf16> to vector<16x64xf32>
    %cst_197 = arith.constant dense<0.000000e+00> : vector<2x64xf32>
    %460 = tpu.matmul %457, %459, %cst_197 {dimension_numbers = #tpu.dot_dimension_numbers<[1], [0], [0], [1], [0, 0, 1, 1], [], []>} : vector<2x16xf32>, vector<16x64xf32>, vector<2x64xf32> -> vector<2x64xf32>
    %461 = arith.addf %440, %460 : vector<2x64xf32>
    %c0_198 = arith.constant 0 : index
    %c0_199 = arith.constant 0 : index
    %462 = vector.load %arg5[%c0_198, %c0_199] : memref<1x64xf32, #tpu.memory_space<vmem>>, vector<1x64xf32>
    %463 = vector.broadcast %462 : vector<1x64xf32> to vector<2x64xf32>
    %464 = arith.addf %461, %463 : vector<2x64xf32>
    %465 = arith.addf %371, %464 : vector<2x64xf32>
    %cst_200 = arith.constant dense<0.000000e+00> : vector<2xf32>
    %466 = vector.multi_reduction <add>, %465, %cst_200 [1] : vector<2x64xf32> to vector<2xf32>
    %467 = vector.shape_cast %466 : vector<2xf32> to vector<2x1xf32>
    %cst_201 = arith.constant 6.400000e+01 : f32
    %468 = vector.broadcast %cst_201 : f32 to vector<2x1xf32>
    %469 = arith.divf %467, %468 : vector<2x1xf32>
    %470 = vector.broadcast %469 : vector<2x1xf32> to vector<2x64xf32>
    %471 = arith.subf %465, %470 : vector<2x64xf32>
    %472 = arith.mulf %471, %471 : vector<2x64xf32>
    %cst_202 = arith.constant dense<0.000000e+00> : vector<2xf32>
    %473 = vector.multi_reduction <add>, %472, %cst_202 [1] : vector<2x64xf32> to vector<2xf32>
    %474 = vector.shape_cast %473 : vector<2xf32> to vector<2x1xf32>
    %cst_203 = arith.constant 6.400000e+01 : f32
    %475 = vector.broadcast %cst_203 : f32 to vector<2x1xf32>
    %476 = arith.divf %474, %475 : vector<2x1xf32>
    %cst_204 = arith.constant 9.99999974E-6 : f32
    %477 = vector.broadcast %cst_204 : f32 to vector<2x1xf32>
    %478 = arith.addf %476, %477 : vector<2x1xf32>
    %479 = math.rsqrt %478 : vector<2x1xf32>
    %480 = vector.broadcast %479 : vector<2x1xf32> to vector<2x64xf32>
    %481 = arith.mulf %471, %480 : vector<2x64xf32>
    %c0_205 = arith.constant 0 : index
    %c0_206 = arith.constant 0 : index
    %482 = vector.load %arg6[%c0_205, %c0_206] : memref<1x64xf32, #tpu.memory_space<vmem>>, vector<1x64xf32>
    %483 = vector.broadcast %482 : vector<1x64xf32> to vector<2x64xf32>
    %484 = arith.mulf %481, %483 : vector<2x64xf32>
    %c0_207 = arith.constant 0 : index
    %c0_208 = arith.constant 0 : index
    %485 = vector.load %arg7[%c0_207, %c0_208] : memref<1x64xf32, #tpu.memory_space<vmem>>, vector<1x64xf32>
    %486 = vector.broadcast %485 : vector<1x64xf32> to vector<2x64xf32>
    %487 = arith.addf %484, %486 : vector<2x64xf32>
    %488 = arith.truncf %487 : vector<2x64xf32> to vector<2x64xbf16>
    %c3_209 = arith.constant 3 : index
    %c0_210 = arith.constant 0 : index
    %c0_211 = arith.constant 0 : index
    %489 = vector.load %arg8[%c3_209, %c0_210, %c0_211] : memref<8x2x64xbf16, #tpu.memory_space<vmem>>, vector<1x2x64xbf16>
    %490 = vector.shape_cast %489 : vector<1x2x64xbf16> to vector<2x64xbf16>
    %491 = vector.shape_cast %488 : vector<2x64xbf16> to vector<1x2x64xbf16>
    tpu.vector_store %arg8[%c3_209, %c0_210, %c0_211], %491 {strides = array<i32>} : memref<8x2x64xbf16, #tpu.memory_space<vmem>>, vector<1x2x64xbf16>,
    %c4 = arith.constant 4 : index
    %c0_212 = arith.constant 0 : index
    %c0_213 = arith.constant 0 : index
    %492 = vector.load %arg1[%c4, %c0_212, %c0_213] : memref<8x2x64xbf16, #tpu.memory_space<vmem>>, vector<1x2x64xbf16>
    %493 = vector.shape_cast %492 : vector<1x2x64xbf16> to vector<2x64xbf16>
    %494 = arith.extf %493 : vector<2x64xbf16> to vector<2x64xf32>
    %c0_214 = arith.constant 0 : index
    %c0_215 = arith.constant 0 : index
    %495 = vector.load %arg2[%c0_214, %c0_215] : memref<64x192xbf16, #tpu.memory_space<vmem>>, vector<64x192xbf16>
    %cst_216 = arith.constant dense<0.000000e+00> : vector<2x192xf32>
    %496 = tpu.matmul %493, %495, %cst_216 {dimension_numbers = #tpu.dot_dimension_numbers<[1], [0], [0], [1], [0, 0, 1, 1], [], []>} : vector<2x64xbf16>, vector<64x192xbf16>, vector<2x192xf32> -> vector<2x192xf32>
    %c0_217 = arith.constant 0 : index
    %c0_218 = arith.constant 0 : index
    %497 = vector.load %arg3[%c0_217, %c0_218] : memref<1x192xf32, #tpu.memory_space<vmem>>, vector<1x192xf32>
    %498 = vector.broadcast %497 : vector<1x192xf32> to vector<2x192xf32>
    %499 = arith.addf %496, %498 : vector<2x192xf32>
    %cst_219 = arith.constant 0.000000e+00 : f32
    %500 = vector.broadcast %cst_219 : f32 to vector<2x64xf32>
    %501 = vector.extract_strided_slice %499 {offsets = [0, 0], sizes = [2, 16], strides = [1, 1]} : vector<2x192xf32> to vector<2x16xf32>
    %cst_220 = arith.constant 2.500000e-01 : f32
    %502 = vector.broadcast %cst_220 : f32 to vector<2x16xf32>
    %503 = arith.mulf %501, %502 : vector<2x16xf32>
    %504 = vector.extract_strided_slice %499 {offsets = [0, 64], sizes = [2, 16], strides = [1, 1]} : vector<2x192xf32> to vector<2x16xf32>
    %505 = vector.extract_strided_slice %499 {offsets = [0, 128], sizes = [2, 16], strides = [1, 1]} : vector<2x192xf32> to vector<2x16xf32>
    %cst_221 = arith.constant dense<0.000000e+00> : vector<2x2xf32>
    %506 = tpu.matmul %503, %504, %cst_221 {dimension_numbers = #tpu.dot_dimension_numbers<[1], [1], [0], [0], [0, 0, 1, 0], [], []>} : vector<2x16xf32>, vector<2x16xf32>, vector<2x2xf32> -> vector<2x2xf32>
    %cst_222 = arith.constant dense<0xFF800000> : vector<2xf32>
    %507 = vector.multi_reduction <maximumf>, %506, %cst_222 [1] : vector<2x2xf32> to vector<2xf32>
    %508 = vector.shape_cast %507 : vector<2xf32> to vector<2x1xf32>
    %509 = vector.broadcast %508 : vector<2x1xf32> to vector<2x2xf32>
    %510 = arith.subf %506, %509 : vector<2x2xf32>
    %511 = math.exp %510 : vector<2x2xf32>
    %cst_223 = arith.constant dense<0.000000e+00> : vector<2xf32>
    %512 = vector.multi_reduction <add>, %511, %cst_223 [1] : vector<2x2xf32> to vector<2xf32>
    %513 = vector.shape_cast %512 : vector<2xf32> to vector<2x1xf32>
    %514 = tpu.reciprocal %513 {approx = true} : vector<2x1xf32> -> vector<2x1xf32>
    %515 = vector.broadcast %514 : vector<2x1xf32> to vector<2x2xf32>
    %516 = arith.mulf %511, %515 : vector<2x2xf32>
    %cst_224 = arith.constant dense<0.000000e+00> : vector<2x16xf32>
    %517 = tpu.matmul %516, %505, %cst_224 {dimension_numbers = #tpu.dot_dimension_numbers<[1], [0], [0], [1], [0, 0, 1, 1], [], []>} : vector<2x2xf32>, vector<2x16xf32>, vector<2x16xf32> -> vector<2x16xf32>
    %c0_225 = arith.constant 0 : index
    %c0_226 = arith.constant 0 : index
    %518 = vector.load %arg4[%c0_225, %c0_226] : memref<64x64xbf16, #tpu.memory_space<vmem>>, vector<16x64xbf16>
    %519 = arith.extf %518 : vector<16x64xbf16> to vector<16x64xf32>
    %cst_227 = arith.constant dense<0.000000e+00> : vector<2x64xf32>
    %520 = tpu.matmul %517, %519, %cst_227 {dimension_numbers = #tpu.dot_dimension_numbers<[1], [0], [0], [1], [0, 0, 1, 1], [], []>} : vector<2x16xf32>, vector<16x64xf32>, vector<2x64xf32> -> vector<2x64xf32>
    %521 = arith.addf %500, %520 : vector<2x64xf32>
    %522 = vector.extract_strided_slice %499 {offsets = [0, 16], sizes = [2, 16], strides = [1, 1]} : vector<2x192xf32> to vector<2x16xf32>
    %cst_228 = arith.constant 2.500000e-01 : f32
    %523 = vector.broadcast %cst_228 : f32 to vector<2x16xf32>
    %524 = arith.mulf %522, %523 : vector<2x16xf32>
    %525 = vector.extract_strided_slice %499 {offsets = [0, 80], sizes = [2, 16], strides = [1, 1]} : vector<2x192xf32> to vector<2x16xf32>
    %526 = vector.extract_strided_slice %499 {offsets = [0, 144], sizes = [2, 16], strides = [1, 1]} : vector<2x192xf32> to vector<2x16xf32>
    %cst_229 = arith.constant dense<0.000000e+00> : vector<2x2xf32>
    %527 = tpu.matmul %524, %525, %cst_229 {dimension_numbers = #tpu.dot_dimension_numbers<[1], [1], [0], [0], [0, 0, 1, 0], [], []>} : vector<2x16xf32>, vector<2x16xf32>, vector<2x2xf32> -> vector<2x2xf32>
    %cst_230 = arith.constant dense<0xFF800000> : vector<2xf32>
    %528 = vector.multi_reduction <maximumf>, %527, %cst_230 [1] : vector<2x2xf32> to vector<2xf32>
    %529 = vector.shape_cast %528 : vector<2xf32> to vector<2x1xf32>
    %530 = vector.broadcast %529 : vector<2x1xf32> to vector<2x2xf32>
    %531 = arith.subf %527, %530 : vector<2x2xf32>
    %532 = math.exp %531 : vector<2x2xf32>
    %cst_231 = arith.constant dense<0.000000e+00> : vector<2xf32>
    %533 = vector.multi_reduction <add>, %532, %cst_231 [1] : vector<2x2xf32> to vector<2xf32>
    %534 = vector.shape_cast %533 : vector<2xf32> to vector<2x1xf32>
    %535 = tpu.reciprocal %534 {approx = true} : vector<2x1xf32> -> vector<2x1xf32>
    %536 = vector.broadcast %535 : vector<2x1xf32> to vector<2x2xf32>
    %537 = arith.mulf %532, %536 : vector<2x2xf32>
    %cst_232 = arith.constant dense<0.000000e+00> : vector<2x16xf32>
    %538 = tpu.matmul %537, %526, %cst_232 {dimension_numbers = #tpu.dot_dimension_numbers<[1], [0], [0], [1], [0, 0, 1, 1], [], []>} : vector<2x2xf32>, vector<2x16xf32>, vector<2x16xf32> -> vector<2x16xf32>
    %c16_233 = arith.constant 16 : index
    %c0_234 = arith.constant 0 : index
    %539 = vector.load %arg4[%c16_233, %c0_234] : memref<64x64xbf16, #tpu.memory_space<vmem>>, vector<16x64xbf16>
    %540 = arith.extf %539 : vector<16x64xbf16> to vector<16x64xf32>
    %cst_235 = arith.constant dense<0.000000e+00> : vector<2x64xf32>
    %541 = tpu.matmul %538, %540, %cst_235 {dimension_numbers = #tpu.dot_dimension_numbers<[1], [0], [0], [1], [0, 0, 1, 1], [], []>} : vector<2x16xf32>, vector<16x64xf32>, vector<2x64xf32> -> vector<2x64xf32>
    %542 = arith.addf %521, %541 : vector<2x64xf32>
    %543 = vector.extract_strided_slice %499 {offsets = [0, 32], sizes = [2, 16], strides = [1, 1]} : vector<2x192xf32> to vector<2x16xf32>
    %cst_236 = arith.constant 2.500000e-01 : f32
    %544 = vector.broadcast %cst_236 : f32 to vector<2x16xf32>
    %545 = arith.mulf %543, %544 : vector<2x16xf32>
    %546 = vector.extract_strided_slice %499 {offsets = [0, 96], sizes = [2, 16], strides = [1, 1]} : vector<2x192xf32> to vector<2x16xf32>
    %547 = vector.extract_strided_slice %499 {offsets = [0, 160], sizes = [2, 16], strides = [1, 1]} : vector<2x192xf32> to vector<2x16xf32>
    %cst_237 = arith.constant dense<0.000000e+00> : vector<2x2xf32>
    %548 = tpu.matmul %545, %546, %cst_237 {dimension_numbers = #tpu.dot_dimension_numbers<[1], [1], [0], [0], [0, 0, 1, 0], [], []>} : vector<2x16xf32>, vector<2x16xf32>, vector<2x2xf32> -> vector<2x2xf32>
    %cst_238 = arith.constant dense<0xFF800000> : vector<2xf32>
    %549 = vector.multi_reduction <maximumf>, %548, %cst_238 [1] : vector<2x2xf32> to vector<2xf32>
    %550 = vector.shape_cast %549 : vector<2xf32> to vector<2x1xf32>
    %551 = vector.broadcast %550 : vector<2x1xf32> to vector<2x2xf32>
    %552 = arith.subf %548, %551 : vector<2x2xf32>
    %553 = math.exp %552 : vector<2x2xf32>
    %cst_239 = arith.constant dense<0.000000e+00> : vector<2xf32>
    %554 = vector.multi_reduction <add>, %553, %cst_239 [1] : vector<2x2xf32> to vector<2xf32>
    %555 = vector.shape_cast %554 : vector<2xf32> to vector<2x1xf32>
    %556 = tpu.reciprocal %555 {approx = true} : vector<2x1xf32> -> vector<2x1xf32>
    %557 = vector.broadcast %556 : vector<2x1xf32> to vector<2x2xf32>
    %558 = arith.mulf %553, %557 : vector<2x2xf32>
    %cst_240 = arith.constant dense<0.000000e+00> : vector<2x16xf32>
    %559 = tpu.matmul %558, %547, %cst_240 {dimension_numbers = #tpu.dot_dimension_numbers<[1], [0], [0], [1], [0, 0, 1, 1], [], []>} : vector<2x2xf32>, vector<2x16xf32>, vector<2x16xf32> -> vector<2x16xf32>
    %c32_241 = arith.constant 32 : index
    %c0_242 = arith.constant 0 : index
    %560 = vector.load %arg4[%c32_241, %c0_242] : memref<64x64xbf16, #tpu.memory_space<vmem>>, vector<16x64xbf16>
    %561 = arith.extf %560 : vector<16x64xbf16> to vector<16x64xf32>
    %cst_243 = arith.constant dense<0.000000e+00> : vector<2x64xf32>
    %562 = tpu.matmul %559, %561, %cst_243 {dimension_numbers = #tpu.dot_dimension_numbers<[1], [0], [0], [1], [0, 0, 1, 1], [], []>} : vector<2x16xf32>, vector<16x64xf32>, vector<2x64xf32> -> vector<2x64xf32>
    %563 = arith.addf %542, %562 : vector<2x64xf32>
    %564 = vector.extract_strided_slice %499 {offsets = [0, 48], sizes = [2, 16], strides = [1, 1]} : vector<2x192xf32> to vector<2x16xf32>
    %cst_244 = arith.constant 2.500000e-01 : f32
    %565 = vector.broadcast %cst_244 : f32 to vector<2x16xf32>
    %566 = arith.mulf %564, %565 : vector<2x16xf32>
    %567 = vector.extract_strided_slice %499 {offsets = [0, 112], sizes = [2, 16], strides = [1, 1]} : vector<2x192xf32> to vector<2x16xf32>
    %568 = vector.extract_strided_slice %499 {offsets = [0, 176], sizes = [2, 16], strides = [1, 1]} : vector<2x192xf32> to vector<2x16xf32>
    %cst_245 = arith.constant dense<0.000000e+00> : vector<2x2xf32>
    %569 = tpu.matmul %566, %567, %cst_245 {dimension_numbers = #tpu.dot_dimension_numbers<[1], [1], [0], [0], [0, 0, 1, 0], [], []>} : vector<2x16xf32>, vector<2x16xf32>, vector<2x2xf32> -> vector<2x2xf32>
    %cst_246 = arith.constant dense<0xFF800000> : vector<2xf32>
    %570 = vector.multi_reduction <maximumf>, %569, %cst_246 [1] : vector<2x2xf32> to vector<2xf32>
    %571 = vector.shape_cast %570 : vector<2xf32> to vector<2x1xf32>
    %572 = vector.broadcast %571 : vector<2x1xf32> to vector<2x2xf32>
    %573 = arith.subf %569, %572 : vector<2x2xf32>
    %574 = math.exp %573 : vector<2x2xf32>
    %cst_247 = arith.constant dense<0.000000e+00> : vector<2xf32>
    %575 = vector.multi_reduction <add>, %574, %cst_247 [1] : vector<2x2xf32> to vector<2xf32>
    %576 = vector.shape_cast %575 : vector<2xf32> to vector<2x1xf32>
    %577 = tpu.reciprocal %576 {approx = true} : vector<2x1xf32> -> vector<2x1xf32>
    %578 = vector.broadcast %577 : vector<2x1xf32> to vector<2x2xf32>
    %579 = arith.mulf %574, %578 : vector<2x2xf32>
    %cst_248 = arith.constant dense<0.000000e+00> : vector<2x16xf32>
    %580 = tpu.matmul %579, %568, %cst_248 {dimension_numbers = #tpu.dot_dimension_numbers<[1], [0], [0], [1], [0, 0, 1, 1], [], []>} : vector<2x2xf32>, vector<2x16xf32>, vector<2x16xf32> -> vector<2x16xf32>
    %c48_249 = arith.constant 48 : index
    %c0_250 = arith.constant 0 : index
    %581 = vector.load %arg4[%c48_249, %c0_250] : memref<64x64xbf16, #tpu.memory_space<vmem>>, vector<16x64xbf16>
    %582 = arith.extf %581 : vector<16x64xbf16> to vector<16x64xf32>
    %cst_251 = arith.constant dense<0.000000e+00> : vector<2x64xf32>
    %583 = tpu.matmul %580, %582, %cst_251 {dimension_numbers = #tpu.dot_dimension_numbers<[1], [0], [0], [1], [0, 0, 1, 1], [], []>} : vector<2x16xf32>, vector<16x64xf32>, vector<2x64xf32> -> vector<2x64xf32>
    %584 = arith.addf %563, %583 : vector<2x64xf32>
    %c0_252 = arith.constant 0 : index
    %c0_253 = arith.constant 0 : index
    %585 = vector.load %arg5[%c0_252, %c0_253] : memref<1x64xf32, #tpu.memory_space<vmem>>, vector<1x64xf32>
    %586 = vector.broadcast %585 : vector<1x64xf32> to vector<2x64xf32>
    %587 = arith.addf %584, %586 : vector<2x64xf32>
    %588 = arith.addf %494, %587 : vector<2x64xf32>
    %cst_254 = arith.constant dense<0.000000e+00> : vector<2xf32>
    %589 = vector.multi_reduction <add>, %588, %cst_254 [1] : vector<2x64xf32> to vector<2xf32>
    %590 = vector.shape_cast %589 : vector<2xf32> to vector<2x1xf32>
    %cst_255 = arith.constant 6.400000e+01 : f32
    %591 = vector.broadcast %cst_255 : f32 to vector<2x1xf32>
    %592 = arith.divf %590, %591 : vector<2x1xf32>
    %593 = vector.broadcast %592 : vector<2x1xf32> to vector<2x64xf32>
    %594 = arith.subf %588, %593 : vector<2x64xf32>
    %595 = arith.mulf %594, %594 : vector<2x64xf32>
    %cst_256 = arith.constant dense<0.000000e+00> : vector<2xf32>
    %596 = vector.multi_reduction <add>, %595, %cst_256 [1] : vector<2x64xf32> to vector<2xf32>
    %597 = vector.shape_cast %596 : vector<2xf32> to vector<2x1xf32>
    %cst_257 = arith.constant 6.400000e+01 : f32
    %598 = vector.broadcast %cst_257 : f32 to vector<2x1xf32>
    %599 = arith.divf %597, %598 : vector<2x1xf32>
    %cst_258 = arith.constant 9.99999974E-6 : f32
    %600 = vector.broadcast %cst_258 : f32 to vector<2x1xf32>
    %601 = arith.addf %599, %600 : vector<2x1xf32>
    %602 = math.rsqrt %601 : vector<2x1xf32>
    %603 = vector.broadcast %602 : vector<2x1xf32> to vector<2x64xf32>
    %604 = arith.mulf %594, %603 : vector<2x64xf32>
    %c0_259 = arith.constant 0 : index
    %c0_260 = arith.constant 0 : index
    %605 = vector.load %arg6[%c0_259, %c0_260] : memref<1x64xf32, #tpu.memory_space<vmem>>, vector<1x64xf32>
    %606 = vector.broadcast %605 : vector<1x64xf32> to vector<2x64xf32>
    %607 = arith.mulf %604, %606 : vector<2x64xf32>
    %c0_261 = arith.constant 0 : index
    %c0_262 = arith.constant 0 : index
    %608 = vector.load %arg7[%c0_261, %c0_262] : memref<1x64xf32, #tpu.memory_space<vmem>>, vector<1x64xf32>
    %609 = vector.broadcast %608 : vector<1x64xf32> to vector<2x64xf32>
    %610 = arith.addf %607, %609 : vector<2x64xf32>
    %611 = arith.truncf %610 : vector<2x64xf32> to vector<2x64xbf16>
    %c4_263 = arith.constant 4 : index
    %c0_264 = arith.constant 0 : index
    %c0_265 = arith.constant 0 : index
    %612 = vector.load %arg8[%c4_263, %c0_264, %c0_265] : memref<8x2x64xbf16, #tpu.memory_space<vmem>>, vector<1x2x64xbf16>
    %613 = vector.shape_cast %612 : vector<1x2x64xbf16> to vector<2x64xbf16>
    %614 = vector.shape_cast %611 : vector<2x64xbf16> to vector<1x2x64xbf16>
    tpu.vector_store %arg8[%c4_263, %c0_264, %c0_265], %614 {strides = array<i32>} : memref<8x2x64xbf16, #tpu.memory_space<vmem>>, vector<1x2x64xbf16>,
    %c5 = arith.constant 5 : index
    %c0_266 = arith.constant 0 : index
    %c0_267 = arith.constant 0 : index
    %615 = vector.load %arg1[%c5, %c0_266, %c0_267] : memref<8x2x64xbf16, #tpu.memory_space<vmem>>, vector<1x2x64xbf16>
    %616 = vector.shape_cast %615 : vector<1x2x64xbf16> to vector<2x64xbf16>
    %617 = arith.extf %616 : vector<2x64xbf16> to vector<2x64xf32>
    %c0_268 = arith.constant 0 : index
    %c0_269 = arith.constant 0 : index
    %618 = vector.load %arg2[%c0_268, %c0_269] : memref<64x192xbf16, #tpu.memory_space<vmem>>, vector<64x192xbf16>
    %cst_270 = arith.constant dense<0.000000e+00> : vector<2x192xf32>
    %619 = tpu.matmul %616, %618, %cst_270 {dimension_numbers = #tpu.dot_dimension_numbers<[1], [0], [0], [1], [0, 0, 1, 1], [], []>} : vector<2x64xbf16>, vector<64x192xbf16>, vector<2x192xf32> -> vector<2x192xf32>
    %c0_271 = arith.constant 0 : index
    %c0_272 = arith.constant 0 : index
    %620 = vector.load %arg3[%c0_271, %c0_272] : memref<1x192xf32, #tpu.memory_space<vmem>>, vector<1x192xf32>
    %621 = vector.broadcast %620 : vector<1x192xf32> to vector<2x192xf32>
    %622 = arith.addf %619, %621 : vector<2x192xf32>
    %cst_273 = arith.constant 0.000000e+00 : f32
    %623 = vector.broadcast %cst_273 : f32 to vector<2x64xf32>
    %624 = vector.extract_strided_slice %622 {offsets = [0, 0], sizes = [2, 16], strides = [1, 1]} : vector<2x192xf32> to vector<2x16xf32>
    %cst_274 = arith.constant 2.500000e-01 : f32
    %625 = vector.broadcast %cst_274 : f32 to vector<2x16xf32>
    %626 = arith.mulf %624, %625 : vector<2x16xf32>
    %627 = vector.extract_strided_slice %622 {offsets = [0, 64], sizes = [2, 16], strides = [1, 1]} : vector<2x192xf32> to vector<2x16xf32>
    %628 = vector.extract_strided_slice %622 {offsets = [0, 128], sizes = [2, 16], strides = [1, 1]} : vector<2x192xf32> to vector<2x16xf32>
    %cst_275 = arith.constant dense<0.000000e+00> : vector<2x2xf32>
    %629 = tpu.matmul %626, %627, %cst_275 {dimension_numbers = #tpu.dot_dimension_numbers<[1], [1], [0], [0], [0, 0, 1, 0], [], []>} : vector<2x16xf32>, vector<2x16xf32>, vector<2x2xf32> -> vector<2x2xf32>
    %cst_276 = arith.constant dense<0xFF800000> : vector<2xf32>
    %630 = vector.multi_reduction <maximumf>, %629, %cst_276 [1] : vector<2x2xf32> to vector<2xf32>
    %631 = vector.shape_cast %630 : vector<2xf32> to vector<2x1xf32>
    %632 = vector.broadcast %631 : vector<2x1xf32> to vector<2x2xf32>
    %633 = arith.subf %629, %632 : vector<2x2xf32>
    %634 = math.exp %633 : vector<2x2xf32>
    %cst_277 = arith.constant dense<0.000000e+00> : vector<2xf32>
    %635 = vector.multi_reduction <add>, %634, %cst_277 [1] : vector<2x2xf32> to vector<2xf32>
    %636 = vector.shape_cast %635 : vector<2xf32> to vector<2x1xf32>
    %637 = tpu.reciprocal %636 {approx = true} : vector<2x1xf32> -> vector<2x1xf32>
    %638 = vector.broadcast %637 : vector<2x1xf32> to vector<2x2xf32>
    %639 = arith.mulf %634, %638 : vector<2x2xf32>
    %cst_278 = arith.constant dense<0.000000e+00> : vector<2x16xf32>
    %640 = tpu.matmul %639, %628, %cst_278 {dimension_numbers = #tpu.dot_dimension_numbers<[1], [0], [0], [1], [0, 0, 1, 1], [], []>} : vector<2x2xf32>, vector<2x16xf32>, vector<2x16xf32> -> vector<2x16xf32>
    %c0_279 = arith.constant 0 : index
    %c0_280 = arith.constant 0 : index
    %641 = vector.load %arg4[%c0_279, %c0_280] : memref<64x64xbf16, #tpu.memory_space<vmem>>, vector<16x64xbf16>
    %642 = arith.extf %641 : vector<16x64xbf16> to vector<16x64xf32>
    %cst_281 = arith.constant dense<0.000000e+00> : vector<2x64xf32>
    %643 = tpu.matmul %640, %642, %cst_281 {dimension_numbers = #tpu.dot_dimension_numbers<[1], [0], [0], [1], [0, 0, 1, 1], [], []>} : vector<2x16xf32>, vector<16x64xf32>, vector<2x64xf32> -> vector<2x64xf32>
    %644 = arith.addf %623, %643 : vector<2x64xf32>
    %645 = vector.extract_strided_slice %622 {offsets = [0, 16], sizes = [2, 16], strides = [1, 1]} : vector<2x192xf32> to vector<2x16xf32>
    %cst_282 = arith.constant 2.500000e-01 : f32
    %646 = vector.broadcast %cst_282 : f32 to vector<2x16xf32>
    %647 = arith.mulf %645, %646 : vector<2x16xf32>
    %648 = vector.extract_strided_slice %622 {offsets = [0, 80], sizes = [2, 16], strides = [1, 1]} : vector<2x192xf32> to vector<2x16xf32>
    %649 = vector.extract_strided_slice %622 {offsets = [0, 144], sizes = [2, 16], strides = [1, 1]} : vector<2x192xf32> to vector<2x16xf32>
    %cst_283 = arith.constant dense<0.000000e+00> : vector<2x2xf32>
    %650 = tpu.matmul %647, %648, %cst_283 {dimension_numbers = #tpu.dot_dimension_numbers<[1], [1], [0], [0], [0, 0, 1, 0], [], []>} : vector<2x16xf32>, vector<2x16xf32>, vector<2x2xf32> -> vector<2x2xf32>
    %cst_284 = arith.constant dense<0xFF800000> : vector<2xf32>
    %651 = vector.multi_reduction <maximumf>, %650, %cst_284 [1] : vector<2x2xf32> to vector<2xf32>
    %652 = vector.shape_cast %651 : vector<2xf32> to vector<2x1xf32>
    %653 = vector.broadcast %652 : vector<2x1xf32> to vector<2x2xf32>
    %654 = arith.subf %650, %653 : vector<2x2xf32>
    %655 = math.exp %654 : vector<2x2xf32>
    %cst_285 = arith.constant dense<0.000000e+00> : vector<2xf32>
    %656 = vector.multi_reduction <add>, %655, %cst_285 [1] : vector<2x2xf32> to vector<2xf32>
    %657 = vector.shape_cast %656 : vector<2xf32> to vector<2x1xf32>
    %658 = tpu.reciprocal %657 {approx = true} : vector<2x1xf32> -> vector<2x1xf32>
    %659 = vector.broadcast %658 : vector<2x1xf32> to vector<2x2xf32>
    %660 = arith.mulf %655, %659 : vector<2x2xf32>
    %cst_286 = arith.constant dense<0.000000e+00> : vector<2x16xf32>
    %661 = tpu.matmul %660, %649, %cst_286 {dimension_numbers = #tpu.dot_dimension_numbers<[1], [0], [0], [1], [0, 0, 1, 1], [], []>} : vector<2x2xf32>, vector<2x16xf32>, vector<2x16xf32> -> vector<2x16xf32>
    %c16_287 = arith.constant 16 : index
    %c0_288 = arith.constant 0 : index
    %662 = vector.load %arg4[%c16_287, %c0_288] : memref<64x64xbf16, #tpu.memory_space<vmem>>, vector<16x64xbf16>
    %663 = arith.extf %662 : vector<16x64xbf16> to vector<16x64xf32>
    %cst_289 = arith.constant dense<0.000000e+00> : vector<2x64xf32>
    %664 = tpu.matmul %661, %663, %cst_289 {dimension_numbers = #tpu.dot_dimension_numbers<[1], [0], [0], [1], [0, 0, 1, 1], [], []>} : vector<2x16xf32>, vector<16x64xf32>, vector<2x64xf32> -> vector<2x64xf32>
    %665 = arith.addf %644, %664 : vector<2x64xf32>
    %666 = vector.extract_strided_slice %622 {offsets = [0, 32], sizes = [2, 16], strides = [1, 1]} : vector<2x192xf32> to vector<2x16xf32>
    %cst_290 = arith.constant 2.500000e-01 : f32
    %667 = vector.broadcast %cst_290 : f32 to vector<2x16xf32>
    %668 = arith.mulf %666, %667 : vector<2x16xf32>
    %669 = vector.extract_strided_slice %622 {offsets = [0, 96], sizes = [2, 16], strides = [1, 1]} : vector<2x192xf32> to vector<2x16xf32>
    %670 = vector.extract_strided_slice %622 {offsets = [0, 160], sizes = [2, 16], strides = [1, 1]} : vector<2x192xf32> to vector<2x16xf32>
    %cst_291 = arith.constant dense<0.000000e+00> : vector<2x2xf32>
    %671 = tpu.matmul %668, %669, %cst_291 {dimension_numbers = #tpu.dot_dimension_numbers<[1], [1], [0], [0], [0, 0, 1, 0], [], []>} : vector<2x16xf32>, vector<2x16xf32>, vector<2x2xf32> -> vector<2x2xf32>
    %cst_292 = arith.constant dense<0xFF800000> : vector<2xf32>
    %672 = vector.multi_reduction <maximumf>, %671, %cst_292 [1] : vector<2x2xf32> to vector<2xf32>
    %673 = vector.shape_cast %672 : vector<2xf32> to vector<2x1xf32>
    %674 = vector.broadcast %673 : vector<2x1xf32> to vector<2x2xf32>
    %675 = arith.subf %671, %674 : vector<2x2xf32>
    %676 = math.exp %675 : vector<2x2xf32>
    %cst_293 = arith.constant dense<0.000000e+00> : vector<2xf32>
    %677 = vector.multi_reduction <add>, %676, %cst_293 [1] : vector<2x2xf32> to vector<2xf32>
    %678 = vector.shape_cast %677 : vector<2xf32> to vector<2x1xf32>
    %679 = tpu.reciprocal %678 {approx = true} : vector<2x1xf32> -> vector<2x1xf32>
    %680 = vector.broadcast %679 : vector<2x1xf32> to vector<2x2xf32>
    %681 = arith.mulf %676, %680 : vector<2x2xf32>
    %cst_294 = arith.constant dense<0.000000e+00> : vector<2x16xf32>
    %682 = tpu.matmul %681, %670, %cst_294 {dimension_numbers = #tpu.dot_dimension_numbers<[1], [0], [0], [1], [0, 0, 1, 1], [], []>} : vector<2x2xf32>, vector<2x16xf32>, vector<2x16xf32> -> vector<2x16xf32>
    %c32_295 = arith.constant 32 : index
    %c0_296 = arith.constant 0 : index
    %683 = vector.load %arg4[%c32_295, %c0_296] : memref<64x64xbf16, #tpu.memory_space<vmem>>, vector<16x64xbf16>
    %684 = arith.extf %683 : vector<16x64xbf16> to vector<16x64xf32>
    %cst_297 = arith.constant dense<0.000000e+00> : vector<2x64xf32>
    %685 = tpu.matmul %682, %684, %cst_297 {dimension_numbers = #tpu.dot_dimension_numbers<[1], [0], [0], [1], [0, 0, 1, 1], [], []>} : vector<2x16xf32>, vector<16x64xf32>, vector<2x64xf32> -> vector<2x64xf32>
    %686 = arith.addf %665, %685 : vector<2x64xf32>
    %687 = vector.extract_strided_slice %622 {offsets = [0, 48], sizes = [2, 16], strides = [1, 1]} : vector<2x192xf32> to vector<2x16xf32>
    %cst_298 = arith.constant 2.500000e-01 : f32
    %688 = vector.broadcast %cst_298 : f32 to vector<2x16xf32>
    %689 = arith.mulf %687, %688 : vector<2x16xf32>
    %690 = vector.extract_strided_slice %622 {offsets = [0, 112], sizes = [2, 16], strides = [1, 1]} : vector<2x192xf32> to vector<2x16xf32>
    %691 = vector.extract_strided_slice %622 {offsets = [0, 176], sizes = [2, 16], strides = [1, 1]} : vector<2x192xf32> to vector<2x16xf32>
    %cst_299 = arith.constant dense<0.000000e+00> : vector<2x2xf32>
    %692 = tpu.matmul %689, %690, %cst_299 {dimension_numbers = #tpu.dot_dimension_numbers<[1], [1], [0], [0], [0, 0, 1, 0], [], []>} : vector<2x16xf32>, vector<2x16xf32>, vector<2x2xf32> -> vector<2x2xf32>
    %cst_300 = arith.constant dense<0xFF800000> : vector<2xf32>
    %693 = vector.multi_reduction <maximumf>, %692, %cst_300 [1] : vector<2x2xf32> to vector<2xf32>
    %694 = vector.shape_cast %693 : vector<2xf32> to vector<2x1xf32>
    %695 = vector.broadcast %694 : vector<2x1xf32> to vector<2x2xf32>
    %696 = arith.subf %692, %695 : vector<2x2xf32>
    %697 = math.exp %696 : vector<2x2xf32>
    %cst_301 = arith.constant dense<0.000000e+00> : vector<2xf32>
    %698 = vector.multi_reduction <add>, %697, %cst_301 [1] : vector<2x2xf32> to vector<2xf32>
    %699 = vector.shape_cast %698 : vector<2xf32> to vector<2x1xf32>
    %700 = tpu.reciprocal %699 {approx = true} : vector<2x1xf32> -> vector<2x1xf32>
    %701 = vector.broadcast %700 : vector<2x1xf32> to vector<2x2xf32>
    %702 = arith.mulf %697, %701 : vector<2x2xf32>
    %cst_302 = arith.constant dense<0.000000e+00> : vector<2x16xf32>
    %703 = tpu.matmul %702, %691, %cst_302 {dimension_numbers = #tpu.dot_dimension_numbers<[1], [0], [0], [1], [0, 0, 1, 1], [], []>} : vector<2x2xf32>, vector<2x16xf32>, vector<2x16xf32> -> vector<2x16xf32>
    %c48_303 = arith.constant 48 : index
    %c0_304 = arith.constant 0 : index
    %704 = vector.load %arg4[%c48_303, %c0_304] : memref<64x64xbf16, #tpu.memory_space<vmem>>, vector<16x64xbf16>
    %705 = arith.extf %704 : vector<16x64xbf16> to vector<16x64xf32>
    %cst_305 = arith.constant dense<0.000000e+00> : vector<2x64xf32>
    %706 = tpu.matmul %703, %705, %cst_305 {dimension_numbers = #tpu.dot_dimension_numbers<[1], [0], [0], [1], [0, 0, 1, 1], [], []>} : vector<2x16xf32>, vector<16x64xf32>, vector<2x64xf32> -> vector<2x64xf32>
    %707 = arith.addf %686, %706 : vector<2x64xf32>
    %c0_306 = arith.constant 0 : index
    %c0_307 = arith.constant 0 : index
    %708 = vector.load %arg5[%c0_306, %c0_307] : memref<1x64xf32, #tpu.memory_space<vmem>>, vector<1x64xf32>
    %709 = vector.broadcast %708 : vector<1x64xf32> to vector<2x64xf32>
    %710 = arith.addf %707, %709 : vector<2x64xf32>
    %711 = arith.addf %617, %710 : vector<2x64xf32>
    %cst_308 = arith.constant dense<0.000000e+00> : vector<2xf32>
    %712 = vector.multi_reduction <add>, %711, %cst_308 [1] : vector<2x64xf32> to vector<2xf32>
    %713 = vector.shape_cast %712 : vector<2xf32> to vector<2x1xf32>
    %cst_309 = arith.constant 6.400000e+01 : f32
    %714 = vector.broadcast %cst_309 : f32 to vector<2x1xf32>
    %715 = arith.divf %713, %714 : vector<2x1xf32>
    %716 = vector.broadcast %715 : vector<2x1xf32> to vector<2x64xf32>
    %717 = arith.subf %711, %716 : vector<2x64xf32>
    %718 = arith.mulf %717, %717 : vector<2x64xf32>
    %cst_310 = arith.constant dense<0.000000e+00> : vector<2xf32>
    %719 = vector.multi_reduction <add>, %718, %cst_310 [1] : vector<2x64xf32> to vector<2xf32>
    %720 = vector.shape_cast %719 : vector<2xf32> to vector<2x1xf32>
    %cst_311 = arith.constant 6.400000e+01 : f32
    %721 = vector.broadcast %cst_311 : f32 to vector<2x1xf32>
    %722 = arith.divf %720, %721 : vector<2x1xf32>
    %cst_312 = arith.constant 9.99999974E-6 : f32
    %723 = vector.broadcast %cst_312 : f32 to vector<2x1xf32>
    %724 = arith.addf %722, %723 : vector<2x1xf32>
    %725 = math.rsqrt %724 : vector<2x1xf32>
    %726 = vector.broadcast %725 : vector<2x1xf32> to vector<2x64xf32>
    %727 = arith.mulf %717, %726 : vector<2x64xf32>
    %c0_313 = arith.constant 0 : index
    %c0_314 = arith.constant 0 : index
    %728 = vector.load %arg6[%c0_313, %c0_314] : memref<1x64xf32, #tpu.memory_space<vmem>>, vector<1x64xf32>
    %729 = vector.broadcast %728 : vector<1x64xf32> to vector<2x64xf32>
    %730 = arith.mulf %727, %729 : vector<2x64xf32>
    %c0_315 = arith.constant 0 : index
    %c0_316 = arith.constant 0 : index
    %731 = vector.load %arg7[%c0_315, %c0_316] : memref<1x64xf32, #tpu.memory_space<vmem>>, vector<1x64xf32>
    %732 = vector.broadcast %731 : vector<1x64xf32> to vector<2x64xf32>
    %733 = arith.addf %730, %732 : vector<2x64xf32>
    %734 = arith.truncf %733 : vector<2x64xf32> to vector<2x64xbf16>
    %c5_317 = arith.constant 5 : index
    %c0_318 = arith.constant 0 : index
    %c0_319 = arith.constant 0 : index
    %735 = vector.load %arg8[%c5_317, %c0_318, %c0_319] : memref<8x2x64xbf16, #tpu.memory_space<vmem>>, vector<1x2x64xbf16>
    %736 = vector.shape_cast %735 : vector<1x2x64xbf16> to vector<2x64xbf16>
    %737 = vector.shape_cast %734 : vector<2x64xbf16> to vector<1x2x64xbf16>
    tpu.vector_store %arg8[%c5_317, %c0_318, %c0_319], %737 {strides = array<i32>} : memref<8x2x64xbf16, #tpu.memory_space<vmem>>, vector<1x2x64xbf16>,
    %c6 = arith.constant 6 : index
    %c0_320 = arith.constant 0 : index
    %c0_321 = arith.constant 0 : index
    %738 = vector.load %arg1[%c6, %c0_320, %c0_321] : memref<8x2x64xbf16, #tpu.memory_space<vmem>>, vector<1x2x64xbf16>
    %739 = vector.shape_cast %738 : vector<1x2x64xbf16> to vector<2x64xbf16>
    %740 = arith.extf %739 : vector<2x64xbf16> to vector<2x64xf32>
    %c0_322 = arith.constant 0 : index
    %c0_323 = arith.constant 0 : index
    %741 = vector.load %arg2[%c0_322, %c0_323] : memref<64x192xbf16, #tpu.memory_space<vmem>>, vector<64x192xbf16>
    %cst_324 = arith.constant dense<0.000000e+00> : vector<2x192xf32>
    %742 = tpu.matmul %739, %741, %cst_324 {dimension_numbers = #tpu.dot_dimension_numbers<[1], [0], [0], [1], [0, 0, 1, 1], [], []>} : vector<2x64xbf16>, vector<64x192xbf16>, vector<2x192xf32> -> vector<2x192xf32>
    %c0_325 = arith.constant 0 : index
    %c0_326 = arith.constant 0 : index
    %743 = vector.load %arg3[%c0_325, %c0_326] : memref<1x192xf32, #tpu.memory_space<vmem>>, vector<1x192xf32>
    %744 = vector.broadcast %743 : vector<1x192xf32> to vector<2x192xf32>
    %745 = arith.addf %742, %744 : vector<2x192xf32>
    %cst_327 = arith.constant 0.000000e+00 : f32
    %746 = vector.broadcast %cst_327 : f32 to vector<2x64xf32>
    %747 = vector.extract_strided_slice %745 {offsets = [0, 0], sizes = [2, 16], strides = [1, 1]} : vector<2x192xf32> to vector<2x16xf32>
    %cst_328 = arith.constant 2.500000e-01 : f32
    %748 = vector.broadcast %cst_328 : f32 to vector<2x16xf32>
    %749 = arith.mulf %747, %748 : vector<2x16xf32>
    %750 = vector.extract_strided_slice %745 {offsets = [0, 64], sizes = [2, 16], strides = [1, 1]} : vector<2x192xf32> to vector<2x16xf32>
    %751 = vector.extract_strided_slice %745 {offsets = [0, 128], sizes = [2, 16], strides = [1, 1]} : vector<2x192xf32> to vector<2x16xf32>
    %cst_329 = arith.constant dense<0.000000e+00> : vector<2x2xf32>
    %752 = tpu.matmul %749, %750, %cst_329 {dimension_numbers = #tpu.dot_dimension_numbers<[1], [1], [0], [0], [0, 0, 1, 0], [], []>} : vector<2x16xf32>, vector<2x16xf32>, vector<2x2xf32> -> vector<2x2xf32>
    %cst_330 = arith.constant dense<0xFF800000> : vector<2xf32>
    %753 = vector.multi_reduction <maximumf>, %752, %cst_330 [1] : vector<2x2xf32> to vector<2xf32>
    %754 = vector.shape_cast %753 : vector<2xf32> to vector<2x1xf32>
    %755 = vector.broadcast %754 : vector<2x1xf32> to vector<2x2xf32>
    %756 = arith.subf %752, %755 : vector<2x2xf32>
    %757 = math.exp %756 : vector<2x2xf32>
    %cst_331 = arith.constant dense<0.000000e+00> : vector<2xf32>
    %758 = vector.multi_reduction <add>, %757, %cst_331 [1] : vector<2x2xf32> to vector<2xf32>
    %759 = vector.shape_cast %758 : vector<2xf32> to vector<2x1xf32>
    %760 = tpu.reciprocal %759 {approx = true} : vector<2x1xf32> -> vector<2x1xf32>
    %761 = vector.broadcast %760 : vector<2x1xf32> to vector<2x2xf32>
    %762 = arith.mulf %757, %761 : vector<2x2xf32>
    %cst_332 = arith.constant dense<0.000000e+00> : vector<2x16xf32>
    %763 = tpu.matmul %762, %751, %cst_332 {dimension_numbers = #tpu.dot_dimension_numbers<[1], [0], [0], [1], [0, 0, 1, 1], [], []>} : vector<2x2xf32>, vector<2x16xf32>, vector<2x16xf32> -> vector<2x16xf32>
    %c0_333 = arith.constant 0 : index
    %c0_334 = arith.constant 0 : index
    %764 = vector.load %arg4[%c0_333, %c0_334] : memref<64x64xbf16, #tpu.memory_space<vmem>>, vector<16x64xbf16>
    %765 = arith.extf %764 : vector<16x64xbf16> to vector<16x64xf32>
    %cst_335 = arith.constant dense<0.000000e+00> : vector<2x64xf32>
    %766 = tpu.matmul %763, %765, %cst_335 {dimension_numbers = #tpu.dot_dimension_numbers<[1], [0], [0], [1], [0, 0, 1, 1], [], []>} : vector<2x16xf32>, vector<16x64xf32>, vector<2x64xf32> -> vector<2x64xf32>
    %767 = arith.addf %746, %766 : vector<2x64xf32>
    %768 = vector.extract_strided_slice %745 {offsets = [0, 16], sizes = [2, 16], strides = [1, 1]} : vector<2x192xf32> to vector<2x16xf32>
    %cst_336 = arith.constant 2.500000e-01 : f32
    %769 = vector.broadcast %cst_336 : f32 to vector<2x16xf32>
    %770 = arith.mulf %768, %769 : vector<2x16xf32>
    %771 = vector.extract_strided_slice %745 {offsets = [0, 80], sizes = [2, 16], strides = [1, 1]} : vector<2x192xf32> to vector<2x16xf32>
    %772 = vector.extract_strided_slice %745 {offsets = [0, 144], sizes = [2, 16], strides = [1, 1]} : vector<2x192xf32> to vector<2x16xf32>
    %cst_337 = arith.constant dense<0.000000e+00> : vector<2x2xf32>
    %773 = tpu.matmul %770, %771, %cst_337 {dimension_numbers = #tpu.dot_dimension_numbers<[1], [1], [0], [0], [0, 0, 1, 0], [], []>} : vector<2x16xf32>, vector<2x16xf32>, vector<2x2xf32> -> vector<2x2xf32>
    %cst_338 = arith.constant dense<0xFF800000> : vector<2xf32>
    %774 = vector.multi_reduction <maximumf>, %773, %cst_338 [1] : vector<2x2xf32> to vector<2xf32>
    %775 = vector.shape_cast %774 : vector<2xf32> to vector<2x1xf32>
    %776 = vector.broadcast %775 : vector<2x1xf32> to vector<2x2xf32>
    %777 = arith.subf %773, %776 : vector<2x2xf32>
    %778 = math.exp %777 : vector<2x2xf32>
    %cst_339 = arith.constant dense<0.000000e+00> : vector<2xf32>
    %779 = vector.multi_reduction <add>, %778, %cst_339 [1] : vector<2x2xf32> to vector<2xf32>
    %780 = vector.shape_cast %779 : vector<2xf32> to vector<2x1xf32>
    %781 = tpu.reciprocal %780 {approx = true} : vector<2x1xf32> -> vector<2x1xf32>
    %782 = vector.broadcast %781 : vector<2x1xf32> to vector<2x2xf32>
    %783 = arith.mulf %778, %782 : vector<2x2xf32>
    %cst_340 = arith.constant dense<0.000000e+00> : vector<2x16xf32>
    %784 = tpu.matmul %783, %772, %cst_340 {dimension_numbers = #tpu.dot_dimension_numbers<[1], [0], [0], [1], [0, 0, 1, 1], [], []>} : vector<2x2xf32>, vector<2x16xf32>, vector<2x16xf32> -> vector<2x16xf32>
    %c16_341 = arith.constant 16 : index
    %c0_342 = arith.constant 0 : index
    %785 = vector.load %arg4[%c16_341, %c0_342] : memref<64x64xbf16, #tpu.memory_space<vmem>>, vector<16x64xbf16>
    %786 = arith.extf %785 : vector<16x64xbf16> to vector<16x64xf32>
    %cst_343 = arith.constant dense<0.000000e+00> : vector<2x64xf32>
    %787 = tpu.matmul %784, %786, %cst_343 {dimension_numbers = #tpu.dot_dimension_numbers<[1], [0], [0], [1], [0, 0, 1, 1], [], []>} : vector<2x16xf32>, vector<16x64xf32>, vector<2x64xf32> -> vector<2x64xf32>
    %788 = arith.addf %767, %787 : vector<2x64xf32>
    %789 = vector.extract_strided_slice %745 {offsets = [0, 32], sizes = [2, 16], strides = [1, 1]} : vector<2x192xf32> to vector<2x16xf32>
    %cst_344 = arith.constant 2.500000e-01 : f32
    %790 = vector.broadcast %cst_344 : f32 to vector<2x16xf32>
    %791 = arith.mulf %789, %790 : vector<2x16xf32>
    %792 = vector.extract_strided_slice %745 {offsets = [0, 96], sizes = [2, 16], strides = [1, 1]} : vector<2x192xf32> to vector<2x16xf32>
    %793 = vector.extract_strided_slice %745 {offsets = [0, 160], sizes = [2, 16], strides = [1, 1]} : vector<2x192xf32> to vector<2x16xf32>
    %cst_345 = arith.constant dense<0.000000e+00> : vector<2x2xf32>
    %794 = tpu.matmul %791, %792, %cst_345 {dimension_numbers = #tpu.dot_dimension_numbers<[1], [1], [0], [0], [0, 0, 1, 0], [], []>} : vector<2x16xf32>, vector<2x16xf32>, vector<2x2xf32> -> vector<2x2xf32>
    %cst_346 = arith.constant dense<0xFF800000> : vector<2xf32>
    %795 = vector.multi_reduction <maximumf>, %794, %cst_346 [1] : vector<2x2xf32> to vector<2xf32>
    %796 = vector.shape_cast %795 : vector<2xf32> to vector<2x1xf32>
    %797 = vector.broadcast %796 : vector<2x1xf32> to vector<2x2xf32>
    %798 = arith.subf %794, %797 : vector<2x2xf32>
    %799 = math.exp %798 : vector<2x2xf32>
    %cst_347 = arith.constant dense<0.000000e+00> : vector<2xf32>
    %800 = vector.multi_reduction <add>, %799, %cst_347 [1] : vector<2x2xf32> to vector<2xf32>
    %801 = vector.shape_cast %800 : vector<2xf32> to vector<2x1xf32>
    %802 = tpu.reciprocal %801 {approx = true} : vector<2x1xf32> -> vector<2x1xf32>
    %803 = vector.broadcast %802 : vector<2x1xf32> to vector<2x2xf32>
    %804 = arith.mulf %799, %803 : vector<2x2xf32>
    %cst_348 = arith.constant dense<0.000000e+00> : vector<2x16xf32>
    %805 = tpu.matmul %804, %793, %cst_348 {dimension_numbers = #tpu.dot_dimension_numbers<[1], [0], [0], [1], [0, 0, 1, 1], [], []>} : vector<2x2xf32>, vector<2x16xf32>, vector<2x16xf32> -> vector<2x16xf32>
    %c32_349 = arith.constant 32 : index
    %c0_350 = arith.constant 0 : index
    %806 = vector.load %arg4[%c32_349, %c0_350] : memref<64x64xbf16, #tpu.memory_space<vmem>>, vector<16x64xbf16>
    %807 = arith.extf %806 : vector<16x64xbf16> to vector<16x64xf32>
    %cst_351 = arith.constant dense<0.000000e+00> : vector<2x64xf32>
    %808 = tpu.matmul %805, %807, %cst_351 {dimension_numbers = #tpu.dot_dimension_numbers<[1], [0], [0], [1], [0, 0, 1, 1], [], []>} : vector<2x16xf32>, vector<16x64xf32>, vector<2x64xf32> -> vector<2x64xf32>
    %809 = arith.addf %788, %808 : vector<2x64xf32>
    %810 = vector.extract_strided_slice %745 {offsets = [0, 48], sizes = [2, 16], strides = [1, 1]} : vector<2x192xf32> to vector<2x16xf32>
    %cst_352 = arith.constant 2.500000e-01 : f32
    %811 = vector.broadcast %cst_352 : f32 to vector<2x16xf32>
    %812 = arith.mulf %810, %811 : vector<2x16xf32>
    %813 = vector.extract_strided_slice %745 {offsets = [0, 112], sizes = [2, 16], strides = [1, 1]} : vector<2x192xf32> to vector<2x16xf32>
    %814 = vector.extract_strided_slice %745 {offsets = [0, 176], sizes = [2, 16], strides = [1, 1]} : vector<2x192xf32> to vector<2x16xf32>
    %cst_353 = arith.constant dense<0.000000e+00> : vector<2x2xf32>
    %815 = tpu.matmul %812, %813, %cst_353 {dimension_numbers = #tpu.dot_dimension_numbers<[1], [1], [0], [0], [0, 0, 1, 0], [], []>} : vector<2x16xf32>, vector<2x16xf32>, vector<2x2xf32> -> vector<2x2xf32>
    %cst_354 = arith.constant dense<0xFF800000> : vector<2xf32>
    %816 = vector.multi_reduction <maximumf>, %815, %cst_354 [1] : vector<2x2xf32> to vector<2xf32>
    %817 = vector.shape_cast %816 : vector<2xf32> to vector<2x1xf32>
    %818 = vector.broadcast %817 : vector<2x1xf32> to vector<2x2xf32>
    %819 = arith.subf %815, %818 : vector<2x2xf32>
    %820 = math.exp %819 : vector<2x2xf32>
    %cst_355 = arith.constant dense<0.000000e+00> : vector<2xf32>
    %821 = vector.multi_reduction <add>, %820, %cst_355 [1] : vector<2x2xf32> to vector<2xf32>
    %822 = vector.shape_cast %821 : vector<2xf32> to vector<2x1xf32>
    %823 = tpu.reciprocal %822 {approx = true} : vector<2x1xf32> -> vector<2x1xf32>
    %824 = vector.broadcast %823 : vector<2x1xf32> to vector<2x2xf32>
    %825 = arith.mulf %820, %824 : vector<2x2xf32>
    %cst_356 = arith.constant dense<0.000000e+00> : vector<2x16xf32>
    %826 = tpu.matmul %825, %814, %cst_356 {dimension_numbers = #tpu.dot_dimension_numbers<[1], [0], [0], [1], [0, 0, 1, 1], [], []>} : vector<2x2xf32>, vector<2x16xf32>, vector<2x16xf32> -> vector<2x16xf32>
    %c48_357 = arith.constant 48 : index
    %c0_358 = arith.constant 0 : index
    %827 = vector.load %arg4[%c48_357, %c0_358] : memref<64x64xbf16, #tpu.memory_space<vmem>>, vector<16x64xbf16>
    %828 = arith.extf %827 : vector<16x64xbf16> to vector<16x64xf32>
    %cst_359 = arith.constant dense<0.000000e+00> : vector<2x64xf32>
    %829 = tpu.matmul %826, %828, %cst_359 {dimension_numbers = #tpu.dot_dimension_numbers<[1], [0], [0], [1], [0, 0, 1, 1], [], []>} : vector<2x16xf32>, vector<16x64xf32>, vector<2x64xf32> -> vector<2x64xf32>
    %830 = arith.addf %809, %829 : vector<2x64xf32>
    %c0_360 = arith.constant 0 : index
    %c0_361 = arith.constant 0 : index
    %831 = vector.load %arg5[%c0_360, %c0_361] : memref<1x64xf32, #tpu.memory_space<vmem>>, vector<1x64xf32>
    %832 = vector.broadcast %831 : vector<1x64xf32> to vector<2x64xf32>
    %833 = arith.addf %830, %832 : vector<2x64xf32>
    %834 = arith.addf %740, %833 : vector<2x64xf32>
    %cst_362 = arith.constant dense<0.000000e+00> : vector<2xf32>
    %835 = vector.multi_reduction <add>, %834, %cst_362 [1] : vector<2x64xf32> to vector<2xf32>
    %836 = vector.shape_cast %835 : vector<2xf32> to vector<2x1xf32>
    %cst_363 = arith.constant 6.400000e+01 : f32
    %837 = vector.broadcast %cst_363 : f32 to vector<2x1xf32>
    %838 = arith.divf %836, %837 : vector<2x1xf32>
    %839 = vector.broadcast %838 : vector<2x1xf32> to vector<2x64xf32>
    %840 = arith.subf %834, %839 : vector<2x64xf32>
    %841 = arith.mulf %840, %840 : vector<2x64xf32>
    %cst_364 = arith.constant dense<0.000000e+00> : vector<2xf32>
    %842 = vector.multi_reduction <add>, %841, %cst_364 [1] : vector<2x64xf32> to vector<2xf32>
    %843 = vector.shape_cast %842 : vector<2xf32> to vector<2x1xf32>
    %cst_365 = arith.constant 6.400000e+01 : f32
    %844 = vector.broadcast %cst_365 : f32 to vector<2x1xf32>
    %845 = arith.divf %843, %844 : vector<2x1xf32>
    %cst_366 = arith.constant 9.99999974E-6 : f32
    %846 = vector.broadcast %cst_366 : f32 to vector<2x1xf32>
    %847 = arith.addf %845, %846 : vector<2x1xf32>
    %848 = math.rsqrt %847 : vector<2x1xf32>
    %849 = vector.broadcast %848 : vector<2x1xf32> to vector<2x64xf32>
    %850 = arith.mulf %840, %849 : vector<2x64xf32>
    %c0_367 = arith.constant 0 : index
    %c0_368 = arith.constant 0 : index
    %851 = vector.load %arg6[%c0_367, %c0_368] : memref<1x64xf32, #tpu.memory_space<vmem>>, vector<1x64xf32>
    %852 = vector.broadcast %851 : vector<1x64xf32> to vector<2x64xf32>
    %853 = arith.mulf %850, %852 : vector<2x64xf32>
    %c0_369 = arith.constant 0 : index
    %c0_370 = arith.constant 0 : index
    %854 = vector.load %arg7[%c0_369, %c0_370] : memref<1x64xf32, #tpu.memory_space<vmem>>, vector<1x64xf32>
    %855 = vector.broadcast %854 : vector<1x64xf32> to vector<2x64xf32>
    %856 = arith.addf %853, %855 : vector<2x64xf32>
    %857 = arith.truncf %856 : vector<2x64xf32> to vector<2x64xbf16>
    %c6_371 = arith.constant 6 : index
    %c0_372 = arith.constant 0 : index
    %c0_373 = arith.constant 0 : index
    %858 = vector.load %arg8[%c6_371, %c0_372, %c0_373] : memref<8x2x64xbf16, #tpu.memory_space<vmem>>, vector<1x2x64xbf16>
    %859 = vector.shape_cast %858 : vector<1x2x64xbf16> to vector<2x64xbf16>
    %860 = vector.shape_cast %857 : vector<2x64xbf16> to vector<1x2x64xbf16>
    tpu.vector_store %arg8[%c6_371, %c0_372, %c0_373], %860 {strides = array<i32>} : memref<8x2x64xbf16, #tpu.memory_space<vmem>>, vector<1x2x64xbf16>,
    %c7 = arith.constant 7 : index
    %c0_374 = arith.constant 0 : index
    %c0_375 = arith.constant 0 : index
    %861 = vector.load %arg1[%c7, %c0_374, %c0_375] : memref<8x2x64xbf16, #tpu.memory_space<vmem>>, vector<1x2x64xbf16>
    %862 = vector.shape_cast %861 : vector<1x2x64xbf16> to vector<2x64xbf16>
    %863 = arith.extf %862 : vector<2x64xbf16> to vector<2x64xf32>
    %c0_376 = arith.constant 0 : index
    %c0_377 = arith.constant 0 : index
    %864 = vector.load %arg2[%c0_376, %c0_377] : memref<64x192xbf16, #tpu.memory_space<vmem>>, vector<64x192xbf16>
    %cst_378 = arith.constant dense<0.000000e+00> : vector<2x192xf32>
    %865 = tpu.matmul %862, %864, %cst_378 {dimension_numbers = #tpu.dot_dimension_numbers<[1], [0], [0], [1], [0, 0, 1, 1], [], []>} : vector<2x64xbf16>, vector<64x192xbf16>, vector<2x192xf32> -> vector<2x192xf32>
    %c0_379 = arith.constant 0 : index
    %c0_380 = arith.constant 0 : index
    %866 = vector.load %arg3[%c0_379, %c0_380] : memref<1x192xf32, #tpu.memory_space<vmem>>, vector<1x192xf32>
    %867 = vector.broadcast %866 : vector<1x192xf32> to vector<2x192xf32>
    %868 = arith.addf %865, %867 : vector<2x192xf32>
    %cst_381 = arith.constant 0.000000e+00 : f32
    %869 = vector.broadcast %cst_381 : f32 to vector<2x64xf32>
    %870 = vector.extract_strided_slice %868 {offsets = [0, 0], sizes = [2, 16], strides = [1, 1]} : vector<2x192xf32> to vector<2x16xf32>
    %cst_382 = arith.constant 2.500000e-01 : f32
    %871 = vector.broadcast %cst_382 : f32 to vector<2x16xf32>
    %872 = arith.mulf %870, %871 : vector<2x16xf32>
    %873 = vector.extract_strided_slice %868 {offsets = [0, 64], sizes = [2, 16], strides = [1, 1]} : vector<2x192xf32> to vector<2x16xf32>
    %874 = vector.extract_strided_slice %868 {offsets = [0, 128], sizes = [2, 16], strides = [1, 1]} : vector<2x192xf32> to vector<2x16xf32>
    %cst_383 = arith.constant dense<0.000000e+00> : vector<2x2xf32>
    %875 = tpu.matmul %872, %873, %cst_383 {dimension_numbers = #tpu.dot_dimension_numbers<[1], [1], [0], [0], [0, 0, 1, 0], [], []>} : vector<2x16xf32>, vector<2x16xf32>, vector<2x2xf32> -> vector<2x2xf32>
    %cst_384 = arith.constant dense<0xFF800000> : vector<2xf32>
    %876 = vector.multi_reduction <maximumf>, %875, %cst_384 [1] : vector<2x2xf32> to vector<2xf32>
    %877 = vector.shape_cast %876 : vector<2xf32> to vector<2x1xf32>
    %878 = vector.broadcast %877 : vector<2x1xf32> to vector<2x2xf32>
    %879 = arith.subf %875, %878 : vector<2x2xf32>
    %880 = math.exp %879 : vector<2x2xf32>
    %cst_385 = arith.constant dense<0.000000e+00> : vector<2xf32>
    %881 = vector.multi_reduction <add>, %880, %cst_385 [1] : vector<2x2xf32> to vector<2xf32>
    %882 = vector.shape_cast %881 : vector<2xf32> to vector<2x1xf32>
    %883 = tpu.reciprocal %882 {approx = true} : vector<2x1xf32> -> vector<2x1xf32>
    %884 = vector.broadcast %883 : vector<2x1xf32> to vector<2x2xf32>
    %885 = arith.mulf %880, %884 : vector<2x2xf32>
    %cst_386 = arith.constant dense<0.000000e+00> : vector<2x16xf32>
    %886 = tpu.matmul %885, %874, %cst_386 {dimension_numbers = #tpu.dot_dimension_numbers<[1], [0], [0], [1], [0, 0, 1, 1], [], []>} : vector<2x2xf32>, vector<2x16xf32>, vector<2x16xf32> -> vector<2x16xf32>
    %c0_387 = arith.constant 0 : index
    %c0_388 = arith.constant 0 : index
    %887 = vector.load %arg4[%c0_387, %c0_388] : memref<64x64xbf16, #tpu.memory_space<vmem>>, vector<16x64xbf16>
    %888 = arith.extf %887 : vector<16x64xbf16> to vector<16x64xf32>
    %cst_389 = arith.constant dense<0.000000e+00> : vector<2x64xf32>
    %889 = tpu.matmul %886, %888, %cst_389 {dimension_numbers = #tpu.dot_dimension_numbers<[1], [0], [0], [1], [0, 0, 1, 1], [], []>} : vector<2x16xf32>, vector<16x64xf32>, vector<2x64xf32> -> vector<2x64xf32>
    %890 = arith.addf %869, %889 : vector<2x64xf32>
    %891 = vector.extract_strided_slice %868 {offsets = [0, 16], sizes = [2, 16], strides = [1, 1]} : vector<2x192xf32> to vector<2x16xf32>
    %cst_390 = arith.constant 2.500000e-01 : f32
    %892 = vector.broadcast %cst_390 : f32 to vector<2x16xf32>
    %893 = arith.mulf %891, %892 : vector<2x16xf32>
    %894 = vector.extract_strided_slice %868 {offsets = [0, 80], sizes = [2, 16], strides = [1, 1]} : vector<2x192xf32> to vector<2x16xf32>
    %895 = vector.extract_strided_slice %868 {offsets = [0, 144], sizes = [2, 16], strides = [1, 1]} : vector<2x192xf32> to vector<2x16xf32>
    %cst_391 = arith.constant dense<0.000000e+00> : vector<2x2xf32>
    %896 = tpu.matmul %893, %894, %cst_391 {dimension_numbers = #tpu.dot_dimension_numbers<[1], [1], [0], [0], [0, 0, 1, 0], [], []>} : vector<2x16xf32>, vector<2x16xf32>, vector<2x2xf32> -> vector<2x2xf32>
    %cst_392 = arith.constant dense<0xFF800000> : vector<2xf32>
    %897 = vector.multi_reduction <maximumf>, %896, %cst_392 [1] : vector<2x2xf32> to vector<2xf32>
    %898 = vector.shape_cast %897 : vector<2xf32> to vector<2x1xf32>
    %899 = vector.broadcast %898 : vector<2x1xf32> to vector<2x2xf32>
    %900 = arith.subf %896, %899 : vector<2x2xf32>
    %901 = math.exp %900 : vector<2x2xf32>
    %cst_393 = arith.constant dense<0.000000e+00> : vector<2xf32>
    %902 = vector.multi_reduction <add>, %901, %cst_393 [1] : vector<2x2xf32> to vector<2xf32>
    %903 = vector.shape_cast %902 : vector<2xf32> to vector<2x1xf32>
    %904 = tpu.reciprocal %903 {approx = true} : vector<2x1xf32> -> vector<2x1xf32>
    %905 = vector.broadcast %904 : vector<2x1xf32> to vector<2x2xf32>
    %906 = arith.mulf %901, %905 : vector<2x2xf32>
    %cst_394 = arith.constant dense<0.000000e+00> : vector<2x16xf32>
    %907 = tpu.matmul %906, %895, %cst_394 {dimension_numbers = #tpu.dot_dimension_numbers<[1], [0], [0], [1], [0, 0, 1, 1], [], []>} : vector<2x2xf32>, vector<2x16xf32>, vector<2x16xf32> -> vector<2x16xf32>
    %c16_395 = arith.constant 16 : index
    %c0_396 = arith.constant 0 : index
    %908 = vector.load %arg4[%c16_395, %c0_396] : memref<64x64xbf16, #tpu.memory_space<vmem>>, vector<16x64xbf16>
    %909 = arith.extf %908 : vector<16x64xbf16> to vector<16x64xf32>
    %cst_397 = arith.constant dense<0.000000e+00> : vector<2x64xf32>
    %910 = tpu.matmul %907, %909, %cst_397 {dimension_numbers = #tpu.dot_dimension_numbers<[1], [0], [0], [1], [0, 0, 1, 1], [], []>} : vector<2x16xf32>, vector<16x64xf32>, vector<2x64xf32> -> vector<2x64xf32>
    %911 = arith.addf %890, %910 : vector<2x64xf32>
    %912 = vector.extract_strided_slice %868 {offsets = [0, 32], sizes = [2, 16], strides = [1, 1]} : vector<2x192xf32> to vector<2x16xf32>
    %cst_398 = arith.constant 2.500000e-01 : f32
    %913 = vector.broadcast %cst_398 : f32 to vector<2x16xf32>
    %914 = arith.mulf %912, %913 : vector<2x16xf32>
    %915 = vector.extract_strided_slice %868 {offsets = [0, 96], sizes = [2, 16], strides = [1, 1]} : vector<2x192xf32> to vector<2x16xf32>
    %916 = vector.extract_strided_slice %868 {offsets = [0, 160], sizes = [2, 16], strides = [1, 1]} : vector<2x192xf32> to vector<2x16xf32>
    %cst_399 = arith.constant dense<0.000000e+00> : vector<2x2xf32>
    %917 = tpu.matmul %914, %915, %cst_399 {dimension_numbers = #tpu.dot_dimension_numbers<[1], [1], [0], [0], [0, 0, 1, 0], [], []>} : vector<2x16xf32>, vector<2x16xf32>, vector<2x2xf32> -> vector<2x2xf32>
    %cst_400 = arith.constant dense<0xFF800000> : vector<2xf32>
    %918 = vector.multi_reduction <maximumf>, %917, %cst_400 [1] : vector<2x2xf32> to vector<2xf32>
    %919 = vector.shape_cast %918 : vector<2xf32> to vector<2x1xf32>
    %920 = vector.broadcast %919 : vector<2x1xf32> to vector<2x2xf32>
    %921 = arith.subf %917, %920 : vector<2x2xf32>
    %922 = math.exp %921 : vector<2x2xf32>
    %cst_401 = arith.constant dense<0.000000e+00> : vector<2xf32>
    %923 = vector.multi_reduction <add>, %922, %cst_401 [1] : vector<2x2xf32> to vector<2xf32>
    %924 = vector.shape_cast %923 : vector<2xf32> to vector<2x1xf32>
    %925 = tpu.reciprocal %924 {approx = true} : vector<2x1xf32> -> vector<2x1xf32>
    %926 = vector.broadcast %925 : vector<2x1xf32> to vector<2x2xf32>
    %927 = arith.mulf %922, %926 : vector<2x2xf32>
    %cst_402 = arith.constant dense<0.000000e+00> : vector<2x16xf32>
    %928 = tpu.matmul %927, %916, %cst_402 {dimension_numbers = #tpu.dot_dimension_numbers<[1], [0], [0], [1], [0, 0, 1, 1], [], []>} : vector<2x2xf32>, vector<2x16xf32>, vector<2x16xf32> -> vector<2x16xf32>
    %c32_403 = arith.constant 32 : index
    %c0_404 = arith.constant 0 : index
    %929 = vector.load %arg4[%c32_403, %c0_404] : memref<64x64xbf16, #tpu.memory_space<vmem>>, vector<16x64xbf16>
    %930 = arith.extf %929 : vector<16x64xbf16> to vector<16x64xf32>
    %cst_405 = arith.constant dense<0.000000e+00> : vector<2x64xf32>
    %931 = tpu.matmul %928, %930, %cst_405 {dimension_numbers = #tpu.dot_dimension_numbers<[1], [0], [0], [1], [0, 0, 1, 1], [], []>} : vector<2x16xf32>, vector<16x64xf32>, vector<2x64xf32> -> vector<2x64xf32>
    %932 = arith.addf %911, %931 : vector<2x64xf32>
    %933 = vector.extract_strided_slice %868 {offsets = [0, 48], sizes = [2, 16], strides = [1, 1]} : vector<2x192xf32> to vector<2x16xf32>
    %cst_406 = arith.constant 2.500000e-01 : f32
    %934 = vector.broadcast %cst_406 : f32 to vector<2x16xf32>
    %935 = arith.mulf %933, %934 : vector<2x16xf32>
    %936 = vector.extract_strided_slice %868 {offsets = [0, 112], sizes = [2, 16], strides = [1, 1]} : vector<2x192xf32> to vector<2x16xf32>
    %937 = vector.extract_strided_slice %868 {offsets = [0, 176], sizes = [2, 16], strides = [1, 1]} : vector<2x192xf32> to vector<2x16xf32>
    %cst_407 = arith.constant dense<0.000000e+00> : vector<2x2xf32>
    %938 = tpu.matmul %935, %936, %cst_407 {dimension_numbers = #tpu.dot_dimension_numbers<[1], [1], [0], [0], [0, 0, 1, 0], [], []>} : vector<2x16xf32>, vector<2x16xf32>, vector<2x2xf32> -> vector<2x2xf32>
    %cst_408 = arith.constant dense<0xFF800000> : vector<2xf32>
    %939 = vector.multi_reduction <maximumf>, %938, %cst_408 [1] : vector<2x2xf32> to vector<2xf32>
    %940 = vector.shape_cast %939 : vector<2xf32> to vector<2x1xf32>
    %941 = vector.broadcast %940 : vector<2x1xf32> to vector<2x2xf32>
    %942 = arith.subf %938, %941 : vector<2x2xf32>
    %943 = math.exp %942 : vector<2x2xf32>
    %cst_409 = arith.constant dense<0.000000e+00> : vector<2xf32>
    %944 = vector.multi_reduction <add>, %943, %cst_409 [1] : vector<2x2xf32> to vector<2xf32>
    %945 = vector.shape_cast %944 : vector<2xf32> to vector<2x1xf32>
    %946 = tpu.reciprocal %945 {approx = true} : vector<2x1xf32> -> vector<2x1xf32>
    %947 = vector.broadcast %946 : vector<2x1xf32> to vector<2x2xf32>
    %948 = arith.mulf %943, %947 : vector<2x2xf32>
    %cst_410 = arith.constant dense<0.000000e+00> : vector<2x16xf32>
    %949 = tpu.matmul %948, %937, %cst_410 {dimension_numbers = #tpu.dot_dimension_numbers<[1], [0], [0], [1], [0, 0, 1, 1], [], []>} : vector<2x2xf32>, vector<2x16xf32>, vector<2x16xf32> -> vector<2x16xf32>
    %c48_411 = arith.constant 48 : index
    %c0_412 = arith.constant 0 : index
    %950 = vector.load %arg4[%c48_411, %c0_412] : memref<64x64xbf16, #tpu.memory_space<vmem>>, vector<16x64xbf16>
    %951 = arith.extf %950 : vector<16x64xbf16> to vector<16x64xf32>
    %cst_413 = arith.constant dense<0.000000e+00> : vector<2x64xf32>
    %952 = tpu.matmul %949, %951, %cst_413 {dimension_numbers = #tpu.dot_dimension_numbers<[1], [0], [0], [1], [0, 0, 1, 1], [], []>} : vector<2x16xf32>, vector<16x64xf32>, vector<2x64xf32> -> vector<2x64xf32>
    %953 = arith.addf %932, %952 : vector<2x64xf32>
    %c0_414 = arith.constant 0 : index
    %c0_415 = arith.constant 0 : index
    %954 = vector.load %arg5[%c0_414, %c0_415] : memref<1x64xf32, #tpu.memory_space<vmem>>, vector<1x64xf32>
    %955 = vector.broadcast %954 : vector<1x64xf32> to vector<2x64xf32>
    %956 = arith.addf %953, %955 : vector<2x64xf32>
    %957 = arith.addf %863, %956 : vector<2x64xf32>
    %cst_416 = arith.constant dense<0.000000e+00> : vector<2xf32>
    %958 = vector.multi_reduction <add>, %957, %cst_416 [1] : vector<2x64xf32> to vector<2xf32>
    %959 = vector.shape_cast %958 : vector<2xf32> to vector<2x1xf32>
    %cst_417 = arith.constant 6.400000e+01 : f32
    %960 = vector.broadcast %cst_417 : f32 to vector<2x1xf32>
    %961 = arith.divf %959, %960 : vector<2x1xf32>
    %962 = vector.broadcast %961 : vector<2x1xf32> to vector<2x64xf32>
    %963 = arith.subf %957, %962 : vector<2x64xf32>
    %964 = arith.mulf %963, %963 : vector<2x64xf32>
    %cst_418 = arith.constant dense<0.000000e+00> : vector<2xf32>
    %965 = vector.multi_reduction <add>, %964, %cst_418 [1] : vector<2x64xf32> to vector<2xf32>
    %966 = vector.shape_cast %965 : vector<2xf32> to vector<2x1xf32>
    %cst_419 = arith.constant 6.400000e+01 : f32
    %967 = vector.broadcast %cst_419 : f32 to vector<2x1xf32>
    %968 = arith.divf %966, %967 : vector<2x1xf32>
    %cst_420 = arith.constant 9.99999974E-6 : f32
    %969 = vector.broadcast %cst_420 : f32 to vector<2x1xf32>
    %970 = arith.addf %968, %969 : vector<2x1xf32>
    %971 = math.rsqrt %970 : vector<2x1xf32>
    %972 = vector.broadcast %971 : vector<2x1xf32> to vector<2x64xf32>
    %973 = arith.mulf %963, %972 : vector<2x64xf32>
    %c0_421 = arith.constant 0 : index
    %c0_422 = arith.constant 0 : index
    %974 = vector.load %arg6[%c0_421, %c0_422] : memref<1x64xf32, #tpu.memory_space<vmem>>, vector<1x64xf32>
    %975 = vector.broadcast %974 : vector<1x64xf32> to vector<2x64xf32>
    %976 = arith.mulf %973, %975 : vector<2x64xf32>
    %c0_423 = arith.constant 0 : index
    %c0_424 = arith.constant 0 : index
    %977 = vector.load %arg7[%c0_423, %c0_424] : memref<1x64xf32, #tpu.memory_space<vmem>>, vector<1x64xf32>
    %978 = vector.broadcast %977 : vector<1x64xf32> to vector<2x64xf32>
    %979 = arith.addf %976, %978 : vector<2x64xf32>
    %980 = arith.truncf %979 : vector<2x64xf32> to vector<2x64xbf16>
    %c7_425 = arith.constant 7 : index
    %c0_426 = arith.constant 0 : index
    %c0_427 = arith.constant 0 : index
    %981 = vector.load %arg8[%c7_425, %c0_426, %c0_427] : memref<8x2x64xbf16, #tpu.memory_space<vmem>>, vector<1x2x64xbf16>
    %982 = vector.shape_cast %981 : vector<1x2x64xbf16> to vector<2x64xbf16>
    %983 = vector.shape_cast %980 : vector<2x64xbf16> to vector<1x2x64xbf16>
    tpu.vector_store %arg8[%c7_425, %c0_426, %c0_427], %983 {strides = array<i32>} : memref<8x2x64xbf16, #tpu.memory_space<vmem>>, vector<1x2x64xbf16>,
    return
  }
  func.func @transform_0(%arg0: i32) -> (i32, i32, i32) {
    %c0_i32 = arith.constant 0 : i32
    %c0_i32_0 = arith.constant 0 : i32
    %c0_i32_1 = arith.constant 0 : i32
    return %arg0, %c0_i32, %c0_i32_0 : i32, i32, i32
  }
  func.func @transform_1(%arg0: i32) -> (i32, i32) {
    %c0_i32 = arith.constant 0 : i32
    %c0_i32_0 = arith.constant 0 : i32
    %c0_i32_1 = arith.constant 0 : i32
    return %c0_i32, %c0_i32_0 : i32, i32
  }
  func.func @transform_2(%arg0: i32) -> (i32, i32) {
    %c0_i32 = arith.constant 0 : i32
    %c0_i32_0 = arith.constant 0 : i32
    %c0_i32_1 = arith.constant 0 : i32
    return %c0_i32, %c0_i32_0 : i32, i32
  }
  func.func @transform_3(%arg0: i32) -> (i32, i32) {
    %c0_i32 = arith.constant 0 : i32
    %c0_i32_0 = arith.constant 0 : i32
    %c0_i32_1 = arith.constant 0 : i32
    return %c0_i32, %c0_i32_0 : i32, i32
  }
  func.func @transform_4(%arg0: i32) -> (i32, i32) {
    %c0_i32 = arith.constant 0 : i32
    %c0_i32_0 = arith.constant 0 : i32
    %c0_i32_1 = arith.constant 0 : i32
    return %c0_i32, %c0_i32_0 : i32, i32
  }
  func.func @transform_5(%arg0: i32) -> (i32, i32) {
    %c0_i32 = arith.constant 0 : i32
    %c0_i32_0 = arith.constant 0 : i32
    %c0_i32_1 = arith.constant 0 : i32
    return %c0_i32, %c0_i32_0 : i32, i32
  }
  func.func @transform_6(%arg0: i32) -> (i32, i32) {
    %c0_i32 = arith.constant 0 : i32
    %c0_i32_0 = arith.constant 0 : i32
    %c0_i32_1 = arith.constant 0 : i32
    return %c0_i32, %c0_i32_0 : i32, i32
  }
  func.func @transform_7(%arg0: i32) -> (i32, i32, i32) {
    %c0_i32 = arith.constant 0 : i32
    %c0_i32_0 = arith.constant 0 : i32
    %c0_i32_1 = arith.constant 0 : i32
    return %arg0, %c0_i32, %c0_i32_0 : i32, i32, i32
  }
}

module attributes {stable_mosaic.version = 11 : i64} {
  func.func @_final_kernel(%arg0: memref<2x32xbf16, #tpu.memory_space<vmem>>, %arg1: memref<2x32xf32, #tpu.memory_space<vmem>>, %arg2: memref<32x32xbf16, #tpu.memory_space<vmem>>, %arg3: memref<1x32xf32, #tpu.memory_space<vmem>>, %arg4: memref<2x32xf32, #tpu.memory_space<vmem>>) attributes {dimension_semantics = [], scalar_prefetch = 0 : i64, scratch_operands = 0 : i64, tpu.core_type = #tpu.core_type<tc>} {
    %c0 = arith.constant 0 : index
    %c0_0 = arith.constant 0 : index
    %0 = vector.load %arg0[%c0, %c0_0] : memref<2x32xbf16, #tpu.memory_space<vmem>>, vector<2x32xbf16>
    %1 = arith.extf %0 : vector<2x32xbf16> to vector<2x32xf32>
    %c0_1 = arith.constant 0 : index
    %c0_2 = arith.constant 0 : index
    %2 = vector.load %arg1[%c0_1, %c0_2] : memref<2x32xf32, #tpu.memory_space<vmem>>, vector<2x32xf32>
    %3 = arith.addf %1, %2 : vector<2x32xf32>
    %4 = arith.truncf %3 : vector<2x32xf32> to vector<2x32xbf16>
    %c0_3 = arith.constant 0 : index
    %c0_4 = arith.constant 0 : index
    %5 = vector.load %arg2[%c0_3, %c0_4] : memref<32x32xbf16, #tpu.memory_space<vmem>>, vector<32x32xbf16>
    %cst = arith.constant dense<0.000000e+00> : vector<2x32xf32>
    %6 = tpu.matmul %4, %5, %cst {dimension_numbers = #tpu.dot_dimension_numbers<[1], [0], [0], [1], [0, 0, 1, 1], [], []>} : vector<2x32xbf16>, vector<32x32xbf16>, vector<2x32xf32> -> vector<2x32xf32>
    %c0_5 = arith.constant 0 : index
    %c0_6 = arith.constant 0 : index
    %7 = vector.load %arg3[%c0_5, %c0_6] : memref<1x32xf32, #tpu.memory_space<vmem>>, vector<1x32xf32>
    %8 = vector.broadcast %7 : vector<1x32xf32> to vector<2x32xf32>
    %9 = arith.addf %6, %8 : vector<2x32xf32>
    %c0_7 = arith.constant 0 : index
    %c0_8 = arith.constant 0 : index
    %10 = vector.load %arg4[%c0_7, %c0_8] : memref<2x32xf32, #tpu.memory_space<vmem>>, vector<2x32xf32>
    tpu.vector_store %arg4[%c0_7, %c0_8], %9 {strides = array<i32>} : memref<2x32xf32, #tpu.memory_space<vmem>>, vector<2x32xf32>,
    return
  }
}

module attributes {stable_mosaic.version = 11 : i64} {
  func.func @_ctrl_tail_kernel(%arg0: memref<8x2x64xbf16, #tpu.memory_space<vmem>>, %arg1: memref<64x32xbf16, #tpu.memory_space<vmem>>, %arg2: memref<1x32xf32, #tpu.memory_space<vmem>>, %arg3: memref<1x8xf32, #tpu.memory_space<smem>>, %arg4: memref<1x1xf32, #tpu.memory_space<smem>>, %arg5: memref<32x32xbf16, #tpu.memory_space<vmem>>, %arg6: memref<1x32xf32, #tpu.memory_space<vmem>>, %arg7: memref<2x32xf32, #tpu.memory_space<vmem>>) attributes {dimension_semantics = [], scalar_prefetch = 0 : i64, scratch_operands = 0 : i64, tpu.core_type = #tpu.core_type<tc>} {
    %cst = arith.constant 0.000000e+00 : f32
    %0 = vector.broadcast %cst : f32 to vector<2x32xf32>
    %c0 = arith.constant 0 : index
    %c0_0 = arith.constant 0 : index
    %c0_1 = arith.constant 0 : index
    %1 = vector.load %arg0[%c0, %c0_0, %c0_1] : memref<8x2x64xbf16, #tpu.memory_space<vmem>>, vector<1x2x64xbf16>
    %2 = vector.shape_cast %1 : vector<1x2x64xbf16> to vector<2x64xbf16>
    %c0_2 = arith.constant 0 : index
    %c0_3 = arith.constant 0 : index
    %3 = vector.load %arg1[%c0_2, %c0_3] : memref<64x32xbf16, #tpu.memory_space<vmem>>, vector<64x32xbf16>
    %cst_4 = arith.constant dense<0.000000e+00> : vector<2x32xf32>
    %4 = tpu.matmul %2, %3, %cst_4 {dimension_numbers = #tpu.dot_dimension_numbers<[1], [0], [0], [1], [0, 0, 1, 1], [], []>} : vector<2x64xbf16>, vector<64x32xbf16>, vector<2x32xf32> -> vector<2x32xf32>
    %c0_5 = arith.constant 0 : index
    %c0_6 = arith.constant 0 : index
    %5 = vector.load %arg2[%c0_5, %c0_6] : memref<1x32xf32, #tpu.memory_space<vmem>>, vector<1x32xf32>
    %6 = vector.broadcast %5 : vector<1x32xf32> to vector<2x32xf32>
    %7 = arith.addf %4, %6 : vector<2x32xf32>
    %c0_7 = arith.constant 0 : index
    %c0_8 = arith.constant 0 : index
    %8 = memref.load %arg3[%c0_7, %c0_8] : memref<1x8xf32, #tpu.memory_space<smem>>
    %9 = vector.broadcast %8 : f32 to vector<2x32xf32>
    %10 = arith.mulf %9, %7 : vector<2x32xf32>
    %11 = arith.addf %0, %10 : vector<2x32xf32>
    %c1 = arith.constant 1 : index
    %c0_9 = arith.constant 0 : index
    %c0_10 = arith.constant 0 : index
    %12 = vector.load %arg0[%c1, %c0_9, %c0_10] : memref<8x2x64xbf16, #tpu.memory_space<vmem>>, vector<1x2x64xbf16>
    %13 = vector.shape_cast %12 : vector<1x2x64xbf16> to vector<2x64xbf16>
    %c0_11 = arith.constant 0 : index
    %c0_12 = arith.constant 0 : index
    %14 = vector.load %arg1[%c0_11, %c0_12] : memref<64x32xbf16, #tpu.memory_space<vmem>>, vector<64x32xbf16>
    %cst_13 = arith.constant dense<0.000000e+00> : vector<2x32xf32>
    %15 = tpu.matmul %13, %14, %cst_13 {dimension_numbers = #tpu.dot_dimension_numbers<[1], [0], [0], [1], [0, 0, 1, 1], [], []>} : vector<2x64xbf16>, vector<64x32xbf16>, vector<2x32xf32> -> vector<2x32xf32>
    %c0_14 = arith.constant 0 : index
    %c0_15 = arith.constant 0 : index
    %16 = vector.load %arg2[%c0_14, %c0_15] : memref<1x32xf32, #tpu.memory_space<vmem>>, vector<1x32xf32>
    %17 = vector.broadcast %16 : vector<1x32xf32> to vector<2x32xf32>
    %18 = arith.addf %15, %17 : vector<2x32xf32>
    %c0_16 = arith.constant 0 : index
    %c1_17 = arith.constant 1 : index
    %19 = memref.load %arg3[%c0_16, %c1_17] : memref<1x8xf32, #tpu.memory_space<smem>>
    %20 = vector.broadcast %19 : f32 to vector<2x32xf32>
    %21 = arith.mulf %20, %18 : vector<2x32xf32>
    %22 = arith.addf %11, %21 : vector<2x32xf32>
    %c2 = arith.constant 2 : index
    %c0_18 = arith.constant 0 : index
    %c0_19 = arith.constant 0 : index
    %23 = vector.load %arg0[%c2, %c0_18, %c0_19] : memref<8x2x64xbf16, #tpu.memory_space<vmem>>, vector<1x2x64xbf16>
    %24 = vector.shape_cast %23 : vector<1x2x64xbf16> to vector<2x64xbf16>
    %c0_20 = arith.constant 0 : index
    %c0_21 = arith.constant 0 : index
    %25 = vector.load %arg1[%c0_20, %c0_21] : memref<64x32xbf16, #tpu.memory_space<vmem>>, vector<64x32xbf16>
    %cst_22 = arith.constant dense<0.000000e+00> : vector<2x32xf32>
    %26 = tpu.matmul %24, %25, %cst_22 {dimension_numbers = #tpu.dot_dimension_numbers<[1], [0], [0], [1], [0, 0, 1, 1], [], []>} : vector<2x64xbf16>, vector<64x32xbf16>, vector<2x32xf32> -> vector<2x32xf32>
    %c0_23 = arith.constant 0 : index
    %c0_24 = arith.constant 0 : index
    %27 = vector.load %arg2[%c0_23, %c0_24] : memref<1x32xf32, #tpu.memory_space<vmem>>, vector<1x32xf32>
    %28 = vector.broadcast %27 : vector<1x32xf32> to vector<2x32xf32>
    %29 = arith.addf %26, %28 : vector<2x32xf32>
    %c0_25 = arith.constant 0 : index
    %c2_26 = arith.constant 2 : index
    %30 = memref.load %arg3[%c0_25, %c2_26] : memref<1x8xf32, #tpu.memory_space<smem>>
    %31 = vector.broadcast %30 : f32 to vector<2x32xf32>
    %32 = arith.mulf %31, %29 : vector<2x32xf32>
    %33 = arith.addf %22, %32 : vector<2x32xf32>
    %c3 = arith.constant 3 : index
    %c0_27 = arith.constant 0 : index
    %c0_28 = arith.constant 0 : index
    %34 = vector.load %arg0[%c3, %c0_27, %c0_28] : memref<8x2x64xbf16, #tpu.memory_space<vmem>>, vector<1x2x64xbf16>
    %35 = vector.shape_cast %34 : vector<1x2x64xbf16> to vector<2x64xbf16>
    %c0_29 = arith.constant 0 : index
    %c0_30 = arith.constant 0 : index
    %36 = vector.load %arg1[%c0_29, %c0_30] : memref<64x32xbf16, #tpu.memory_space<vmem>>, vector<64x32xbf16>
    %cst_31 = arith.constant dense<0.000000e+00> : vector<2x32xf32>
    %37 = tpu.matmul %35, %36, %cst_31 {dimension_numbers = #tpu.dot_dimension_numbers<[1], [0], [0], [1], [0, 0, 1, 1], [], []>} : vector<2x64xbf16>, vector<64x32xbf16>, vector<2x32xf32> -> vector<2x32xf32>
    %c0_32 = arith.constant 0 : index
    %c0_33 = arith.constant 0 : index
    %38 = vector.load %arg2[%c0_32, %c0_33] : memref<1x32xf32, #tpu.memory_space<vmem>>, vector<1x32xf32>
    %39 = vector.broadcast %38 : vector<1x32xf32> to vector<2x32xf32>
    %40 = arith.addf %37, %39 : vector<2x32xf32>
    %c0_34 = arith.constant 0 : index
    %c3_35 = arith.constant 3 : index
    %41 = memref.load %arg3[%c0_34, %c3_35] : memref<1x8xf32, #tpu.memory_space<smem>>
    %42 = vector.broadcast %41 : f32 to vector<2x32xf32>
    %43 = arith.mulf %42, %40 : vector<2x32xf32>
    %44 = arith.addf %33, %43 : vector<2x32xf32>
    %c4 = arith.constant 4 : index
    %c0_36 = arith.constant 0 : index
    %c0_37 = arith.constant 0 : index
    %45 = vector.load %arg0[%c4, %c0_36, %c0_37] : memref<8x2x64xbf16, #tpu.memory_space<vmem>>, vector<1x2x64xbf16>
    %46 = vector.shape_cast %45 : vector<1x2x64xbf16> to vector<2x64xbf16>
    %c0_38 = arith.constant 0 : index
    %c0_39 = arith.constant 0 : index
    %47 = vector.load %arg1[%c0_38, %c0_39] : memref<64x32xbf16, #tpu.memory_space<vmem>>, vector<64x32xbf16>
    %cst_40 = arith.constant dense<0.000000e+00> : vector<2x32xf32>
    %48 = tpu.matmul %46, %47, %cst_40 {dimension_numbers = #tpu.dot_dimension_numbers<[1], [0], [0], [1], [0, 0, 1, 1], [], []>} : vector<2x64xbf16>, vector<64x32xbf16>, vector<2x32xf32> -> vector<2x32xf32>
    %c0_41 = arith.constant 0 : index
    %c0_42 = arith.constant 0 : index
    %49 = vector.load %arg2[%c0_41, %c0_42] : memref<1x32xf32, #tpu.memory_space<vmem>>, vector<1x32xf32>
    %50 = vector.broadcast %49 : vector<1x32xf32> to vector<2x32xf32>
    %51 = arith.addf %48, %50 : vector<2x32xf32>
    %c0_43 = arith.constant 0 : index
    %c4_44 = arith.constant 4 : index
    %52 = memref.load %arg3[%c0_43, %c4_44] : memref<1x8xf32, #tpu.memory_space<smem>>
    %53 = vector.broadcast %52 : f32 to vector<2x32xf32>
    %54 = arith.mulf %53, %51 : vector<2x32xf32>
    %55 = arith.addf %44, %54 : vector<2x32xf32>
    %c5 = arith.constant 5 : index
    %c0_45 = arith.constant 0 : index
    %c0_46 = arith.constant 0 : index
    %56 = vector.load %arg0[%c5, %c0_45, %c0_46] : memref<8x2x64xbf16, #tpu.memory_space<vmem>>, vector<1x2x64xbf16>
    %57 = vector.shape_cast %56 : vector<1x2x64xbf16> to vector<2x64xbf16>
    %c0_47 = arith.constant 0 : index
    %c0_48 = arith.constant 0 : index
    %58 = vector.load %arg1[%c0_47, %c0_48] : memref<64x32xbf16, #tpu.memory_space<vmem>>, vector<64x32xbf16>
    %cst_49 = arith.constant dense<0.000000e+00> : vector<2x32xf32>
    %59 = tpu.matmul %57, %58, %cst_49 {dimension_numbers = #tpu.dot_dimension_numbers<[1], [0], [0], [1], [0, 0, 1, 1], [], []>} : vector<2x64xbf16>, vector<64x32xbf16>, vector<2x32xf32> -> vector<2x32xf32>
    %c0_50 = arith.constant 0 : index
    %c0_51 = arith.constant 0 : index
    %60 = vector.load %arg2[%c0_50, %c0_51] : memref<1x32xf32, #tpu.memory_space<vmem>>, vector<1x32xf32>
    %61 = vector.broadcast %60 : vector<1x32xf32> to vector<2x32xf32>
    %62 = arith.addf %59, %61 : vector<2x32xf32>
    %c0_52 = arith.constant 0 : index
    %c5_53 = arith.constant 5 : index
    %63 = memref.load %arg3[%c0_52, %c5_53] : memref<1x8xf32, #tpu.memory_space<smem>>
    %64 = vector.broadcast %63 : f32 to vector<2x32xf32>
    %65 = arith.mulf %64, %62 : vector<2x32xf32>
    %66 = arith.addf %55, %65 : vector<2x32xf32>
    %c6 = arith.constant 6 : index
    %c0_54 = arith.constant 0 : index
    %c0_55 = arith.constant 0 : index
    %67 = vector.load %arg0[%c6, %c0_54, %c0_55] : memref<8x2x64xbf16, #tpu.memory_space<vmem>>, vector<1x2x64xbf16>
    %68 = vector.shape_cast %67 : vector<1x2x64xbf16> to vector<2x64xbf16>
    %c0_56 = arith.constant 0 : index
    %c0_57 = arith.constant 0 : index
    %69 = vector.load %arg1[%c0_56, %c0_57] : memref<64x32xbf16, #tpu.memory_space<vmem>>, vector<64x32xbf16>
    %cst_58 = arith.constant dense<0.000000e+00> : vector<2x32xf32>
    %70 = tpu.matmul %68, %69, %cst_58 {dimension_numbers = #tpu.dot_dimension_numbers<[1], [0], [0], [1], [0, 0, 1, 1], [], []>} : vector<2x64xbf16>, vector<64x32xbf16>, vector<2x32xf32> -> vector<2x32xf32>
    %c0_59 = arith.constant 0 : index
    %c0_60 = arith.constant 0 : index
    %71 = vector.load %arg2[%c0_59, %c0_60] : memref<1x32xf32, #tpu.memory_space<vmem>>, vector<1x32xf32>
    %72 = vector.broadcast %71 : vector<1x32xf32> to vector<2x32xf32>
    %73 = arith.addf %70, %72 : vector<2x32xf32>
    %c0_61 = arith.constant 0 : index
    %c6_62 = arith.constant 6 : index
    %74 = memref.load %arg3[%c0_61, %c6_62] : memref<1x8xf32, #tpu.memory_space<smem>>
    %75 = vector.broadcast %74 : f32 to vector<2x32xf32>
    %76 = arith.mulf %75, %73 : vector<2x32xf32>
    %77 = arith.addf %66, %76 : vector<2x32xf32>
    %c7 = arith.constant 7 : index
    %c0_63 = arith.constant 0 : index
    %c0_64 = arith.constant 0 : index
    %78 = vector.load %arg0[%c7, %c0_63, %c0_64] : memref<8x2x64xbf16, #tpu.memory_space<vmem>>, vector<1x2x64xbf16>
    %79 = vector.shape_cast %78 : vector<1x2x64xbf16> to vector<2x64xbf16>
    %c0_65 = arith.constant 0 : index
    %c0_66 = arith.constant 0 : index
    %80 = vector.load %arg1[%c0_65, %c0_66] : memref<64x32xbf16, #tpu.memory_space<vmem>>, vector<64x32xbf16>
    %cst_67 = arith.constant dense<0.000000e+00> : vector<2x32xf32>
    %81 = tpu.matmul %79, %80, %cst_67 {dimension_numbers = #tpu.dot_dimension_numbers<[1], [0], [0], [1], [0, 0, 1, 1], [], []>} : vector<2x64xbf16>, vector<64x32xbf16>, vector<2x32xf32> -> vector<2x32xf32>
    %c0_68 = arith.constant 0 : index
    %c0_69 = arith.constant 0 : index
    %82 = vector.load %arg2[%c0_68, %c0_69] : memref<1x32xf32, #tpu.memory_space<vmem>>, vector<1x32xf32>
    %83 = vector.broadcast %82 : vector<1x32xf32> to vector<2x32xf32>
    %84 = arith.addf %81, %83 : vector<2x32xf32>
    %c0_70 = arith.constant 0 : index
    %c7_71 = arith.constant 7 : index
    %85 = memref.load %arg3[%c0_70, %c7_71] : memref<1x8xf32, #tpu.memory_space<smem>>
    %86 = vector.broadcast %85 : f32 to vector<2x32xf32>
    %87 = arith.mulf %86, %84 : vector<2x32xf32>
    %88 = arith.addf %77, %87 : vector<2x32xf32>
    %c0_72 = arith.constant 0 : index
    %c0_73 = arith.constant 0 : index
    %89 = memref.load %arg4[%c0_72, %c0_73] : memref<1x1xf32, #tpu.memory_space<smem>>
    %90 = vector.broadcast %89 : f32 to vector<2x32xf32>
    %91 = arith.addf %88, %90 : vector<2x32xf32>
    %92 = arith.truncf %91 : vector<2x32xf32> to vector<2x32xbf16>
    %c0_74 = arith.constant 0 : index
    %c0_75 = arith.constant 0 : index
    %93 = vector.load %arg5[%c0_74, %c0_75] : memref<32x32xbf16, #tpu.memory_space<vmem>>, vector<32x32xbf16>
    %cst_76 = arith.constant dense<0.000000e+00> : vector<2x32xf32>
    %94 = tpu.matmul %92, %93, %cst_76 {dimension_numbers = #tpu.dot_dimension_numbers<[1], [0], [0], [1], [0, 0, 1, 1], [], []>} : vector<2x32xbf16>, vector<32x32xbf16>, vector<2x32xf32> -> vector<2x32xf32>
    %c0_77 = arith.constant 0 : index
    %c0_78 = arith.constant 0 : index
    %95 = vector.load %arg6[%c0_77, %c0_78] : memref<1x32xf32, #tpu.memory_space<vmem>>, vector<1x32xf32>
    %96 = vector.broadcast %95 : vector<1x32xf32> to vector<2x32xf32>
    %97 = arith.addf %94, %96 : vector<2x32xf32>
    %c0_79 = arith.constant 0 : index
    %c0_80 = arith.constant 0 : index
    %98 = vector.load %arg7[%c0_79, %c0_80] : memref<2x32xf32, #tpu.memory_space<vmem>>, vector<2x32xf32>
    tpu.vector_store %arg7[%c0_79, %c0_80], %97 {strides = array<i32>} : memref<2x32xf32, #tpu.memory_space<vmem>>, vector<2x32xf32>,
    return
  }
}

</mosaic_0001>

<llo_original>
// kernel: controlnet_forward.18
$region0: #{controlnet_forward.18}
  #allocation0 [shape = 'u32[]', space=smem, size = 0x4, offset = 0x4, fixed_abs, tag = 'smem constant byte address 0x4 - core index']
  #allocation1 [shape = 'u32[72,128]{1,0:T(1,128)}', space=vmem, size = 0x9000, scoped, tag = 'internal scratch']
  %s0 = inlined_call_operand.hbm [shape: f32[2,8,16], index: 0, kind: input, shape index: {}]
  %s1 = inlined_call_operand.hbm [shape: f32[2,1,32], index: 1, kind: input, shape index: {}]
  %s2 = inlined_call_operand.hbm [shape: f32[1,8], index: 2, kind: input, shape index: {}]
  %s3 = inlined_call_operand.vmem [shape: f32[1,3], index: 3, kind: input, shape index: {}]
  %s4 = inlined_call_operand.vmem [shape: bf16[16,32], index: 4, kind: input, shape index: {}]
  %s5 = inlined_call_operand.vmem [shape: bf16[32,32], index: 5, kind: input, shape index: {}]
  %s6 = inlined_call_operand.hbm [shape: f32[1,32], index: 6, kind: input, shape index: {}]
  %s7 = inlined_call_operand.vmem [shape: bf16[2,1,32], index: 7, kind: output, shape index: {}]
  %s8 = sld [smem:[#allocation0]]
  $region58: #{controlnet_forward.18} parent=0
    _
  %s10 = ssub.s32 1, %s8
  %s11 = scalar_select 0, %s10, %s8
  $region1: #{controlnet_forward.18} parent=0
    #allocation2 [shape = 'u8[8192]{0}', space=vmem, size = 0x2000, scoped, tag = 'input window, operand 0, single buffered']
    #allocation3 [shape = 's32[1]{0}', space=sflag, size = 0x4, scoped, tag = 'scoped memory for controlnet_forward.18']
    #allocation4 [shape = 's32[1]{0}', space=sflag, size = 0x4, scoped, tag = 'scoped memory for controlnet_forward.18']
    #allocation5 [shape = 'u8[1024]{0}', space=vmem, size = 0x400, scoped, tag = 'input window, operand 1, single buffered']
    #allocation6 [shape = 's32[1]{0}', space=sflag, size = 0x4, scoped, tag = 'scoped memory for controlnet_forward.18']
    #allocation7 [shape = 'u8[512]{0}', space=vmem, size = 0x400, scoped, tag = 'input window, operand 2, single buffered']
    #allocation8 [shape = 'u8[512]{0}', space=smem, size = 0x200, scoped, tag = 'input window, operand 3, single buffered']
    #allocation9 [shape = 'u8[512]{0}', space=vmem, size = 0x400, scoped, tag = 'input window, operand 6, single buffered']
    #allocation10 [shape = 's32[1]{0}', space=sflag, size = 0x4, scoped, tag = 'scoped memory for controlnet_forward.18']
    %12 = vsyncpa [#allocation3], 0
    %13 = vsyncpa [#allocation6], 0
    %14 = vsyncpa [#allocation4], 0
    %15 = vsyncpa [#allocation10], 0
    // Predicated region
    $region2: #{controlnet_forward.18} parent=1 // pred_check
      _
    $region3: #{controlnet_forward.18} parent=1 // pred_check_branch
      %17 = sbr.rel (0) target = $region5
    $region4: #{controlnet_forward.18} parent=1 // pred_region
      %19 = vsyncadd [#allocation3], 0
      %s20 = sshll.u32 %s0, 4
      %s21 = int_to_ptr.hbm [resolvable:$true] %s20
      %s22 = sshll.u32 [#allocation2], 4
      %s23 = int_to_ptr.vmem [resolvable:$true] %s22
      %28 = dma.hbm_to_vmem [thread:$0]  %s21, 256, %s23, [#allocation3], 128, 128, 8
    $region5: #{controlnet_forward.18} parent=1 // pred_fallthru
      _
    // Predicated region
    $region6: #{controlnet_forward.18} parent=1 // pred_check
      _
    $region7: #{controlnet_forward.18} parent=1 // pred_check_branch
      %30 = sbr.rel (0) target = $region9
    $region8: #{controlnet_forward.18} parent=1 // pred_region
      %32 = vsyncadd [#allocation6], 0
      %s33 = sshll.u32 %s1, 4
      %s34 = int_to_ptr.hbm [resolvable:$true] %s33
      %s35 = sshll.u32 [#allocation5], 4
      %s36 = int_to_ptr.vmem [resolvable:$true] %s35
      %41 = dma.hbm_to_vmem [thread:$0]  %s34, 32, %s36, [#allocation6], 16, 16, 1
    $region9: #{controlnet_forward.18} parent=1 // pred_fallthru
      _
    // Predicated region
    $region10: #{controlnet_forward.18} parent=1 // pred_check
      _
    $region11: #{controlnet_forward.18} parent=1 // pred_check_branch
      %43 = sbr.rel (0) target = $region13
    $region12: #{controlnet_forward.18} parent=1 // pred_region
      %45 = vsyncadd [#allocation6], 0
      %s47 = sshll.u32 %s2, 4
      %s48 = int_to_ptr.hbm [resolvable:$true] %s47
      %s49 = sshll.u32 [#allocation7], 4
      %s50 = int_to_ptr.vmem [resolvable:$true] %s49
      %52 = dma.hbm_to_vmem [thread:$0]  %s48, 16, %s50, [#allocation6]
    $region13: #{controlnet_forward.18} parent=1 // pred_fallthru
      _
    // Predicated region
    $region14: #{controlnet_forward.18} parent=1 // pred_check
      _
    $region15: #{controlnet_forward.18} parent=1 // pred_check_branch
      %54 = sbr.rel (0) target = $region17
    $region16: #{controlnet_forward.18} parent=1 // pred_region
      %56 = vsyncadd [#allocation4], 0
      %s58 = sshll.u32 %s3, 4
      %s59 = int_to_ptr.vmem [resolvable:$true] %s58
      %61 = dma.vmem_to_smem %s59, 16, [#allocation8], [#allocation4]
    $region17: #{controlnet_forward.18} parent=1 // pred_fallthru
      _
    // Predicated region
    $region18: #{controlnet_forward.18} parent=1 // pred_check
      _
    $region19: #{controlnet_forward.18} parent=1 // pred_check_branch
      %63 = sbr.rel (0) target = $region21
    $region20: #{controlnet_forward.18} parent=1 // pred_region
      _
    $region21: #{controlnet_forward.18} parent=1 // pred_fallthru
      _
    // Predicated region
    $region22: #{controlnet_forward.18} parent=1 // pred_check
      _
    $region23: #{controlnet_forward.18} parent=1 // pred_check_branch
      %65 = sbr.rel (0) target = $region25
    $region24: #{controlnet_forward.18} parent=1 // pred_region
      _
    $region25: #{controlnet_forward.18} parent=1 // pred_fallthru
      _
    // Predicated region
    $region26: #{controlnet_forward.18} parent=1 // pred_check
      _
    $region27: #{controlnet_forward.18} parent=1 // pred_check_branch
      %67 = sbr.rel (0) target = $region29
    $region28: #{controlnet_forward.18} parent=1 // pred_region
      %69 = vsyncadd [#allocation10], 0
      %s71 = sshll.u32 %s6, 4
      %s72 = int_to_ptr.hbm [resolvable:$true] %s71
      %s73 = sshll.u32 [#allocation9], 4
      %s74 = int_to_ptr.vmem [resolvable:$true] %s73
      %76 = dma.hbm_to_vmem [thread:$0]  %s72, 16, %s74, [#allocation10]
    $region29: #{controlnet_forward.18} parent=1 // pred_fallthru
      _
    // Predicated region
    $region30: #{controlnet_forward.18} parent=1 // pred_check
      _
    $region31: #{controlnet_forward.18} parent=1 // pred_check_branch
      %78 = sbr.rel (0) target = $region33
    $region32: #{controlnet_forward.18} parent=1 // pred_region
      %80 = dma.done [#allocation3], 256
    $region33: #{controlnet_forward.18} parent=1 // pred_fallthru
      _
    // Predicated region
    $region34: #{controlnet_forward.18} parent=1 // pred_check
      _
    $region35: #{controlnet_forward.18} parent=1 // pred_check_branch
      %82 = sbr.rel (0) target = $region37
    $region36: #{controlnet_forward.18} parent=1 // pred_region
      %84 = dma.done [#allocation6], 32
    $region37: #{controlnet_forward.18} parent=1 // pred_fallthru
      _
    // Predicated region
    $region38: #{controlnet_forward.18} parent=1 // pred_check
      _
    $region39: #{controlnet_forward.18} parent=1 // pred_check_branch
      %86 = sbr.rel (0) target = $region41
    $region40: #{controlnet_forward.18} parent=1 // pred_region
      %88 = dma.done [#allocation6], 16
    $region41: #{controlnet_forward.18} parent=1 // pred_fallthru
      _
    // Predicated region
    $region42: #{controlnet_forward.18} parent=1 // pred_check
      _
    $region43: #{controlnet_forward.18} parent=1 // pred_check_branch
      %90 = sbr.rel (0) target = $region45
    $region44: #{controlnet_forward.18} parent=1 // pred_region
      %92 = dma.done [#allocation4], 16
    $region45: #{controlnet_forward.18} parent=1 // pred_fallthru
      _
    // Predicated region
    $region46: #{controlnet_forward.18} parent=1 // pred_check
      _
    $region47: #{controlnet_forward.18} parent=1 // pred_check_branch
      %94 = sbr.rel (0) target = $region49
    $region48: #{controlnet_forward.18} parent=1 // pred_region
      %96 = dma.done [#allocation10], 16
    $region49: #{controlnet_forward.18} parent=1 // pred_fallthru
      _
    %97 = sfence
    %s99 = sld [smem:[#allocation8]]
    %s100 = sld [smem:[#allocation8 + $0x1]]
    %s101 = sld [smem:[#allocation8 + $0x2]]
    %v102 = vld [vmem:[#allocation2] sm:$0xff]
    %v103 = vld [vmem:[#allocation7] sm:$0x1]
    %v104 = vstv %s99
    %vm105 = vcmask 64512
    %v107 = vsel %vm105, %v103, 0
    %109 = vmatpush.msra.mxu0 0.0
    %110 = vmatpush.msra.mxu0 0.0
    %111 = vmatpush.msra.mxu0 0.0
    %112 = vmatpush.msra.mxu0 0.0
    %113 = vmatpush.msra.mxu0 0.0
    %114 = vmatpush.msra.mxu0 0.0
    %115 = vmatpush.msra.mxu0 0.0
    %116 = vmatpush.msra.mxu0 0.0
    %117 = vmatpush.msra.mxu0 0.0
    %118 = vmatpush.msra.mxu0 0.0
    %119 = vmatpush.msra.mxu0 0.0
    %120 = vmatpush.msra.mxu0 0.0
    %121 = vmatpush.msra.mxu0 0.0
    %122 = vmatpush.msra.mxu0 0.0
    %123 = vmatpush.msra.mxu0 0.0
    %124 = vmatpush.msra.mxu0 %v102
    %125 = vmatmul.f32.gmra.mxu0 %v107
    %v126 = vpop.f32.mrf.mxu0
    %v127 = vadd.f32 %v104, %v126
    %128 = vdwg.mxu0
    %v129 = vld [vmem:[#allocation5] sm:$0x1]
    %v130 = vstv %s100
    %v131 = vmul.f32 %v129, %v130
    %v132 = vstv %s101
    %v133 = vadd.f32 %v131, %v132
    %v134 = vpack.c.bf16 %v127, %v127
    %v135 = vld [vmem:[%s4] sm:$0xf]
    %v136 = vld [vmem:[%s4 + $0x4] sm:$0xf]
    %v137 = vpack.c.bf16 %v133, %v133
    %v138 = vld [vmem:[%s5] sm:$0xf]
    %v139 = vld [vmem:[%s5 + $0x4] sm:$0xf]
    %v140 = vld [vmem:[%s5 + $0x8] sm:$0xf]
    %v141 = vld [vmem:[%s5 + $0xc] sm:$0xf]
    %v146 = vunpack.c.l.b16 %v138
    %v147 = vunpack.c.l.b16 %v139
    %v148 = vunpack.c.l.b16 %v140
    %v149 = vunpack.c.l.b16 %v141
    %v150 = vpack.c.b16 %v147, %v146
    %v151 = vpack.c.b16 %v149, %v148
    %vm154 = vcmask 261120
    %v156 = vsel %vm154, %v137, 0
    %158 = vmatpush.bf16.msra.mxu0 0
    %159 = vmatpush.bf16.msra.mxu0 0
    %160 = vmatpush.bf16.msra.mxu0 0
    %161 = vmatpush.bf16.msra.mxu0 0
    %162 = vmatpush.bf16.msra.mxu0 0
    %163 = vmatpush.bf16.msra.mxu0 0
    %164 = vmatpush.bf16.msra.mxu0 %v151
    %165 = vmatpush.bf16.msra.mxu0 %v150
    %166 = vmatmul.bf16.gmra.mxu0 %v156
    %v167 = vpop.f32.mrf.mxu0
    %v168 = vadd.f32 0.0, %v167
    %v169 = vpop.f32.mrf.mxu0
    %170 = vdwg.mxu0
    %v173 = vunpack.c.l.b16 %v135
    %v174 = vunpack.c.l.b16 %v136
    %v175 = vpack.c.b16 %v174, %v173
    %vm177 = vcmask 130048
    %v179 = vsel %vm177, %v134, 0
    %181 = vmatpush.bf16.msra.mxu0 0
    %182 = vmatpush.bf16.msra.mxu0 0
    %183 = vmatpush.bf16.msra.mxu0 0
    %184 = vmatpush.bf16.msra.mxu0 0
    %185 = vmatpush.bf16.msra.mxu0 0
    %186 = vmatpush.bf16.msra.mxu0 0
    %187 = vmatpush.bf16.msra.mxu0 0
    %188 = vmatpush.bf16.msra.mxu0 %v175
    %189 = vmatmul.bf16.gmra.mxu0 %v179
    %v190 = vpop.f32.mrf.mxu0
    %v191 = vadd.f32 %v168, %v190
    %v192 = vpop.f32.mrf.mxu0
    %193 = vdwg.mxu0
    %v194 = vld [vmem:[#allocation9] sm:$0x1]
    %v195 = vadd.f32 %v191, %v194
    %v196 = vpack.c.bf16 %v195, %v195
    %vm197 = vcmask 253952
    %vm198 = vsmask.f32 256
    %vm199 = vmand %vm197, %vm198
    %v200 = vld [vmem:[%s7] sm:$0x1]
    %v201 = vsel %vm199, %v196, %v200
    %202 = vst [vmem:[%s7] sm:$0x1] %v201
    %s203 = scalar_lea.vmem [#allocation2], 8
    %v204 = vld [vmem:[%s203] sm:$0xff]
    %v205 = vld [vmem:[#allocation7] sm:$0x1]
    %v207 = vsel %vm105, %v205, 0
    %209 = vmatpush.msra.mxu0 0.0
    %210 = vmatpush.msra.mxu0 0.0
    %211 = vmatpush.msra.mxu0 0.0
    %212 = vmatpush.msra.mxu0 0.0
    %213 = vmatpush.msra.mxu0 0.0
    %214 = vmatpush.msra.mxu0 0.0
    %215 = vmatpush.msra.mxu0 0.0
    %216 = vmatpush.msra.mxu0 0.0
    %217 = vmatpush.msra.mxu0 0.0
    %218 = vmatpush.msra.mxu0 0.0
    %219 = vmatpush.msra.mxu0 0.0
    %220 = vmatpush.msra.mxu0 0.0
    %221 = vmatpush.msra.mxu0 0.0
    %222 = vmatpush.msra.mxu0 0.0
    %223 = vmatpush.msra.mxu0 0.0
    %224 = vmatpush.msra.mxu0 %v204
    %225 = vmatmul.f32.gmra.mxu0 %v207
    %v226 = vpop.f32.mrf.mxu0
    %v227 = vadd.f32 %v104, %v226
    %228 = vdwg.mxu0
    %s229 = scalar_lea.vmem [#allocation5], 1
    %v230 = vld [vmem:[%s229] sm:$0x1]
    %v231 = vmul.f32 %v230, %v130
    %v232 = vadd.f32 %v231, %v132
    %v233 = vpack.c.bf16 %v227, %v227
    %v234 = vld [vmem:[%s4] sm:$0xf]
    %v235 = vld [vmem:[%s4 + $0x4] sm:$0xf]
    %v236 = vpack.c.bf16 %v232, %v232
    %v237 = vld [vmem:[%s5] sm:$0xf]
    %v238 = vld [vmem:[%s5 + $0x4] sm:$0xf]
    %v239 = vld [vmem:[%s5 + $0x8] sm:$0xf]
    %v240 = vld [vmem:[%s5 + $0xc] sm:$0xf]
    %v245 = vunpack.c.l.b16 %v237
    %v246 = vunpack.c.l.b16 %v238
    %v247 = vunpack.c.l.b16 %v239
    %v248 = vunpack.c.l.b16 %v240
    %v249 = vpack.c.b16 %v246, %v245
    %v250 = vpack.c.b16 %v248, %v247
    %v254 = vsel %vm154, %v236, 0
    %256 = vmatpush.bf16.msra.mxu0 0
    %257 = vmatpush.bf16.msra.mxu0 0
    %258 = vmatpush.bf16.msra.mxu0 0
    %259 = vmatpush.bf16.msra.mxu0 0
    %260 = vmatpush.bf16.msra.mxu0 0
    %261 = vmatpush.bf16.msra.mxu0 0
    %262 = vmatpush.bf16.msra.mxu0 %v250
    %263 = vmatpush.bf16.msra.mxu0 %v249
    %264 = vmatmul.bf16.gmra.mxu0 %v254
    %v265 = vpop.f32.mrf.mxu0
    %v266 = vadd.f32 0.0, %v265
    %v267 = vpop.f32.mrf.mxu0
    %268 = vdwg.mxu0
    %v271 = vunpack.c.l.b16 %v234
    %v272 = vunpack.c.l.b16 %v235
    %v273 = vpack.c.b16 %v272, %v271
    %v276 = vsel %vm177, %v233, 0
    %278 = vmatpush.bf16.msra.mxu0 0
    %279 = vmatpush.bf16.msra.mxu0 0
    %280 = vmatpush.bf16.msra.mxu0 0
    %281 = vmatpush.bf16.msra.mxu0 0
    %282 = vmatpush.bf16.msra.mxu0 0
    %283 = vmatpush.bf16.msra.mxu0 0
    %284 = vmatpush.bf16.msra.mxu0 0
    %285 = vmatpush.bf16.msra.mxu0 %v273
    %286 = vmatmul.bf16.gmra.mxu0 %v276
    %v287 = vpop.f32.mrf.mxu0
    %v288 = vadd.f32 %v266, %v287
    %v289 = vpop.f32.mrf.mxu0
    %290 = vdwg.mxu0
    %v291 = vld [vmem:[#allocation9] sm:$0x1]
    %v292 = vadd.f32 %v288, %v291
    %v293 = vpack.c.bf16 %v292, %v292
    %s294 = scalar_lea.vmem %s7, 1
    %v295 = vld [vmem:[%s294] sm:$0x1]
    %v296 = vsel %vm199, %v293, %v295
    %297 = vst [vmem:[%s294] sm:$0x1] %v296
    // Predicated region
    $region50: #{controlnet_forward.18} parent=1 // pred_check
      _
    $region51: #{controlnet_forward.18} parent=1 // pred_check_branch
      %299 = sbr.rel (0) target = $region53
    $region52: #{controlnet_forward.18} parent=1 // pred_region
      _
    $region53: #{controlnet_forward.18} parent=1 // pred_fallthru
      _
    // Predicated region
    $region54: #{controlnet_forward.18} parent=1 // pred_check
      _
    $region55: #{controlnet_forward.18} parent=1 // pred_check_branch
      %301 = sbr.rel (0) target = $region57
    $region56: #{controlnet_forward.18} parent=1 // pred_region
      _
    $region57: #{controlnet_forward.18} parent=1 // pred_fallthru
      _
    %302 = vsyncpa [#allocation3], 1
    %303 = vsyncpa [#allocation6], 1
    %304 = vsyncpa [#allocation10], 1
    %305 = vsyncpa [#allocation4], 1

// kernel: controlnet_forward.12
$region0: #{controlnet_forward.12}
  #allocation0 [shape = 'u32[]', space=smem, size = 0x4, offset = 0x4, fixed_abs, tag = 'smem constant byte address 0x4 - core index']
  #allocation1 [shape = 'u32[72,128]{1,0:T(1,128)}', space=vmem, size = 0x9000, scoped, tag = 'internal scratch']
  %s0 = inlined_call_operand.vmem [shape: f32[16,16], index: 0, kind: input, shape index: {}]
  %s1 = inlined_call_operand.vmem [shape: f32[16,64], index: 1, kind: input, shape index: {}]
  %s2 = inlined_call_operand.hbm [shape: bf16[16,64], index: 2, kind: input, shape index: {}]
  %s3 = inlined_call_operand.hbm [shape: f32[1,64], index: 3, kind: input, shape index: {}]
  %s4 = inlined_call_operand.vmem [shape: bf16[16,64], index: 4, kind: output, shape index: {}]
  %s5 = sld [smem:[#allocation0]]
  $region34: #{controlnet_forward.12} parent=0
    _
  %s7 = ssub.s32 1, %s5
  %s8 = scalar_select 0, %s7, %s5
  $region1: #{controlnet_forward.12} parent=0
    #allocation2 [shape = 'u8[4096]{0}', space=vmem, size = 0x1000, scoped, tag = 'input window, operand 2, single buffered']
    #allocation3 [shape = 's32[1]{0}', space=sflag, size = 0x4, scoped, tag = 'scoped memory for controlnet_forward.12']
    #allocation4 [shape = 'u8[512]{0}', space=vmem, size = 0x400, scoped, tag = 'input window, operand 3, single buffered']
    #allocation5 [shape = 's32[1]{0}', space=sflag, size = 0x4, scoped, tag = 'scoped memory for controlnet_forward.12']
    %9 = vsyncpa [#allocation3], 0
    %10 = vsyncpa [#allocation5], 0
    // Predicated region
    $region2: #{controlnet_forward.12} parent=1 // pred_check
      _
    $region3: #{controlnet_forward.12} parent=1 // pred_check_branch
      %12 = sbr.rel (0) target = $region5
    $region4: #{controlnet_forward.12} parent=1 // pred_region
      _
    $region5: #{controlnet_forward.12} parent=1 // pred_fallthru
      _
    // Predicated region
    $region6: #{controlnet_forward.12} parent=1 // pred_check
      _
    $region7: #{controlnet_forward.12} parent=1 // pred_check_branch
      %14 = sbr.rel (0) target = $region9
    $region8: #{controlnet_forward.12} parent=1 // pred_region
      _
    $region9: #{controlnet_forward.12} parent=1 // pred_fallthru
      _
    // Predicated region
    $region10: #{controlnet_forward.12} parent=1 // pred_check
      _
    $region11: #{controlnet_forward.12} parent=1 // pred_check_branch
      %16 = sbr.rel (0) target = $region13
    $region12: #{controlnet_forward.12} parent=1 // pred_region
      %18 = vsyncadd [#allocation3], 0
      %s19 = sshll.u32 %s2, 4
      %s20 = int_to_ptr.hbm [resolvable:$true] %s19
      %s21 = sshll.u32 [#allocation2], 4
      %s22 = int_to_ptr.vmem [resolvable:$true] %s21
      %27 = dma.hbm_to_vmem [thread:$0]  %s20, 128, %s22, [#allocation3], 64, 64, 4
    $region13: #{controlnet_forward.12} parent=1 // pred_fallthru
      _
    // Predicated region
    $region14: #{controlnet_forward.12} parent=1 // pred_check
      _
    $region15: #{controlnet_forward.12} parent=1 // pred_check_branch
      %29 = sbr.rel (0) target = $region17
    $region16: #{controlnet_forward.12} parent=1 // pred_region
      %31 = vsyncadd [#allocation5], 0
      %s33 = sshll.u32 %s3, 4
      %s34 = int_to_ptr.hbm [resolvable:$true] %s33
      %s35 = sshll.u32 [#allocation4], 4
      %s36 = int_to_ptr.vmem [resolvable:$true] %s35
      %38 = dma.hbm_to_vmem [thread:$0]  %s34, 16, %s36, [#allocation5]
    $region17: #{controlnet_forward.12} parent=1 // pred_fallthru
      _
    // Predicated region
    $region18: #{controlnet_forward.12} parent=1 // pred_check
      _
    $region19: #{controlnet_forward.12} parent=1 // pred_check_branch
      %40 = sbr.rel (0) target = $region21
    $region20: #{controlnet_forward.12} parent=1 // pred_region
      %42 = dma.done [#allocation3], 128
    $region21: #{controlnet_forward.12} parent=1 // pred_fallthru
      _
    // Predicated region
    $region22: #{controlnet_forward.12} parent=1 // pred_check
      _
    $region23: #{controlnet_forward.12} parent=1 // pred_check_branch
      %44 = sbr.rel (0) target = $region25
    $region24: #{controlnet_forward.12} parent=1 // pred_region
      %46 = dma.done [#allocation5], 16
    $region25: #{controlnet_forward.12} parent=1 // pred_fallthru
      _
    %v48 = vld [vmem:[%s0] sm:$0xff]
    %v49 = vld [vmem:[%s0 + $0x8] sm:$0xff]
    %v50 = vpack.c.bf16 %v49, %v48
    %v51 = vld [vmem:[#allocation2] sm:$0xf]
    %v52 = vld [vmem:[#allocation2 + $0x4] sm:$0xf]
    %v53 = vld [vmem:[#allocation4] sm:$0x1]
    %v55 = vperm.slane %v53, 0
    %v59 = vunpack.c.l.b16 %v51
    %v60 = vunpack.c.l.b16 %v52
    %v61 = vpack.c.b16 %v60, %v59
    %vm63 = vcmask 130048
    %v65 = vsel %vm63, %v50, 0
    %67 = vmatpush.bf16.msra.mxu0 0
    %68 = vmatpush.bf16.msra.mxu0 0
    %69 = vmatpush.bf16.msra.mxu0 0
    %70 = vmatpush.bf16.msra.mxu0 0
    %71 = vmatpush.bf16.msra.mxu0 0
    %72 = vmatpush.bf16.msra.mxu0 0
    %73 = vmatpush.bf16.msra.mxu0 0
    %74 = vmatpush.bf16.msra.mxu0 %v61
    %75 = vmatmul.bf16.gmra.mxu0 %v65
    %v76 = vpop.f32.mrf.mxu0
    %v77 = vadd.f32 %v55, %v76
    %v78 = vpop.f32.mrf.mxu0
    %v79 = vadd.f32 %v55, %v78
    %80 = vdwg.mxu0
    %v81 = vld [vmem:[%s1] sm:$0xff]
    %v82 = vld [vmem:[%s1 + $0x8] sm:$0xff]
    %v83 = vadd.f32 %v77, %v81
    %v84 = vadd.f32 %v79, %v82
    %v85 = vpack.c.bf16 %v83, %v83
    %v86 = vpack.c.bf16 %v84, %v84
    %vm87 = vcmask 519168
    %88 = vst.msk [vmem:[%s4] sm:$0xf] %vm87, %v85
    %89 = vst.msk [vmem:[%s4 + $0x4] sm:$0xf] %vm87, %v86
    // Predicated region
    $region26: #{controlnet_forward.12} parent=1 // pred_check
      _
    $region27: #{controlnet_forward.12} parent=1 // pred_check_branch
      %91 = sbr.rel (0) target = $region29
    $region28: #{controlnet_forward.12} parent=1 // pred_region
      _
    $region29: #{controlnet_forward.12} parent=1 // pred_fallthru
      _
    // Predicated region
    $region30: #{controlnet_forward.12} parent=1 // pred_check
      _
    $region31: #{controlnet_forward.12} parent=1 // pred_check_branch
      %93 = sbr.rel (0) target = $region33
    $region32: #{controlnet_forward.12} parent=1 // pred_region
      _
    $region33: #{controlnet_forward.12} parent=1 // pred_fallthru
      _
    %94 = vsyncpa [#allocation3], 1
    %95 = vsyncpa [#allocation5], 1

// kernel: controlnet_forward.11
$region0: #{controlnet_forward.11}
  #allocation0 [shape = 'u32[]', space=smem, size = 0x4, offset = 0x4, fixed_abs, tag = 'smem constant byte address 0x4 - core index']
  #allocation1 [shape = 'u32[72,128]{1,0:T(1,128)}', space=vmem, size = 0x9000, scoped, tag = 'internal scratch']
  %s0 = inlined_call_operand.vmem [shape: f32[2,256], index: 0, kind: input, shape index: {}]
  %s1 = inlined_call_operand.vmem [shape: bf16[256,32], index: 1, kind: input, shape index: {}]
  %s2 = inlined_call_operand.hbm [shape: f32[1,32], index: 2, kind: input, shape index: {}]
  %s3 = inlined_call_operand.hbm [shape: bf16[32,32], index: 3, kind: input, shape index: {}]
  %s4 = inlined_call_operand.hbm [shape: f32[1,32], index: 4, kind: input, shape index: {}]
  %s5 = inlined_call_operand.vmem [shape: bf16[2,32], index: 5, kind: output, shape index: {}]
  %s6 = sld [smem:[#allocation0]]
  $region42: #{controlnet_forward.11} parent=0
    _
  %s8 = ssub.s32 1, %s6
  %s9 = scalar_select 0, %s8, %s6
  $region1: #{controlnet_forward.11} parent=0
    #allocation2 [shape = 'u8[512]{0}', space=vmem, size = 0x400, scoped, tag = 'input window, operand 2, single buffered']
    #allocation3 [shape = 's32[1]{0}', space=sflag, size = 0x4, scoped, tag = 'scoped memory for controlnet_forward.11']
    #allocation4 [shape = 'u8[8192]{0}', space=vmem, size = 0x2000, scoped, tag = 'input window, operand 3, single buffered']
    #allocation5 [shape = 's32[1]{0}', space=sflag, size = 0x4, scoped, tag = 'scoped memory for controlnet_forward.11']
    #allocation6 [shape = 'u8[512]{0}', space=vmem, size = 0x400, scoped, tag = 'input window, operand 4, single buffered']
    %10 = vsyncpa [#allocation3], 0
    %11 = vsyncpa [#allocation5], 0
    // Predicated region
    $region2: #{controlnet_forward.11} parent=1 // pred_check
      _
    $region3: #{controlnet_forward.11} parent=1 // pred_check_branch
      %13 = sbr.rel (0) target = $region5
    $region4: #{controlnet_forward.11} parent=1 // pred_region
      _
    $region5: #{controlnet_forward.11} parent=1 // pred_fallthru
      _
    // Predicated region
    $region6: #{controlnet_forward.11} parent=1 // pred_check
      _
    $region7: #{controlnet_forward.11} parent=1 // pred_check_branch
      %15 = sbr.rel (0) target = $region9
    $region8: #{controlnet_forward.11} parent=1 // pred_region
      _
    $region9: #{controlnet_forward.11} parent=1 // pred_fallthru
      _
    // Predicated region
    $region10: #{controlnet_forward.11} parent=1 // pred_check
      _
    $region11: #{controlnet_forward.11} parent=1 // pred_check_branch
      %17 = sbr.rel (0) target = $region13
    $region12: #{controlnet_forward.11} parent=1 // pred_region
      %19 = vsyncadd [#allocation3], 0
      %s21 = sshll.u32 %s2, 4
      %s22 = int_to_ptr.hbm [resolvable:$true] %s21
      %s23 = sshll.u32 [#allocation2], 4
      %s24 = int_to_ptr.vmem [resolvable:$true] %s23
      %26 = dma.hbm_to_vmem [thread:$0]  %s22, 16, %s24, [#allocation3]
    $region13: #{controlnet_forward.11} parent=1 // pred_fallthru
      _
    // Predicated region
    $region14: #{controlnet_forward.11} parent=1 // pred_check
      _
    $region15: #{controlnet_forward.11} parent=1 // pred_check_branch
      %28 = sbr.rel (0) target = $region17
    $region16: #{controlnet_forward.11} parent=1 // pred_region
      %30 = vsyncadd [#allocation5], 0
      %s31 = sshll.u32 %s3, 4
      %s32 = int_to_ptr.hbm [resolvable:$true] %s31
      %s33 = sshll.u32 [#allocation4], 4
      %s34 = int_to_ptr.vmem [resolvable:$true] %s33
      %39 = dma.hbm_to_vmem [thread:$0]  %s32, 256, %s34, [#allocation5], 64, 64, 4
    $region17: #{controlnet_forward.11} parent=1 // pred_fallthru
      _
    // Predicated region
    $region18: #{controlnet_forward.11} parent=1 // pred_check
      _
    $region19: #{controlnet_forward.11} parent=1 // pred_check_branch
      %41 = sbr.rel (0) target = $region21
    $region20: #{controlnet_forward.11} parent=1 // pred_region
      %43 = vsyncadd [#allocation5], 0
      %s45 = sshll.u32 %s4, 4
      %s46 = int_to_ptr.hbm [resolvable:$true] %s45
      %s47 = sshll.u32 [#allocation6], 4
      %s48 = int_to_ptr.vmem [resolvable:$true] %s47
      %50 = dma.hbm_to_vmem [thread:$0]  %s46, 16, %s48, [#allocation5]
    $region21: #{controlnet_forward.11} parent=1 // pred_fallthru
      _
    // Predicated region
    $region22: #{controlnet_forward.11} parent=1 // pred_check
      _
    $region23: #{controlnet_forward.11} parent=1 // pred_check_branch
      %52 = sbr.rel (0) target = $region25
    $region24: #{controlnet_forward.11} parent=1 // pred_region
      %54 = dma.done [#allocation3], 16
    $region25: #{controlnet_forward.11} parent=1 // pred_fallthru
      _
    // Predicated region
    $region26: #{controlnet_forward.11} parent=1 // pred_check
      _
    $region27: #{controlnet_forward.11} parent=1 // pred_check_branch
      %56 = sbr.rel (0) target = $region29
    $region28: #{controlnet_forward.11} parent=1 // pred_region
      %58 = dma.done [#allocation5], 256
    $region29: #{controlnet_forward.11} parent=1 // pred_fallthru
      _
    // Predicated region
    $region30: #{controlnet_forward.11} parent=1 // pred_check
      _
    $region31: #{controlnet_forward.11} parent=1 // pred_check_branch
      %60 = sbr.rel (0) target = $region33
    $region32: #{controlnet_forward.11} parent=1 // pred_region
      %62 = dma.done [#allocation5], 16
    $region33: #{controlnet_forward.11} parent=1 // pred_fallthru
      _
    %v64 = vld [vmem:[%s0] sm:$0xf]
    %66 = vst [vmem:[#allocation1] ss:$4 sm:$0xff] %v64
    %v67 = vld.sshfl [vmem:[#allocation1] sm:$0xff pattern:$0x73625140]
    %v68 = vld.sshfl [vmem:[#allocation1 + $0x8] sm:$0xff pattern:$0x73625140]
    %v71 = vpack.c.bf16 %v67, %v67
    %v72 = vpack.c.bf16 %v68, %v68
    %v73 = vld [vmem:[%s1] sm:$0xf]
    %v74 = vld [vmem:[%s1 + $0x4] sm:$0xf]
    %v75 = vld [vmem:[%s1 + $0x8] sm:$0xf]
    %v76 = vld [vmem:[%s1 + $0xc] sm:$0xf]
    %v77 = vld [vmem:[%s1 + $0x10] sm:$0xf]
    %v78 = vld [vmem:[%s1 + $0x14] sm:$0xf]
    %v79 = vld [vmem:[%s1 + $0x18] sm:$0xf]
    %v80 = vld [vmem:[%s1 + $0x1c] sm:$0xf]
    %v81 = vld [vmem:[%s1 + $0x20] sm:$0xf]
    %v82 = vld [vmem:[%s1 + $0x24] sm:$0xf]
    %v83 = vld [vmem:[%s1 + $0x28] sm:$0xf]
    %v84 = vld [vmem:[%s1 + $0x2c] sm:$0xf]
    %v85 = vld [vmem:[%s1 + $0x30] sm:$0xf]
    %v86 = vld [vmem:[%s1 + $0x34] sm:$0xf]
    %v87 = vld [vmem:[%s1 + $0x38] sm:$0xf]
    %v88 = vld [vmem:[%s1 + $0x3c] sm:$0xf]
    %v89 = vld [vmem:[%s1 + $0x40] sm:$0xf]
    %v90 = vld [vmem:[%s1 + $0x44] sm:$0xf]
    %v91 = vld [vmem:[%s1 + $0x48] sm:$0xf]
    %v92 = vld [vmem:[%s1 + $0x4c] sm:$0xf]
    %v93 = vld [vmem:[%s1 + $0x50] sm:$0xf]
    %v94 = vld [vmem:[%s1 + $0x54] sm:$0xf]
    %v95 = vld [vmem:[%s1 + $0x58] sm:$0xf]
    %v96 = vld [vmem:[%s1 + $0x5c] sm:$0xf]
    %v97 = vld [vmem:[%s1 + $0x60] sm:$0xf]
    %v98 = vld [vmem:[%s1 + $0x64] sm:$0xf]
    %v99 = vld [vmem:[%s1 + $0x68] sm:$0xf]
    %v100 = vld [vmem:[%s1 + $0x6c] sm:$0xf]
    %v101 = vld [vmem:[%s1 + $0x70] sm:$0xf]
    %v102 = vld [vmem:[%s1 + $0x74] sm:$0xf]
    %v103 = vld [vmem:[%s1 + $0x78] sm:$0xf]
    %v104 = vld [vmem:[%s1 + $0x7c] sm:$0xf]
    %v105 = vld [vmem:[#allocation2] sm:$0x1]
    %v107 = vperm.slane %v105, 0
    %v141 = vunpack.c.l.b16 %v73
    %v142 = vunpack.c.l.b16 %v74
    %v143 = vunpack.c.l.b16 %v75
    %v144 = vunpack.c.l.b16 %v76
    %v145 = vunpack.c.l.b16 %v77
    %v146 = vunpack.c.l.b16 %v78
    %v147 = vunpack.c.l.b16 %v79
    %v148 = vunpack.c.l.b16 %v80
    %v149 = vunpack.c.l.b16 %v81
    %v150 = vunpack.c.l.b16 %v82
    %v151 = vunpack.c.l.b16 %v83
    %v152 = vunpack.c.l.b16 %v84
    %v153 = vunpack.c.l.b16 %v85
    %v154 = vunpack.c.l.b16 %v86
    %v155 = vunpack.c.l.b16 %v87
    %v156 = vunpack.c.l.b16 %v88
    %v157 = vunpack.c.l.b16 %v89
    %v158 = vunpack.c.l.b16 %v90
    %v159 = vunpack.c.l.b16 %v91
    %v160 = vunpack.c.l.b16 %v92
    %v161 = vunpack.c.l.b16 %v93
    %v162 = vunpack.c.l.b16 %v94
    %v163 = vunpack.c.l.b16 %v95
    %v164 = vunpack.c.l.b16 %v96
    %v165 = vunpack.c.l.b16 %v97
    %v166 = vunpack.c.l.b16 %v98
    %v167 = vunpack.c.l.b16 %v99
    %v168 = vunpack.c.l.b16 %v100
    %v169 = vunpack.c.l.b16 %v101
    %v170 = vunpack.c.l.b16 %v102
    %v171 = vunpack.c.l.b16 %v103
    %v172 = vunpack.c.l.b16 %v104
    %v173 = vpack.c.b16 %v142, %v141
    %v174 = vpack.c.b16 %v144, %v143
    %v175 = vpack.c.b16 %v146, %v145
    %v176 = vpack.c.b16 %v148, %v147
    %v177 = vpack.c.b16 %v150, %v149
    %v178 = vpack.c.b16 %v152, %v151
    %v179 = vpack.c.b16 %v154, %v153
    %v180 = vpack.c.b16 %v156, %v155
    %v181 = vpack.c.b16 %v158, %v157
    %v182 = vpack.c.b16 %v160, %v159
    %v183 = vpack.c.b16 %v162, %v161
    %v184 = vpack.c.b16 %v164, %v163
    %v185 = vpack.c.b16 %v166, %v165
    %v186 = vpack.c.b16 %v168, %v167
    %v187 = vpack.c.b16 %v170, %v169
    %v188 = vpack.c.b16 %v172, %v171
    %205 = vmatpush.bf16.msra.mxu0 %v180
    %206 = vmatpush.bf16.msra.mxu0 %v179
    %207 = vmatpush.bf16.msra.mxu0 %v178
    %208 = vmatpush.bf16.msra.mxu0 %v177
    %209 = vmatpush.bf16.msra.mxu0 %v176
    %210 = vmatpush.bf16.msra.mxu0 %v175
    %211 = vmatpush.bf16.msra.mxu0 %v174
    %212 = vmatpush.bf16.msra.mxu0 %v173
    %213 = vmatmul.bf16.gmra.mxu0 %v71
    %v214 = vpop.f32.mrf.mxu0
    %v215 = vadd.f32 %v107, %v214
    %v216 = vpop.f32.mrf.mxu0
    %217 = vdwg.mxu0
    %218 = vmatpush.bf16.msra.mxu0 %v188
    %219 = vmatpush.bf16.msra.mxu0 %v187
    %220 = vmatpush.bf16.msra.mxu0 %v186
    %221 = vmatpush.bf16.msra.mxu0 %v185
    %222 = vmatpush.bf16.msra.mxu0 %v184
    %223 = vmatpush.bf16.msra.mxu0 %v183
    %224 = vmatpush.bf16.msra.mxu0 %v182
    %225 = vmatpush.bf16.msra.mxu0 %v181
    %226 = vmatmul.bf16.gmra.mxu0 %v72
    %v227 = vpop.f32.mrf.mxu0
    %v228 = vadd.f32 %v215, %v227
    %v229 = vpop.f32.mrf.mxu0
    %230 = vdwg.mxu0
    %v231 = vsub.f32 0.0, %v228
    %v232 = vmul.f32 %v231, 1.442695
    %v233 = vpow.pop %v232
    %v234 = vadd.f32 %v233, 1.0
    %v235 = vrcp.pop %v234
    %v236 = vmul.f32 %v234, %v235
    %v237 = vsub.f32 1.0, %v236
    %v238 = vmul.f32 %v235, %v237
    %v239 = vadd.f32 %v235, %v238
    %vm240 = vweird.f32 %v234
    %vm241 = vweird.f32 %v235
    %vm242 = vmor %vm240, %vm241
    %v243 = vsel %vm242, %v235, %v239
    %v244 = vand.u32 2147483647, %v234
    %vm245 = vcmp.eq.f32.partialorder %v244, 8.507059e+37
    %v246 = vand.u32 %v234, 2147483648
    %v247 = vor.u32 1.1754944e-38, %v246
    %v248 = vsel %vm245, %v247, %v243
    %v249 = vmul.f32 1.0, %v248
    %v250 = vmul.f32 %v228, %v249
    %v251 = vpack.c.bf16 %v250, %v250
    %v252 = vld [vmem:[#allocation4] sm:$0xf]
    %v253 = vld [vmem:[#allocation4 + $0x4] sm:$0xf]
    %v254 = vld [vmem:[#allocation4 + $0x8] sm:$0xf]
    %v255 = vld [vmem:[#allocation4 + $0xc] sm:$0xf]
    %v256 = vld [vmem:[#allocation6] sm:$0x1]
    %v258 = vperm.slane %v256, 0
    %v264 = vunpack.c.l.b16 %v252
    %v265 = vunpack.c.l.b16 %v253
    %v266 = vunpack.c.l.b16 %v254
    %v267 = vunpack.c.l.b16 %v255
    %v268 = vpack.c.b16 %v265, %v264
    %v269 = vpack.c.b16 %v267, %v266
    %vm272 = vcmask 261120
    %v274 = vsel %vm272, %v251, 0
    %276 = vmatpush.bf16.msra.mxu0 0
    %277 = vmatpush.bf16.msra.mxu0 0
    %278 = vmatpush.bf16.msra.mxu0 0
    %279 = vmatpush.bf16.msra.mxu0 0
    %280 = vmatpush.bf16.msra.mxu0 0
    %281 = vmatpush.bf16.msra.mxu0 0
    %282 = vmatpush.bf16.msra.mxu0 %v269
    %283 = vmatpush.bf16.msra.mxu0 %v268
    %284 = vmatmul.bf16.gmra.mxu0 %v274
    %v285 = vpop.f32.mrf.mxu0
    %v286 = vadd.f32 %v258, %v285
    %v287 = vpop.f32.mrf.mxu0
    %288 = vdwg.mxu0
    %v289 = vpack.c.bf16 %v286, %v286
    %vm290 = vcmask 253952
    %291 = vst.msk [vmem:[%s5] sm:$0x1] %vm290, %v289
    // Predicated region
    $region34: #{controlnet_forward.11} parent=1 // pred_check
      _
    $region35: #{controlnet_forward.11} parent=1 // pred_check_branch
      %293 = sbr.rel (0) target = $region37
    $region36: #{controlnet_forward.11} parent=1 // pred_region
      _
    $region37: #{controlnet_forward.11} parent=1 // pred_fallthru
      _
    // Predicated region
    $region38: #{controlnet_forward.11} parent=1 // pred_check
      _
    $region39: #{controlnet_forward.11} parent=1 // pred_check_branch
      %295 = sbr.rel (0) target = $region41
    $region40: #{controlnet_forward.11} parent=1 // pred_region
      _
    $region41: #{controlnet_forward.11} parent=1 // pred_fallthru
      _
    %296 = vsyncpa [#allocation3], 1
    %297 = vsyncpa [#allocation5], 1

// kernel: controlnet_forward.19
$region0: #{controlnet_forward.19}
  #allocation0 [shape = 'u32[]', space=smem, size = 0x4, offset = 0x4, fixed_abs, tag = 'smem constant byte address 0x4 - core index']
  #allocation1 [shape = 'u32[72,128]{1,0:T(1,128)}', space=vmem, size = 0x9000, scoped, tag = 'internal scratch']
  %s0 = inlined_call_operand.vmem [shape: bf16[2,1,32], index: 0, kind: input, shape index: {}]
  %s1 = inlined_call_operand.vmem [shape: bf16[2,1,32], index: 1, kind: input, shape index: {}]
  %s2 = inlined_call_operand.hbm [shape: bf16[32,96], index: 2, kind: input, shape index: {}]
  %s3 = inlined_call_operand.hbm [shape: f32[1,96], index: 3, kind: input, shape index: {}]
  %s4 = inlined_call_operand.hbm [shape: bf16[32,32], index: 4, kind: input, shape index: {}]
  %s5 = inlined_call_operand.hbm [shape: f32[1,32], index: 5, kind: input, shape index: {}]
  %s6 = inlined_call_operand.hbm [shape: bf16[32,128], index: 6, kind: input, shape index: {}]
  %s7 = inlined_call_operand.hbm [shape: f32[1,128], index: 7, kind: input, shape index: {}]
  %s8 = inlined_call_operand.vmem [shape: bf16[128,32], index: 8, kind: input, shape index: {}]
  %s9 = inlined_call_operand.hbm [shape: f32[1,32], index: 9, kind: input, shape index: {}]
  %s10 = inlined_call_operand.hbm [shape: bf16[32,192], index: 10, kind: input, shape index: {}]
  %s11 = inlined_call_operand.hbm [shape: f32[1,192], index: 11, kind: input, shape index: {}]
  %s12 = inlined_call_operand.vmem [shape: bf16[2,1,32], index: 12, kind: output, shape index: {}]
  %s13 = sld [smem:[#allocation0]]
  $region94: #{controlnet_forward.19} parent=0
    _
  %s15 = ssub.s32 1, %s13
  %s16 = scalar_select 0, %s15, %s13
  $region1: #{controlnet_forward.19} parent=0
    #allocation2 [shape = 'u8[8192]{0}', space=vmem, size = 0x2000, scoped, tag = 'input window, operand 2, single buffered']
    #allocation3 [shape = 's32[1]{0}', space=sflag, size = 0x4, scoped, tag = 'scoped memory for controlnet_forward.19']
    #allocation4 [shape = 'u8[512]{0}', space=vmem, size = 0x400, scoped, tag = 'input window, operand 3, single buffered']
    #allocation5 [shape = 's32[1]{0}', space=sflag, size = 0x4, scoped, tag = 'scoped memory for controlnet_forward.19']
    #allocation6 [shape = 'u8[8192]{0}', space=vmem, size = 0x2000, scoped, tag = 'input window, operand 4, single buffered']
    #allocation7 [shape = 'u8[512]{0}', space=vmem, size = 0x400, scoped, tag = 'input window, operand 5, single buffered']
    #allocation8 [shape = 's32[1]{0}', space=sflag, size = 0x4, scoped, tag = 'scoped memory for controlnet_forward.19']
    #allocation9 [shape = 'u8[8192]{0}', space=vmem, size = 0x2000, scoped, tag = 'input window, operand 6, single buffered']
    #allocation10 [shape = 'u8[512]{0}', space=vmem, size = 0x400, scoped, tag = 'input window, operand 7, single buffered']
    #allocation11 [shape = 's32[1]{0}', space=sflag, size = 0x4, scoped, tag = 'scoped memory for controlnet_forward.19']
    #allocation12 [shape = 'u8[512]{0}', space=vmem, size = 0x400, scoped, tag = 'input window, operand 9, single buffered']
    #allocation13 [shape = 'u8[16384]{0}', space=vmem, size = 0x4000, scoped, tag = 'input window, operand 10, single buffered']
    #allocation14 [shape = 's32[1]{0}', space=sflag, size = 0x4, scoped, tag = 'scoped memory for controlnet_forward.19']
    #allocation15 [shape = 'u8[1024]{0}', space=vmem, size = 0x400, scoped, tag = 'input window, operand 11, single buffered']
    %17 = vsyncpa [#allocation3], 0
    %18 = vsyncpa [#allocation5], 0
    %19 = vsyncpa [#allocation8], 0
    %20 = vsyncpa [#allocation11], 0
    %21 = vsyncpa [#allocation14], 0
    // Predicated region
    $region2: #{controlnet_forward.19} parent=1 // pred_check
      _
    $region3: #{controlnet_forward.19} parent=1 // pred_check_branch
      %23 = sbr.rel (0) target = $region5
    $region4: #{controlnet_forward.19} parent=1 // pred_region
      _
    $region5: #{controlnet_forward.19} parent=1 // pred_fallthru
      _
    // Predicated region
    $region6: #{controlnet_forward.19} parent=1 // pred_check
      _
    $region7: #{controlnet_forward.19} parent=1 // pred_check_branch
      %25 = sbr.rel (0) target = $region9
    $region8: #{controlnet_forward.19} parent=1 // pred_region
      _
    $region9: #{controlnet_forward.19} parent=1 // pred_fallthru
      _
    // Predicated region
    $region10: #{controlnet_forward.19} parent=1 // pred_check
      _
    $region11: #{controlnet_forward.19} parent=1 // pred_check_branch
      %27 = sbr.rel (0) target = $region13
    $region12: #{controlnet_forward.19} parent=1 // pred_region
      %29 = vsyncadd [#allocation3], 0
      %s30 = sshll.u32 %s2, 4
      %s31 = int_to_ptr.hbm [resolvable:$true] %s30
      %s32 = sshll.u32 [#allocation2], 4
      %s33 = int_to_ptr.vmem [resolvable:$true] %s32
      %38 = dma.hbm_to_vmem [thread:$0]  %s31, 256, %s33, [#allocation3], 64, 64, 4
    $region13: #{controlnet_forward.19} parent=1 // pred_fallthru
      _
    // Predicated region
    $region14: #{controlnet_forward.19} parent=1 // pred_check
      _
    $region15: #{controlnet_forward.19} parent=1 // pred_check_branch
      %40 = sbr.rel (0) target = $region17
    $region16: #{controlnet_forward.19} parent=1 // pred_region
      %42 = vsyncadd [#allocation5], 0
      %s44 = sshll.u32 %s3, 4
      %s45 = int_to_ptr.hbm [resolvable:$true] %s44
      %s46 = sshll.u32 [#allocation4], 4
      %s47 = int_to_ptr.vmem [resolvable:$true] %s46
      %49 = dma.hbm_to_vmem [thread:$0]  %s45, 16, %s47, [#allocation5]
    $region17: #{controlnet_forward.19} parent=1 // pred_fallthru
      _
    // Predicated region
    $region18: #{controlnet_forward.19} parent=1 // pred_check
      _
    $region19: #{controlnet_forward.19} parent=1 // pred_check_branch
      %51 = sbr.rel (0) target = $region21
    $region20: #{controlnet_forward.19} parent=1 // pred_region
      %53 = vsyncadd [#allocation5], 0
      %s54 = sshll.u32 %s4, 4
      %s55 = int_to_ptr.hbm [resolvable:$true] %s54
      %s56 = sshll.u32 [#allocation6], 4
      %s57 = int_to_ptr.vmem [resolvable:$true] %s56
      %62 = dma.hbm_to_vmem [thread:$0]  %s55, 256, %s57, [#allocation5], 64, 64, 4
    $region21: #{controlnet_forward.19} parent=1 // pred_fallthru
      _
    // Predicated region
    $region22: #{controlnet_forward.19} parent=1 // pred_check
      _
    $region23: #{controlnet_forward.19} parent=1 // pred_check_branch
      %64 = sbr.rel (0) target = $region25
    $region24: #{controlnet_forward.19} parent=1 // pred_region
      %66 = vsyncadd [#allocation8], 0
      %s68 = sshll.u32 %s5, 4
      %s69 = int_to_ptr.hbm [resolvable:$true] %s68
      %s70 = sshll.u32 [#allocation7], 4
      %s71 = int_to_ptr.vmem [resolvable:$true] %s70
      %73 = dma.hbm_to_vmem [thread:$0]  %s69, 16, %s71, [#allocation8]
    $region25: #{controlnet_forward.19} parent=1 // pred_fallthru
      _
    // Predicated region
    $region26: #{controlnet_forward.19} parent=1 // pred_check
      _
    $region27: #{controlnet_forward.19} parent=1 // pred_check_branch
      %75 = sbr.rel (0) target = $region29
    $region28: #{controlnet_forward.19} parent=1 // pred_region
      %77 = vsyncadd [#allocation8], 0
      %s78 = sshll.u32 %s6, 4
      %s79 = int_to_ptr.hbm [resolvable:$true] %s78
      %s80 = sshll.u32 [#allocation9], 4
      %s81 = int_to_ptr.vmem [resolvable:$true] %s80
      %86 = dma.hbm_to_vmem [thread:$0]  %s79, 256, %s81, [#allocation8], 64, 64, 4
    $region29: #{controlnet_forward.19} parent=1 // pred_fallthru
      _
    // Predicated region
    $region30: #{controlnet_forward.19} parent=1 // pred_check
      _
    $region31: #{controlnet_forward.19} parent=1 // pred_check_branch
      %88 = sbr.rel (0) target = $region33
    $region32: #{controlnet_forward.19} parent=1 // pred_region
      %90 = vsyncadd [#allocation11], 0
      %s92 = sshll.u32 %s7, 4
      %s93 = int_to_ptr.hbm [resolvable:$true] %s92
      %s94 = sshll.u32 [#allocation10], 4
      %s95 = int_to_ptr.vmem [resolvable:$true] %s94
      %97 = dma.hbm_to_vmem [thread:$0]  %s93, 16, %s95, [#allocation11]
    $region33: #{controlnet_forward.19} parent=1 // pred_fallthru
      _
    // Predicated region
    $region34: #{controlnet_forward.19} parent=1 // pred_check
      _
    $region35: #{controlnet_forward.19} parent=1 // pred_check_branch
      %99 = sbr.rel (0) target = $region37
    $region36: #{controlnet_forward.19} parent=1 // pred_region
      _
    $region37: #{controlnet_forward.19} parent=1 // pred_fallthru
      _
    // Predicated region
    $region38: #{controlnet_forward.19} parent=1 // pred_check
      _
    $region39: #{controlnet_forward.19} parent=1 // pred_check_branch
      %101 = sbr.rel (0) target = $region41
    $region40: #{controlnet_forward.19} parent=1 // pred_region
      %103 = vsyncadd [#allocation11], 0
      %s105 = sshll.u32 %s9, 4
      %s106 = int_to_ptr.hbm [resolvable:$true] %s105
      %s107 = sshll.u32 [#allocation12], 4
      %s108 = int_to_ptr.vmem [resolvable:$true] %s107
      %110 = dma.hbm_to_vmem [thread:$0]  %s106, 16, %s108, [#allocation11]
    $region41: #{controlnet_forward.19} parent=1 // pred_fallthru
      _
    // Predicated region
    $region42: #{controlnet_forward.19} parent=1 // pred_check
      _
    $region43: #{controlnet_forward.19} parent=1 // pred_check_branch
      %112 = sbr.rel (0) target = $region45
    $region44: #{controlnet_forward.19} parent=1 // pred_region
      %114 = vsyncadd [#allocation14], 0
      %s115 = sshll.u32 %s10, 4
      %s116 = int_to_ptr.hbm [resolvable:$true] %s115
      %s117 = sshll.u32 [#allocation13], 4
      %s118 = int_to_ptr.vmem [resolvable:$true] %s117
      %123 = dma.hbm_to_vmem [thread:$0]  %s116, 512, %s118, [#allocation14], 128, 128, 8
    $region45: #{controlnet_forward.19} parent=1 // pred_fallthru
      _
    // Predicated region
    $region46: #{controlnet_forward.19} parent=1 // pred_check
      _
    $region47: #{controlnet_forward.19} parent=1 // pred_check_branch
      %125 = sbr.rel (0) target = $region49
    $region48: #{controlnet_forward.19} parent=1 // pred_region
      %127 = vsyncadd [#allocation14], 0
      %s129 = sshll.u32 %s11, 4
      %s130 = int_to_ptr.hbm [resolvable:$true] %s129
      %s131 = sshll.u32 [#allocation15], 4
      %s132 = int_to_ptr.vmem [resolvable:$true] %s131
      %134 = dma.hbm_to_vmem [thread:$0]  %s130, 32, %s132, [#allocation14]
    $region49: #{controlnet_forward.19} parent=1 // pred_fallthru
      _
    // Predicated region
    $region50: #{controlnet_forward.19} parent=1 // pred_check
      _
    $region51: #{controlnet_forward.19} parent=1 // pred_check_branch
      %136 = sbr.rel (0) target = $region53
    $region52: #{controlnet_forward.19} parent=1 // pred_region
      %138 = dma.done [#allocation3], 256
    $region53: #{controlnet_forward.19} parent=1 // pred_fallthru
      _
    // Predicated region
    $region54: #{controlnet_forward.19} parent=1 // pred_check
      _
    $region55: #{controlnet_forward.19} parent=1 // pred_check_branch
      %140 = sbr.rel (0) target = $region57
    $region56: #{controlnet_forward.19} parent=1 // pred_region
      %142 = dma.done [#allocation5], 16
    $region57: #{controlnet_forward.19} parent=1 // pred_fallthru
      _
    // Predicated region
    $region58: #{controlnet_forward.19} parent=1 // pred_check
      _
    $region59: #{controlnet_forward.19} parent=1 // pred_check_branch
      %144 = sbr.rel (0) target = $region61
    $region60: #{controlnet_forward.19} parent=1 // pred_region
      %146 = dma.done [#allocation5], 256
    $region61: #{controlnet_forward.19} parent=1 // pred_fallthru
      _
    // Predicated region
    $region62: #{controlnet_forward.19} parent=1 // pred_check
      _
    $region63: #{controlnet_forward.19} parent=1 // pred_check_branch
      %148 = sbr.rel (0) target = $region65
    $region64: #{controlnet_forward.19} parent=1 // pred_region
      %150 = dma.done [#allocation8], 16
    $region65: #{controlnet_forward.19} parent=1 // pred_fallthru
      _
    // Predicated region
    $region66: #{controlnet_forward.19} parent=1 // pred_check
      _
    $region67: #{controlnet_forward.19} parent=1 // pred_check_branch
      %152 = sbr.rel (0) target = $region69
    $region68: #{controlnet_forward.19} parent=1 // pred_region
      %154 = dma.done [#allocation8], 256
    $region69: #{controlnet_forward.19} parent=1 // pred_fallthru
      _
    // Predicated region
    $region70: #{controlnet_forward.19} parent=1 // pred_check
      _
    $region71: #{controlnet_forward.19} parent=1 // pred_check_branch
      %156 = sbr.rel (0) target = $region73
    $region72: #{controlnet_forward.19} parent=1 // pred_region
      %158 = dma.done [#allocation11], 16
    $region73: #{controlnet_forward.19} parent=1 // pred_fallthru
      _
    // Predicated region
    $region74: #{controlnet_forward.19} parent=1 // pred_check
      _
    $region75: #{controlnet_forward.19} parent=1 // pred_check_branch
      %160 = sbr.rel (0) target = $region77
    $region76: #{controlnet_forward.19} parent=1 // pred_region
      %162 = dma.done [#allocation11], 16
    $region77: #{controlnet_forward.19} parent=1 // pred_fallthru
      _
    // Predicated region
    $region78: #{controlnet_forward.19} parent=1 // pred_check
      _
    $region79: #{controlnet_forward.19} parent=1 // pred_check_branch
      %164 = sbr.rel (0) target = $region81
    $region80: #{controlnet_forward.19} parent=1 // pred_region
      %166 = dma.done [#allocation14], 512
    $region81: #{controlnet_forward.19} parent=1 // pred_fallthru
      _
    // Predicated region
    $region82: #{controlnet_forward.19} parent=1 // pred_check
      _
    $region83: #{controlnet_forward.19} parent=1 // pred_check_branch
      %168 = sbr.rel (0) target = $region85
    $region84: #{controlnet_forward.19} parent=1 // pred_region
      %170 = dma.done [#allocation14], 32
    $region85: #{controlnet_forward.19} parent=1 // pred_fallthru
      _
    %v172 = vld [vmem:[%s0] sm:$0x1]
    %v173 = vunpack.c.l.bf16 %v172
    %v174 = vld [vmem:[%s1] sm:$0x1]
    %v175 = vunpack.c.l.bf16 %v174
    %v176 = vsub.f32 0.0, %v175
    %v177 = vmul.f32 %v176, 1.442695
    %v178 = vpow.pop %v177
    %v179 = vadd.f32 %v178, 1.0
    %v180 = vrcp.pop %v179
    %v181 = vmul.f32 %v179, %v180
    %v182 = vsub.f32 1.0, %v181
    %v183 = vmul.f32 %v180, %v182
    %v184 = vadd.f32 %v180, %v183
    %vm185 = vweird.f32 %v179
    %vm186 = vweird.f32 %v180
    %vm187 = vmor %vm185, %vm186
    %v188 = vsel %vm187, %v180, %v184
    %v189 = vand.u32 2147483647, %v179
    %vm190 = vcmp.eq.f32.partialorder %v189, 8.507059e+37
    %v191 = vand.u32 %v179, 2147483648
    %v192 = vor.u32 1.1754944e-38, %v191
    %v193 = vsel %vm190, %v192, %v188
    %v194 = vmul.f32 1.0, %v193
    %v195 = vmul.f32 %v175, %v194
    %v196 = vpack.c.bf16 %v195, %v195
    %v197 = vld [vmem:[#allocation13] sm:$0xff]
    %v198 = vld [vmem:[#allocation13 + $0x8] sm:$0xff]
    %v199 = vld [vmem:[#allocation13 + $0x10] sm:$0xff]
    %v200 = vld [vmem:[#allocation13 + $0x18] sm:$0xff]
    %v201 = vld [vmem:[#allocation15] sm:$0x3]
    %v206 = vunpack.c.l.b16 %v197
    %v207 = vunpack.c.h.b16 %v197
    %v208 = vunpack.c.l.b16 %v198
    %v209 = vunpack.c.h.b16 %v198
    %v210 = vunpack.c.l.b16 %v199
    %v211 = vunpack.c.h.b16 %v199
    %v212 = vunpack.c.l.b16 %v200
    %v213 = vunpack.c.h.b16 %v200
    %v214 = vpack.c.b16 %v208, %v206
    %v215 = vpack.c.b16 %v209, %v207
    %v216 = vpack.c.b16 %v212, %v210
    %v217 = vpack.c.b16 %v213, %v211
    %v223 = vperm.slane %v201, 0
    %v224 = vperm.slane %v201, 1
    %vm227 = vcmask 261120
    %v229 = vsel %vm227, %v196, 0
    %231 = vmatpush.bf16.msra.mxu0 0
    %232 = vmatpush.bf16.msra.mxu0 0
    %233 = vmatpush.bf16.msra.mxu0 0
    %234 = vmatpush.bf16.msra.mxu0 0
    %235 = vmatpush.bf16.msra.mxu0 0
    %236 = vmatpush.bf16.msra.mxu0 0
    %237 = vmatpush.bf16.msra.mxu0 %v216
    %238 = vmatpush.bf16.msra.mxu0 %v214
    %239 = vmatmul.bf16.gmra.mxu0 %v229
    %v240 = vpop.f32.mrf.mxu0
    %v241 = vadd.f32 %v223, %v240
    %v242 = vpop.f32.mrf.mxu0
    %243 = vdwg.mxu0
    %244 = vmatpush.bf16.msra.mxu0 0
    %245 = vmatpush.bf16.msra.mxu0 0
    %246 = vmatpush.bf16.msra.mxu0 0
    %247 = vmatpush.bf16.msra.mxu0 0
    %248 = vmatpush.bf16.msra.mxu0 0
    %249 = vmatpush.bf16.msra.mxu0 0
    %250 = vmatpush.bf16.msra.mxu0 %v217
    %251 = vmatpush.bf16.msra.mxu0 %v215
    %252 = vmatmul.bf16.gmra.mxu0 %v229
    %v253 = vpop.f32.mrf.mxu0
    %v254 = vadd.f32 %v224, %v253
    %v255 = vpop.f32.mrf.mxu0
    %256 = vdwg.mxu0
    %vm257 = vcmask 253952
    %v258 = vsel %vm257, %v173, 0.0
    %259 = vadd.xlane.f32.xlu0 %v258
    %v260 = vpop.xlane.xlu0 %259
    %v261 = vrcp.pop 32.0
    %v262 = vmul.f32 32.0, %v261
    %v263 = vsub.f32 1.0, %v262
    %v264 = vmul.f32 %v261, %v263
    %v265 = vadd.f32 %v261, %v264
    %vm266 = vweird.f32 %v261
    %v267 = vsel %vm266, %v261, %v265
    %v268 = vmul.f32 %v260, %v267
    %v269 = vsub.f32 %v173, %v268
    %v270 = vmul.f32 %v269, %v269
    %v271 = vsel %vm257, %v270, 0.0
    %272 = vadd.xlane.f32.xlu0 %v271
    %v273 = vpop.xlane.xlu0 %272
    %v274 = vmul.f32 %v273, %v267
    %v275 = vadd.f32 %v274, 1e-06
    %v276 = vrsqrt.pop %v275
    %v277 = vmul.f32 %v276, %v275
    %v278 = vmul.f32 %v277, %v276
    %v279 = vmul.f32 0.5, %v278
    %v280 = vsub.f32 1.5, %v279
    %v281 = vmul.f32 %v276, %v280
    %vm282 = vweird.f32 %v275
    %vm283 = vweird.f32 %v276
    %vm284 = vmor %vm282, %vm283
    %v285 = vsel %vm284, %v276, %v281
    %v286 = vmul.f32 %v269, %v285
    %v287 = vadd.f32 %v241, 1.0
    %289 = vrot.lane.b32.xlu0 %v287, 96
    %v290 = vpop.permute.xlu0 %289
    %v292 = vmul.f32 %v286, %v290
    %v293 = vadd.f32 %v292, %v241
    %v294 = vpack.c.bf16 %v293, %v293
    %v295 = vld [vmem:[#allocation2] sm:$0xf]
    %v296 = vld [vmem:[#allocation2 + $0x4] sm:$0xf]
    %v297 = vld [vmem:[#allocation2 + $0x8] sm:$0xf]
    %v298 = vld [vmem:[#allocation2 + $0xc] sm:$0xf]
    %v299 = vld [vmem:[#allocation4] sm:$0x1]
    %v304 = vunpack.c.l.b16 %v295
    %v305 = vunpack.c.l.b16 %v296
    %v306 = vunpack.c.l.b16 %v297
    %v307 = vunpack.c.l.b16 %v298
    %v308 = vpack.c.b16 %v305, %v304
    %v309 = vpack.c.b16 %v307, %v306
    %v313 = vsel %vm227, %v294, 0
    %315 = vmatpush.bf16.msra.mxu0 0
    %316 = vmatpush.bf16.msra.mxu0 0
    %317 = vmatpush.bf16.msra.mxu0 0
    %318 = vmatpush.bf16.msra.mxu0 0
    %319 = vmatpush.bf16.msra.mxu0 0
    %320 = vmatpush.bf16.msra.mxu0 0
    %321 = vmatpush.bf16.msra.mxu0 %v309
    %322 = vmatpush.bf16.msra.mxu0 %v308
    %323 = vmatmul.bf16.gmra.mxu0 %v313
    %v324 = vpop.f32.mrf.mxu0
    %v325 = vadd.f32 %v299, %v324
    %v326 = vpop.f32.mrf.mxu0
    %327 = vdwg.mxu0
    %v328 = vmul.f32 %v325, 0.35355338
    %330 = vrot.lane.b32.xlu0 %v325, 96
    %v331 = vpop.permute.xlu0 %330
    %v333 = vmul.f32 %v328, %v331
    %vm334 = vcmask 57344
    %v335 = vsel %vm334, %v333, 0.0
    %336 = vadd.xlane.f32.xlu0 %v335
    %v337 = vpop.xlane.xlu0 %336
    %v338 = vsub.f32 %v337, %v337
    %v339 = vmul.f32 %v338, 1.442695
    %v340 = vpow.pop %v339
    %v341 = vadd.f32 %v340, 0.0
    %v342 = vrcp.pop %v341
    %v343 = vmul.f32 %v340, %v342
    %344 = vrot.lane.b32.xlu0 %v325, 64
    %v345 = vpop.permute.xlu0 %344
    %vm346 = vcmask 7168
    %v348 = vsel %vm346, %v343, 0
    %vm350 = vcmask 1040384
    %v351 = vsel %vm350, %v345, 0
    %353 = vmatpush.msra.mxu0 0.0
    %354 = vmatpush.msra.mxu0 0.0
    %355 = vmatpush.msra.mxu0 0.0
    %356 = vmatpush.msra.mxu0 0.0
    %357 = vmatpush.msra.mxu0 0.0
    %358 = vmatpush.msra.mxu0 0.0
    %359 = vmatpush.msra.mxu0 0.0
    %360 = vmatpush.msra.mxu0 0.0
    %361 = vmatpush.msra.mxu0 0.0
    %362 = vmatpush.msra.mxu0 0.0
    %363 = vmatpush.msra.mxu0 0.0
    %364 = vmatpush.msra.mxu0 0.0
    %365 = vmatpush.msra.mxu0 0.0
    %366 = vmatpush.msra.mxu0 0.0
    %367 = vmatpush.msra.mxu0 0.0
    %368 = vmatpush.msra.mxu0 %v351
    %369 = vmatmul.f32.gmra.mxu0 %v348
    %v370 = vpop.f32.mrf.mxu0
    %v371 = vadd.f32 0.0, %v370
    %372 = vdwg.mxu0
    %v373 = vld [vmem:[#allocation6] sm:$0xf]
    %v374 = vunpack.c.l.bf16 %v373
    %376 = vrot.lane.b32.xlu0 %v333, 120
    %v377 = vpop.permute.xlu0 %376
    %v379 = vsel %vm334, %v377, 0.0
    %380 = vadd.xlane.f32.xlu0 %v379
    %v381 = vpop.xlane.xlu0 %380
    %v382 = vsub.f32 %v381, %v381
    %v383 = vmul.f32 %v382, 1.442695
    %v384 = vpow.pop %v383
    %v385 = vadd.f32 %v384, 0.0
    %v386 = vrcp.pop %v385
    %v387 = vmul.f32 %v384, %v386
    %388 = vrot.lane.b32.xlu0 %v325, 56
    %v389 = vpop.permute.xlu0 %388
    %v391 = vsel %vm346, %v387, 0
    %v393 = vsel %vm350, %v389, 0
    %395 = vmatpush.msra.mxu0 0.0
    %396 = vmatpush.msra.mxu0 0.0
    %397 = vmatpush.msra.mxu0 0.0
    %398 = vmatpush.msra.mxu0 0.0
    %399 = vmatpush.msra.mxu0 0.0
    %400 = vmatpush.msra.mxu0 0.0
    %401 = vmatpush.msra.mxu0 0.0
    %402 = vmatpush.msra.mxu0 0.0
    %403 = vmatpush.msra.mxu0 0.0
    %404 = vmatpush.msra.mxu0 0.0
    %405 = vmatpush.msra.mxu0 0.0
    %406 = vmatpush.msra.mxu0 0.0
    %407 = vmatpush.msra.mxu0 0.0
    %408 = vmatpush.msra.mxu0 0.0
    %409 = vmatpush.msra.mxu0 0.0
    %410 = vmatpush.msra.mxu0 %v393
    %411 = vmatmul.f32.gmra.mxu0 %v391
    %v412 = vpop.f32.mrf.mxu0
    %v413 = vadd.f32 0.0, %v412
    %414 = vdwg.mxu0
    %v415 = vld [vmem:[#allocation6 + $0x4] sm:$0xf]
    %v416 = vunpack.c.l.bf16 %v415
    %vm417 = vcmask 64512
    %v419 = vsel %vm417, %v413, 0
    %421 = vmatpush.msra.mxu0 0.0
    %422 = vmatpush.msra.mxu0 0.0
    %423 = vmatpush.msra.mxu0 0.0
    %424 = vmatpush.msra.mxu0 0.0
    %425 = vmatpush.msra.mxu0 0.0
    %426 = vmatpush.msra.mxu0 0.0
    %427 = vmatpush.msra.mxu0 0.0
    %428 = vmatpush.msra.mxu0 0.0
    %429 = vmatpush.msra.mxu0 0.0
    %430 = vmatpush.msra.mxu0 0.0
    %431 = vmatpush.msra.mxu0 0.0
    %432 = vmatpush.msra.mxu0 0.0
    %433 = vmatpush.msra.mxu0 0.0
    %434 = vmatpush.msra.mxu0 0.0
    %435 = vmatpush.msra.mxu0 0.0
    %436 = vmatpush.msra.mxu0 %v416
    %437 = vmatmul.f32.gmra.mxu0 %v419
    %v438 = vpop.f32.mrf.mxu0
    %v439 = vadd.f32 0.0, %v438
    %440 = vdwg.mxu0
    %v442 = vsel %vm417, %v371, 0
    %444 = vmatpush.msra.mxu0 0.0
    %445 = vmatpush.msra.mxu0 0.0
    %446 = vmatpush.msra.mxu0 0.0
    %447 = vmatpush.msra.mxu0 0.0
    %448 = vmatpush.msra.mxu0 0.0
    %449 = vmatpush.msra.mxu0 0.0
    %450 = vmatpush.msra.mxu0 0.0
    %451 = vmatpush.msra.mxu0 0.0
    %452 = vmatpush.msra.mxu0 0.0
    %453 = vmatpush.msra.mxu0 0.0
    %454 = vmatpush.msra.mxu0 0.0
    %455 = vmatpush.msra.mxu0 0.0
    %456 = vmatpush.msra.mxu0 0.0
    %457 = vmatpush.msra.mxu0 0.0
    %458 = vmatpush.msra.mxu0 0.0
    %459 = vmatpush.msra.mxu0 %v374
    %460 = vmatmul.f32.gmra.mxu0 %v442
    %v461 = vpop.f32.mrf.mxu0
    %v462 = vadd.f32 %v439, %v461
    %463 = vdwg.mxu0
    %464 = vrot.lane.b32.xlu0 %v333, 112
    %v465 = vpop.permute.xlu0 %464
    %v467 = vsel %vm334, %v465, 0.0
    %468 = vadd.xlane.f32.xlu0 %v467
    %v469 = vpop.xlane.xlu0 %468
    %v470 = vsub.f32 %v469, %v469
    %v471 = vmul.f32 %v470, 1.442695
    %v472 = vpow.pop %v471
    %v473 = vadd.f32 %v472, 0.0
    %v474 = vrcp.pop %v473
    %v475 = vmul.f32 %v472, %v474
    %476 = vrot.lane.b32.xlu0 %v325, 48
    %v477 = vpop.permute.xlu0 %476
    %v479 = vsel %vm346, %v475, 0
    %v481 = vsel %vm350, %v477, 0
    %483 = vmatpush.msra.mxu0 0.0
    %484 = vmatpush.msra.mxu0 0.0
    %485 = vmatpush.msra.mxu0 0.0
    %486 = vmatpush.msra.mxu0 0.0
    %487 = vmatpush.msra.mxu0 0.0
    %488 = vmatpush.msra.mxu0 0.0
    %489 = vmatpush.msra.mxu0 0.0
    %490 = vmatpush.msra.mxu0 0.0
    %491 = vmatpush.msra.mxu0 0.0
    %492 = vmatpush.msra.mxu0 0.0
    %493 = vmatpush.msra.mxu0 0.0
    %494 = vmatpush.msra.mxu0 0.0
    %495 = vmatpush.msra.mxu0 0.0
    %496 = vmatpush.msra.mxu0 0.0
    %497 = vmatpush.msra.mxu0 0.0
    %498 = vmatpush.msra.mxu0 %v481
    %499 = vmatmul.f32.gmra.mxu0 %v479
    %v500 = vpop.f32.mrf.mxu0
    %v501 = vadd.f32 0.0, %v500
    %502 = vdwg.mxu0
    %v503 = vld [vmem:[#allocation6 + $0x8] sm:$0xf]
    %v504 = vunpack.c.l.bf16 %v503
    %v506 = vsel %vm417, %v501, 0
    %508 = vmatpush.msra.mxu0 0.0
    %509 = vmatpush.msra.mxu0 0.0
    %510 = vmatpush.msra.mxu0 0.0
    %511 = vmatpush.msra.mxu0 0.0
    %512 = vmatpush.msra.mxu0 0.0
    %513 = vmatpush.msra.mxu0 0.0
    %514 = vmatpush.msra.mxu0 0.0
    %515 = vmatpush.msra.mxu0 0.0
    %516 = vmatpush.msra.mxu0 0.0
    %517 = vmatpush.msra.mxu0 0.0
    %518 = vmatpush.msra.mxu0 0.0
    %519 = vmatpush.msra.mxu0 0.0
    %520 = vmatpush.msra.mxu0 0.0
    %521 = vmatpush.msra.mxu0 0.0
    %522 = vmatpush.msra.mxu0 0.0
    %523 = vmatpush.msra.mxu0 %v504
    %524 = vmatmul.f32.gmra.mxu0 %v506
    %v525 = vpop.f32.mrf.mxu0
    %v526 = vadd.f32 0.0, %v525
    %527 = vdwg.mxu0
    %v528 = vadd.f32 %v462, %v526
    %529 = vrot.lane.b32.xlu0 %v333, 104
    %v530 = vpop.permute.xlu0 %529
    %v532 = vsel %vm334, %v530, 0.0
    %533 = vadd.xlane.f32.xlu0 %v532
    %v534 = vpop.xlane.xlu0 %533
    %v535 = vsub.f32 %v534, %v534
    %v536 = vmul.f32 %v535, 1.442695
    %v537 = vpow.pop %v536
    %v538 = vadd.f32 %v537, 0.0
    %v539 = vrcp.pop %v538
    %v540 = vmul.f32 %v537, %v539
    %541 = vrot.lane.b32.xlu0 %v325, 40
    %v542 = vpop.permute.xlu0 %541
    %v544 = vsel %vm346, %v540, 0
    %v546 = vsel %vm350, %v542, 0
    %548 = vmatpush.msra.mxu0 0.0
    %549 = vmatpush.msra.mxu0 0.0
    %550 = vmatpush.msra.mxu0 0.0
    %551 = vmatpush.msra.mxu0 0.0
    %552 = vmatpush.msra.mxu0 0.0
    %553 = vmatpush.msra.mxu0 0.0
    %554 = vmatpush.msra.mxu0 0.0
    %555 = vmatpush.msra.mxu0 0.0
    %556 = vmatpush.msra.mxu0 0.0
    %557 = vmatpush.msra.mxu0 0.0
    %558 = vmatpush.msra.mxu0 0.0
    %559 = vmatpush.msra.mxu0 0.0
    %560 = vmatpush.msra.mxu0 0.0
    %561 = vmatpush.msra.mxu0 0.0
    %562 = vmatpush.msra.mxu0 0.0
    %563 = vmatpush.msra.mxu0 %v546
    %564 = vmatmul.f32.gmra.mxu0 %v544
    %v565 = vpop.f32.mrf.mxu0
    %v566 = vadd.f32 0.0, %v565
    %567 = vdwg.mxu0
    %v568 = vld [vmem:[#allocation6 + $0xc] sm:$0xf]
    %v569 = vunpack.c.l.bf16 %v568
    %v571 = vsel %vm417, %v566, 0
    %573 = vmatpush.msra.mxu0 0.0
    %574 = vmatpush.msra.mxu0 0.0
    %575 = vmatpush.msra.mxu0 0.0
    %576 = vmatpush.msra.mxu0 0.0
    %577 = vmatpush.msra.mxu0 0.0
    %578 = vmatpush.msra.mxu0 0.0
    %579 = vmatpush.msra.mxu0 0.0
    %580 = vmatpush.msra.mxu0 0.0
    %581 = vmatpush.msra.mxu0 0.0
    %582 = vmatpush.msra.mxu0 0.0
    %583 = vmatpush.msra.mxu0 0.0
    %584 = vmatpush.msra.mxu0 0.0
    %585 = vmatpush.msra.mxu0 0.0
    %586 = vmatpush.msra.mxu0 0.0
    %587 = vmatpush.msra.mxu0 0.0
    %588 = vmatpush.msra.mxu0 %v569
    %589 = vmatmul.f32.gmra.mxu0 %v571
    %v590 = vpop.f32.mrf.mxu0
    %v591 = vadd.f32 0.0, %v590
    %592 = vdwg.mxu0
    %v593 = vadd.f32 %v528, %v591
    %v594 = vld [vmem:[#allocation7] sm:$0x1]
    %v595 = vadd.f32 %v593, %v594
    %597 = vrot.lane.b32.xlu0 %v595, 64
    %v598 = vpop.permute.xlu0 %597
    %v600 = vmul.f32 %v241, %v598
    %602 = vrot.lane.b32.xlu0 %v600, 64
    %v603 = vpop.permute.xlu0 %602
    %v605 = vadd.f32 %v173, %v603
    %v606 = vsel %vm257, %v605, 0.0
    %607 = vadd.xlane.f32.xlu0 %v606
    %v608 = vpop.xlane.xlu0 %607
    %v609 = vmul.f32 %v608, %v267
    %v610 = vsub.f32 %v605, %v609
    %v611 = vmul.f32 %v610, %v610
    %v612 = vsel %vm257, %v611, 0.0
    %613 = vadd.xlane.f32.xlu0 %v612
    %v614 = vpop.xlane.xlu0 %613
    %v615 = vmul.f32 %v614, %v267
    %v616 = vadd.f32 %v615, 1e-06
    %v617 = vrsqrt.pop %v616
    %v618 = vmul.f32 %v617, %v616
    %v619 = vmul.f32 %v618, %v617
    %v620 = vmul.f32 0.5, %v619
    %v621 = vsub.f32 1.5, %v620
    %v622 = vmul.f32 %v617, %v621
    %vm623 = vweird.f32 %v616
    %vm624 = vweird.f32 %v617
    %vm625 = vmor %vm623, %vm624
    %v626 = vsel %vm625, %v617, %v622
    %v627 = vmul.f32 %v610, %v626
    %v628 = vadd.f32 %v254, 1.0
    %v629 = vmul.f32 %v627, %v628
    %631 = vrot.lane.b32.xlu0 %v241, 32
    %v632 = vpop.permute.xlu0 %631
    %v634 = vadd.f32 %v629, %v632
    %v635 = vpack.c.bf16 %v634, %v634
    %v636 = vld [vmem:[#allocation9] sm:$0xf]
    %v637 = vld [vmem:[#allocation9 + $0x4] sm:$0xf]
    %v638 = vld [vmem:[#allocation9 + $0x8] sm:$0xf]
    %v639 = vld [vmem:[#allocation9 + $0xc] sm:$0xf]
    %v640 = vld [vmem:[#allocation10] sm:$0x1]
    %v645 = vunpack.c.l.b16 %v636
    %v646 = vunpack.c.l.b16 %v637
    %v647 = vunpack.c.l.b16 %v638
    %v648 = vunpack.c.l.b16 %v639
    %v649 = vpack.c.b16 %v646, %v645
    %v650 = vpack.c.b16 %v648, %v647
    %v654 = vsel %vm227, %v635, 0
    %656 = vmatpush.bf16.msra.mxu0 0
    %657 = vmatpush.bf16.msra.mxu0 0
    %658 = vmatpush.bf16.msra.mxu0 0
    %659 = vmatpush.bf16.msra.mxu0 0
    %660 = vmatpush.bf16.msra.mxu0 0
    %661 = vmatpush.bf16.msra.mxu0 0
    %662 = vmatpush.bf16.msra.mxu0 %v650
    %663 = vmatpush.bf16.msra.mxu0 %v649
    %664 = vmatmul.bf16.gmra.mxu0 %v654
    %v665 = vpop.f32.mrf.mxu0
    %v666 = vadd.f32 %v640, %v665
    %v667 = vpop.f32.mrf.mxu0
    %668 = vdwg.mxu0
    %v669 = vmul.f32 %v666, 0.5
    %v670 = vmul.f32 %v666, 0.044715
    %v671 = vmul.f32 %v670, %v666
    %v672 = vmul.f32 %v671, %v666
    %v673 = vadd.f32 %v666, %v672
    %v674 = vmul.f32 %v673, 0.7978846
    %v675 = vtanh.pop %v674
    %v676 = vadd.f32 %v675, 1.0
    %v677 = vmul.f32 %v669, %v676
    %v678 = vpack.c.bf16 %v677, %v677
    %v679 = vld [vmem:[%s8] sm:$0xf]
    %v680 = vld [vmem:[%s8 + $0x4] sm:$0xf]
    %v681 = vld [vmem:[%s8 + $0x8] sm:$0xf]
    %v682 = vld [vmem:[%s8 + $0xc] sm:$0xf]
    %v683 = vld [vmem:[%s8 + $0x10] sm:$0xf]
    %v684 = vld [vmem:[%s8 + $0x14] sm:$0xf]
    %v685 = vld [vmem:[%s8 + $0x18] sm:$0xf]
    %v686 = vld [vmem:[%s8 + $0x1c] sm:$0xf]
    %v687 = vld [vmem:[%s8 + $0x20] sm:$0xf]
    %v688 = vld [vmem:[%s8 + $0x24] sm:$0xf]
    %v689 = vld [vmem:[%s8 + $0x28] sm:$0xf]
    %v690 = vld [vmem:[%s8 + $0x2c] sm:$0xf]
    %v691 = vld [vmem:[%s8 + $0x30] sm:$0xf]
    %v692 = vld [vmem:[%s8 + $0x34] sm:$0xf]
    %v693 = vld [vmem:[%s8 + $0x38] sm:$0xf]
    %v694 = vld [vmem:[%s8 + $0x3c] sm:$0xf]
    %v695 = vld [vmem:[#allocation12] sm:$0x1]
    %v712 = vunpack.c.l.b16 %v679
    %v713 = vunpack.c.l.b16 %v680
    %v714 = vunpack.c.l.b16 %v681
    %v715 = vunpack.c.l.b16 %v682
    %v716 = vunpack.c.l.b16 %v683
    %v717 = vunpack.c.l.b16 %v684
    %v718 = vunpack.c.l.b16 %v685
    %v719 = vunpack.c.l.b16 %v686
    %v720 = vunpack.c.l.b16 %v687
    %v721 = vunpack.c.l.b16 %v688
    %v722 = vunpack.c.l.b16 %v689
    %v723 = vunpack.c.l.b16 %v690
    %v724 = vunpack.c.l.b16 %v691
    %v725 = vunpack.c.l.b16 %v692
    %v726 = vunpack.c.l.b16 %v693
    %v727 = vunpack.c.l.b16 %v694
    %v728 = vpack.c.b16 %v713, %v712
    %v729 = vpack.c.b16 %v715, %v714
    %v730 = vpack.c.b16 %v717, %v716
    %v731 = vpack.c.b16 %v719, %v718
    %v732 = vpack.c.b16 %v721, %v720
    %v733 = vpack.c.b16 %v723, %v722
    %v734 = vpack.c.b16 %v725, %v724
    %v735 = vpack.c.b16 %v727, %v726
    %744 = vmatpush.bf16.msra.mxu0 %v735
    %745 = vmatpush.bf16.msra.mxu0 %v734
    %746 = vmatpush.bf16.msra.mxu0 %v733
    %747 = vmatpush.bf16.msra.mxu0 %v732
    %748 = vmatpush.bf16.msra.mxu0 %v731
    %749 = vmatpush.bf16.msra.mxu0 %v730
    %750 = vmatpush.bf16.msra.mxu0 %v729
    %751 = vmatpush.bf16.msra.mxu0 %v728
    %752 = vmatmul.bf16.gmra.mxu0 %v678
    %v753 = vpop.f32.mrf.mxu0
    %v754 = vadd.f32 %v695, %v753
    %v755 = vpop.f32.mrf.mxu0
    %756 = vdwg.mxu0
    %758 = vrot.lane.b32.xlu0 %v754, 32
    %v759 = vpop.permute.xlu0 %758
    %v761 = vmul.f32 %v254, %v759
    %763 = vrot.lane.b32.xlu0 %v761, 96
    %v764 = vpop.permute.xlu0 %763
    %v766 = vadd.f32 %v605, %v764
    %v767 = vpack.c.bf16 %v766, %v766
    %vm768 = vcmask 253952
    %vm769 = vsmask.f32 256
    %vm770 = vmand %vm768, %vm769
    %v771 = vld [vmem:[%s12] sm:$0x1]
    %v772 = vsel %vm770, %v767, %v771
    %773 = vst [vmem:[%s12] sm:$0x1] %v772
    %s774 = scalar_lea.vmem %s0, 1
    %v775 = vld [vmem:[%s774] sm:$0x1]
    %v776 = vunpack.c.l.bf16 %v775
    %s777 = scalar_lea.vmem %s1, 1
    %v778 = vld [vmem:[%s777] sm:$0x1]
    %v779 = vunpack.c.l.bf16 %v778
    %v780 = vsub.f32 0.0, %v779
    %v781 = vmul.f32 %v780, 1.442695
    %v782 = vpow.pop %v781
    %v783 = vadd.f32 %v782, 1.0
    %v784 = vrcp.pop %v783
    %v785 = vmul.f32 %v783, %v784
    %v786 = vsub.f32 1.0, %v785
    %v787 = vmul.f32 %v784, %v786
    %v788 = vadd.f32 %v784, %v787
    %vm789 = vweird.f32 %v783
    %vm790 = vweird.f32 %v784
    %vm791 = vmor %vm789, %vm790
    %v792 = vsel %vm791, %v784, %v788
    %v793 = vand.u32 2147483647, %v783
    %vm794 = vcmp.eq.f32.partialorder %v793, 8.507059e+37
    %v795 = vand.u32 %v783, 2147483648
    %v796 = vor.u32 1.1754944e-38, %v795
    %v797 = vsel %vm794, %v796, %v792
    %v798 = vmul.f32 1.0, %v797
    %v799 = vmul.f32 %v779, %v798
    %v800 = vpack.c.bf16 %v799, %v799
    %v801 = vld [vmem:[#allocation13] sm:$0xff]
    %v802 = vld [vmem:[#allocation13 + $0x8] sm:$0xff]
    %v803 = vld [vmem:[#allocation13 + $0x10] sm:$0xff]
    %v804 = vld [vmem:[#allocation13 + $0x18] sm:$0xff]
    %v805 = vld [vmem:[#allocation15] sm:$0x3]
    %v810 = vunpack.c.l.b16 %v801
    %v811 = vunpack.c.h.b16 %v801
    %v812 = vunpack.c.l.b16 %v802
    %v813 = vunpack.c.h.b16 %v802
    %v814 = vunpack.c.l.b16 %v803
    %v815 = vunpack.c.h.b16 %v803
    %v816 = vunpack.c.l.b16 %v804
    %v817 = vunpack.c.h.b16 %v804
    %v818 = vpack.c.b16 %v812, %v810
    %v819 = vpack.c.b16 %v813, %v811
    %v820 = vpack.c.b16 %v816, %v814
    %v821 = vpack.c.b16 %v817, %v815
    %v827 = vperm.slane %v805, 0
    %v828 = vperm.slane %v805, 1
    %v832 = vsel %vm227, %v800, 0
    %834 = vmatpush.bf16.msra.mxu0 0
    %835 = vmatpush.bf16.msra.mxu0 0
    %836 = vmatpush.bf16.msra.mxu0 0
    %837 = vmatpush.bf16.msra.mxu0 0
    %838 = vmatpush.bf16.msra.mxu0 0
    %839 = vmatpush.bf16.msra.mxu0 0
    %840 = vmatpush.bf16.msra.mxu0 %v820
    %841 = vmatpush.bf16.msra.mxu0 %v818
    %842 = vmatmul.bf16.gmra.mxu0 %v832
    %v843 = vpop.f32.mrf.mxu0
    %v844 = vadd.f32 %v827, %v843
    %v845 = vpop.f32.mrf.mxu0
    %846 = vdwg.mxu0
    %847 = vmatpush.bf16.msra.mxu0 0
    %848 = vmatpush.bf16.msra.mxu0 0
    %849 = vmatpush.bf16.msra.mxu0 0
    %850 = vmatpush.bf16.msra.mxu0 0
    %851 = vmatpush.bf16.msra.mxu0 0
    %852 = vmatpush.bf16.msra.mxu0 0
    %853 = vmatpush.bf16.msra.mxu0 %v821
    %854 = vmatpush.bf16.msra.mxu0 %v819
    %855 = vmatmul.bf16.gmra.mxu0 %v832
    %v856 = vpop.f32.mrf.mxu0
    %v857 = vadd.f32 %v828, %v856
    %v858 = vpop.f32.mrf.mxu0
    %859 = vdwg.mxu0
    %v860 = vsel %vm257, %v776, 0.0
    %861 = vadd.xlane.f32.xlu0 %v860
    %v862 = vpop.xlane.xlu0 %861
    %v863 = vmul.f32 %v862, %v267
    %v864 = vsub.f32 %v776, %v863
    %v865 = vmul.f32 %v864, %v864
    %v866 = vsel %vm257, %v865, 0.0
    %867 = vadd.xlane.f32.xlu0 %v866
    %v868 = vpop.xlane.xlu0 %867
    %v869 = vmul.f32 %v868, %v267
    %v870 = vadd.f32 %v869, 1e-06
    %v871 = vrsqrt.pop %v870
    %v872 = vmul.f32 %v871, %v870
    %v873 = vmul.f32 %v872, %v871
    %v874 = vmul.f32 0.5, %v873
    %v875 = vsub.f32 1.5, %v874
    %v876 = vmul.f32 %v871, %v875
    %vm877 = vweird.f32 %v870
    %vm878 = vweird.f32 %v871
    %vm879 = vmor %vm877, %vm878
    %v880 = vsel %vm879, %v871, %v876
    %v881 = vmul.f32 %v864, %v880
    %v882 = vadd.f32 %v844, 1.0
    %884 = vrot.lane.b32.xlu0 %v882, 96
    %v885 = vpop.permute.xlu0 %884
    %v887 = vmul.f32 %v881, %v885
    %v888 = vadd.f32 %v887, %v844
    %v889 = vpack.c.bf16 %v888, %v888
    %v890 = vld [vmem:[#allocation2] sm:$0xf]
    %v891 = vld [vmem:[#allocation2 + $0x4] sm:$0xf]
    %v892 = vld [vmem:[#allocation2 + $0x8] sm:$0xf]
    %v893 = vld [vmem:[#allocation2 + $0xc] sm:$0xf]
    %v894 = vld [vmem:[#allocation4] sm:$0x1]
    %v899 = vunpack.c.l.b16 %v890
    %v900 = vunpack.c.l.b16 %v891
    %v901 = vunpack.c.l.b16 %v892
    %v902 = vunpack.c.l.b16 %v893
    %v903 = vpack.c.b16 %v900, %v899
    %v904 = vpack.c.b16 %v902, %v901
    %v908 = vsel %vm227, %v889, 0
    %910 = vmatpush.bf16.msra.mxu0 0
    %911 = vmatpush.bf16.msra.mxu0 0
    %912 = vmatpush.bf16.msra.mxu0 0
    %913 = vmatpush.bf16.msra.mxu0 0
    %914 = vmatpush.bf16.msra.mxu0 0
    %915 = vmatpush.bf16.msra.mxu0 0
    %916 = vmatpush.bf16.msra.mxu0 %v904
    %917 = vmatpush.bf16.msra.mxu0 %v903
    %918 = vmatmul.bf16.gmra.mxu0 %v908
    %v919 = vpop.f32.mrf.mxu0
    %v920 = vadd.f32 %v894, %v919
    %v921 = vpop.f32.mrf.mxu0
    %922 = vdwg.mxu0
    %v923 = vmul.f32 %v920, 0.35355338
    %925 = vrot.lane.b32.xlu0 %v920, 96
    %v926 = vpop.permute.xlu0 %925
    %v928 = vmul.f32 %v923, %v926
    %v929 = vsel %vm334, %v928, 0.0
    %930 = vadd.xlane.f32.xlu0 %v929
    %v931 = vpop.xlane.xlu0 %930
    %v932 = vsub.f32 %v931, %v931
    %v933 = vmul.f32 %v932, 1.442695
    %v934 = vpow.pop %v933
    %v935 = vadd.f32 %v934, 0.0
    %v936 = vrcp.pop %v935
    %v937 = vmul.f32 %v934, %v936
    %938 = vrot.lane.b32.xlu0 %v920, 64
    %v939 = vpop.permute.xlu0 %938
    %v941 = vsel %vm346, %v937, 0
    %v943 = vsel %vm350, %v939, 0
    %945 = vmatpush.msra.mxu0 0.0
    %946 = vmatpush.msra.mxu0 0.0
    %947 = vmatpush.msra.mxu0 0.0
    %948 = vmatpush.msra.mxu0 0.0
    %949 = vmatpush.msra.mxu0 0.0
    %950 = vmatpush.msra.mxu0 0.0
    %951 = vmatpush.msra.mxu0 0.0
    %952 = vmatpush.msra.mxu0 0.0
    %953 = vmatpush.msra.mxu0 0.0
    %954 = vmatpush.msra.mxu0 0.0
    %955 = vmatpush.msra.mxu0 0.0
    %956 = vmatpush.msra.mxu0 0.0
    %957 = vmatpush.msra.mxu0 0.0
    %958 = vmatpush.msra.mxu0 0.0
    %959 = vmatpush.msra.mxu0 0.0
    %960 = vmatpush.msra.mxu0 %v943
    %961 = vmatmul.f32.gmra.mxu0 %v941
    %v962 = vpop.f32.mrf.mxu0
    %v963 = vadd.f32 0.0, %v962
    %964 = vdwg.mxu0
    %v965 = vld [vmem:[#allocation6] sm:$0xf]
    %v966 = vunpack.c.l.bf16 %v965
    %968 = vrot.lane.b32.xlu0 %v928, 120
    %v969 = vpop.permute.xlu0 %968
    %v971 = vsel %vm334, %v969, 0.0
    %972 = vadd.xlane.f32.xlu0 %v971
    %v973 = vpop.xlane.xlu0 %972
    %v974 = vsub.f32 %v973, %v973
    %v975 = vmul.f32 %v974, 1.442695
    %v976 = vpow.pop %v975
    %v977 = vadd.f32 %v976, 0.0
    %v978 = vrcp.pop %v977
    %v979 = vmul.f32 %v976, %v978
    %980 = vrot.lane.b32.xlu0 %v920, 56
    %v981 = vpop.permute.xlu0 %980
    %v983 = vsel %vm346, %v979, 0
    %v985 = vsel %vm350, %v981, 0
    %987 = vmatpush.msra.mxu0 0.0
    %988 = vmatpush.msra.mxu0 0.0
    %989 = vmatpush.msra.mxu0 0.0
    %990 = vmatpush.msra.mxu0 0.0
    %991 = vmatpush.msra.mxu0 0.0
    %992 = vmatpush.msra.mxu0 0.0
    %993 = vmatpush.msra.mxu0 0.0
    %994 = vmatpush.msra.mxu0 0.0
    %995 = vmatpush.msra.mxu0 0.0
    %996 = vmatpush.msra.mxu0 0.0
    %997 = vmatpush.msra.mxu0 0.0
    %998 = vmatpush.msra.mxu0 0.0
    %999 = vmatpush.msra.mxu0 0.0
    %1000 = vmatpush.msra.mxu0 0.0
    %1001 = vmatpush.msra.mxu0 0.0
    %1002 = vmatpush.msra.mxu0 %v985
    %1003 = vmatmul.f32.gmra.mxu0 %v983
    %v1004 = vpop.f32.mrf.mxu0
    %v1005 = vadd.f32 0.0, %v1004
    %1006 = vdwg.mxu0
    %v1007 = vld [vmem:[#allocation6 + $0x4] sm:$0xf]
    %v1008 = vunpack.c.l.bf16 %v1007
    %v1010 = vsel %vm417, %v1005, 0
    %1012 = vmatpush.msra.mxu0 0.0
    %1013 = vmatpush.msra.mxu0 0.0
    %1014 = vmatpush.msra.mxu0 0.0
    %1015 = vmatpush.msra.mxu0 0.0
    %1016 = vmatpush.msra.mxu0 0.0
    %1017 = vmatpush.msra.mxu0 0.0
    %1018 = vmatpush.msra.mxu0 0.0
    %1019 = vmatpush.msra.mxu0 0.0
    %1020 = vmatpush.msra.mxu0 0.0
    %1021 = vmatpush.msra.mxu0 0.0
    %1022 = vmatpush.msra.mxu0 0.0
    %1023 = vmatpush.msra.mxu0 0.0
    %1024 = vmatpush.msra.mxu0 0.0
    %1025 = vmatpush.msra.mxu0 0.0
    %1026 = vmatpush.msra.mxu0 0.0
    %1027 = vmatpush.msra.mxu0 %v1008
    %1028 = vmatmul.f32.gmra.mxu0 %v1010
    %v1029 = vpop.f32.mrf.mxu0
    %v1030 = vadd.f32 0.0, %v1029
    %1031 = vdwg.mxu0
    %v1033 = vsel %vm417, %v963, 0
    %1035 = vmatpush.msra.mxu0 0.0
    %1036 = vmatpush.msra.mxu0 0.0
    %1037 = vmatpush.msra.mxu0 0.0
    %1038 = vmatpush.msra.mxu0 0.0
    %1039 = vmatpush.msra.mxu0 0.0
    %1040 = vmatpush.msra.mxu0 0.0
    %1041 = vmatpush.msra.mxu0 0.0
    %1042 = vmatpush.msra.mxu0 0.0
    %1043 = vmatpush.msra.mxu0 0.0
    %1044 = vmatpush.msra.mxu0 0.0
    %1045 = vmatpush.msra.mxu0 0.0
    %1046 = vmatpush.msra.mxu0 0.0
    %1047 = vmatpush.msra.mxu0 0.0
    %1048 = vmatpush.msra.mxu0 0.0
    %1049 = vmatpush.msra.mxu0 0.0
    %1050 = vmatpush.msra.mxu0 %v966
    %1051 = vmatmul.f32.gmra.mxu0 %v1033
    %v1052 = vpop.f32.mrf.mxu0
    %v1053 = vadd.f32 %v1030, %v1052
    %1054 = vdwg.mxu0
    %1055 = vrot.lane.b32.xlu0 %v928, 112
    %v1056 = vpop.permute.xlu0 %1055
    %v1058 = vsel %vm334, %v1056, 0.0
    %1059 = vadd.xlane.f32.xlu0 %v1058
    %v1060 = vpop.xlane.xlu0 %1059
    %v1061 = vsub.f32 %v1060, %v1060
    %v1062 = vmul.f32 %v1061, 1.442695
    %v1063 = vpow.pop %v1062
    %v1064 = vadd.f32 %v1063, 0.0
    %v1065 = vrcp.pop %v1064
    %v1066 = vmul.f32 %v1063, %v1065
    %1067 = vrot.lane.b32.xlu0 %v920, 48
    %v1068 = vpop.permute.xlu0 %1067
    %v1070 = vsel %vm346, %v1066, 0
    %v1072 = vsel %vm350, %v1068, 0
    %1074 = vmatpush.msra.mxu0 0.0
    %1075 = vmatpush.msra.mxu0 0.0
    %1076 = vmatpush.msra.mxu0 0.0
    %1077 = vmatpush.msra.mxu0 0.0
    %1078 = vmatpush.msra.mxu0 0.0
    %1079 = vmatpush.msra.mxu0 0.0
    %1080 = vmatpush.msra.mxu0 0.0
    %1081 = vmatpush.msra.mxu0 0.0
    %1082 = vmatpush.msra.mxu0 0.0
    %1083 = vmatpush.msra.mxu0 0.0
    %1084 = vmatpush.msra.mxu0 0.0
    %1085 = vmatpush.msra.mxu0 0.0
    %1086 = vmatpush.msra.mxu0 0.0
    %1087 = vmatpush.msra.mxu0 0.0
    %1088 = vmatpush.msra.mxu0 0.0
    %1089 = vmatpush.msra.mxu0 %v1072
    %1090 = vmatmul.f32.gmra.mxu0 %v1070
    %v1091 = vpop.f32.mrf.mxu0
    %v1092 = vadd.f32 0.0, %v1091
    %1093 = vdwg.mxu0
    %v1094 = vld [vmem:[#allocation6 + $0x8] sm:$0xf]
    %v1095 = vunpack.c.l.bf16 %v1094
    %v1097 = vsel %vm417, %v1092, 0
    %1099 = vmatpush.msra.mxu0 0.0
    %1100 = vmatpush.msra.mxu0 0.0
    %1101 = vmatpush.msra.mxu0 0.0
    %1102 = vmatpush.msra.mxu0 0.0
    %1103 = vmatpush.msra.mxu0 0.0
    %1104 = vmatpush.msra.mxu0 0.0
    %1105 = vmatpush.msra.mxu0 0.0
    %1106 = vmatpush.msra.mxu0 0.0
    %1107 = vmatpush.msra.mxu0 0.0
    %1108 = vmatpush.msra.mxu0 0.0
    %1109 = vmatpush.msra.mxu0 0.0
    %1110 = vmatpush.msra.mxu0 0.0
    %1111 = vmatpush.msra.mxu0 0.0
    %1112 = vmatpush.msra.mxu0 0.0
    %1113 = vmatpush.msra.mxu0 0.0
    %1114 = vmatpush.msra.mxu0 %v1095
    %1115 = vmatmul.f32.gmra.mxu0 %v1097
    %v1116 = vpop.f32.mrf.mxu0
    %v1117 = vadd.f32 0.0, %v1116
    %1118 = vdwg.mxu0
    %v1119 = vadd.f32 %v1053, %v1117
    %1120 = vrot.lane.b32.xlu0 %v928, 104
    %v1121 = vpop.permute.xlu0 %1120
    %v1123 = vsel %vm334, %v1121, 0.0
    %1124 = vadd.xlane.f32.xlu0 %v1123
    %v1125 = vpop.xlane.xlu0 %1124
    %v1126 = vsub.f32 %v1125, %v1125
    %v1127 = vmul.f32 %v1126, 1.442695
    %v1128 = vpow.pop %v1127
    %v1129 = vadd.f32 %v1128, 0.0
    %v1130 = vrcp.pop %v1129
    %v1131 = vmul.f32 %v1128, %v1130
    %1132 = vrot.lane.b32.xlu0 %v920, 40
    %v1133 = vpop.permute.xlu0 %1132
    %v1135 = vsel %vm346, %v1131, 0
    %v1137 = vsel %vm350, %v1133, 0
    %1139 = vmatpush.msra.mxu0 0.0
    %1140 = vmatpush.msra.mxu0 0.0
    %1141 = vmatpush.msra.mxu0 0.0
    %1142 = vmatpush.msra.mxu0 0.0
    %1143 = vmatpush.msra.mxu0 0.0
    %1144 = vmatpush.msra.mxu0 0.0
    %1145 = vmatpush.msra.mxu0 0.0
    %1146 = vmatpush.msra.mxu0 0.0
    %1147 = vmatpush.msra.mxu0 0.0
    %1148 = vmatpush.msra.mxu0 0.0
    %1149 = vmatpush.msra.mxu0 0.0
    %1150 = vmatpush.msra.mxu0 0.0
    %1151 = vmatpush.msra.mxu0 0.0
    %1152 = vmatpush.msra.mxu0 0.0
    %1153 = vmatpush.msra.mxu0 0.0
    %1154 = vmatpush.msra.mxu0 %v1137
    %1155 = vmatmul.f32.gmra.mxu0 %v1135
    %v1156 = vpop.f32.mrf.mxu0
    %v1157 = vadd.f32 0.0, %v1156
    %1158 = vdwg.mxu0
    %v1159 = vld [vmem:[#allocation6 + $0xc] sm:$0xf]
    %v1160 = vunpack.c.l.bf16 %v1159
    %v1162 = vsel %vm417, %v1157, 0
    %1164 = vmatpush.msra.mxu0 0.0
    %1165 = vmatpush.msra.mxu0 0.0
    %1166 = vmatpush.msra.mxu0 0.0
    %1167 = vmatpush.msra.mxu0 0.0
    %1168 = vmatpush.msra.mxu0 0.0
    %1169 = vmatpush.msra.mxu0 0.0
    %1170 = vmatpush.msra.mxu0 0.0
    %1171 = vmatpush.msra.mxu0 0.0
    %1172 = vmatpush.msra.mxu0 0.0
    %1173 = vmatpush.msra.mxu0 0.0
    %1174 = vmatpush.msra.mxu0 0.0
    %1175 = vmatpush.msra.mxu0 0.0
    %1176 = vmatpush.msra.mxu0 0.0
    %1177 = vmatpush.msra.mxu0 0.0
    %1178 = vmatpush.msra.mxu0 0.0
    %1179 = vmatpush.msra.mxu0 %v1160
    %1180 = vmatmul.f32.gmra.mxu0 %v1162
    %v1181 = vpop.f32.mrf.mxu0
    %v1182 = vadd.f32 0.0, %v1181
    %1183 = vdwg.mxu0
    %v1184 = vadd.f32 %v1119, %v1182
    %v1185 = vld [vmem:[#allocation7] sm:$0x1]
    %v1186 = vadd.f32 %v1184, %v1185
    %1188 = vrot.lane.b32.xlu0 %v1186, 64
    %v1189 = vpop.permute.xlu0 %1188
    %v1191 = vmul.f32 %v844, %v1189
    %1193 = vrot.lane.b32.xlu0 %v1191, 64
    %v1194 = vpop.permute.xlu0 %1193
    %v1196 = vadd.f32 %v776, %v1194
    %v1197 = vsel %vm257, %v1196, 0.0
    %1198 = vadd.xlane.f32.xlu0 %v1197
    %v1199 = vpop.xlane.xlu0 %1198
    %v1200 = vmul.f32 %v1199, %v267
    %v1201 = vsub.f32 %v1196, %v1200
    %v1202 = vmul.f32 %v1201, %v1201
    %v1203 = vsel %vm257, %v1202, 0.0
    %1204 = vadd.xlane.f32.xlu0 %v1203
    %v1205 = vpop.xlane.xlu0 %1204
    %v1206 = vmul.f32 %v1205, %v267
    %v1207 = vadd.f32 %v1206, 1e-06
    %v1208 = vrsqrt.pop %v1207
    %v1209 = vmul.f32 %v1208, %v1207
    %v1210 = vmul.f32 %v1209, %v1208
    %v1211 = vmul.f32 0.5, %v1210
    %v1212 = vsub.f32 1.5, %v1211
    %v1213 = vmul.f32 %v1208, %v1212
    %vm1214 = vweird.f32 %v1207
    %vm1215 = vweird.f32 %v1208
    %vm1216 = vmor %vm1214, %vm1215
    %v1217 = vsel %vm1216, %v1208, %v1213
    %v1218 = vmul.f32 %v1201, %v1217
    %v1219 = vadd.f32 %v857, 1.0
    %v1220 = vmul.f32 %v1218, %v1219
    %1222 = vrot.lane.b32.xlu0 %v844, 32
    %v1223 = vpop.permute.xlu0 %1222
    %v1225 = vadd.f32 %v1220, %v1223
    %v1226 = vpack.c.bf16 %v1225, %v1225
    %v1227 = vld [vmem:[#allocation9] sm:$0xf]
    %v1228 = vld [vmem:[#allocation9 + $0x4] sm:$0xf]
    %v1229 = vld [vmem:[#allocation9 + $0x8] sm:$0xf]
    %v1230 = vld [vmem:[#allocation9 + $0xc] sm:$0xf]
    %v1231 = vld [vmem:[#allocation10] sm:$0x1]
    %v1236 = vunpack.c.l.b16 %v1227
    %v1237 = vunpack.c.l.b16 %v1228
    %v1238 = vunpack.c.l.b16 %v1229
    %v1239 = vunpack.c.l.b16 %v1230
    %v1240 = vpack.c.b16 %v1237, %v1236
    %v1241 = vpack.c.b16 %v1239, %v1238
    %v1245 = vsel %vm227, %v1226, 0
    %1247 = vmatpush.bf16.msra.mxu0 0
    %1248 = vmatpush.bf16.msra.mxu0 0
    %1249 = vmatpush.bf16.msra.mxu0 0
    %1250 = vmatpush.bf16.msra.mxu0 0
    %1251 = vmatpush.bf16.msra.mxu0 0
    %1252 = vmatpush.bf16.msra.mxu0 0
    %1253 = vmatpush.bf16.msra.mxu0 %v1241
    %1254 = vmatpush.bf16.msra.mxu0 %v1240
    %1255 = vmatmul.bf16.gmra.mxu0 %v1245
    %v1256 = vpop.f32.mrf.mxu0
    %v1257 = vadd.f32 %v1231, %v1256
    %v1258 = vpop.f32.mrf.mxu0
    %1259 = vdwg.mxu0
    %v1260 = vmul.f32 %v1257, 0.5
    %v1261 = vmul.f32 %v1257, 0.044715
    %v1262 = vmul.f32 %v1261, %v1257
    %v1263 = vmul.f32 %v1262, %v1257
    %v1264 = vadd.f32 %v1257, %v1263
    %v1265 = vmul.f32 %v1264, 0.7978846
    %v1266 = vtanh.pop %v1265
    %v1267 = vadd.f32 %v1266, 1.0
    %v1268 = vmul.f32 %v1260, %v1267
    %v1269 = vpack.c.bf16 %v1268, %v1268
    %v1270 = vld [vmem:[%s8] sm:$0xf]
    %v1271 = vld [vmem:[%s8 + $0x4] sm:$0xf]
    %v1272 = vld [vmem:[%s8 + $0x8] sm:$0xf]
    %v1273 = vld [vmem:[%s8 + $0xc] sm:$0xf]
    %v1274 = vld [vmem:[%s8 + $0x10] sm:$0xf]
    %v1275 = vld [vmem:[%s8 + $0x14] sm:$0xf]
    %v1276 = vld [vmem:[%s8 + $0x18] sm:$0xf]
    %v1277 = vld [vmem:[%s8 + $0x1c] sm:$0xf]
    %v1278 = vld [vmem:[%s8 + $0x20] sm:$0xf]
    %v1279 = vld [vmem:[%s8 + $0x24] sm:$0xf]
    %v1280 = vld [vmem:[%s8 + $0x28] sm:$0xf]
    %v1281 = vld [vmem:[%s8 + $0x2c] sm:$0xf]
    %v1282 = vld [vmem:[%s8 + $0x30] sm:$0xf]
    %v1283 = vld [vmem:[%s8 + $0x34] sm:$0xf]
    %v1284 = vld [vmem:[%s8 + $0x38] sm:$0xf]
    %v1285 = vld [vmem:[%s8 + $0x3c] sm:$0xf]
    %v1286 = vld [vmem:[#allocation12] sm:$0x1]
    %v1303 = vunpack.c.l.b16 %v1270
    %v1304 = vunpack.c.l.b16 %v1271
    %v1305 = vunpack.c.l.b16 %v1272
    %v1306 = vunpack.c.l.b16 %v1273
    %v1307 = vunpack.c.l.b16 %v1274
    %v1308 = vunpack.c.l.b16 %v1275
    %v1309 = vunpack.c.l.b16 %v1276
    %v1310 = vunpack.c.l.b16 %v1277
    %v1311 = vunpack.c.l.b16 %v1278
    %v1312 = vunpack.c.l.b16 %v1279
    %v1313 = vunpack.c.l.b16 %v1280
    %v1314 = vunpack.c.l.b16 %v1281
    %v1315 = vunpack.c.l.b16 %v1282
    %v1316 = vunpack.c.l.b16 %v1283
    %v1317 = vunpack.c.l.b16 %v1284
    %v1318 = vunpack.c.l.b16 %v1285
    %v1319 = vpack.c.b16 %v1304, %v1303
    %v1320 = vpack.c.b16 %v1306, %v1305
    %v1321 = vpack.c.b16 %v1308, %v1307
    %v1322 = vpack.c.b16 %v1310, %v1309
    %v1323 = vpack.c.b16 %v1312, %v1311
    %v1324 = vpack.c.b16 %v1314, %v1313
    %v1325 = vpack.c.b16 %v1316, %v1315
    %v1326 = vpack.c.b16 %v1318, %v1317
    %1335 = vmatpush.bf16.msra.mxu0 %v1326
    %1336 = vmatpush.bf16.msra.mxu0 %v1325
    %1337 = vmatpush.bf16.msra.mxu0 %v1324
    %1338 = vmatpush.bf16.msra.mxu0 %v1323
    %1339 = vmatpush.bf16.msra.mxu0 %v1322
    %1340 = vmatpush.bf16.msra.mxu0 %v1321
    %1341 = vmatpush.bf16.msra.mxu0 %v1320
    %1342 = vmatpush.bf16.msra.mxu0 %v1319
    %1343 = vmatmul.bf16.gmra.mxu0 %v1269
    %v1344 = vpop.f32.mrf.mxu0
    %v1345 = vadd.f32 %v1286, %v1344
    %v1346 = vpop.f32.mrf.mxu0
    %1347 = vdwg.mxu0
    %1349 = vrot.lane.b32.xlu0 %v1345, 32
    %v1350 = vpop.permute.xlu0 %1349
    %v1352 = vmul.f32 %v857, %v1350
    %1354 = vrot.lane.b32.xlu0 %v1352, 96
    %v1355 = vpop.permute.xlu0 %1354
    %v1357 = vadd.f32 %v1196, %v1355
    %v1358 = vpack.c.bf16 %v1357, %v1357
    %s1359 = scalar_lea.vmem %s12, 1
    %v1360 = vld [vmem:[%s1359] sm:$0x1]
    %v1361 = vsel %vm770, %v1358, %v1360
    %1362 = vst [vmem:[%s1359] sm:$0x1] %v1361
    // Predicated region
    $region86: #{controlnet_forward.19} parent=1 // pred_check
      _
    $region87: #{controlnet_forward.19} parent=1 // pred_check_branch
      %1364 = sbr.rel (0) target = $region89
    $region88: #{controlnet_forward.19} parent=1 // pred_region
      _
    $region89: #{controlnet_forward.19} parent=1 // pred_fallthru
      _
    // Predicated region
    $region90: #{controlnet_forward.19} parent=1 // pred_check
      _
    $region91: #{controlnet_forward.19} parent=1 // pred_check_branch
      %1366 = sbr.rel (0) target = $region93
    $region92: #{controlnet_forward.19} parent=1 // pred_region
      _
    $region93: #{controlnet_forward.19} parent=1 // pred_fallthru
      _
    %1367 = vsyncpa [#allocation3], 1
    %1368 = vsyncpa [#allocation5], 1
    %1369 = vsyncpa [#allocation8], 1
    %1370 = vsyncpa [#allocation11], 1
    %1371 = vsyncpa [#allocation14], 1

// kernel: controlnet_forward.14
$region0: #{controlnet_forward.14}
  #allocation0 [shape = 'u32[]', space=smem, size = 0x4, offset = 0x4, fixed_abs, tag = 'smem constant byte address 0x4 - core index']
  #allocation1 [shape = 'u32[72,128]{1,0:T(1,128)}', space=vmem, size = 0x9000, scoped, tag = 'internal scratch']
  %s0 = inlined_call_operand.vmem [shape: bf16[16,64], index: 0, kind: input, shape index: {}]
  %s1 = inlined_call_operand.hbm [shape: bf16[64,128], index: 1, kind: input, shape index: {}]
  %s2 = inlined_call_operand.hbm [shape: f32[1,128], index: 2, kind: input, shape index: {}]
  %s3 = inlined_call_operand.vmem [shape: bf16[128,64], index: 3, kind: input, shape index: {}]
  %s4 = inlined_call_operand.hbm [shape: f32[1,64], index: 4, kind: input, shape index: {}]
  %s5 = inlined_call_operand.hbm [shape: f32[1,64], index: 5, kind: input, shape index: {}]
  %s6 = inlined_call_operand.hbm [shape: f32[1,64], index: 6, kind: input, shape index: {}]
  %s7 = inlined_call_operand.vmem [shape: bf16[16,64], index: 7, kind: output, shape index: {}]
  %s8 = sld [smem:[#allocation0]]
  $region58: #{controlnet_forward.14} parent=0
    _
  %s10 = ssub.s32 1, %s8
  %s11 = scalar_select 0, %s10, %s8
  $region1: #{controlnet_forward.14} parent=0
    #allocation2 [shape = 'u8[16384]{0}', space=vmem, size = 0x4000, scoped, tag = 'input window, operand 1, single buffered']
    #allocation3 [shape = 's32[1]{0}', space=sflag, size = 0x4, scoped, tag = 'scoped memory for controlnet_forward.14']
    #allocation4 [shape = 'u8[512]{0}', space=vmem, size = 0x400, scoped, tag = 'input window, operand 2, single buffered']
    #allocation5 [shape = 's32[1]{0}', space=sflag, size = 0x4, scoped, tag = 'scoped memory for controlnet_forward.14']
    #allocation6 [shape = 'u8[512]{0}', space=vmem, size = 0x400, scoped, tag = 'input window, operand 4, single buffered']
    #allocation7 [shape = 'u8[512]{0}', space=vmem, size = 0x400, scoped, tag = 'input window, operand 5, single buffered']
    #allocation8 [shape = 's32[1]{0}', space=sflag, size = 0x4, scoped, tag = 'scoped memory for controlnet_forward.14']
    #allocation9 [shape = 'u8[512]{0}', space=vmem, size = 0x400, scoped, tag = 'input window, operand 6, single buffered']
    %12 = vsyncpa [#allocation3], 0
    %13 = vsyncpa [#allocation5], 0
    %14 = vsyncpa [#allocation8], 0
    // Predicated region
    $region2: #{controlnet_forward.14} parent=1 // pred_check
      _
    $region3: #{controlnet_forward.14} parent=1 // pred_check_branch
      %16 = sbr.rel (0) target = $region5
    $region4: #{controlnet_forward.14} parent=1 // pred_region
      _
    $region5: #{controlnet_forward.14} parent=1 // pred_fallthru
      _
    // Predicated region
    $region6: #{controlnet_forward.14} parent=1 // pred_check
      _
    $region7: #{controlnet_forward.14} parent=1 // pred_check_branch
      %18 = sbr.rel (0) target = $region9
    $region8: #{controlnet_forward.14} parent=1 // pred_region
      %20 = vsyncadd [#allocation3], 0
      %s21 = sshll.u32 %s1, 4
      %s22 = int_to_ptr.hbm [resolvable:$true] %s21
      %s23 = sshll.u32 [#allocation2], 4
      %s24 = int_to_ptr.vmem [resolvable:$true] %s23
      %29 = dma.hbm_to_vmem [thread:$0]  %s22, 512, %s24, [#allocation3], 64, 64, 4
    $region9: #{controlnet_forward.14} parent=1 // pred_fallthru
      _
    // Predicated region
    $region10: #{controlnet_forward.14} parent=1 // pred_check
      _
    $region11: #{controlnet_forward.14} parent=1 // pred_check_branch
      %31 = sbr.rel (0) target = $region13
    $region12: #{controlnet_forward.14} parent=1 // pred_region
      %33 = vsyncadd [#allocation5], 0
      %s35 = sshll.u32 %s2, 4
      %s36 = int_to_ptr.hbm [resolvable:$true] %s35
      %s37 = sshll.u32 [#allocation4], 4
      %s38 = int_to_ptr.vmem [resolvable:$true] %s37
      %40 = dma.hbm_to_vmem [thread:$0]  %s36, 16, %s38, [#allocation5]
    $region13: #{controlnet_forward.14} parent=1 // pred_fallthru
      _
    // Predicated region
    $region14: #{controlnet_forward.14} parent=1 // pred_check
      _
    $region15: #{controlnet_forward.14} parent=1 // pred_check_branch
      %42 = sbr.rel (0) target = $region17
    $region16: #{controlnet_forward.14} parent=1 // pred_region
      _
    $region17: #{controlnet_forward.14} parent=1 // pred_fallthru
      _
    // Predicated region
    $region18: #{controlnet_forward.14} parent=1 // pred_check
      _
    $region19: #{controlnet_forward.14} parent=1 // pred_check_branch
      %44 = sbr.rel (0) target = $region21
    $region20: #{controlnet_forward.14} parent=1 // pred_region
      %46 = vsyncadd [#allocation5], 0
      %s48 = sshll.u32 %s4, 4
      %s49 = int_to_ptr.hbm [resolvable:$true] %s48
      %s50 = sshll.u32 [#allocation6], 4
      %s51 = int_to_ptr.vmem [resolvable:$true] %s50
      %53 = dma.hbm_to_vmem [thread:$0]  %s49, 16, %s51, [#allocation5]
    $region21: #{controlnet_forward.14} parent=1 // pred_fallthru
      _
    // Predicated region
    $region22: #{controlnet_forward.14} parent=1 // pred_check
      _
    $region23: #{controlnet_forward.14} parent=1 // pred_check_branch
      %55 = sbr.rel (0) target = $region25
    $region24: #{controlnet_forward.14} parent=1 // pred_region
      %57 = vsyncadd [#allocation8], 0
      %s59 = sshll.u32 %s5, 4
      %s60 = int_to_ptr.hbm [resolvable:$true] %s59
      %s61 = sshll.u32 [#allocation7], 4
      %s62 = int_to_ptr.vmem [resolvable:$true] %s61
      %64 = dma.hbm_to_vmem [thread:$0]  %s60, 16, %s62, [#allocation8]
    $region25: #{controlnet_forward.14} parent=1 // pred_fallthru
      _
    // Predicated region
    $region26: #{controlnet_forward.14} parent=1 // pred_check
      _
    $region27: #{controlnet_forward.14} parent=1 // pred_check_branch
      %66 = sbr.rel (0) target = $region29
    $region28: #{controlnet_forward.14} parent=1 // pred_region
      %68 = vsyncadd [#allocation8], 0
      %s70 = sshll.u32 %s6, 4
      %s71 = int_to_ptr.hbm [resolvable:$true] %s70
      %s72 = sshll.u32 [#allocation9], 4
      %s73 = int_to_ptr.vmem [resolvable:$true] %s72
      %75 = dma.hbm_to_vmem [thread:$0]  %s71, 16, %s73, [#allocation8]
    $region29: #{controlnet_forward.14} parent=1 // pred_fallthru
      _
    // Predicated region
    $region30: #{controlnet_forward.14} parent=1 // pred_check
      _
    $region31: #{controlnet_forward.14} parent=1 // pred_check_branch
      %77 = sbr.rel (0) target = $region33
    $region32: #{controlnet_forward.14} parent=1 // pred_region
      %79 = dma.done [#allocation3], 512
    $region33: #{controlnet_forward.14} parent=1 // pred_fallthru
      _
    // Predicated region
    $region34: #{controlnet_forward.14} parent=1 // pred_check
      _
    $region35: #{controlnet_forward.14} parent=1 // pred_check_branch
      %81 = sbr.rel (0) target = $region37
    $region36: #{controlnet_forward.14} parent=1 // pred_region
      %83 = dma.done [#allocation5], 16
    $region37: #{controlnet_forward.14} parent=1 // pred_fallthru
      _
    // Predicated region
    $region38: #{controlnet_forward.14} parent=1 // pred_check
      _
    $region39: #{controlnet_forward.14} parent=1 // pred_check_branch
      %85 = sbr.rel (0) target = $region41
    $region40: #{controlnet_forward.14} parent=1 // pred_region
      %87 = dma.done [#allocation5], 16
    $region41: #{controlnet_forward.14} parent=1 // pred_fallthru
      _
    // Predicated region
    $region42: #{controlnet_forward.14} parent=1 // pred_check
      _
    $region43: #{controlnet_forward.14} parent=1 // pred_check_branch
      %89 = sbr.rel (0) target = $region45
    $region44: #{controlnet_forward.14} parent=1 // pred_region
      %91 = dma.done [#allocation8], 16
    $region45: #{controlnet_forward.14} parent=1 // pred_fallthru
      _
    // Predicated region
    $region46: #{controlnet_forward.14} parent=1 // pred_check
      _
    $region47: #{controlnet_forward.14} parent=1 // pred_check_branch
      %93 = sbr.rel (0) target = $region49
    $region48: #{controlnet_forward.14} parent=1 // pred_region
      %95 = dma.done [#allocation8], 16
    $region49: #{controlnet_forward.14} parent=1 // pred_fallthru
      _
    %v97 = vld [vmem:[%s0] sm:$0xf]
    %v98 = vld [vmem:[%s0 + $0x4] sm:$0xf]
    %v99 = vunpack.c.l.bf16 %v97
    %v100 = vunpack.c.l.bf16 %v98
    %v101 = vld [vmem:[#allocation2] sm:$0xf]
    %v102 = vld [vmem:[#allocation2 + $0x4] sm:$0xf]
    %v103 = vld [vmem:[#allocation2 + $0x8] sm:$0xf]
    %v104 = vld [vmem:[#allocation2 + $0xc] sm:$0xf]
    %v105 = vld [vmem:[#allocation2 + $0x10] sm:$0xf]
    %v106 = vld [vmem:[#allocation2 + $0x14] sm:$0xf]
    %v107 = vld [vmem:[#allocation2 + $0x18] sm:$0xf]
    %v108 = vld [vmem:[#allocation2 + $0x1c] sm:$0xf]
    %v109 = vld [vmem:[#allocation4] sm:$0x1]
    %v111 = vperm.slane %v109, 0
    %v115 = vunpack.c.l.b16 %v97
    %v116 = vunpack.c.l.b16 %v98
    %v117 = vpack.c.b16 %v116, %v115
    %v126 = vunpack.c.l.b16 %v101
    %v127 = vunpack.c.l.b16 %v102
    %v128 = vunpack.c.l.b16 %v103
    %v129 = vunpack.c.l.b16 %v104
    %v130 = vunpack.c.l.b16 %v105
    %v131 = vunpack.c.l.b16 %v106
    %v132 = vunpack.c.l.b16 %v107
    %v133 = vunpack.c.l.b16 %v108
    %v134 = vpack.c.b16 %v127, %v126
    %v135 = vpack.c.b16 %v129, %v128
    %v136 = vpack.c.b16 %v131, %v130
    %v137 = vpack.c.b16 %v133, %v132
    %vm142 = vcmask 523264
    %v144 = vsel %vm142, %v117, 0
    %146 = vmatpush.bf16.msra.mxu0 0
    %147 = vmatpush.bf16.msra.mxu0 0
    %148 = vmatpush.bf16.msra.mxu0 0
    %149 = vmatpush.bf16.msra.mxu0 0
    %150 = vmatpush.bf16.msra.mxu0 %v137
    %151 = vmatpush.bf16.msra.mxu0 %v136
    %152 = vmatpush.bf16.msra.mxu0 %v135
    %153 = vmatpush.bf16.msra.mxu0 %v134
    %154 = vmatmul.bf16.gmra.mxu0 %v144
    %v155 = vpop.f32.mrf.mxu0
    %v156 = vadd.f32 %v111, %v155
    %v157 = vpop.f32.mrf.mxu0
    %v158 = vadd.f32 %v111, %v157
    %159 = vdwg.mxu0
    %v160 = vmul.f32 %v156, 0.5
    %v161 = vmul.f32 %v158, 0.5
    %v162 = vmul.f32 %v156, 0.70710677
    %v163 = vmul.f32 %v158, 0.70710677
    %vm164 = vcmp.ge.f32.partialorder %v162, 0.0
    %vm165 = vcmp.ge.f32.partialorder %v163, 0.0
    %v166 = vsel %vm164, 1.0, -1.0
    %v167 = vsel %vm165, 1.0, -1.0
    %v168 = vand.u32 2147483647, %v162
    %v169 = vand.u32 2147483647, %v163
    %v170 = vmul.f32 %v168, 0.3275911
    %v171 = vmul.f32 %v169, 0.3275911
    %v172 = vadd.f32 %v170, 1.0
    %v173 = vadd.f32 %v171, 1.0
    %v174 = vrcp.pop %v172
    %v175 = vmul.f32 %v172, %v174
    %v176 = vsub.f32 1.0, %v175
    %v177 = vmul.f32 %v174, %v176
    %v178 = vadd.f32 %v174, %v177
    %vm179 = vweird.f32 %v172
    %vm180 = vweird.f32 %v174
    %vm181 = vmor %vm179, %vm180
    %v182 = vsel %vm181, %v174, %v178
    %v183 = vand.u32 2147483647, %v172
    %vm184 = vcmp.eq.f32.partialorder %v183, 8.507059e+37
    %v185 = vand.u32 %v172, 2147483648
    %v186 = vor.u32 1.1754944e-38, %v185
    %v187 = vsel %vm184, %v186, %v182
    %v188 = vmul.f32 1.0, %v187
    %v189 = vrcp.pop %v173
    %v190 = vmul.f32 %v173, %v189
    %v191 = vsub.f32 1.0, %v190
    %v192 = vmul.f32 %v189, %v191
    %v193 = vadd.f32 %v189, %v192
    %vm194 = vweird.f32 %v173
    %vm195 = vweird.f32 %v189
    %vm196 = vmor %vm194, %vm195
    %v197 = vsel %vm196, %v189, %v193
    %v198 = vand.u32 2147483647, %v173
    %vm199 = vcmp.eq.f32.partialorder %v198, 8.507059e+37
    %v200 = vand.u32 %v173, 2147483648
    %v201 = vor.u32 1.1754944e-38, %v200
    %v202 = vsel %vm199, %v201, %v197
    %v203 = vmul.f32 1.0, %v202
    %v204 = vmul.f32 %v188, 1.0614054
    %v205 = vmul.f32 %v203, 1.0614054
    %v206 = vadd.f32 %v204, -1.4531521
    %v207 = vadd.f32 %v205, -1.4531521
    %v208 = vmul.f32 %v206, %v188
    %v209 = vmul.f32 %v207, %v203
    %v210 = vadd.f32 %v208, 1.4214138
    %v211 = vadd.f32 %v209, 1.4214138
    %v212 = vmul.f32 %v210, %v188
    %v213 = vmul.f32 %v211, %v203
    %v214 = vadd.f32 %v212, -0.28449672
    %v215 = vadd.f32 %v213, -0.28449672
    %v216 = vmul.f32 %v214, %v188
    %v217 = vmul.f32 %v215, %v203
    %v218 = vadd.f32 %v216, 0.2548296
    %v219 = vadd.f32 %v217, 0.2548296
    %v220 = vmul.f32 %v218, %v188
    %v221 = vmul.f32 %v219, %v203
    %v222 = vsub.f32 0.0, %v168
    %v223 = vsub.f32 0.0, %v169
    %v224 = vmul.f32 %v222, %v168
    %v225 = vmul.f32 %v223, %v169
    %v226 = vmul.f32 %v224, 1.442695
    %v227 = vpow.pop %v226
    %v228 = vmul.f32 %v225, 1.442695
    %v229 = vpow.pop %v228
    %v230 = vmul.f32 %v220, %v227
    %v231 = vmul.f32 %v221, %v229
    %v232 = vsub.f32 1.0, %v230
    %v233 = vsub.f32 1.0, %v231
    %v234 = vmul.f32 %v166, %v232
    %v235 = vmul.f32 %v167, %v233
    %v236 = vadd.f32 %v234, 1.0
    %v237 = vadd.f32 %v235, 1.0
    %v238 = vmul.f32 %v160, %v236
    %v239 = vmul.f32 %v161, %v237
    %v240 = vpack.c.bf16 %v239, %v238
    %v241 = vld [vmem:[%s3] sm:$0xf]
    %v242 = vld [vmem:[%s3 + $0x4] sm:$0xf]
    %v243 = vld [vmem:[%s3 + $0x8] sm:$0xf]
    %v244 = vld [vmem:[%s3 + $0xc] sm:$0xf]
    %v245 = vld [vmem:[%s3 + $0x10] sm:$0xf]
    %v246 = vld [vmem:[%s3 + $0x14] sm:$0xf]
    %v247 = vld [vmem:[%s3 + $0x18] sm:$0xf]
    %v248 = vld [vmem:[%s3 + $0x1c] sm:$0xf]
    %v249 = vld [vmem:[%s3 + $0x20] sm:$0xf]
    %v250 = vld [vmem:[%s3 + $0x24] sm:$0xf]
    %v251 = vld [vmem:[%s3 + $0x28] sm:$0xf]
    %v252 = vld [vmem:[%s3 + $0x2c] sm:$0xf]
    %v253 = vld [vmem:[%s3 + $0x30] sm:$0xf]
    %v254 = vld [vmem:[%s3 + $0x34] sm:$0xf]
    %v255 = vld [vmem:[%s3 + $0x38] sm:$0xf]
    %v256 = vld [vmem:[%s3 + $0x3c] sm:$0xf]
    %v257 = vld [vmem:[#allocation6] sm:$0x1]
    %v259 = vperm.slane %v257, 0
    %v277 = vunpack.c.l.b16 %v241
    %v278 = vunpack.c.l.b16 %v242
    %v279 = vunpack.c.l.b16 %v243
    %v280 = vunpack.c.l.b16 %v244
    %v281 = vunpack.c.l.b16 %v245
    %v282 = vunpack.c.l.b16 %v246
    %v283 = vunpack.c.l.b16 %v247
    %v284 = vunpack.c.l.b16 %v248
    %v285 = vunpack.c.l.b16 %v249
    %v286 = vunpack.c.l.b16 %v250
    %v287 = vunpack.c.l.b16 %v251
    %v288 = vunpack.c.l.b16 %v252
    %v289 = vunpack.c.l.b16 %v253
    %v290 = vunpack.c.l.b16 %v254
    %v291 = vunpack.c.l.b16 %v255
    %v292 = vunpack.c.l.b16 %v256
    %v293 = vpack.c.b16 %v278, %v277
    %v294 = vpack.c.b16 %v280, %v279
    %v295 = vpack.c.b16 %v282, %v281
    %v296 = vpack.c.b16 %v284, %v283
    %v297 = vpack.c.b16 %v286, %v285
    %v298 = vpack.c.b16 %v288, %v287
    %v299 = vpack.c.b16 %v290, %v289
    %v300 = vpack.c.b16 %v292, %v291
    %309 = vmatpush.bf16.msra.mxu0 %v300
    %310 = vmatpush.bf16.msra.mxu0 %v299
    %311 = vmatpush.bf16.msra.mxu0 %v298
    %312 = vmatpush.bf16.msra.mxu0 %v297
    %313 = vmatpush.bf16.msra.mxu0 %v296
    %314 = vmatpush.bf16.msra.mxu0 %v295
    %315 = vmatpush.bf16.msra.mxu0 %v294
    %316 = vmatpush.bf16.msra.mxu0 %v293
    %317 = vmatmul.bf16.gmra.mxu0 %v240
    %v318 = vpop.f32.mrf.mxu0
    %v319 = vadd.f32 %v259, %v318
    %v320 = vpop.f32.mrf.mxu0
    %v321 = vadd.f32 %v259, %v320
    %322 = vdwg.mxu0
    %v323 = vadd.f32 %v99, %v319
    %v324 = vadd.f32 %v100, %v321
    %v325 = vsel %vm142, %v323, 0.0
    %326 = vadd.xlane.f32.xlu0 %v325
    %v327 = vpop.xlane.xlu0 %326
    %v328 = vsel %vm142, %v324, 0.0
    %329 = vadd.xlane.f32.xlu0 %v328
    %v330 = vpop.xlane.xlu0 %329
    %v331 = vrcp.pop 64.0
    %v332 = vmul.f32 64.0, %v331
    %v333 = vsub.f32 1.0, %v332
    %v334 = vmul.f32 %v331, %v333
    %v335 = vadd.f32 %v331, %v334
    %vm336 = vweird.f32 %v331
    %v337 = vsel %vm336, %v331, %v335
    %v338 = vmul.f32 %v327, %v337
    %v339 = vmul.f32 %v330, %v337
    %v340 = vsub.f32 %v323, %v338
    %v341 = vsub.f32 %v324, %v339
    %v342 = vmul.f32 %v340, %v340
    %v343 = vmul.f32 %v341, %v341
    %v344 = vsel %vm142, %v342, 0.0
    %345 = vadd.xlane.f32.xlu0 %v344
    %v346 = vpop.xlane.xlu0 %345
    %v347 = vsel %vm142, %v343, 0.0
    %348 = vadd.xlane.f32.xlu0 %v347
    %v349 = vpop.xlane.xlu0 %348
    %v350 = vmul.f32 %v346, %v337
    %v351 = vmul.f32 %v349, %v337
    %v352 = vadd.f32 %v350, 1e-05
    %v353 = vadd.f32 %v351, 1e-05
    %v354 = vrsqrt.pop %v352
    %v355 = vmul.f32 %v354, %v352
    %v356 = vmul.f32 %v355, %v354
    %v357 = vmul.f32 0.5, %v356
    %v358 = vsub.f32 1.5, %v357
    %v359 = vmul.f32 %v354, %v358
    %vm360 = vweird.f32 %v352
    %vm361 = vweird.f32 %v354
    %vm362 = vmor %vm360, %vm361
    %v363 = vsel %vm362, %v354, %v359
    %v364 = vrsqrt.pop %v353
    %v365 = vmul.f32 %v364, %v353
    %v366 = vmul.f32 %v365, %v364
    %v367 = vmul.f32 0.5, %v366
    %v368 = vsub.f32 1.5, %v367
    %v369 = vmul.f32 %v364, %v368
    %vm370 = vweird.f32 %v353
    %vm371 = vweird.f32 %v364
    %vm372 = vmor %vm370, %vm371
    %v373 = vsel %vm372, %v364, %v369
    %v374 = vmul.f32 %v340, %v363
    %v375 = vmul.f32 %v341, %v373
    %v376 = vld [vmem:[#allocation7] sm:$0x1]
    %v378 = vperm.slane %v376, 0
    %v380 = vmul.f32 %v374, %v378
    %v381 = vmul.f32 %v375, %v378
    %v382 = vld [vmem:[#allocation9] sm:$0x1]
    %v384 = vperm.slane %v382, 0
    %v386 = vadd.f32 %v380, %v384
    %v387 = vadd.f32 %v381, %v384
    %v388 = vpack.c.bf16 %v386, %v386
    %v389 = vpack.c.bf16 %v387, %v387
    %vm390 = vcmask 519168
    %391 = vst.msk [vmem:[%s7] sm:$0xf] %vm390, %v388
    %392 = vst.msk [vmem:[%s7 + $0x4] sm:$0xf] %vm390, %v389
    // Predicated region
    $region50: #{controlnet_forward.14} parent=1 // pred_check
      _
    $region51: #{controlnet_forward.14} parent=1 // pred_check_branch
      %394 = sbr.rel (0) target = $region53
    $region52: #{controlnet_forward.14} parent=1 // pred_region
      _
    $region53: #{controlnet_forward.14} parent=1 // pred_fallthru
      _
    // Predicated region
    $region54: #{controlnet_forward.14} parent=1 // pred_check
      _
    $region55: #{controlnet_forward.14} parent=1 // pred_check_branch
      %396 = sbr.rel (0) target = $region57
    $region56: #{controlnet_forward.14} parent=1 // pred_region
      _
    $region57: #{controlnet_forward.14} parent=1 // pred_fallthru
      _
    %397 = vsyncpa [#allocation3], 1
    %398 = vsyncpa [#allocation5], 1
    %399 = vsyncpa [#allocation8], 1

// kernel: controlnet_forward.21
$region0: #{controlnet_forward.21}
  #allocation0 [shape = 'u32[]', space=smem, size = 0x4, offset = 0x4, fixed_abs, tag = 'smem constant byte address 0x4 - core index']
  #allocation1 [shape = 'u32[72,128]{1,0:T(1,128)}', space=vmem, size = 0x9000, scoped, tag = 'internal scratch']
  %s0 = inlined_call_operand.vmem [shape: bf16[2,32], index: 0, kind: input, shape index: {}]
  %s1 = inlined_call_operand.vmem [shape: f32[2,32], index: 1, kind: input, shape index: {}]
  %s2 = inlined_call_operand.hbm [shape: bf16[32,32], index: 2, kind: input, shape index: {}]
  %s3 = inlined_call_operand.hbm [shape: f32[1,32], index: 3, kind: input, shape index: {}]
  %s4 = inlined_call_operand.hbm [shape: f32[2,32], index: 4, kind: output, shape index: {}]
  %s5 = sld [smem:[#allocation0]]
  $region34: #{controlnet_forward.21} parent=0
    _
  %s7 = ssub.s32 1, %s5
  %s8 = scalar_select 0, %s7, %s5
  $region1: #{controlnet_forward.21} parent=0
    #allocation2 [shape = 'u8[8192]{0}', space=vmem, size = 0x2000, scoped, tag = 'input window, operand 2, single buffered']
    #allocation3 [shape = 's32[1]{0}', space=sflag, size = 0x4, scoped, tag = 'scoped memory for controlnet_forward.21']
    #allocation4 [shape = 's32[1]{0}', space=sflag, size = 0x4, scoped, tag = 'scoped memory for controlnet_forward.21']
    #allocation5 [shape = 'u8[512]{0}', space=vmem, size = 0x400, scoped, tag = 'input window, operand 3, single buffered']
    #allocation6 [shape = 's32[1]{0}', space=sflag, size = 0x4, scoped, tag = 'scoped memory for controlnet_forward.21']
    #allocation7 [shape = 'u8[1024]{0}', space=vmem, size = 0x400, scoped, tag = 'output window, operand 0, single buffered']
    %9 = vsyncpa [#allocation3], 0
    %10 = vsyncpa [#allocation6], 0
    %11 = vsyncpa [#allocation4], 0
    // Predicated region
    $region2: #{controlnet_forward.21} parent=1 // pred_check
      _
    $region3: #{controlnet_forward.21} parent=1 // pred_check_branch
      %13 = sbr.rel (0) target = $region5
    $region4: #{controlnet_forward.21} parent=1 // pred_region
      _
    $region5: #{controlnet_forward.21} parent=1 // pred_fallthru
      _
    // Predicated region
    $region6: #{controlnet_forward.21} parent=1 // pred_check
      _
    $region7: #{controlnet_forward.21} parent=1 // pred_check_branch
      %15 = sbr.rel (0) target = $region9
    $region8: #{controlnet_forward.21} parent=1 // pred_region
      _
    $region9: #{controlnet_forward.21} parent=1 // pred_fallthru
      _
    // Predicated region
    $region10: #{controlnet_forward.21} parent=1 // pred_check
      _
    $region11: #{controlnet_forward.21} parent=1 // pred_check_branch
      %17 = sbr.rel (0) target = $region13
    $region12: #{controlnet_forward.21} parent=1 // pred_region
      %19 = vsyncadd [#allocation3], 0
      %s20 = sshll.u32 %s2, 4
      %s21 = int_to_ptr.hbm [resolvable:$true] %s20
      %s22 = sshll.u32 [#allocation2], 4
      %s23 = int_to_ptr.vmem [resolvable:$true] %s22
      %28 = dma.hbm_to_vmem [thread:$0]  %s21, 256, %s23, [#allocation3], 64, 64, 4
    $region13: #{controlnet_forward.21} parent=1 // pred_fallthru
      _
    // Predicated region
    $region14: #{controlnet_forward.21} parent=1 // pred_check
      _
    $region15: #{controlnet_forward.21} parent=1 // pred_check_branch
      %30 = sbr.rel (0) target = $region17
    $region16: #{controlnet_forward.21} parent=1 // pred_region
      %32 = vsyncadd [#allocation6], 0
      %s34 = sshll.u32 %s3, 4
      %s35 = int_to_ptr.hbm [resolvable:$true] %s34
      %s36 = sshll.u32 [#allocation5], 4
      %s37 = int_to_ptr.vmem [resolvable:$true] %s36
      %39 = dma.hbm_to_vmem [thread:$0]  %s35, 16, %s37, [#allocation6]
    $region17: #{controlnet_forward.21} parent=1 // pred_fallthru
      _
    // Predicated region
    $region18: #{controlnet_forward.21} parent=1 // pred_check
      _
    $region19: #{controlnet_forward.21} parent=1 // pred_check_branch
      %41 = sbr.rel (0) target = $region21
    $region20: #{controlnet_forward.21} parent=1 // pred_region
      %43 = dma.done [#allocation3], 256
    $region21: #{controlnet_forward.21} parent=1 // pred_fallthru
      _
    // Predicated region
    $region22: #{controlnet_forward.21} parent=1 // pred_check
      _
    $region23: #{controlnet_forward.21} parent=1 // pred_check_branch
      %45 = sbr.rel (0) target = $region25
    $region24: #{controlnet_forward.21} parent=1 // pred_region
      %47 = dma.done [#allocation6], 16
    $region25: #{controlnet_forward.21} parent=1 // pred_fallthru
      _
    %v49 = vld [vmem:[%s0] sm:$0x1]
    %v50 = vunpack.c.l.bf16 %v49
    %v51 = vld [vmem:[%s1] sm:$0x3]
    %v52 = vadd.f32 %v50, %v51
    %v53 = vpack.c.bf16 %v52, %v52
    %v54 = vld [vmem:[#allocation2] sm:$0xf]
    %v55 = vld [vmem:[#allocation2 + $0x4] sm:$0xf]
    %v56 = vld [vmem:[#allocation2 + $0x8] sm:$0xf]
    %v57 = vld [vmem:[#allocation2 + $0xc] sm:$0xf]
    %v58 = vld [vmem:[#allocation5] sm:$0x1]
    %v60 = vperm.slane %v58, 0
    %v66 = vunpack.c.l.b16 %v54
    %v67 = vunpack.c.l.b16 %v55
    %v68 = vunpack.c.l.b16 %v56
    %v69 = vunpack.c.l.b16 %v57
    %v70 = vpack.c.b16 %v67, %v66
    %v71 = vpack.c.b16 %v69, %v68
    %vm74 = vcmask 261120
    %v76 = vsel %vm74, %v53, 0
    %78 = vmatpush.bf16.msra.mxu0 0
    %79 = vmatpush.bf16.msra.mxu0 0
    %80 = vmatpush.bf16.msra.mxu0 0
    %81 = vmatpush.bf16.msra.mxu0 0
    %82 = vmatpush.bf16.msra.mxu0 0
    %83 = vmatpush.bf16.msra.mxu0 0
    %84 = vmatpush.bf16.msra.mxu0 %v71
    %85 = vmatpush.bf16.msra.mxu0 %v70
    %86 = vmatmul.bf16.gmra.mxu0 %v76
    %v87 = vpop.f32.mrf.mxu0
    %v88 = vadd.f32 %v60, %v87
    %v89 = vpop.f32.mrf.mxu0
    %90 = vdwg.mxu0
    %vm91 = vcmask 254976
    %92 = vst.msk [vmem:[#allocation7] sm:$0x3] %vm91, %v88
    // Predicated region
    $region26: #{controlnet_forward.21} parent=1 // pred_check
      _
    $region27: #{controlnet_forward.21} parent=1 // pred_check_branch
      %94 = sbr.rel (0) target = $region29
    $region28: #{controlnet_forward.21} parent=1 // pred_region
      %96 = vsyncadd [#allocation4], 0
      %s98 = sshll.u32 [#allocation7], 4
      %s99 = int_to_ptr.vmem [resolvable:$true] %s98
      %s100 = sshll.u32 %s4, 4
      %s101 = int_to_ptr.hbm [resolvable:$true] %s100
      %103 = dma.vmem_to_hbm [thread:$0]  %s99, 32, %s101, [#allocation4]
    $region29: #{controlnet_forward.21} parent=1 // pred_fallthru
      _
    // Predicated region
    $region30: #{controlnet_forward.21} parent=1 // pred_check
      _
    $region31: #{controlnet_forward.21} parent=1 // pred_check_branch
      %105 = sbr.rel (0) target = $region33
    $region32: #{controlnet_forward.21} parent=1 // pred_region
      %107 = dma.done [#allocation4], 32
    $region33: #{controlnet_forward.21} parent=1 // pred_fallthru
      _
    %108 = vsyncpa [#allocation3], 1
    %109 = vsyncpa [#allocation6], 1
    %110 = vsyncpa [#allocation4], 1

// kernel: controlnet_forward.17
$region0: #{controlnet_forward.17}
  #allocation0 [shape = 'u32[]', space=smem, size = 0x4, offset = 0x4, fixed_abs, tag = 'smem constant byte address 0x4 - core index']
  #allocation1 [shape = 'u32[72,128]{1,0:T(1,128)}', space=vmem, size = 0x9000, scoped, tag = 'internal scratch']
  #allocation2 [shape = 'f32[1,1]{1,0:T(1,128)S(6)}', space=smem, size = 0x200, scoped, tag = 'scoped memory for controlnet_forward.17']
  %s0 = inlined_call_operand.vmem [shape: bf16[8,2,64], index: 0, kind: input, shape index: {}]
  %s1 = inlined_call_operand.vmem [shape: bf16[64,32], index: 1, kind: input, shape index: {}]
  %s2 = inlined_call_operand.hbm [shape: f32[1,32], index: 2, kind: input, shape index: {}]
  %s3 = inlined_call_operand.hbm [shape: f32[1,8], index: 3, kind: input, shape index: {}]
  %s4 = inlined_call_operand.<no memory space> [shape: f32[1,1], index: 4, kind: input, shape index: {}]
  %s5 = inlined_call_operand.hbm [shape: bf16[32,32], index: 5, kind: input, shape index: {}]
  %s6 = inlined_call_operand.hbm [shape: f32[1,32], index: 6, kind: input, shape index: {}]
  %s7 = inlined_call_operand.vmem [shape: f32[2,32], index: 7, kind: output, shape index: {}]
  %s8 = sld [smem:[#allocation0]]
  $region54: #{controlnet_forward.17} parent=0
    _
  %s10 = ssub.s32 1, %s8
  %s11 = scalar_select 0, %s10, %s8
  %12 = sst [smem:[#allocation2]] %s4
  $region1: #{controlnet_forward.17} parent=0
    #allocation3 [shape = 'u8[512]{0}', space=vmem, size = 0x400, scoped, tag = 'input window, operand 2, single buffered']
    #allocation4 [shape = 's32[1]{0}', space=sflag, size = 0x4, scoped, tag = 'scoped memory for controlnet_forward.17']
    #allocation5 [shape = 's32[1]{0}', space=sflag, size = 0x4, scoped, tag = 'scoped memory for controlnet_forward.17']
    #allocation6 [shape = 'u8[512]{0}', space=smem, size = 0x200, scoped, tag = 'input window, operand 3, single buffered']
    #allocation7 [shape = 'u8[8192]{0}', space=vmem, size = 0x2000, scoped, tag = 'input window, operand 5, single buffered']
    #allocation8 [shape = 's32[1]{0}', space=sflag, size = 0x4, scoped, tag = 'scoped memory for controlnet_forward.17']
    #allocation9 [shape = 'u8[512]{0}', space=vmem, size = 0x400, scoped, tag = 'input window, operand 6, single buffered']
    %13 = vsyncpa [#allocation4], 0
    %14 = vsyncpa [#allocation5], 0
    %15 = vsyncpa [#allocation8], 0
    // Predicated region
    $region2: #{controlnet_forward.17} parent=1 // pred_check
      _
    $region3: #{controlnet_forward.17} parent=1 // pred_check_branch
      %17 = sbr.rel (0) target = $region5
    $region4: #{controlnet_forward.17} parent=1 // pred_region
      _
    $region5: #{controlnet_forward.17} parent=1 // pred_fallthru
      _
    // Predicated region
    $region6: #{controlnet_forward.17} parent=1 // pred_check
      _
    $region7: #{controlnet_forward.17} parent=1 // pred_check_branch
      %19 = sbr.rel (0) target = $region9
    $region8: #{controlnet_forward.17} parent=1 // pred_region
      _
    $region9: #{controlnet_forward.17} parent=1 // pred_fallthru
      _
    // Predicated region
    $region10: #{controlnet_forward.17} parent=1 // pred_check
      _
    $region11: #{controlnet_forward.17} parent=1 // pred_check_branch
      %21 = sbr.rel (0) target = $region13
    $region12: #{controlnet_forward.17} parent=1 // pred_region
      %23 = vsyncadd [#allocation4], 0
      %s25 = sshll.u32 %s2, 4
      %s26 = int_to_ptr.hbm [resolvable:$true] %s25
      %s27 = sshll.u32 [#allocation3], 4
      %s28 = int_to_ptr.vmem [resolvable:$true] %s27
      %30 = dma.hbm_to_vmem [thread:$0]  %s26, 16, %s28, [#allocation4]
    $region13: #{controlnet_forward.17} parent=1 // pred_fallthru
      _
    // Predicated region
    $region14: #{controlnet_forward.17} parent=1 // pred_check
      _
    $region15: #{controlnet_forward.17} parent=1 // pred_check_branch
      %32 = sbr.rel (0) target = $region17
    $region16: #{controlnet_forward.17} parent=1 // pred_region
      %34 = vsyncadd [#allocation5], 0
      %s36 = sshll.u32 %s3, 4
      %s37 = int_to_ptr.hbm [resolvable:$true] %s36
      %39 = dma.hbm_to_smem %s37, 16, [#allocation6], [#allocation5]
    $region17: #{controlnet_forward.17} parent=1 // pred_fallthru
      _
    // Predicated region
    $region18: #{controlnet_forward.17} parent=1 // pred_check
      _
    $region19: #{controlnet_forward.17} parent=1 // pred_check_branch
      %41 = sbr.rel (0) target = $region21
    $region20: #{controlnet_forward.17} parent=1 // pred_region
      _
    $region21: #{controlnet_forward.17} parent=1 // pred_fallthru
      _
    // Predicated region
    $region22: #{controlnet_forward.17} parent=1 // pred_check
      _
    $region23: #{controlnet_forward.17} parent=1 // pred_check_branch
      %43 = sbr.rel (0) target = $region25
    $region24: #{controlnet_forward.17} parent=1 // pred_region
      %45 = vsyncadd [#allocation8], 0
      %s46 = sshll.u32 %s5, 4
      %s47 = int_to_ptr.hbm [resolvable:$true] %s46
      %s48 = sshll.u32 [#allocation7], 4
      %s49 = int_to_ptr.vmem [resolvable:$true] %s48
      %54 = dma.hbm_to_vmem [thread:$0]  %s47, 256, %s49, [#allocation8], 64, 64, 4
    $region25: #{controlnet_forward.17} parent=1 // pred_fallthru
      _
    // Predicated region
    $region26: #{controlnet_forward.17} parent=1 // pred_check
      _
    $region27: #{controlnet_forward.17} parent=1 // pred_check_branch
      %56 = sbr.rel (0) target = $region29
    $region28: #{controlnet_forward.17} parent=1 // pred_region
      %58 = vsyncadd [#allocation8], 0
      %s60 = sshll.u32 %s6, 4
      %s61 = int_to_ptr.hbm [resolvable:$true] %s60
      %s62 = sshll.u32 [#allocation9], 4
      %s63 = int_to_ptr.vmem [resolvable:$true] %s62
      %65 = dma.hbm_to_vmem [thread:$0]  %s61, 16, %s63, [#allocation8]
    $region29: #{controlnet_forward.17} parent=1 // pred_fallthru
      _
    // Predicated region
    $region30: #{controlnet_forward.17} parent=1 // pred_check
      _
    $region31: #{controlnet_forward.17} parent=1 // pred_check_branch
      %67 = sbr.rel (0) target = $region33
    $region32: #{controlnet_forward.17} parent=1 // pred_region
      %69 = dma.done [#allocation4], 16
    $region33: #{controlnet_forward.17} parent=1 // pred_fallthru
      _
    // Predicated region
    $region34: #{controlnet_forward.17} parent=1 // pred_check
      _
    $region35: #{controlnet_forward.17} parent=1 // pred_check_branch
      %71 = sbr.rel (0) target = $region37
    $region36: #{controlnet_forward.17} parent=1 // pred_region
      %73 = dma.done [#allocation5], 16
    $region37: #{controlnet_forward.17} parent=1 // pred_fallthru
      _
    // Predicated region
    $region38: #{controlnet_forward.17} parent=1 // pred_check
      _
    $region39: #{controlnet_forward.17} parent=1 // pred_check_branch
      %75 = sbr.rel (0) target = $region41
    $region40: #{controlnet_forward.17} parent=1 // pred_region
      %77 = dma.done [#allocation8], 256
    $region41: #{controlnet_forward.17} parent=1 // pred_fallthru
      _
    // Predicated region
    $region42: #{controlnet_forward.17} parent=1 // pred_check
      _
    $region43: #{controlnet_forward.17} parent=1 // pred_check_branch
      %79 = sbr.rel (0) target = $region45
    $region44: #{controlnet_forward.17} parent=1 // pred_region
      %81 = dma.done [#allocation8], 16
    $region45: #{controlnet_forward.17} parent=1 // pred_fallthru
      _
    %82 = sfence
    %v84 = vld [vmem:[%s0] sm:$0x1]
    %v85 = vld [vmem:[%s1] sm:$0xf]
    %v86 = vld [vmem:[%s1 + $0x4] sm:$0xf]
    %v87 = vld [vmem:[%s1 + $0x8] sm:$0xf]
    %v88 = vld [vmem:[%s1 + $0xc] sm:$0xf]
    %v89 = vld [vmem:[%s1 + $0x10] sm:$0xf]
    %v90 = vld [vmem:[%s1 + $0x14] sm:$0xf]
    %v91 = vld [vmem:[%s1 + $0x18] sm:$0xf]
    %v92 = vld [vmem:[%s1 + $0x1c] sm:$0xf]
    %v93 = vld [vmem:[#allocation3] sm:$0x1]
    %v95 = vperm.slane %v93, 0
    %v105 = vunpack.c.l.b16 %v85
    %v106 = vunpack.c.l.b16 %v86
    %v107 = vunpack.c.l.b16 %v87
    %v108 = vunpack.c.l.b16 %v88
    %v109 = vunpack.c.l.b16 %v89
    %v110 = vunpack.c.l.b16 %v90
    %v111 = vunpack.c.l.b16 %v91
    %v112 = vunpack.c.l.b16 %v92
    %v113 = vpack.c.b16 %v106, %v105
    %v114 = vpack.c.b16 %v108, %v107
    %v115 = vpack.c.b16 %v110, %v109
    %v116 = vpack.c.b16 %v112, %v111
    %vm121 = vcmask 523264
    %v123 = vsel %vm121, %v84, 0
    %125 = vmatpush.bf16.msra.mxu0 0
    %126 = vmatpush.bf16.msra.mxu0 0
    %127 = vmatpush.bf16.msra.mxu0 0
    %128 = vmatpush.bf16.msra.mxu0 0
    %129 = vmatpush.bf16.msra.mxu0 %v116
    %130 = vmatpush.bf16.msra.mxu0 %v115
    %131 = vmatpush.bf16.msra.mxu0 %v114
    %132 = vmatpush.bf16.msra.mxu0 %v113
    %133 = vmatmul.bf16.gmra.mxu0 %v123
    %v134 = vpop.f32.mrf.mxu0
    %v135 = vadd.f32 %v95, %v134
    %v136 = vpop.f32.mrf.mxu0
    %137 = vdwg.mxu0
    %s138 = sld [smem:[#allocation6]]
    %v139 = vstv %s138
    %v140 = vmul.f32 %v139, %v135
    %v141 = vadd.f32 %v140, 0.0
    %s142 = scalar_lea.vmem %s0, 1
    %v143 = vld [vmem:[%s142] sm:$0x1]
    %v145 = vsel %vm121, %v143, 0
    %147 = vmatpush.bf16.msra.mxu0 0
    %148 = vmatpush.bf16.msra.mxu0 0
    %149 = vmatpush.bf16.msra.mxu0 0
    %150 = vmatpush.bf16.msra.mxu0 0
    %151 = vmatpush.bf16.msra.mxu0 %v116
    %152 = vmatpush.bf16.msra.mxu0 %v115
    %153 = vmatpush.bf16.msra.mxu0 %v114
    %154 = vmatpush.bf16.msra.mxu0 %v113
    %155 = vmatmul.bf16.gmra.mxu0 %v145
    %v156 = vpop.f32.mrf.mxu0
    %v157 = vadd.f32 %v95, %v156
    %v158 = vpop.f32.mrf.mxu0
    %159 = vdwg.mxu0
    %s160 = sld [smem:[#allocation6 + $0x1]]
    %v161 = vstv %s160
    %v162 = vmul.f32 %v161, %v157
    %v163 = vadd.f32 %v141, %v162
    %s164 = scalar_lea.vmem %s0, 2
    %v165 = vld [vmem:[%s164] sm:$0x1]
    %v167 = vsel %vm121, %v165, 0
    %169 = vmatpush.bf16.msra.mxu0 0
    %170 = vmatpush.bf16.msra.mxu0 0
    %171 = vmatpush.bf16.msra.mxu0 0
    %172 = vmatpush.bf16.msra.mxu0 0
    %173 = vmatpush.bf16.msra.mxu0 %v116
    %174 = vmatpush.bf16.msra.mxu0 %v115
    %175 = vmatpush.bf16.msra.mxu0 %v114
    %176 = vmatpush.bf16.msra.mxu0 %v113
    %177 = vmatmul.bf16.gmra.mxu0 %v167
    %v178 = vpop.f32.mrf.mxu0
    %v179 = vadd.f32 %v95, %v178
    %v180 = vpop.f32.mrf.mxu0
    %181 = vdwg.mxu0
    %s182 = sld [smem:[#allocation6 + $0x2]]
    %v183 = vstv %s182
    %v184 = vmul.f32 %v183, %v179
    %v185 = vadd.f32 %v163, %v184
    %s186 = scalar_lea.vmem %s0, 3
    %v187 = vld [vmem:[%s186] sm:$0x1]
    %v189 = vsel %vm121, %v187, 0
    %191 = vmatpush.bf16.msra.mxu0 0
    %192 = vmatpush.bf16.msra.mxu0 0
    %193 = vmatpush.bf16.msra.mxu0 0
    %194 = vmatpush.bf16.msra.mxu0 0
    %195 = vmatpush.bf16.msra.mxu0 %v116
    %196 = vmatpush.bf16.msra.mxu0 %v115
    %197 = vmatpush.bf16.msra.mxu0 %v114
    %198 = vmatpush.bf16.msra.mxu0 %v113
    %199 = vmatmul.bf16.gmra.mxu0 %v189
    %v200 = vpop.f32.mrf.mxu0
    %v201 = vadd.f32 %v95, %v200
    %v202 = vpop.f32.mrf.mxu0
    %203 = vdwg.mxu0
    %s204 = sld [smem:[#allocation6 + $0x3]]
    %v205 = vstv %s204
    %v206 = vmul.f32 %v205, %v201
    %v207 = vadd.f32 %v185, %v206
    %s208 = scalar_lea.vmem %s0, 4
    %v209 = vld [vmem:[%s208] sm:$0x1]
    %v211 = vsel %vm121, %v209, 0
    %213 = vmatpush.bf16.msra.mxu0 0
    %214 = vmatpush.bf16.msra.mxu0 0
    %215 = vmatpush.bf16.msra.mxu0 0
    %216 = vmatpush.bf16.msra.mxu0 0
    %217 = vmatpush.bf16.msra.mxu0 %v116
    %218 = vmatpush.bf16.msra.mxu0 %v115
    %219 = vmatpush.bf16.msra.mxu0 %v114
    %220 = vmatpush.bf16.msra.mxu0 %v113
    %221 = vmatmul.bf16.gmra.mxu0 %v211
    %v222 = vpop.f32.mrf.mxu0
    %v223 = vadd.f32 %v95, %v222
    %v224 = vpop.f32.mrf.mxu0
    %225 = vdwg.mxu0
    %s226 = sld [smem:[#allocation6 + $0x4]]
    %v227 = vstv %s226
    %v228 = vmul.f32 %v227, %v223
    %v229 = vadd.f32 %v207, %v228
    %s230 = scalar_lea.vmem %s0, 5
    %v231 = vld [vmem:[%s230] sm:$0x1]
    %v233 = vsel %vm121, %v231, 0
    %235 = vmatpush.bf16.msra.mxu0 0
    %236 = vmatpush.bf16.msra.mxu0 0
    %237 = vmatpush.bf16.msra.mxu0 0
    %238 = vmatpush.bf16.msra.mxu0 0
    %239 = vmatpush.bf16.msra.mxu0 %v116
    %240 = vmatpush.bf16.msra.mxu0 %v115
    %241 = vmatpush.bf16.msra.mxu0 %v114
    %242 = vmatpush.bf16.msra.mxu0 %v113
    %243 = vmatmul.bf16.gmra.mxu0 %v233
    %v244 = vpop.f32.mrf.mxu0
    %v245 = vadd.f32 %v95, %v244
    %v246 = vpop.f32.mrf.mxu0
    %247 = vdwg.mxu0
    %s248 = sld [smem:[#allocation6 + $0x5]]
    %v249 = vstv %s248
    %v250 = vmul.f32 %v249, %v245
    %v251 = vadd.f32 %v229, %v250
    %s252 = scalar_lea.vmem %s0, 6
    %v253 = vld [vmem:[%s252] sm:$0x1]
    %v255 = vsel %vm121, %v253, 0
    %257 = vmatpush.bf16.msra.mxu0 0
    %258 = vmatpush.bf16.msra.mxu0 0
    %259 = vmatpush.bf16.msra.mxu0 0
    %260 = vmatpush.bf16.msra.mxu0 0
    %261 = vmatpush.bf16.msra.mxu0 %v116
    %262 = vmatpush.bf16.msra.mxu0 %v115
    %263 = vmatpush.bf16.msra.mxu0 %v114
    %264 = vmatpush.bf16.msra.mxu0 %v113
    %265 = vmatmul.bf16.gmra.mxu0 %v255
    %v266 = vpop.f32.mrf.mxu0
    %v267 = vadd.f32 %v95, %v266
    %v268 = vpop.f32.mrf.mxu0
    %269 = vdwg.mxu0
    %s270 = sld [smem:[#allocation6 + $0x6]]
    %v271 = vstv %s270
    %v272 = vmul.f32 %v271, %v267
    %v273 = vadd.f32 %v251, %v272
    %s274 = scalar_lea.vmem %s0, 7
    %v275 = vld [vmem:[%s274] sm:$0x1]
    %v277 = vsel %vm121, %v275, 0
    %279 = vmatpush.bf16.msra.mxu0 0
    %280 = vmatpush.bf16.msra.mxu0 0
    %281 = vmatpush.bf16.msra.mxu0 0
    %282 = vmatpush.bf16.msra.mxu0 0
    %283 = vmatpush.bf16.msra.mxu0 %v116
    %284 = vmatpush.bf16.msra.mxu0 %v115
    %285 = vmatpush.bf16.msra.mxu0 %v114
    %286 = vmatpush.bf16.msra.mxu0 %v113
    %287 = vmatmul.bf16.gmra.mxu0 %v277
    %v288 = vpop.f32.mrf.mxu0
    %v289 = vadd.f32 %v95, %v288
    %v290 = vpop.f32.mrf.mxu0
    %291 = vdwg.mxu0
    %s292 = sld [smem:[#allocation6 + $0x7]]
    %v293 = vstv %s292
    %v294 = vmul.f32 %v293, %v289
    %v295 = vadd.f32 %v273, %v294
    %s296 = sld [smem:[#allocation2]]
    %v297 = vstv %s296
    %v298 = vadd.f32 %v295, %v297
    %v299 = vpack.c.bf16 %v298, %v298
    %v300 = vld [vmem:[#allocation7] sm:$0xf]
    %v301 = vld [vmem:[#allocation7 + $0x4] sm:$0xf]
    %v302 = vld [vmem:[#allocation7 + $0x8] sm:$0xf]
    %v303 = vld [vmem:[#allocation7 + $0xc] sm:$0xf]
    %v304 = vld [vmem:[#allocation9] sm:$0x1]
    %v306 = vperm.slane %v304, 0
    %v312 = vunpack.c.l.b16 %v300
    %v313 = vunpack.c.l.b16 %v301
    %v314 = vunpack.c.l.b16 %v302
    %v315 = vunpack.c.l.b16 %v303
    %v316 = vpack.c.b16 %v313, %v312
    %v317 = vpack.c.b16 %v315, %v314
    %vm320 = vcmask 261120
    %v322 = vsel %vm320, %v299, 0
    %324 = vmatpush.bf16.msra.mxu0 0
    %325 = vmatpush.bf16.msra.mxu0 0
    %326 = vmatpush.bf16.msra.mxu0 0
    %327 = vmatpush.bf16.msra.mxu0 0
    %328 = vmatpush.bf16.msra.mxu0 0
    %329 = vmatpush.bf16.msra.mxu0 0
    %330 = vmatpush.bf16.msra.mxu0 %v317
    %331 = vmatpush.bf16.msra.mxu0 %v316
    %332 = vmatmul.bf16.gmra.mxu0 %v322
    %v333 = vpop.f32.mrf.mxu0
    %v334 = vadd.f32 %v306, %v333
    %v335 = vpop.f32.mrf.mxu0
    %336 = vdwg.mxu0
    %vm337 = vcmask 254976
    %338 = vst.msk [vmem:[%s7] sm:$0x3] %vm337, %v334
    // Predicated region
    $region46: #{controlnet_forward.17} parent=1 // pred_check
      _
    $region47: #{controlnet_forward.17} parent=1 // pred_check_branch
      %340 = sbr.rel (0) target = $region49
    $region48: #{controlnet_forward.17} parent=1 // pred_region
      _
    $region49: #{controlnet_forward.17} parent=1 // pred_fallthru
      _
    // Predicated region
    $region50: #{controlnet_forward.17} parent=1 // pred_check
      _
    $region51: #{controlnet_forward.17} parent=1 // pred_check_branch
      %342 = sbr.rel (0) target = $region53
    $region52: #{controlnet_forward.17} parent=1 // pred_region
      _
    $region53: #{controlnet_forward.17} parent=1 // pred_fallthru
      _
    %343 = vsyncpa [#allocation4], 1
    %344 = vsyncpa [#allocation8], 1
    %345 = vsyncpa [#allocation5], 1

// kernel: controlnet_forward.13
$region0: #{controlnet_forward.13}
  #allocation0 [shape = 'u32[]', space=smem, size = 0x4, offset = 0x4, fixed_abs, tag = 'smem constant byte address 0x4 - core index']
  #allocation1 [shape = 'u32[72,128]{1,0:T(1,128)}', space=vmem, size = 0x9000, scoped, tag = 'internal scratch']
  %s0 = inlined_call_operand.vmem [shape: bf16[8,2,64], index: 0, kind: input, shape index: {}]
  %s1 = inlined_call_operand.hbm [shape: bf16[64,192], index: 1, kind: input, shape index: {}]
  %s2 = inlined_call_operand.hbm [shape: f32[1,192], index: 2, kind: input, shape index: {}]
  %s3 = inlined_call_operand.hbm [shape: bf16[64,64], index: 3, kind: input, shape index: {}]
  %s4 = inlined_call_operand.hbm [shape: f32[1,64], index: 4, kind: input, shape index: {}]
  %s5 = inlined_call_operand.hbm [shape: f32[1,64], index: 5, kind: input, shape index: {}]
  %s6 = inlined_call_operand.hbm [shape: f32[1,64], index: 6, kind: input, shape index: {}]
  %s7 = inlined_call_operand.vmem [shape: bf16[8,2,64], index: 7, kind: output, shape index: {}]
  %s8 = sld [smem:[#allocation0]]
  $region62: #{controlnet_forward.13} parent=0
    _
  %s10 = ssub.s32 1, %s8
  %s11 = scalar_select 0, %s10, %s8
  $region1: #{controlnet_forward.13} parent=0
    #allocation2 [shape = 'u8[32768]{0}', space=vmem, size = 0x8000, scoped, tag = 'input window, operand 1, single buffered']
    #allocation3 [shape = 's32[1]{0}', space=sflag, size = 0x4, scoped, tag = 'scoped memory for controlnet_forward.13']
    #allocation4 [shape = 'u8[1024]{0}', space=vmem, size = 0x400, scoped, tag = 'input window, operand 2, single buffered']
    #allocation5 [shape = 's32[1]{0}', space=sflag, size = 0x4, scoped, tag = 'scoped memory for controlnet_forward.13']
    #allocation6 [shape = 'u8[16384]{0}', space=vmem, size = 0x4000, scoped, tag = 'input window, operand 3, single buffered']
    #allocation7 [shape = 'u8[512]{0}', space=vmem, size = 0x400, scoped, tag = 'input window, operand 4, single buffered']
    #allocation8 [shape = 's32[1]{0}', space=sflag, size = 0x4, scoped, tag = 'scoped memory for controlnet_forward.13']
    #allocation9 [shape = 'u8[512]{0}', space=vmem, size = 0x400, scoped, tag = 'input window, operand 5, single buffered']
    #allocation10 [shape = 'u8[512]{0}', space=vmem, size = 0x400, scoped, tag = 'input window, operand 6, single buffered']
    #allocation11 [shape = 's32[1]{0}', space=sflag, size = 0x4, scoped, tag = 'scoped memory for controlnet_forward.13']
    %12 = vsyncpa [#allocation3], 0
    %13 = vsyncpa [#allocation5], 0
    %14 = vsyncpa [#allocation8], 0
    %15 = vsyncpa [#allocation11], 0
    // Predicated region
    $region2: #{controlnet_forward.13} parent=1 // pred_check
      _
    $region3: #{controlnet_forward.13} parent=1 // pred_check_branch
      %17 = sbr.rel (0) target = $region5
    $region4: #{controlnet_forward.13} parent=1 // pred_region
      _
    $region5: #{controlnet_forward.13} parent=1 // pred_fallthru
      _
    // Predicated region
    $region6: #{controlnet_forward.13} parent=1 // pred_check
      _
    $region7: #{controlnet_forward.13} parent=1 // pred_check_branch
      %19 = sbr.rel (0) target = $region9
    $region8: #{controlnet_forward.13} parent=1 // pred_region
      %21 = vsyncadd [#allocation3], 0
      %s22 = sshll.u32 %s1, 4
      %s23 = int_to_ptr.hbm [resolvable:$true] %s22
      %s24 = sshll.u32 [#allocation2], 4
      %s25 = int_to_ptr.vmem [resolvable:$true] %s24
      %30 = dma.hbm_to_vmem [thread:$0]  %s23, 1024, %s25, [#allocation3], 128, 128, 8
    $region9: #{controlnet_forward.13} parent=1 // pred_fallthru
      _
    // Predicated region
    $region10: #{controlnet_forward.13} parent=1 // pred_check
      _
    $region11: #{controlnet_forward.13} parent=1 // pred_check_branch
      %32 = sbr.rel (0) target = $region13
    $region12: #{controlnet_forward.13} parent=1 // pred_region
      %34 = vsyncadd [#allocation5], 0
      %s36 = sshll.u32 %s2, 4
      %s37 = int_to_ptr.hbm [resolvable:$true] %s36
      %s38 = sshll.u32 [#allocation4], 4
      %s39 = int_to_ptr.vmem [resolvable:$true] %s38
      %41 = dma.hbm_to_vmem [thread:$0]  %s37, 32, %s39, [#allocation5]
    $region13: #{controlnet_forward.13} parent=1 // pred_fallthru
      _
    // Predicated region
    $region14: #{controlnet_forward.13} parent=1 // pred_check
      _
    $region15: #{controlnet_forward.13} parent=1 // pred_check_branch
      %43 = sbr.rel (0) target = $region17
    $region16: #{controlnet_forward.13} parent=1 // pred_region
      %45 = vsyncadd [#allocation5], 0
      %s46 = sshll.u32 %s3, 4
      %s47 = int_to_ptr.hbm [resolvable:$true] %s46
      %s48 = sshll.u32 [#allocation6], 4
      %s49 = int_to_ptr.vmem [resolvable:$true] %s48
      %54 = dma.hbm_to_vmem [thread:$0]  %s47, 512, %s49, [#allocation5], 64, 64, 4
    $region17: #{controlnet_forward.13} parent=1 // pred_fallthru
      _
    // Predicated region
    $region18: #{controlnet_forward.13} parent=1 // pred_check
      _
    $region19: #{controlnet_forward.13} parent=1 // pred_check_branch
      %56 = sbr.rel (0) target = $region21
    $region20: #{controlnet_forward.13} parent=1 // pred_region
      %58 = vsyncadd [#allocation8], 0
      %s60 = sshll.u32 %s4, 4
      %s61 = int_to_ptr.hbm [resolvable:$true] %s60
      %s62 = sshll.u32 [#allocation7], 4
      %s63 = int_to_ptr.vmem [resolvable:$true] %s62
      %65 = dma.hbm_to_vmem [thread:$0]  %s61, 16, %s63, [#allocation8]
    $region21: #{controlnet_forward.13} parent=1 // pred_fallthru
      _
    // Predicated region
    $region22: #{controlnet_forward.13} parent=1 // pred_check
      _
    $region23: #{controlnet_forward.13} parent=1 // pred_check_branch
      %67 = sbr.rel (0) target = $region25
    $region24: #{controlnet_forward.13} parent=1 // pred_region
      %69 = vsyncadd [#allocation8], 0
      %s71 = sshll.u32 %s5, 4
      %s72 = int_to_ptr.hbm [resolvable:$true] %s71
      %s73 = sshll.u32 [#allocation9], 4
      %s74 = int_to_ptr.vmem [resolvable:$true] %s73
      %76 = dma.hbm_to_vmem [thread:$0]  %s72, 16, %s74, [#allocation8]
    $region25: #{controlnet_forward.13} parent=1 // pred_fallthru
      _
    // Predicated region
    $region26: #{controlnet_forward.13} parent=1 // pred_check
      _
    $region27: #{controlnet_forward.13} parent=1 // pred_check_branch
      %78 = sbr.rel (0) target = $region29
    $region28: #{controlnet_forward.13} parent=1 // pred_region
      %80 = vsyncadd [#allocation11], 0
      %s82 = sshll.u32 %s6, 4
      %s83 = int_to_ptr.hbm [resolvable:$true] %s82
      %s84 = sshll.u32 [#allocation10], 4
      %s85 = int_to_ptr.vmem [resolvable:$true] %s84
      %87 = dma.hbm_to_vmem [thread:$0]  %s83, 16, %s85, [#allocation11]
    $region29: #{controlnet_forward.13} parent=1 // pred_fallthru
      _
    // Predicated region
    $region30: #{controlnet_forward.13} parent=1 // pred_check
      _
    $region31: #{controlnet_forward.13} parent=1 // pred_check_branch
      %89 = sbr.rel (0) target = $region33
    $region32: #{controlnet_forward.13} parent=1 // pred_region
      %91 = dma.done [#allocation3], 1024
    $region33: #{controlnet_forward.13} parent=1 // pred_fallthru
      _
    // Predicated region
    $region34: #{controlnet_forward.13} parent=1 // pred_check
      _
    $region35: #{controlnet_forward.13} parent=1 // pred_check_branch
      %93 = sbr.rel (0) target = $region37
    $region36: #{controlnet_forward.13} parent=1 // pred_region
      %95 = dma.done [#allocation5], 32
    $region37: #{controlnet_forward.13} parent=1 // pred_fallthru
      _
    // Predicated region
    $region38: #{controlnet_forward.13} parent=1 // pred_check
      _
    $region39: #{controlnet_forward.13} parent=1 // pred_check_branch
      %97 = sbr.rel (0) target = $region41
    $region40: #{controlnet_forward.13} parent=1 // pred_region
      %99 = dma.done [#allocation5], 512
    $region41: #{controlnet_forward.13} parent=1 // pred_fallthru
      _
    // Predicated region
    $region42: #{controlnet_forward.13} parent=1 // pred_check
      _
    $region43: #{controlnet_forward.13} parent=1 // pred_check_branch
      %101 = sbr.rel (0) target = $region45
    $region44: #{controlnet_forward.13} parent=1 // pred_region
      %103 = dma.done [#allocation8], 16
    $region45: #{controlnet_forward.13} parent=1 // pred_fallthru
      _
    // Predicated region
    $region46: #{controlnet_forward.13} parent=1 // pred_check
      _
    $region47: #{controlnet_forward.13} parent=1 // pred_check_branch
      %105 = sbr.rel (0) target = $region49
    $region48: #{controlnet_forward.13} parent=1 // pred_region
      %107 = dma.done [#allocation8], 16
    $region49: #{controlnet_forward.13} parent=1 // pred_fallthru
      _
    // Predicated region
    $region50: #{controlnet_forward.13} parent=1 // pred_check
      _
    $region51: #{controlnet_forward.13} parent=1 // pred_check_branch
      %109 = sbr.rel (0) target = $region53
    $region52: #{controlnet_forward.13} parent=1 // pred_region
      %111 = dma.done [#allocation11], 16
    $region53: #{controlnet_forward.13} parent=1 // pred_fallthru
      _
    %v113 = vld [vmem:[%s0] sm:$0x1]
    %v114 = vunpack.c.l.bf16 %v113
    %v115 = vld [vmem:[#allocation2] sm:$0xff]
    %v116 = vld [vmem:[#allocation2 + $0x8] sm:$0xff]
    %v117 = vld [vmem:[#allocation2 + $0x10] sm:$0xff]
    %v118 = vld [vmem:[#allocation2 + $0x18] sm:$0xff]
    %v119 = vld [vmem:[#allocation2 + $0x20] sm:$0xff]
    %v120 = vld [vmem:[#allocation2 + $0x28] sm:$0xff]
    %v121 = vld [vmem:[#allocation2 + $0x30] sm:$0xff]
    %v122 = vld [vmem:[#allocation2 + $0x38] sm:$0xff]
    %v123 = vld [vmem:[#allocation4] sm:$0x3]
    %v125 = vperm.slane %v123, 0
    %v126 = vperm.slane %v123, 1
    %v137 = vunpack.c.l.b16 %v115
    %v138 = vunpack.c.h.b16 %v115
    %v139 = vunpack.c.l.b16 %v116
    %v140 = vunpack.c.h.b16 %v116
    %v141 = vunpack.c.l.b16 %v117
    %v142 = vunpack.c.h.b16 %v117
    %v143 = vunpack.c.l.b16 %v118
    %v144 = vunpack.c.h.b16 %v118
    %v145 = vunpack.c.l.b16 %v119
    %v146 = vunpack.c.h.b16 %v119
    %v147 = vunpack.c.l.b16 %v120
    %v148 = vunpack.c.h.b16 %v120
    %v149 = vunpack.c.l.b16 %v121
    %v150 = vunpack.c.h.b16 %v121
    %v151 = vunpack.c.l.b16 %v122
    %v152 = vunpack.c.h.b16 %v122
    %v153 = vpack.c.b16 %v139, %v137
    %v154 = vpack.c.b16 %v140, %v138
    %v155 = vpack.c.b16 %v143, %v141
    %v156 = vpack.c.b16 %v144, %v142
    %v157 = vpack.c.b16 %v147, %v145
    %v158 = vpack.c.b16 %v148, %v146
    %v159 = vpack.c.b16 %v151, %v149
    %v160 = vpack.c.b16 %v152, %v150
    %vm169 = vcmask 523264
    %v171 = vsel %vm169, %v113, 0
    %173 = vmatpush.bf16.msra.mxu0 0
    %174 = vmatpush.bf16.msra.mxu0 0
    %175 = vmatpush.bf16.msra.mxu0 0
    %176 = vmatpush.bf16.msra.mxu0 0
    %177 = vmatpush.bf16.msra.mxu0 %v159
    %178 = vmatpush.bf16.msra.mxu0 %v157
    %179 = vmatpush.bf16.msra.mxu0 %v155
    %180 = vmatpush.bf16.msra.mxu0 %v153
    %181 = vmatmul.bf16.gmra.mxu0 %v171
    %v182 = vpop.f32.mrf.mxu0
    %v183 = vadd.f32 %v125, %v182
    %v184 = vpop.f32.mrf.mxu0
    %185 = vdwg.mxu0
    %186 = vmatpush.bf16.msra.mxu0 0
    %187 = vmatpush.bf16.msra.mxu0 0
    %188 = vmatpush.bf16.msra.mxu0 0
    %189 = vmatpush.bf16.msra.mxu0 0
    %190 = vmatpush.bf16.msra.mxu0 %v160
    %191 = vmatpush.bf16.msra.mxu0 %v158
    %192 = vmatpush.bf16.msra.mxu0 %v156
    %193 = vmatpush.bf16.msra.mxu0 %v154
    %194 = vmatmul.bf16.gmra.mxu0 %v171
    %v195 = vpop.f32.mrf.mxu0
    %v196 = vadd.f32 %v126, %v195
    %v197 = vpop.f32.mrf.mxu0
    %198 = vdwg.mxu0
    %v199 = vmul.f32 %v183, 0.25
    %201 = vrot.lane.b32.xlu0 %v183, 64
    %v202 = vpop.permute.xlu0 %201
    %vm203 = vcmask 130048
    %v205 = vsel %vm203, %v199, 0
    %v207 = vsel %vm203, %v202, 0
    %209 = vmatpush.xpose.msra.mxu0 0.0
    %210 = vmatpush.xpose.msra.mxu0 0.0
    %211 = vmatpush.xpose.msra.mxu0 0.0
    %212 = vmatpush.xpose.msra.mxu0 0.0
    %213 = vmatpush.xpose.msra.mxu0 0.0
    %214 = vmatpush.xpose.msra.mxu0 0.0
    %215 = vmatpush.xpose.msra.mxu0 0.0
    %216 = vmatpush.xpose.msra.mxu0 0.0
    %217 = vmatpush.xpose.msra.mxu0 0.0
    %218 = vmatpush.xpose.msra.mxu0 0.0
    %219 = vmatpush.xpose.msra.mxu0 0.0
    %220 = vmatpush.xpose.msra.mxu0 0.0
    %221 = vmatpush.xpose.msra.mxu0 0.0
    %222 = vmatpush.xpose.msra.mxu0 0.0
    %223 = vmatpush.xpose.msra.mxu0 0.0
    %224 = vmatpush.xpose.msra.mxu0 %v207
    %225 = vmatmul.f32.gmra.mxu0 %v205
    %v226 = vpop.f32.mrf.mxu0
    %v227 = vadd.f32 0.0, %v226
    %228 = vdwg.mxu0
    %vm229 = vcmask 9216
    %v230 = vsel %vm229, %v227, -inf
    %231 = vmax.xlane.f32.xlu0 %v230
    %v232 = vpop.xlane.xlu0 %231
    %v233 = vsub.f32 %v227, %v232
    %v234 = vmul.f32 %v233, 1.442695
    %v235 = vpow.pop %v234
    %v236 = vsel %vm229, %v235, 0.0
    %237 = vadd.xlane.f32.xlu0 %v236
    %v238 = vpop.xlane.xlu0 %237
    %v239 = vrcp.pop %v238
    %v240 = vmul.f32 %v235, %v239
    %vm241 = vcmask 15360
    %v243 = vsel %vm241, %v240, 0
    %vm245 = vcmask 1041408
    %v247 = vsel %vm245, %v196, 0
    %249 = vmatpush.msra.mxu0 0.0
    %250 = vmatpush.msra.mxu0 0.0
    %251 = vmatpush.msra.mxu0 0.0
    %252 = vmatpush.msra.mxu0 0.0
    %253 = vmatpush.msra.mxu0 0.0
    %254 = vmatpush.msra.mxu0 0.0
    %255 = vmatpush.msra.mxu0 0.0
    %256 = vmatpush.msra.mxu0 0.0
    %257 = vmatpush.msra.mxu0 0.0
    %258 = vmatpush.msra.mxu0 0.0
    %259 = vmatpush.msra.mxu0 0.0
    %260 = vmatpush.msra.mxu0 0.0
    %261 = vmatpush.msra.mxu0 0.0
    %262 = vmatpush.msra.mxu0 0.0
    %263 = vmatpush.msra.mxu0 0.0
    %264 = vmatpush.msra.mxu0 %v247
    %265 = vmatmul.f32.gmra.mxu0 %v243
    %v266 = vpop.f32.mrf.mxu0
    %v267 = vadd.f32 0.0, %v266
    %268 = vdwg.mxu0
    %v269 = vld [vmem:[#allocation6] sm:$0xf]
    %v270 = vld [vmem:[#allocation6 + $0x4] sm:$0xf]
    %v271 = vunpack.c.l.bf16 %v269
    %v272 = vunpack.c.l.bf16 %v270
    %273 = vrot.lane.b32.xlu0 %v199, 112
    %v274 = vpop.permute.xlu0 %273
    %275 = vrot.lane.b32.xlu0 %v183, 48
    %v276 = vpop.permute.xlu0 %275
    %v277 = vsel %vm203, %v274, 0
    %v279 = vsel %vm203, %v276, 0
    %281 = vmatpush.xpose.msra.mxu0 0.0
    %282 = vmatpush.xpose.msra.mxu0 0.0
    %283 = vmatpush.xpose.msra.mxu0 0.0
    %284 = vmatpush.xpose.msra.mxu0 0.0
    %285 = vmatpush.xpose.msra.mxu0 0.0
    %286 = vmatpush.xpose.msra.mxu0 0.0
    %287 = vmatpush.xpose.msra.mxu0 0.0
    %288 = vmatpush.xpose.msra.mxu0 0.0
    %289 = vmatpush.xpose.msra.mxu0 0.0
    %290 = vmatpush.xpose.msra.mxu0 0.0
    %291 = vmatpush.xpose.msra.mxu0 0.0
    %292 = vmatpush.xpose.msra.mxu0 0.0
    %293 = vmatpush.xpose.msra.mxu0 0.0
    %294 = vmatpush.xpose.msra.mxu0 0.0
    %295 = vmatpush.xpose.msra.mxu0 0.0
    %296 = vmatpush.xpose.msra.mxu0 %v279
    %297 = vmatmul.f32.gmra.mxu0 %v277
    %v298 = vpop.f32.mrf.mxu0
    %v299 = vadd.f32 0.0, %v298
    %300 = vdwg.mxu0
    %v301 = vsel %vm229, %v299, -inf
    %302 = vmax.xlane.f32.xlu0 %v301
    %v303 = vpop.xlane.xlu0 %302
    %v304 = vsub.f32 %v299, %v303
    %v305 = vmul.f32 %v304, 1.442695
    %v306 = vpow.pop %v305
    %v307 = vsel %vm229, %v306, 0.0
    %308 = vadd.xlane.f32.xlu0 %v307
    %v309 = vpop.xlane.xlu0 %308
    %v310 = vrcp.pop %v309
    %v311 = vmul.f32 %v306, %v310
    %312 = vrot.lane.b32.xlu0 %v196, 112
    %v313 = vpop.permute.xlu0 %312
    %v315 = vsel %vm241, %v311, 0
    %v317 = vsel %vm245, %v313, 0
    %319 = vmatpush.msra.mxu0 0.0
    %320 = vmatpush.msra.mxu0 0.0
    %321 = vmatpush.msra.mxu0 0.0
    %322 = vmatpush.msra.mxu0 0.0
    %323 = vmatpush.msra.mxu0 0.0
    %324 = vmatpush.msra.mxu0 0.0
    %325 = vmatpush.msra.mxu0 0.0
    %326 = vmatpush.msra.mxu0 0.0
    %327 = vmatpush.msra.mxu0 0.0
    %328 = vmatpush.msra.mxu0 0.0
    %329 = vmatpush.msra.mxu0 0.0
    %330 = vmatpush.msra.mxu0 0.0
    %331 = vmatpush.msra.mxu0 0.0
    %332 = vmatpush.msra.mxu0 0.0
    %333 = vmatpush.msra.mxu0 0.0
    %334 = vmatpush.msra.mxu0 %v317
    %335 = vmatmul.f32.gmra.mxu0 %v315
    %v336 = vpop.f32.mrf.mxu0
    %v337 = vadd.f32 0.0, %v336
    %338 = vdwg.mxu0
    %v339 = vld [vmem:[#allocation6 + $0x8] sm:$0xf]
    %v340 = vld [vmem:[#allocation6 + $0xc] sm:$0xf]
    %v341 = vunpack.c.l.bf16 %v339
    %v342 = vunpack.c.l.bf16 %v340
    %v344 = vsel %vm203, %v337, 0
    %346 = vmatpush.msra.mxu0 0.0
    %347 = vmatpush.msra.mxu0 0.0
    %348 = vmatpush.msra.mxu0 0.0
    %349 = vmatpush.msra.mxu0 0.0
    %350 = vmatpush.msra.mxu0 0.0
    %351 = vmatpush.msra.mxu0 0.0
    %352 = vmatpush.msra.mxu0 0.0
    %353 = vmatpush.msra.mxu0 0.0
    %354 = vmatpush.msra.mxu0 0.0
    %355 = vmatpush.msra.mxu0 0.0
    %356 = vmatpush.msra.mxu0 0.0
    %357 = vmatpush.msra.mxu0 0.0
    %358 = vmatpush.msra.mxu0 0.0
    %359 = vmatpush.msra.mxu0 0.0
    %360 = vmatpush.msra.mxu0 %v342
    %361 = vmatpush.msra.mxu0 %v341
    %362 = vmatmul.f32.gmra.mxu0 %v344
    %v363 = vpop.f32.mrf.mxu0
    %v364 = vadd.f32 0.0, %v363
    %365 = vdwg.mxu0
    %v367 = vsel %vm203, %v267, 0
    %369 = vmatpush.msra.mxu0 0.0
    %370 = vmatpush.msra.mxu0 0.0
    %371 = vmatpush.msra.mxu0 0.0
    %372 = vmatpush.msra.mxu0 0.0
    %373 = vmatpush.msra.mxu0 0.0
    %374 = vmatpush.msra.mxu0 0.0
    %375 = vmatpush.msra.mxu0 0.0
    %376 = vmatpush.msra.mxu0 0.0
    %377 = vmatpush.msra.mxu0 0.0
    %378 = vmatpush.msra.mxu0 0.0
    %379 = vmatpush.msra.mxu0 0.0
    %380 = vmatpush.msra.mxu0 0.0
    %381 = vmatpush.msra.mxu0 0.0
    %382 = vmatpush.msra.mxu0 0.0
    %383 = vmatpush.msra.mxu0 %v272
    %384 = vmatpush.msra.mxu0 %v271
    %385 = vmatmul.f32.gmra.mxu0 %v367
    %v386 = vpop.f32.mrf.mxu0
    %v387 = vadd.f32 %v364, %v386
    %388 = vdwg.mxu0
    %389 = vrot.lane.b32.xlu0 %v199, 96
    %v390 = vpop.permute.xlu0 %389
    %391 = vrot.lane.b32.xlu0 %v183, 32
    %v392 = vpop.permute.xlu0 %391
    %v393 = vsel %vm203, %v390, 0
    %v395 = vsel %vm203, %v392, 0
    %397 = vmatpush.xpose.msra.mxu0 0.0
    %398 = vmatpush.xpose.msra.mxu0 0.0
    %399 = vmatpush.xpose.msra.mxu0 0.0
    %400 = vmatpush.xpose.msra.mxu0 0.0
    %401 = vmatpush.xpose.msra.mxu0 0.0
    %402 = vmatpush.xpose.msra.mxu0 0.0
    %403 = vmatpush.xpose.msra.mxu0 0.0
    %404 = vmatpush.xpose.msra.mxu0 0.0
    %405 = vmatpush.xpose.msra.mxu0 0.0
    %406 = vmatpush.xpose.msra.mxu0 0.0
    %407 = vmatpush.xpose.msra.mxu0 0.0
    %408 = vmatpush.xpose.msra.mxu0 0.0
    %409 = vmatpush.xpose.msra.mxu0 0.0
    %410 = vmatpush.xpose.msra.mxu0 0.0
    %411 = vmatpush.xpose.msra.mxu0 0.0
    %412 = vmatpush.xpose.msra.mxu0 %v395
    %413 = vmatmul.f32.gmra.mxu0 %v393
    %v414 = vpop.f32.mrf.mxu0
    %v415 = vadd.f32 0.0, %v414
    %416 = vdwg.mxu0
    %v417 = vsel %vm229, %v415, -inf
    %418 = vmax.xlane.f32.xlu0 %v417
    %v419 = vpop.xlane.xlu0 %418
    %v420 = vsub.f32 %v415, %v419
    %v421 = vmul.f32 %v420, 1.442695
    %v422 = vpow.pop %v421
    %v423 = vsel %vm229, %v422, 0.0
    %424 = vadd.xlane.f32.xlu0 %v423
    %v425 = vpop.xlane.xlu0 %424
    %v426 = vrcp.pop %v425
    %v427 = vmul.f32 %v422, %v426
    %428 = vrot.lane.b32.xlu0 %v196, 96
    %v429 = vpop.permute.xlu0 %428
    %v431 = vsel %vm241, %v427, 0
    %v433 = vsel %vm245, %v429, 0
    %435 = vmatpush.msra.mxu0 0.0
    %436 = vmatpush.msra.mxu0 0.0
    %437 = vmatpush.msra.mxu0 0.0
    %438 = vmatpush.msra.mxu0 0.0
    %439 = vmatpush.msra.mxu0 0.0
    %440 = vmatpush.msra.mxu0 0.0
    %441 = vmatpush.msra.mxu0 0.0
    %442 = vmatpush.msra.mxu0 0.0
    %443 = vmatpush.msra.mxu0 0.0
    %444 = vmatpush.msra.mxu0 0.0
    %445 = vmatpush.msra.mxu0 0.0
    %446 = vmatpush.msra.mxu0 0.0
    %447 = vmatpush.msra.mxu0 0.0
    %448 = vmatpush.msra.mxu0 0.0
    %449 = vmatpush.msra.mxu0 0.0
    %450 = vmatpush.msra.mxu0 %v433
    %451 = vmatmul.f32.gmra.mxu0 %v431
    %v452 = vpop.f32.mrf.mxu0
    %v453 = vadd.f32 0.0, %v452
    %454 = vdwg.mxu0
    %v455 = vld [vmem:[#allocation6 + $0x10] sm:$0xf]
    %v456 = vld [vmem:[#allocation6 + $0x14] sm:$0xf]
    %v457 = vunpack.c.l.bf16 %v455
    %v458 = vunpack.c.l.bf16 %v456
    %v460 = vsel %vm203, %v453, 0
    %462 = vmatpush.msra.mxu0 0.0
    %463 = vmatpush.msra.mxu0 0.0
    %464 = vmatpush.msra.mxu0 0.0
    %465 = vmatpush.msra.mxu0 0.0
    %466 = vmatpush.msra.mxu0 0.0
    %467 = vmatpush.msra.mxu0 0.0
    %468 = vmatpush.msra.mxu0 0.0
    %469 = vmatpush.msra.mxu0 0.0
    %470 = vmatpush.msra.mxu0 0.0
    %471 = vmatpush.msra.mxu0 0.0
    %472 = vmatpush.msra.mxu0 0.0
    %473 = vmatpush.msra.mxu0 0.0
    %474 = vmatpush.msra.mxu0 0.0
    %475 = vmatpush.msra.mxu0 0.0
    %476 = vmatpush.msra.mxu0 %v458
    %477 = vmatpush.msra.mxu0 %v457
    %478 = vmatmul.f32.gmra.mxu0 %v460
    %v479 = vpop.f32.mrf.mxu0
    %v480 = vadd.f32 0.0, %v479
    %481 = vdwg.mxu0
    %v482 = vadd.f32 %v387, %v480
    %483 = vrot.lane.b32.xlu0 %v199, 80
    %v484 = vpop.permute.xlu0 %483
    %485 = vrot.lane.b32.xlu0 %v183, 16
    %v486 = vpop.permute.xlu0 %485
    %v487 = vsel %vm203, %v484, 0
    %v489 = vsel %vm203, %v486, 0
    %491 = vmatpush.xpose.msra.mxu0 0.0
    %492 = vmatpush.xpose.msra.mxu0 0.0
    %493 = vmatpush.xpose.msra.mxu0 0.0
    %494 = vmatpush.xpose.msra.mxu0 0.0
    %495 = vmatpush.xpose.msra.mxu0 0.0
    %496 = vmatpush.xpose.msra.mxu0 0.0
    %497 = vmatpush.xpose.msra.mxu0 0.0
    %498 = vmatpush.xpose.msra.mxu0 0.0
    %499 = vmatpush.xpose.msra.mxu0 0.0
    %500 = vmatpush.xpose.msra.mxu0 0.0
    %501 = vmatpush.xpose.msra.mxu0 0.0
    %502 = vmatpush.xpose.msra.mxu0 0.0
    %503 = vmatpush.xpose.msra.mxu0 0.0
    %504 = vmatpush.xpose.msra.mxu0 0.0
    %505 = vmatpush.xpose.msra.mxu0 0.0
    %506 = vmatpush.xpose.msra.mxu0 %v489
    %507 = vmatmul.f32.gmra.mxu0 %v487
    %v508 = vpop.f32.mrf.mxu0
    %v509 = vadd.f32 0.0, %v508
    %510 = vdwg.mxu0
    %v511 = vsel %vm229, %v509, -inf
    %512 = vmax.xlane.f32.xlu0 %v511
    %v513 = vpop.xlane.xlu0 %512
    %v514 = vsub.f32 %v509, %v513
    %v515 = vmul.f32 %v514, 1.442695
    %v516 = vpow.pop %v515
    %v517 = vsel %vm229, %v516, 0.0
    %518 = vadd.xlane.f32.xlu0 %v517
    %v519 = vpop.xlane.xlu0 %518
    %v520 = vrcp.pop %v519
    %v521 = vmul.f32 %v516, %v520
    %522 = vrot.lane.b32.xlu0 %v196, 80
    %v523 = vpop.permute.xlu0 %522
    %v525 = vsel %vm241, %v521, 0
    %v527 = vsel %vm245, %v523, 0
    %529 = vmatpush.msra.mxu0 0.0
    %530 = vmatpush.msra.mxu0 0.0
    %531 = vmatpush.msra.mxu0 0.0
    %532 = vmatpush.msra.mxu0 0.0
    %533 = vmatpush.msra.mxu0 0.0
    %534 = vmatpush.msra.mxu0 0.0
    %535 = vmatpush.msra.mxu0 0.0
    %536 = vmatpush.msra.mxu0 0.0
    %537 = vmatpush.msra.mxu0 0.0
    %538 = vmatpush.msra.mxu0 0.0
    %539 = vmatpush.msra.mxu0 0.0
    %540 = vmatpush.msra.mxu0 0.0
    %541 = vmatpush.msra.mxu0 0.0
    %542 = vmatpush.msra.mxu0 0.0
    %543 = vmatpush.msra.mxu0 0.0
    %544 = vmatpush.msra.mxu0 %v527
    %545 = vmatmul.f32.gmra.mxu0 %v525
    %v546 = vpop.f32.mrf.mxu0
    %v547 = vadd.f32 0.0, %v546
    %548 = vdwg.mxu0
    %v549 = vld [vmem:[#allocation6 + $0x18] sm:$0xf]
    %v550 = vld [vmem:[#allocation6 + $0x1c] sm:$0xf]
    %v551 = vunpack.c.l.bf16 %v549
    %v552 = vunpack.c.l.bf16 %v550
    %v554 = vsel %vm203, %v547, 0
    %556 = vmatpush.msra.mxu0 0.0
    %557 = vmatpush.msra.mxu0 0.0
    %558 = vmatpush.msra.mxu0 0.0
    %559 = vmatpush.msra.mxu0 0.0
    %560 = vmatpush.msra.mxu0 0.0
    %561 = vmatpush.msra.mxu0 0.0
    %562 = vmatpush.msra.mxu0 0.0
    %563 = vmatpush.msra.mxu0 0.0
    %564 = vmatpush.msra.mxu0 0.0
    %565 = vmatpush.msra.mxu0 0.0
    %566 = vmatpush.msra.mxu0 0.0
    %567 = vmatpush.msra.mxu0 0.0
    %568 = vmatpush.msra.mxu0 0.0
    %569 = vmatpush.msra.mxu0 0.0
    %570 = vmatpush.msra.mxu0 %v552
    %571 = vmatpush.msra.mxu0 %v551
    %572 = vmatmul.f32.gmra.mxu0 %v554
    %v573 = vpop.f32.mrf.mxu0
    %v574 = vadd.f32 0.0, %v573
    %575 = vdwg.mxu0
    %v576 = vadd.f32 %v482, %v574
    %v577 = vld [vmem:[#allocation7] sm:$0x1]
    %v579 = vperm.slane %v577, 0
    %v581 = vadd.f32 %v576, %v579
    %v582 = vadd.f32 %v114, %v581
    %vm583 = vcmask 517120
    %v584 = vsel %vm583, %v582, 0.0
    %585 = vadd.xlane.f32.xlu0 %v584
    %v586 = vpop.xlane.xlu0 %585
    %v587 = vrcp.pop 64.0
    %v588 = vmul.f32 64.0, %v587
    %v589 = vsub.f32 1.0, %v588
    %v590 = vmul.f32 %v587, %v589
    %v591 = vadd.f32 %v587, %v590
    %vm592 = vweird.f32 %v587
    %v593 = vsel %vm592, %v587, %v591
    %v594 = vmul.f32 %v586, %v593
    %v595 = vsub.f32 %v582, %v594
    %v596 = vmul.f32 %v595, %v595
    %v597 = vsel %vm583, %v596, 0.0
    %598 = vadd.xlane.f32.xlu0 %v597
    %v599 = vpop.xlane.xlu0 %598
    %v600 = vmul.f32 %v599, %v593
    %v601 = vadd.f32 %v600, 1e-05
    %v602 = vrsqrt.pop %v601
    %v603 = vmul.f32 %v602, %v601
    %v604 = vmul.f32 %v603, %v602
    %v605 = vmul.f32 0.5, %v604
    %v606 = vsub.f32 1.5, %v605
    %v607 = vmul.f32 %v602, %v606
    %vm608 = vweird.f32 %v601
    %vm609 = vweird.f32 %v602
    %vm610 = vmor %vm608, %vm609
    %v611 = vsel %vm610, %v602, %v607
    %v612 = vmul.f32 %v595, %v611
    %v613 = vld [vmem:[#allocation9] sm:$0x1]
    %v615 = vperm.slane %v613, 0
    %v617 = vmul.f32 %v612, %v615
    %v618 = vld [vmem:[#allocation10] sm:$0x1]
    %v620 = vperm.slane %v618, 0
    %v622 = vadd.f32 %v617, %v620
    %v623 = vpack.c.bf16 %v622, %v622
    %vm624 = vcmask 516096
    %625 = vst.msk [vmem:[%s7] sm:$0x1] %vm624, %v623
    %s626 = scalar_lea.vmem %s0, 1
    %v627 = vld [vmem:[%s626] sm:$0x1]
    %v628 = vunpack.c.l.bf16 %v627
    %v629 = vld [vmem:[#allocation2] sm:$0xff]
    %v630 = vld [vmem:[#allocation2 + $0x8] sm:$0xff]
    %v631 = vld [vmem:[#allocation2 + $0x10] sm:$0xff]
    %v632 = vld [vmem:[#allocation2 + $0x18] sm:$0xff]
    %v633 = vld [vmem:[#allocation2 + $0x20] sm:$0xff]
    %v634 = vld [vmem:[#allocation2 + $0x28] sm:$0xff]
    %v635 = vld [vmem:[#allocation2 + $0x30] sm:$0xff]
    %v636 = vld [vmem:[#allocation2 + $0x38] sm:$0xff]
    %v637 = vld [vmem:[#allocation4] sm:$0x3]
    %v639 = vperm.slane %v637, 0
    %v640 = vperm.slane %v637, 1
    %v651 = vunpack.c.l.b16 %v629
    %v652 = vunpack.c.h.b16 %v629
    %v653 = vunpack.c.l.b16 %v630
    %v654 = vunpack.c.h.b16 %v630
    %v655 = vunpack.c.l.b16 %v631
    %v656 = vunpack.c.h.b16 %v631
    %v657 = vunpack.c.l.b16 %v632
    %v658 = vunpack.c.h.b16 %v632
    %v659 = vunpack.c.l.b16 %v633
    %v660 = vunpack.c.h.b16 %v633
    %v661 = vunpack.c.l.b16 %v634
    %v662 = vunpack.c.h.b16 %v634
    %v663 = vunpack.c.l.b16 %v635
    %v664 = vunpack.c.h.b16 %v635
    %v665 = vunpack.c.l.b16 %v636
    %v666 = vunpack.c.h.b16 %v636
    %v667 = vpack.c.b16 %v653, %v651
    %v668 = vpack.c.b16 %v654, %v652
    %v669 = vpack.c.b16 %v657, %v655
    %v670 = vpack.c.b16 %v658, %v656
    %v671 = vpack.c.b16 %v661, %v659
    %v672 = vpack.c.b16 %v662, %v660
    %v673 = vpack.c.b16 %v665, %v663
    %v674 = vpack.c.b16 %v666, %v664
    %v684 = vsel %vm169, %v627, 0
    %686 = vmatpush.bf16.msra.mxu0 0
    %687 = vmatpush.bf16.msra.mxu0 0
    %688 = vmatpush.bf16.msra.mxu0 0
    %689 = vmatpush.bf16.msra.mxu0 0
    %690 = vmatpush.bf16.msra.mxu0 %v673
    %691 = vmatpush.bf16.msra.mxu0 %v671
    %692 = vmatpush.bf16.msra.mxu0 %v669
    %693 = vmatpush.bf16.msra.mxu0 %v667
    %694 = vmatmul.bf16.gmra.mxu0 %v684
    %v695 = vpop.f32.mrf.mxu0
    %v696 = vadd.f32 %v639, %v695
    %v697 = vpop.f32.mrf.mxu0
    %698 = vdwg.mxu0
    %699 = vmatpush.bf16.msra.mxu0 0
    %700 = vmatpush.bf16.msra.mxu0 0
    %701 = vmatpush.bf16.msra.mxu0 0
    %702 = vmatpush.bf16.msra.mxu0 0
    %703 = vmatpush.bf16.msra.mxu0 %v674
    %704 = vmatpush.bf16.msra.mxu0 %v672
    %705 = vmatpush.bf16.msra.mxu0 %v670
    %706 = vmatpush.bf16.msra.mxu0 %v668
    %707 = vmatmul.bf16.gmra.mxu0 %v684
    %v708 = vpop.f32.mrf.mxu0
    %v709 = vadd.f32 %v640, %v708
    %v710 = vpop.f32.mrf.mxu0
    %711 = vdwg.mxu0
    %v712 = vmul.f32 %v696, 0.25
    %714 = vrot.lane.b32.xlu0 %v696, 64
    %v715 = vpop.permute.xlu0 %714
    %v717 = vsel %vm203, %v712, 0
    %v719 = vsel %vm203, %v715, 0
    %721 = vmatpush.xpose.msra.mxu0 0.0
    %722 = vmatpush.xpose.msra.mxu0 0.0
    %723 = vmatpush.xpose.msra.mxu0 0.0
    %724 = vmatpush.xpose.msra.mxu0 0.0
    %725 = vmatpush.xpose.msra.mxu0 0.0
    %726 = vmatpush.xpose.msra.mxu0 0.0
    %727 = vmatpush.xpose.msra.mxu0 0.0
    %728 = vmatpush.xpose.msra.mxu0 0.0
    %729 = vmatpush.xpose.msra.mxu0 0.0
    %730 = vmatpush.xpose.msra.mxu0 0.0
    %731 = vmatpush.xpose.msra.mxu0 0.0
    %732 = vmatpush.xpose.msra.mxu0 0.0
    %733 = vmatpush.xpose.msra.mxu0 0.0
    %734 = vmatpush.xpose.msra.mxu0 0.0
    %735 = vmatpush.xpose.msra.mxu0 0.0
    %736 = vmatpush.xpose.msra.mxu0 %v719
    %737 = vmatmul.f32.gmra.mxu0 %v717
    %v738 = vpop.f32.mrf.mxu0
    %v739 = vadd.f32 0.0, %v738
    %740 = vdwg.mxu0
    %v741 = vsel %vm229, %v739, -inf
    %742 = vmax.xlane.f32.xlu0 %v741
    %v743 = vpop.xlane.xlu0 %742
    %v744 = vsub.f32 %v739, %v743
    %v745 = vmul.f32 %v744, 1.442695
    %v746 = vpow.pop %v745
    %v747 = vsel %vm229, %v746, 0.0
    %748 = vadd.xlane.f32.xlu0 %v747
    %v749 = vpop.xlane.xlu0 %748
    %v750 = vrcp.pop %v749
    %v751 = vmul.f32 %v746, %v750
    %v753 = vsel %vm241, %v751, 0
    %v756 = vsel %vm245, %v709, 0
    %758 = vmatpush.msra.mxu0 0.0
    %759 = vmatpush.msra.mxu0 0.0
    %760 = vmatpush.msra.mxu0 0.0
    %761 = vmatpush.msra.mxu0 0.0
    %762 = vmatpush.msra.mxu0 0.0
    %763 = vmatpush.msra.mxu0 0.0
    %764 = vmatpush.msra.mxu0 0.0
    %765 = vmatpush.msra.mxu0 0.0
    %766 = vmatpush.msra.mxu0 0.0
    %767 = vmatpush.msra.mxu0 0.0
    %768 = vmatpush.msra.mxu0 0.0
    %769 = vmatpush.msra.mxu0 0.0
    %770 = vmatpush.msra.mxu0 0.0
    %771 = vmatpush.msra.mxu0 0.0
    %772 = vmatpush.msra.mxu0 0.0
    %773 = vmatpush.msra.mxu0 %v756
    %774 = vmatmul.f32.gmra.mxu0 %v753
    %v775 = vpop.f32.mrf.mxu0
    %v776 = vadd.f32 0.0, %v775
    %777 = vdwg.mxu0
    %v778 = vld [vmem:[#allocation6] sm:$0xf]
    %v779 = vld [vmem:[#allocation6 + $0x4] sm:$0xf]
    %v780 = vunpack.c.l.bf16 %v778
    %v781 = vunpack.c.l.bf16 %v779
    %782 = vrot.lane.b32.xlu0 %v712, 112
    %v783 = vpop.permute.xlu0 %782
    %784 = vrot.lane.b32.xlu0 %v696, 48
    %v785 = vpop.permute.xlu0 %784
    %v786 = vsel %vm203, %v783, 0
    %v788 = vsel %vm203, %v785, 0
    %790 = vmatpush.xpose.msra.mxu0 0.0
    %791 = vmatpush.xpose.msra.mxu0 0.0
    %792 = vmatpush.xpose.msra.mxu0 0.0
    %793 = vmatpush.xpose.msra.mxu0 0.0
    %794 = vmatpush.xpose.msra.mxu0 0.0
    %795 = vmatpush.xpose.msra.mxu0 0.0
    %796 = vmatpush.xpose.msra.mxu0 0.0
    %797 = vmatpush.xpose.msra.mxu0 0.0
    %798 = vmatpush.xpose.msra.mxu0 0.0
    %799 = vmatpush.xpose.msra.mxu0 0.0
    %800 = vmatpush.xpose.msra.mxu0 0.0
    %801 = vmatpush.xpose.msra.mxu0 0.0
    %802 = vmatpush.xpose.msra.mxu0 0.0
    %803 = vmatpush.xpose.msra.mxu0 0.0
    %804 = vmatpush.xpose.msra.mxu0 0.0
    %805 = vmatpush.xpose.msra.mxu0 %v788
    %806 = vmatmul.f32.gmra.mxu0 %v786
    %v807 = vpop.f32.mrf.mxu0
    %v808 = vadd.f32 0.0, %v807
    %809 = vdwg.mxu0
    %v810 = vsel %vm229, %v808, -inf
    %811 = vmax.xlane.f32.xlu0 %v810
    %v812 = vpop.xlane.xlu0 %811
    %v813 = vsub.f32 %v808, %v812
    %v814 = vmul.f32 %v813, 1.442695
    %v815 = vpow.pop %v814
    %v816 = vsel %vm229, %v815, 0.0
    %817 = vadd.xlane.f32.xlu0 %v816
    %v818 = vpop.xlane.xlu0 %817
    %v819 = vrcp.pop %v818
    %v820 = vmul.f32 %v815, %v819
    %821 = vrot.lane.b32.xlu0 %v709, 112
    %v822 = vpop.permute.xlu0 %821
    %v824 = vsel %vm241, %v820, 0
    %v826 = vsel %vm245, %v822, 0
    %828 = vmatpush.msra.mxu0 0.0
    %829 = vmatpush.msra.mxu0 0.0
    %830 = vmatpush.msra.mxu0 0.0
    %831 = vmatpush.msra.mxu0 0.0
    %832 = vmatpush.msra.mxu0 0.0
    %833 = vmatpush.msra.mxu0 0.0
    %834 = vmatpush.msra.mxu0 0.0
    %835 = vmatpush.msra.mxu0 0.0
    %836 = vmatpush.msra.mxu0 0.0
    %837 = vmatpush.msra.mxu0 0.0
    %838 = vmatpush.msra.mxu0 0.0
    %839 = vmatpush.msra.mxu0 0.0
    %840 = vmatpush.msra.mxu0 0.0
    %841 = vmatpush.msra.mxu0 0.0
    %842 = vmatpush.msra.mxu0 0.0
    %843 = vmatpush.msra.mxu0 %v826
    %844 = vmatmul.f32.gmra.mxu0 %v824
    %v845 = vpop.f32.mrf.mxu0
    %v846 = vadd.f32 0.0, %v845
    %847 = vdwg.mxu0
    %v848 = vld [vmem:[#allocation6 + $0x8] sm:$0xf]
    %v849 = vld [vmem:[#allocation6 + $0xc] sm:$0xf]
    %v850 = vunpack.c.l.bf16 %v848
    %v851 = vunpack.c.l.bf16 %v849
    %v853 = vsel %vm203, %v846, 0
    %855 = vmatpush.msra.mxu0 0.0
    %856 = vmatpush.msra.mxu0 0.0
    %857 = vmatpush.msra.mxu0 0.0
    %858 = vmatpush.msra.mxu0 0.0
    %859 = vmatpush.msra.mxu0 0.0
    %860 = vmatpush.msra.mxu0 0.0
    %861 = vmatpush.msra.mxu0 0.0
    %862 = vmatpush.msra.mxu0 0.0
    %863 = vmatpush.msra.mxu0 0.0
    %864 = vmatpush.msra.mxu0 0.0
    %865 = vmatpush.msra.mxu0 0.0
    %866 = vmatpush.msra.mxu0 0.0
    %867 = vmatpush.msra.mxu0 0.0
    %868 = vmatpush.msra.mxu0 0.0
    %869 = vmatpush.msra.mxu0 %v851
    %870 = vmatpush.msra.mxu0 %v850
    %871 = vmatmul.f32.gmra.mxu0 %v853
    %v872 = vpop.f32.mrf.mxu0
    %v873 = vadd.f32 0.0, %v872
    %874 = vdwg.mxu0
    %v876 = vsel %vm203, %v776, 0
    %878 = vmatpush.msra.mxu0 0.0
    %879 = vmatpush.msra.mxu0 0.0
    %880 = vmatpush.msra.mxu0 0.0
    %881 = vmatpush.msra.mxu0 0.0
    %882 = vmatpush.msra.mxu0 0.0
    %883 = vmatpush.msra.mxu0 0.0
    %884 = vmatpush.msra.mxu0 0.0
    %885 = vmatpush.msra.mxu0 0.0
    %886 = vmatpush.msra.mxu0 0.0
    %887 = vmatpush.msra.mxu0 0.0
    %888 = vmatpush.msra.mxu0 0.0
    %889 = vmatpush.msra.mxu0 0.0
    %890 = vmatpush.msra.mxu0 0.0
    %891 = vmatpush.msra.mxu0 0.0
    %892 = vmatpush.msra.mxu0 %v781
    %893 = vmatpush.msra.mxu0 %v780
    %894 = vmatmul.f32.gmra.mxu0 %v876
    %v895 = vpop.f32.mrf.mxu0
    %v896 = vadd.f32 %v873, %v895
    %897 = vdwg.mxu0
    %898 = vrot.lane.b32.xlu0 %v712, 96
    %v899 = vpop.permute.xlu0 %898
    %900 = vrot.lane.b32.xlu0 %v696, 32
    %v901 = vpop.permute.xlu0 %900
    %v902 = vsel %vm203, %v899, 0
    %v904 = vsel %vm203, %v901, 0
    %906 = vmatpush.xpose.msra.mxu0 0.0
    %907 = vmatpush.xpose.msra.mxu0 0.0
    %908 = vmatpush.xpose.msra.mxu0 0.0
    %909 = vmatpush.xpose.msra.mxu0 0.0
    %910 = vmatpush.xpose.msra.mxu0 0.0
    %911 = vmatpush.xpose.msra.mxu0 0.0
    %912 = vmatpush.xpose.msra.mxu0 0.0
    %913 = vmatpush.xpose.msra.mxu0 0.0
    %914 = vmatpush.xpose.msra.mxu0 0.0
    %915 = vmatpush.xpose.msra.mxu0 0.0
    %916 = vmatpush.xpose.msra.mxu0 0.0
    %917 = vmatpush.xpose.msra.mxu0 0.0
    %918 = vmatpush.xpose.msra.mxu0 0.0
    %919 = vmatpush.xpose.msra.mxu0 0.0
    %920 = vmatpush.xpose.msra.mxu0 0.0
    %921 = vmatpush.xpose.msra.mxu0 %v904
    %922 = vmatmul.f32.gmra.mxu0 %v902
    %v923 = vpop.f32.mrf.mxu0
    %v924 = vadd.f32 0.0, %v923
    %925 = vdwg.mxu0
    %v926 = vsel %vm229, %v924, -inf
    %927 = vmax.xlane.f32.xlu0 %v926
    %v928 = vpop.xlane.xlu0 %927
    %v929 = vsub.f32 %v924, %v928
    %v930 = vmul.f32 %v929, 1.442695
    %v931 = vpow.pop %v930
    %v932 = vsel %vm229, %v931, 0.0
    %933 = vadd.xlane.f32.xlu0 %v932
    %v934 = vpop.xlane.xlu0 %933
    %v935 = vrcp.pop %v934
    %v936 = vmul.f32 %v931, %v935
    %937 = vrot.lane.b32.xlu0 %v709, 96
    %v938 = vpop.permute.xlu0 %937
    %v940 = vsel %vm241, %v936, 0
    %v942 = vsel %vm245, %v938, 0
    %944 = vmatpush.msra.mxu0 0.0
    %945 = vmatpush.msra.mxu0 0.0
    %946 = vmatpush.msra.mxu0 0.0
    %947 = vmatpush.msra.mxu0 0.0
    %948 = vmatpush.msra.mxu0 0.0
    %949 = vmatpush.msra.mxu0 0.0
    %950 = vmatpush.msra.mxu0 0.0
    %951 = vmatpush.msra.mxu0 0.0
    %952 = vmatpush.msra.mxu0 0.0
    %953 = vmatpush.msra.mxu0 0.0
    %954 = vmatpush.msra.mxu0 0.0
    %955 = vmatpush.msra.mxu0 0.0
    %956 = vmatpush.msra.mxu0 0.0
    %957 = vmatpush.msra.mxu0 0.0
    %958 = vmatpush.msra.mxu0 0.0
    %959 = vmatpush.msra.mxu0 %v942
    %960 = vmatmul.f32.gmra.mxu0 %v940
    %v961 = vpop.f32.mrf.mxu0
    %v962 = vadd.f32 0.0, %v961
    %963 = vdwg.mxu0
    %v964 = vld [vmem:[#allocation6 + $0x10] sm:$0xf]
    %v965 = vld [vmem:[#allocation6 + $0x14] sm:$0xf]
    %v966 = vunpack.c.l.bf16 %v964
    %v967 = vunpack.c.l.bf16 %v965
    %v969 = vsel %vm203, %v962, 0
    %971 = vmatpush.msra.mxu0 0.0
    %972 = vmatpush.msra.mxu0 0.0
    %973 = vmatpush.msra.mxu0 0.0
    %974 = vmatpush.msra.mxu0 0.0
    %975 = vmatpush.msra.mxu0 0.0
    %976 = vmatpush.msra.mxu0 0.0
    %977 = vmatpush.msra.mxu0 0.0
    %978 = vmatpush.msra.mxu0 0.0
    %979 = vmatpush.msra.mxu0 0.0
    %980 = vmatpush.msra.mxu0 0.0
    %981 = vmatpush.msra.mxu0 0.0
    %982 = vmatpush.msra.mxu0 0.0
    %983 = vmatpush.msra.mxu0 0.0
    %984 = vmatpush.msra.mxu0 0.0
    %985 = vmatpush.msra.mxu0 %v967
    %986 = vmatpush.msra.mxu0 %v966
    %987 = vmatmul.f32.gmra.mxu0 %v969
    %v988 = vpop.f32.mrf.mxu0
    %v989 = vadd.f32 0.0, %v988
    %990 = vdwg.mxu0
    %v991 = vadd.f32 %v896, %v989
    %992 = vrot.lane.b32.xlu0 %v712, 80
    %v993 = vpop.permute.xlu0 %992
    %994 = vrot.lane.b32.xlu0 %v696, 16
    %v995 = vpop.permute.xlu0 %994
    %v996 = vsel %vm203, %v993, 0
    %v998 = vsel %vm203, %v995, 0
    %1000 = vmatpush.xpose.msra.mxu0 0.0
    %1001 = vmatpush.xpose.msra.mxu0 0.0
    %1002 = vmatpush.xpose.msra.mxu0 0.0
    %1003 = vmatpush.xpose.msra.mxu0 0.0
    %1004 = vmatpush.xpose.msra.mxu0 0.0
    %1005 = vmatpush.xpose.msra.mxu0 0.0
    %1006 = vmatpush.xpose.msra.mxu0 0.0
    %1007 = vmatpush.xpose.msra.mxu0 0.0
    %1008 = vmatpush.xpose.msra.mxu0 0.0
    %1009 = vmatpush.xpose.msra.mxu0 0.0
    %1010 = vmatpush.xpose.msra.mxu0 0.0
    %1011 = vmatpush.xpose.msra.mxu0 0.0
    %1012 = vmatpush.xpose.msra.mxu0 0.0
    %1013 = vmatpush.xpose.msra.mxu0 0.0
    %1014 = vmatpush.xpose.msra.mxu0 0.0
    %1015 = vmatpush.xpose.msra.mxu0 %v998
    %1016 = vmatmul.f32.gmra.mxu0 %v996
    %v1017 = vpop.f32.mrf.mxu0
    %v1018 = vadd.f32 0.0, %v1017
    %1019 = vdwg.mxu0
    %v1020 = vsel %vm229, %v1018, -inf
    %1021 = vmax.xlane.f32.xlu0 %v1020
    %v1022 = vpop.xlane.xlu0 %1021
    %v1023 = vsub.f32 %v1018, %v1022
    %v1024 = vmul.f32 %v1023, 1.442695
    %v1025 = vpow.pop %v1024
    %v1026 = vsel %vm229, %v1025, 0.0
    %1027 = vadd.xlane.f32.xlu0 %v1026
    %v1028 = vpop.xlane.xlu0 %1027
    %v1029 = vrcp.pop %v1028
    %v1030 = vmul.f32 %v1025, %v1029
    %1031 = vrot.lane.b32.xlu0 %v709, 80
    %v1032 = vpop.permute.xlu0 %1031
    %v1034 = vsel %vm241, %v1030, 0
    %v1036 = vsel %vm245, %v1032, 0
    %1038 = vmatpush.msra.mxu0 0.0
    %1039 = vmatpush.msra.mxu0 0.0
    %1040 = vmatpush.msra.mxu0 0.0
    %1041 = vmatpush.msra.mxu0 0.0
    %1042 = vmatpush.msra.mxu0 0.0
    %1043 = vmatpush.msra.mxu0 0.0
    %1044 = vmatpush.msra.mxu0 0.0
    %1045 = vmatpush.msra.mxu0 0.0
    %1046 = vmatpush.msra.mxu0 0.0
    %1047 = vmatpush.msra.mxu0 0.0
    %1048 = vmatpush.msra.mxu0 0.0
    %1049 = vmatpush.msra.mxu0 0.0
    %1050 = vmatpush.msra.mxu0 0.0
    %1051 = vmatpush.msra.mxu0 0.0
    %1052 = vmatpush.msra.mxu0 0.0
    %1053 = vmatpush.msra.mxu0 %v1036
    %1054 = vmatmul.f32.gmra.mxu0 %v1034
    %v1055 = vpop.f32.mrf.mxu0
    %v1056 = vadd.f32 0.0, %v1055
    %1057 = vdwg.mxu0
    %v1058 = vld [vmem:[#allocation6 + $0x18] sm:$0xf]
    %v1059 = vld [vmem:[#allocation6 + $0x1c] sm:$0xf]
    %v1060 = vunpack.c.l.bf16 %v1058
    %v1061 = vunpack.c.l.bf16 %v1059
    %v1063 = vsel %vm203, %v1056, 0
    %1065 = vmatpush.msra.mxu0 0.0
    %1066 = vmatpush.msra.mxu0 0.0
    %1067 = vmatpush.msra.mxu0 0.0
    %1068 = vmatpush.msra.mxu0 0.0
    %1069 = vmatpush.msra.mxu0 0.0
    %1070 = vmatpush.msra.mxu0 0.0
    %1071 = vmatpush.msra.mxu0 0.0
    %1072 = vmatpush.msra.mxu0 0.0
    %1073 = vmatpush.msra.mxu0 0.0
    %1074 = vmatpush.msra.mxu0 0.0
    %1075 = vmatpush.msra.mxu0 0.0
    %1076 = vmatpush.msra.mxu0 0.0
    %1077 = vmatpush.msra.mxu0 0.0
    %1078 = vmatpush.msra.mxu0 0.0
    %1079 = vmatpush.msra.mxu0 %v1061
    %1080 = vmatpush.msra.mxu0 %v1060
    %1081 = vmatmul.f32.gmra.mxu0 %v1063
    %v1082 = vpop.f32.mrf.mxu0
    %v1083 = vadd.f32 0.0, %v1082
    %1084 = vdwg.mxu0
    %v1085 = vadd.f32 %v991, %v1083
    %v1086 = vld [vmem:[#allocation7] sm:$0x1]
    %v1088 = vperm.slane %v1086, 0
    %v1090 = vadd.f32 %v1085, %v1088
    %v1091 = vadd.f32 %v628, %v1090
    %v1092 = vsel %vm583, %v1091, 0.0
    %1093 = vadd.xlane.f32.xlu0 %v1092
    %v1094 = vpop.xlane.xlu0 %1093
    %v1095 = vmul.f32 %v1094, %v593
    %v1096 = vsub.f32 %v1091, %v1095
    %v1097 = vmul.f32 %v1096, %v1096
    %v1098 = vsel %vm583, %v1097, 0.0
    %1099 = vadd.xlane.f32.xlu0 %v1098
    %v1100 = vpop.xlane.xlu0 %1099
    %v1101 = vmul.f32 %v1100, %v593
    %v1102 = vadd.f32 %v1101, 1e-05
    %v1103 = vrsqrt.pop %v1102
    %v1104 = vmul.f32 %v1103, %v1102
    %v1105 = vmul.f32 %v1104, %v1103
    %v1106 = vmul.f32 0.5, %v1105
    %v1107 = vsub.f32 1.5, %v1106
    %v1108 = vmul.f32 %v1103, %v1107
    %vm1109 = vweird.f32 %v1102
    %vm1110 = vweird.f32 %v1103
    %vm1111 = vmor %vm1109, %vm1110
    %v1112 = vsel %vm1111, %v1103, %v1108
    %v1113 = vmul.f32 %v1096, %v1112
    %v1114 = vld [vmem:[#allocation9] sm:$0x1]
    %v1116 = vperm.slane %v1114, 0
    %v1118 = vmul.f32 %v1113, %v1116
    %v1119 = vld [vmem:[#allocation10] sm:$0x1]
    %v1121 = vperm.slane %v1119, 0
    %v1123 = vadd.f32 %v1118, %v1121
    %v1124 = vpack.c.bf16 %v1123, %v1123
    %s1125 = scalar_lea.vmem %s7, 1
    %1126 = vst.msk [vmem:[%s1125] sm:$0x1] %vm624, %v1124
    %s1127 = scalar_lea.vmem %s0, 2
    %v1128 = vld [vmem:[%s1127] sm:$0x1]
    %v1129 = vunpack.c.l.bf16 %v1128
    %v1130 = vld [vmem:[#allocation2] sm:$0xff]
    %v1131 = vld [vmem:[#allocation2 + $0x8] sm:$0xff]
    %v1132 = vld [vmem:[#allocation2 + $0x10] sm:$0xff]
    %v1133 = vld [vmem:[#allocation2 + $0x18] sm:$0xff]
    %v1134 = vld [vmem:[#allocation2 + $0x20] sm:$0xff]
    %v1135 = vld [vmem:[#allocation2 + $0x28] sm:$0xff]
    %v1136 = vld [vmem:[#allocation2 + $0x30] sm:$0xff]
    %v1137 = vld [vmem:[#allocation2 + $0x38] sm:$0xff]
    %v1138 = vld [vmem:[#allocation4] sm:$0x3]
    %v1140 = vperm.slane %v1138, 0
    %v1141 = vperm.slane %v1138, 1
    %v1152 = vunpack.c.l.b16 %v1130
    %v1153 = vunpack.c.h.b16 %v1130
    %v1154 = vunpack.c.l.b16 %v1131
    %v1155 = vunpack.c.h.b16 %v1131
    %v1156 = vunpack.c.l.b16 %v1132
    %v1157 = vunpack.c.h.b16 %v1132
    %v1158 = vunpack.c.l.b16 %v1133
    %v1159 = vunpack.c.h.b16 %v1133
    %v1160 = vunpack.c.l.b16 %v1134
    %v1161 = vunpack.c.h.b16 %v1134
    %v1162 = vunpack.c.l.b16 %v1135
    %v1163 = vunpack.c.h.b16 %v1135
    %v1164 = vunpack.c.l.b16 %v1136
    %v1165 = vunpack.c.h.b16 %v1136
    %v1166 = vunpack.c.l.b16 %v1137
    %v1167 = vunpack.c.h.b16 %v1137
    %v1168 = vpack.c.b16 %v1154, %v1152
    %v1169 = vpack.c.b16 %v1155, %v1153
    %v1170 = vpack.c.b16 %v1158, %v1156
    %v1171 = vpack.c.b16 %v1159, %v1157
    %v1172 = vpack.c.b16 %v1162, %v1160
    %v1173 = vpack.c.b16 %v1163, %v1161
    %v1174 = vpack.c.b16 %v1166, %v1164
    %v1175 = vpack.c.b16 %v1167, %v1165
    %v1185 = vsel %vm169, %v1128, 0
    %1187 = vmatpush.bf16.msra.mxu0 0
    %1188 = vmatpush.bf16.msra.mxu0 0
    %1189 = vmatpush.bf16.msra.mxu0 0
    %1190 = vmatpush.bf16.msra.mxu0 0
    %1191 = vmatpush.bf16.msra.mxu0 %v1174
    %1192 = vmatpush.bf16.msra.mxu0 %v1172
    %1193 = vmatpush.bf16.msra.mxu0 %v1170
    %1194 = vmatpush.bf16.msra.mxu0 %v1168
    %1195 = vmatmul.bf16.gmra.mxu0 %v1185
    %v1196 = vpop.f32.mrf.mxu0
    %v1197 = vadd.f32 %v1140, %v1196
    %v1198 = vpop.f32.mrf.mxu0
    %1199 = vdwg.mxu0
    %1200 = vmatpush.bf16.msra.mxu0 0
    %1201 = vmatpush.bf16.msra.mxu0 0
    %1202 = vmatpush.bf16.msra.mxu0 0
    %1203 = vmatpush.bf16.msra.mxu0 0
    %1204 = vmatpush.bf16.msra.mxu0 %v1175
    %1205 = vmatpush.bf16.msra.mxu0 %v1173
    %1206 = vmatpush.bf16.msra.mxu0 %v1171
    %1207 = vmatpush.bf16.msra.mxu0 %v1169
    %1208 = vmatmul.bf16.gmra.mxu0 %v1185
    %v1209 = vpop.f32.mrf.mxu0
    %v1210 = vadd.f32 %v1141, %v1209
    %v1211 = vpop.f32.mrf.mxu0
    %1212 = vdwg.mxu0
    %v1213 = vmul.f32 %v1197, 0.25
    %1215 = vrot.lane.b32.xlu0 %v1197, 64
    %v1216 = vpop.permute.xlu0 %1215
    %v1218 = vsel %vm203, %v1213, 0
    %v1220 = vsel %vm203, %v1216, 0
    %1222 = vmatpush.xpose.msra.mxu0 0.0
    %1223 = vmatpush.xpose.msra.mxu0 0.0
    %1224 = vmatpush.xpose.msra.mxu0 0.0
    %1225 = vmatpush.xpose.msra.mxu0 0.0
    %1226 = vmatpush.xpose.msra.mxu0 0.0
    %1227 = vmatpush.xpose.msra.mxu0 0.0
    %1228 = vmatpush.xpose.msra.mxu0 0.0
    %1229 = vmatpush.xpose.msra.mxu0 0.0
    %1230 = vmatpush.xpose.msra.mxu0 0.0
    %1231 = vmatpush.xpose.msra.mxu0 0.0
    %1232 = vmatpush.xpose.msra.mxu0 0.0
    %1233 = vmatpush.xpose.msra.mxu0 0.0
    %1234 = vmatpush.xpose.msra.mxu0 0.0
    %1235 = vmatpush.xpose.msra.mxu0 0.0
    %1236 = vmatpush.xpose.msra.mxu0 0.0
    %1237 = vmatpush.xpose.msra.mxu0 %v1220
    %1238 = vmatmul.f32.gmra.mxu0 %v1218
    %v1239 = vpop.f32.mrf.mxu0
    %v1240 = vadd.f32 0.0, %v1239
    %1241 = vdwg.mxu0
    %v1242 = vsel %vm229, %v1240, -inf
    %1243 = vmax.xlane.f32.xlu0 %v1242
    %v1244 = vpop.xlane.xlu0 %1243
    %v1245 = vsub.f32 %v1240, %v1244
    %v1246 = vmul.f32 %v1245, 1.442695
    %v1247 = vpow.pop %v1246
    %v1248 = vsel %vm229, %v1247, 0.0
    %1249 = vadd.xlane.f32.xlu0 %v1248
    %v1250 = vpop.xlane.xlu0 %1249
    %v1251 = vrcp.pop %v1250
    %v1252 = vmul.f32 %v1247, %v1251
    %v1254 = vsel %vm241, %v1252, 0
    %v1257 = vsel %vm245, %v1210, 0
    %1259 = vmatpush.msra.mxu0 0.0
    %1260 = vmatpush.msra.mxu0 0.0
    %1261 = vmatpush.msra.mxu0 0.0
    %1262 = vmatpush.msra.mxu0 0.0
    %1263 = vmatpush.msra.mxu0 0.0
    %1264 = vmatpush.msra.mxu0 0.0
    %1265 = vmatpush.msra.mxu0 0.0
    %1266 = vmatpush.msra.mxu0 0.0
    %1267 = vmatpush.msra.mxu0 0.0
    %1268 = vmatpush.msra.mxu0 0.0
    %1269 = vmatpush.msra.mxu0 0.0
    %1270 = vmatpush.msra.mxu0 0.0
    %1271 = vmatpush.msra.mxu0 0.0
    %1272 = vmatpush.msra.mxu0 0.0
    %1273 = vmatpush.msra.mxu0 0.0
    %1274 = vmatpush.msra.mxu0 %v1257
    %1275 = vmatmul.f32.gmra.mxu0 %v1254
    %v1276 = vpop.f32.mrf.mxu0
    %v1277 = vadd.f32 0.0, %v1276
    %1278 = vdwg.mxu0
    %v1279 = vld [vmem:[#allocation6] sm:$0xf]
    %v1280 = vld [vmem:[#allocation6 + $0x4] sm:$0xf]
    %v1281 = vunpack.c.l.bf16 %v1279
    %v1282 = vunpack.c.l.bf16 %v1280
    %1283 = vrot.lane.b32.xlu0 %v1213, 112
    %v1284 = vpop.permute.xlu0 %1283
    %1285 = vrot.lane.b32.xlu0 %v1197, 48
    %v1286 = vpop.permute.xlu0 %1285
    %v1287 = vsel %vm203, %v1284, 0
    %v1289 = vsel %vm203, %v1286, 0
    %1291 = vmatpush.xpose.msra.mxu0 0.0
    %1292 = vmatpush.xpose.msra.mxu0 0.0
    %1293 = vmatpush.xpose.msra.mxu0 0.0
    %1294 = vmatpush.xpose.msra.mxu0 0.0
    %1295 = vmatpush.xpose.msra.mxu0 0.0
    %1296 = vmatpush.xpose.msra.mxu0 0.0
    %1297 = vmatpush.xpose.msra.mxu0 0.0
    %1298 = vmatpush.xpose.msra.mxu0 0.0
    %1299 = vmatpush.xpose.msra.mxu0 0.0
    %1300 = vmatpush.xpose.msra.mxu0 0.0
    %1301 = vmatpush.xpose.msra.mxu0 0.0
    %1302 = vmatpush.xpose.msra.mxu0 0.0
    %1303 = vmatpush.xpose.msra.mxu0 0.0
    %1304 = vmatpush.xpose.msra.mxu0 0.0
    %1305 = vmatpush.xpose.msra.mxu0 0.0
    %1306 = vmatpush.xpose.msra.mxu0 %v1289
    %1307 = vmatmul.f32.gmra.mxu0 %v1287
    %v1308 = vpop.f32.mrf.mxu0
    %v1309 = vadd.f32 0.0, %v1308
    %1310 = vdwg.mxu0
    %v1311 = vsel %vm229, %v1309, -inf
    %1312 = vmax.xlane.f32.xlu0 %v1311
    %v1313 = vpop.xlane.xlu0 %1312
    %v1314 = vsub.f32 %v1309, %v1313
    %v1315 = vmul.f32 %v1314, 1.442695
    %v1316 = vpow.pop %v1315
    %v1317 = vsel %vm229, %v1316, 0.0
    %1318 = vadd.xlane.f32.xlu0 %v1317
    %v1319 = vpop.xlane.xlu0 %1318
    %v1320 = vrcp.pop %v1319
    %v1321 = vmul.f32 %v1316, %v1320
    %1322 = vrot.lane.b32.xlu0 %v1210, 112
    %v1323 = vpop.permute.xlu0 %1322
    %v1325 = vsel %vm241, %v1321, 0
    %v1327 = vsel %vm245, %v1323, 0
    %1329 = vmatpush.msra.mxu0 0.0
    %1330 = vmatpush.msra.mxu0 0.0
    %1331 = vmatpush.msra.mxu0 0.0
    %1332 = vmatpush.msra.mxu0 0.0
    %1333 = vmatpush.msra.mxu0 0.0
    %1334 = vmatpush.msra.mxu0 0.0
    %1335 = vmatpush.msra.mxu0 0.0
    %1336 = vmatpush.msra.mxu0 0.0
    %1337 = vmatpush.msra.mxu0 0.0
    %1338 = vmatpush.msra.mxu0 0.0
    %1339 = vmatpush.msra.mxu0 0.0
    %1340 = vmatpush.msra.mxu0 0.0
    %1341 = vmatpush.msra.mxu0 0.0
    %1342 = vmatpush.msra.mxu0 0.0
    %1343 = vmatpush.msra.mxu0 0.0
    %1344 = vmatpush.msra.mxu0 %v1327
    %1345 = vmatmul.f32.gmra.mxu0 %v1325
    %v1346 = vpop.f32.mrf.mxu0
    %v1347 = vadd.f32 0.0, %v1346
    %1348 = vdwg.mxu0
    %v1349 = vld [vmem:[#allocation6 + $0x8] sm:$0xf]
    %v1350 = vld [vmem:[#allocation6 + $0xc] sm:$0xf]
    %v1351 = vunpack.c.l.bf16 %v1349
    %v1352 = vunpack.c.l.bf16 %v1350
    %v1354 = vsel %vm203, %v1347, 0
    %1356 = vmatpush.msra.mxu0 0.0
    %1357 = vmatpush.msra.mxu0 0.0
    %1358 = vmatpush.msra.mxu0 0.0
    %1359 = vmatpush.msra.mxu0 0.0
    %1360 = vmatpush.msra.mxu0 0.0
    %1361 = vmatpush.msra.mxu0 0.0
    %1362 = vmatpush.msra.mxu0 0.0
    %1363 = vmatpush.msra.mxu0 0.0
    %1364 = vmatpush.msra.mxu0 0.0
    %1365 = vmatpush.msra.mxu0 0.0
    %1366 = vmatpush.msra.mxu0 0.0
    %1367 = vmatpush.msra.mxu0 0.0
    %1368 = vmatpush.msra.mxu0 0.0
    %1369 = vmatpush.msra.mxu0 0.0
    %1370 = vmatpush.msra.mxu0 %v1352
    %1371 = vmatpush.msra.mxu0 %v1351
    %1372 = vmatmul.f32.gmra.mxu0 %v1354
    %v1373 = vpop.f32.mrf.mxu0
    %v1374 = vadd.f32 0.0, %v1373
    %1375 = vdwg.mxu0
    %v1377 = vsel %vm203, %v1277, 0
    %1379 = vmatpush.msra.mxu0 0.0
    %1380 = vmatpush.msra.mxu0 0.0
    %1381 = vmatpush.msra.mxu0 0.0
    %1382 = vmatpush.msra.mxu0 0.0
    %1383 = vmatpush.msra.mxu0 0.0
    %1384 = vmatpush.msra.mxu0 0.0
    %1385 = vmatpush.msra.mxu0 0.0
    %1386 = vmatpush.msra.mxu0 0.0
    %1387 = vmatpush.msra.mxu0 0.0
    %1388 = vmatpush.msra.mxu0 0.0
    %1389 = vmatpush.msra.mxu0 0.0
    %1390 = vmatpush.msra.mxu0 0.0
    %1391 = vmatpush.msra.mxu0 0.0
    %1392 = vmatpush.msra.mxu0 0.0
    %1393 = vmatpush.msra.mxu0 %v1282
    %1394 = vmatpush.msra.mxu0 %v1281
    %1395 = vmatmul.f32.gmra.mxu0 %v1377
    %v1396 = vpop.f32.mrf.mxu0
    %v1397 = vadd.f32 %v1374, %v1396
    %1398 = vdwg.mxu0
    %1399 = vrot.lane.b32.xlu0 %v1213, 96
    %v1400 = vpop.permute.xlu0 %1399
    %1401 = vrot.lane.b32.xlu0 %v1197, 32
    %v1402 = vpop.permute.xlu0 %1401
    %v1403 = vsel %vm203, %v1400, 0
    %v1405 = vsel %vm203, %v1402, 0
    %1407 = vmatpush.xpose.msra.mxu0 0.0
    %1408 = vmatpush.xpose.msra.mxu0 0.0
    %1409 = vmatpush.xpose.msra.mxu0 0.0
    %1410 = vmatpush.xpose.msra.mxu0 0.0
    %1411 = vmatpush.xpose.msra.mxu0 0.0
    %1412 = vmatpush.xpose.msra.mxu0 0.0
    %1413 = vmatpush.xpose.msra.mxu0 0.0
    %1414 = vmatpush.xpose.msra.mxu0 0.0
    %1415 = vmatpush.xpose.msra.mxu0 0.0
    %1416 = vmatpush.xpose.msra.mxu0 0.0
    %1417 = vmatpush.xpose.msra.mxu0 0.0
    %1418 = vmatpush.xpose.msra.mxu0 0.0
    %1419 = vmatpush.xpose.msra.mxu0 0.0
    %1420 = vmatpush.xpose.msra.mxu0 0.0
    %1421 = vmatpush.xpose.msra.mxu0 0.0
    %1422 = vmatpush.xpose.msra.mxu0 %v1405
    %1423 = vmatmul.f32.gmra.mxu0 %v1403
    %v1424 = vpop.f32.mrf.mxu0
    %v1425 = vadd.f32 0.0, %v1424
    %1426 = vdwg.mxu0
    %v1427 = vsel %vm229, %v1425, -inf
    %1428 = vmax.xlane.f32.xlu0 %v1427
    %v1429 = vpop.xlane.xlu0 %1428
    %v1430 = vsub.f32 %v1425, %v1429
    %v1431 = vmul.f32 %v1430, 1.442695
    %v1432 = vpow.pop %v1431
    %v1433 = vsel %vm229, %v1432, 0.0
    %1434 = vadd.xlane.f32.xlu0 %v1433
    %v1435 = vpop.xlane.xlu0 %1434
    %v1436 = vrcp.pop %v1435
    %v1437 = vmul.f32 %v1432, %v1436
    %1438 = vrot.lane.b32.xlu0 %v1210, 96
    %v1439 = vpop.permute.xlu0 %1438
    %v1441 = vsel %vm241, %v1437, 0
    %v1443 = vsel %vm245, %v1439, 0
    %1445 = vmatpush.msra.mxu0 0.0
    %1446 = vmatpush.msra.mxu0 0.0
    %1447 = vmatpush.msra.mxu0 0.0
    %1448 = vmatpush.msra.mxu0 0.0
    %1449 = vmatpush.msra.mxu0 0.0
    %1450 = vmatpush.msra.mxu0 0.0
    %1451 = vmatpush.msra.mxu0 0.0
    %1452 = vmatpush.msra.mxu0 0.0
    %1453 = vmatpush.msra.mxu0 0.0
    %1454 = vmatpush.msra.mxu0 0.0
    %1455 = vmatpush.msra.mxu0 0.0
    %1456 = vmatpush.msra.mxu0 0.0
    %1457 = vmatpush.msra.mxu0 0.0
    %1458 = vmatpush.msra.mxu0 0.0
    %1459 = vmatpush.msra.mxu0 0.0
    %1460 = vmatpush.msra.mxu0 %v1443
    %1461 = vmatmul.f32.gmra.mxu0 %v1441
    %v1462 = vpop.f32.mrf.mxu0
    %v1463 = vadd.f32 0.0, %v1462
    %1464 = vdwg.mxu0
    %v1465 = vld [vmem:[#allocation6 + $0x10] sm:$0xf]
    %v1466 = vld [vmem:[#allocation6 + $0x14] sm:$0xf]
    %v1467 = vunpack.c.l.bf16 %v1465
    %v1468 = vunpack.c.l.bf16 %v1466
    %v1470 = vsel %vm203, %v1463, 0
    %1472 = vmatpush.msra.mxu0 0.0
    %1473 = vmatpush.msra.mxu0 0.0
    %1474 = vmatpush.msra.mxu0 0.0
    %1475 = vmatpush.msra.mxu0 0.0
    %1476 = vmatpush.msra.mxu0 0.0
    %1477 = vmatpush.msra.mxu0 0.0
    %1478 = vmatpush.msra.mxu0 0.0
    %1479 = vmatpush.msra.mxu0 0.0
    %1480 = vmatpush.msra.mxu0 0.0
    %1481 = vmatpush.msra.mxu0 0.0
    %1482 = vmatpush.msra.mxu0 0.0
    %1483 = vmatpush.msra.mxu0 0.0
    %1484 = vmatpush.msra.mxu0 0.0
    %1485 = vmatpush.msra.mxu0 0.0
    %1486 = vmatpush.msra.mxu0 %v1468
    %1487 = vmatpush.msra.mxu0 %v1467
    %1488 = vmatmul.f32.gmra.mxu0 %v1470
    %v1489 = vpop.f32.mrf.mxu0
    %v1490 = vadd.f32 0.0, %v1489
    %1491 = vdwg.mxu0
    %v1492 = vadd.f32 %v1397, %v1490
    %1493 = vrot.lane.b32.xlu0 %v1213, 80
    %v1494 = vpop.permute.xlu0 %1493
    %1495 = vrot.lane.b32.xlu0 %v1197, 16
    %v1496 = vpop.permute.xlu0 %1495
    %v1497 = vsel %vm203, %v1494, 0
    %v1499 = vsel %vm203, %v1496, 0
    %1501 = vmatpush.xpose.msra.mxu0 0.0
    %1502 = vmatpush.xpose.msra.mxu0 0.0
    %1503 = vmatpush.xpose.msra.mxu0 0.0
    %1504 = vmatpush.xpose.msra.mxu0 0.0
    %1505 = vmatpush.xpose.msra.mxu0 0.0
    %1506 = vmatpush.xpose.msra.mxu0 0.0
    %1507 = vmatpush.xpose.msra.mxu0 0.0
    %1508 = vmatpush.xpose.msra.mxu0 0.0
    %1509 = vmatpush.xpose.msra.mxu0 0.0
    %1510 = vmatpush.xpose.msra.mxu0 0.0
    %1511 = vmatpush.xpose.msra.mxu0 0.0
    %1512 = vmatpush.xpose.msra.mxu0 0.0
    %1513 = vmatpush.xpose.msra.mxu0 0.0
    %1514 = vmatpush.xpose.msra.mxu0 0.0
    %1515 = vmatpush.xpose.msra.mxu0 0.0
    %1516 = vmatpush.xpose.msra.mxu0 %v1499
    %1517 = vmatmul.f32.gmra.mxu0 %v1497
    %v1518 = vpop.f32.mrf.mxu0
    %v1519 = vadd.f32 0.0, %v1518
    %1520 = vdwg.mxu0
    %v1521 = vsel %vm229, %v1519, -inf
    %1522 = vmax.xlane.f32.xlu0 %v1521
    %v1523 = vpop.xlane.xlu0 %1522
    %v1524 = vsub.f32 %v1519, %v1523
    %v1525 = vmul.f32 %v1524, 1.442695
    %v1526 = vpow.pop %v1525
    %v1527 = vsel %vm229, %v1526, 0.0
    %1528 = vadd.xlane.f32.xlu0 %v1527
    %v1529 = vpop.xlane.xlu0 %1528
    %v1530 = vrcp.pop %v1529
    %v1531 = vmul.f32 %v1526, %v1530
    %1532 = vrot.lane.b32.xlu0 %v1210, 80
    %v1533 = vpop.permute.xlu0 %1532
    %v1535 = vsel %vm241, %v1531, 0
    %v1537 = vsel %vm245, %v1533, 0
    %1539 = vmatpush.msra.mxu0 0.0
    %1540 = vmatpush.msra.mxu0 0.0
    %1541 = vmatpush.msra.mxu0 0.0
    %1542 = vmatpush.msra.mxu0 0.0
    %1543 = vmatpush.msra.mxu0 0.0
    %1544 = vmatpush.msra.mxu0 0.0
    %1545 = vmatpush.msra.mxu0 0.0
    %1546 = vmatpush.msra.mxu0 0.0
    %1547 = vmatpush.msra.mxu0 0.0
    %1548 = vmatpush.msra.mxu0 0.0
    %1549 = vmatpush.msra.mxu0 0.0
    %1550 = vmatpush.msra.mxu0 0.0
    %1551 = vmatpush.msra.mxu0 0.0
    %1552 = vmatpush.msra.mxu0 0.0
    %1553 = vmatpush.msra.mxu0 0.0
    %1554 = vmatpush.msra.mxu0 %v1537
    %1555 = vmatmul.f32.gmra.mxu0 %v1535
    %v1556 = vpop.f32.mrf.mxu0
    %v1557 = vadd.f32 0.0, %v1556
    %1558 = vdwg.mxu0
    %v1559 = vld [vmem:[#allocation6 + $0x18] sm:$0xf]
    %v1560 = vld [vmem:[#allocation6 + $0x1c] sm:$0xf]
    %v1561 = vunpack.c.l.bf16 %v1559
    %v1562 = vunpack.c.l.bf16 %v1560
    %v1564 = vsel %vm203, %v1557, 0
    %1566 = vmatpush.msra.mxu0 0.0
    %1567 = vmatpush.msra.mxu0 0.0
    %1568 = vmatpush.msra.mxu0 0.0
    %1569 = vmatpush.msra.mxu0 0.0
    %1570 = vmatpush.msra.mxu0 0.0
    %1571 = vmatpush.msra.mxu0 0.0
    %1572 = vmatpush.msra.mxu0 0.0
    %1573 = vmatpush.msra.mxu0 0.0
    %1574 = vmatpush.msra.mxu0 0.0
    %1575 = vmatpush.msra.mxu0 0.0
    %1576 = vmatpush.msra.mxu0 0.0
    %1577 = vmatpush.msra.mxu0 0.0
    %1578 = vmatpush.msra.mxu0 0.0
    %1579 = vmatpush.msra.mxu0 0.0
    %1580 = vmatpush.msra.mxu0 %v1562
    %1581 = vmatpush.msra.mxu0 %v1561
    %1582 = vmatmul.f32.gmra.mxu0 %v1564
    %v1583 = vpop.f32.mrf.mxu0
    %v1584 = vadd.f32 0.0, %v1583
    %1585 = vdwg.mxu0
    %v1586 = vadd.f32 %v1492, %v1584
    %v1587 = vld [vmem:[#allocation7] sm:$0x1]
    %v1589 = vperm.slane %v1587, 0
    %v1591 = vadd.f32 %v1586, %v1589
    %v1592 = vadd.f32 %v1129, %v1591
    %v1593 = vsel %vm583, %v1592, 0.0
    %1594 = vadd.xlane.f32.xlu0 %v1593
    %v1595 = vpop.xlane.xlu0 %1594
    %v1596 = vmul.f32 %v1595, %v593
    %v1597 = vsub.f32 %v1592, %v1596
    %v1598 = vmul.f32 %v1597, %v1597
    %v1599 = vsel %vm583, %v1598, 0.0
    %1600 = vadd.xlane.f32.xlu0 %v1599
    %v1601 = vpop.xlane.xlu0 %1600
    %v1602 = vmul.f32 %v1601, %v593
    %v1603 = vadd.f32 %v1602, 1e-05
    %v1604 = vrsqrt.pop %v1603
    %v1605 = vmul.f32 %v1604, %v1603
    %v1606 = vmul.f32 %v1605, %v1604
    %v1607 = vmul.f32 0.5, %v1606
    %v1608 = vsub.f32 1.5, %v1607
    %v1609 = vmul.f32 %v1604, %v1608
    %vm1610 = vweird.f32 %v1603
    %vm1611 = vweird.f32 %v1604
    %vm1612 = vmor %vm1610, %vm1611
    %v1613 = vsel %vm1612, %v1604, %v1609
    %v1614 = vmul.f32 %v1597, %v1613
    %v1615 = vld [vmem:[#allocation9] sm:$0x1]
    %v1617 = vperm.slane %v1615, 0
    %v1619 = vmul.f32 %v1614, %v1617
    %v1620 = vld [vmem:[#allocation10] sm:$0x1]
    %v1622 = vperm.slane %v1620, 0
    %v1624 = vadd.f32 %v1619, %v1622
    %v1625 = vpack.c.bf16 %v1624, %v1624
    %s1626 = scalar_lea.vmem %s7, 2
    %1627 = vst.msk [vmem:[%s1626] sm:$0x1] %vm624, %v1625
    %s1628 = scalar_lea.vmem %s0, 3
    %v1629 = vld [vmem:[%s1628] sm:$0x1]
    %v1630 = vunpack.c.l.bf16 %v1629
    %v1631 = vld [vmem:[#allocation2] sm:$0xff]
    %v1632 = vld [vmem:[#allocation2 + $0x8] sm:$0xff]
    %v1633 = vld [vmem:[#allocation2 + $0x10] sm:$0xff]
    %v1634 = vld [vmem:[#allocation2 + $0x18] sm:$0xff]
    %v1635 = vld [vmem:[#allocation2 + $0x20] sm:$0xff]
    %v1636 = vld [vmem:[#allocation2 + $0x28] sm:$0xff]
    %v1637 = vld [vmem:[#allocation2 + $0x30] sm:$0xff]
    %v1638 = vld [vmem:[#allocation2 + $0x38] sm:$0xff]
    %v1639 = vld [vmem:[#allocation4] sm:$0x3]
    %v1641 = vperm.slane %v1639, 0
    %v1642 = vperm.slane %v1639, 1
    %v1653 = vunpack.c.l.b16 %v1631
    %v1654 = vunpack.c.h.b16 %v1631
    %v1655 = vunpack.c.l.b16 %v1632
    %v1656 = vunpack.c.h.b16 %v1632
    %v1657 = vunpack.c.l.b16 %v1633
    %v1658 = vunpack.c.h.b16 %v1633
    %v1659 = vunpack.c.l.b16 %v1634
    %v1660 = vunpack.c.h.b16 %v1634
    %v1661 = vunpack.c.l.b16 %v1635
    %v1662 = vunpack.c.h.b16 %v1635
    %v1663 = vunpack.c.l.b16 %v1636
    %v1664 = vunpack.c.h.b16 %v1636
    %v1665 = vunpack.c.l.b16 %v1637
    %v1666 = vunpack.c.h.b16 %v1637
    %v1667 = vunpack.c.l.b16 %v1638
    %v1668 = vunpack.c.h.b16 %v1638
    %v1669 = vpack.c.b16 %v1655, %v1653
    %v1670 = vpack.c.b16 %v1656, %v1654
    %v1671 = vpack.c.b16 %v1659, %v1657
    %v1672 = vpack.c.b16 %v1660, %v1658
    %v1673 = vpack.c.b16 %v1663, %v1661
    %v1674 = vpack.c.b16 %v1664, %v1662
    %v1675 = vpack.c.b16 %v1667, %v1665
    %v1676 = vpack.c.b16 %v1668, %v1666
    %v1686 = vsel %vm169, %v1629, 0
    %1688 = vmatpush.bf16.msra.mxu0 0
    %1689 = vmatpush.bf16.msra.mxu0 0
    %1690 = vmatpush.bf16.msra.mxu0 0
    %1691 = vmatpush.bf16.msra.mxu0 0
    %1692 = vmatpush.bf16.msra.mxu0 %v1675
    %1693 = vmatpush.bf16.msra.mxu0 %v1673
    %1694 = vmatpush.bf16.msra.mxu0 %v1671
    %1695 = vmatpush.bf16.msra.mxu0 %v1669
    %1696 = vmatmul.bf16.gmra.mxu0 %v1686
    %v1697 = vpop.f32.mrf.mxu0
    %v1698 = vadd.f32 %v1641, %v1697
    %v1699 = vpop.f32.mrf.mxu0
    %1700 = vdwg.mxu0
    %1701 = vmatpush.bf16.msra.mxu0 0
    %1702 = vmatpush.bf16.msra.mxu0 0
    %1703 = vmatpush.bf16.msra.mxu0 0
    %1704 = vmatpush.bf16.msra.mxu0 0
    %1705 = vmatpush.bf16.msra.mxu0 %v1676
    %1706 = vmatpush.bf16.msra.mxu0 %v1674
    %1707 = vmatpush.bf16.msra.mxu0 %v1672
    %1708 = vmatpush.bf16.msra.mxu0 %v1670
    %1709 = vmatmul.bf16.gmra.mxu0 %v1686
    %v1710 = vpop.f32.mrf.mxu0
    %v1711 = vadd.f32 %v1642, %v1710
    %v1712 = vpop.f32.mrf.mxu0
    %1713 = vdwg.mxu0
    %v1714 = vmul.f32 %v1698, 0.25
    %1716 = vrot.lane.b32.xlu0 %v1698, 64
    %v1717 = vpop.permute.xlu0 %1716
    %v1719 = vsel %vm203, %v1714, 0
    %v1721 = vsel %vm203, %v1717, 0
    %1723 = vmatpush.xpose.msra.mxu0 0.0
    %1724 = vmatpush.xpose.msra.mxu0 0.0
    %1725 = vmatpush.xpose.msra.mxu0 0.0
    %1726 = vmatpush.xpose.msra.mxu0 0.0
    %1727 = vmatpush.xpose.msra.mxu0 0.0
    %1728 = vmatpush.xpose.msra.mxu0 0.0
    %1729 = vmatpush.xpose.msra.mxu0 0.0
    %1730 = vmatpush.xpose.msra.mxu0 0.0
    %1731 = vmatpush.xpose.msra.mxu0 0.0
    %1732 = vmatpush.xpose.msra.mxu0 0.0
    %1733 = vmatpush.xpose.msra.mxu0 0.0
    %1734 = vmatpush.xpose.msra.mxu0 0.0
    %1735 = vmatpush.xpose.msra.mxu0 0.0
    %1736 = vmatpush.xpose.msra.mxu0 0.0
    %1737 = vmatpush.xpose.msra.mxu0 0.0
    %1738 = vmatpush.xpose.msra.mxu0 %v1721
    %1739 = vmatmul.f32.gmra.mxu0 %v1719
    %v1740 = vpop.f32.mrf.mxu0
    %v1741 = vadd.f32 0.0, %v1740
    %1742 = vdwg.mxu0
    %v1743 = vsel %vm229, %v1741, -inf
    %1744 = vmax.xlane.f32.xlu0 %v1743
    %v1745 = vpop.xlane.xlu0 %1744
    %v1746 = vsub.f32 %v1741, %v1745
    %v1747 = vmul.f32 %v1746, 1.442695
    %v1748 = vpow.pop %v1747
    %v1749 = vsel %vm229, %v1748, 0.0
    %1750 = vadd.xlane.f32.xlu0 %v1749
    %v1751 = vpop.xlane.xlu0 %1750
    %v1752 = vrcp.pop %v1751
    %v1753 = vmul.f32 %v1748, %v1752
    %v1755 = vsel %vm241, %v1753, 0
    %v1758 = vsel %vm245, %v1711, 0
    %1760 = vmatpush.msra.mxu0 0.0
    %1761 = vmatpush.msra.mxu0 0.0
    %1762 = vmatpush.msra.mxu0 0.0
    %1763 = vmatpush.msra.mxu0 0.0
    %1764 = vmatpush.msra.mxu0 0.0
    %1765 = vmatpush.msra.mxu0 0.0
    %1766 = vmatpush.msra.mxu0 0.0
    %1767 = vmatpush.msra.mxu0 0.0
    %1768 = vmatpush.msra.mxu0 0.0
    %1769 = vmatpush.msra.mxu0 0.0
    %1770 = vmatpush.msra.mxu0 0.0
    %1771 = vmatpush.msra.mxu0 0.0
    %1772 = vmatpush.msra.mxu0 0.0
    %1773 = vmatpush.msra.mxu0 0.0
    %1774 = vmatpush.msra.mxu0 0.0
    %1775 = vmatpush.msra.mxu0 %v1758
    %1776 = vmatmul.f32.gmra.mxu0 %v1755
    %v1777 = vpop.f32.mrf.mxu0
    %v1778 = vadd.f32 0.0, %v1777
    %1779 = vdwg.mxu0
    %v1780 = vld [vmem:[#allocation6] sm:$0xf]
    %v1781 = vld [vmem:[#allocation6 + $0x4] sm:$0xf]
    %v1782 = vunpack.c.l.bf16 %v1780
    %v1783 = vunpack.c.l.bf16 %v1781
    %1784 = vrot.lane.b32.xlu0 %v1714, 112
    %v1785 = vpop.permute.xlu0 %1784
    %1786 = vrot.lane.b32.xlu0 %v1698, 48
    %v1787 = vpop.permute.xlu0 %1786
    %v1788 = vsel %vm203, %v1785, 0
    %v1790 = vsel %vm203, %v1787, 0
    %1792 = vmatpush.xpose.msra.mxu0 0.0
    %1793 = vmatpush.xpose.msra.mxu0 0.0
    %1794 = vmatpush.xpose.msra.mxu0 0.0
    %1795 = vmatpush.xpose.msra.mxu0 0.0
    %1796 = vmatpush.xpose.msra.mxu0 0.0
    %1797 = vmatpush.xpose.msra.mxu0 0.0
    %1798 = vmatpush.xpose.msra.mxu0 0.0
    %1799 = vmatpush.xpose.msra.mxu0 0.0
    %1800 = vmatpush.xpose.msra.mxu0 0.0
    %1801 = vmatpush.xpose.msra.mxu0 0.0
    %1802 = vmatpush.xpose.msra.mxu0 0.0
    %1803 = vmatpush.xpose.msra.mxu0 0.0
    %1804 = vmatpush.xpose.msra.mxu0 0.0
    %1805 = vmatpush.xpose.msra.mxu0 0.0
    %1806 = vmatpush.xpose.msra.mxu0 0.0
    %1807 = vmatpush.xpose.msra.mxu0 %v1790
    %1808 = vmatmul.f32.gmra.mxu0 %v1788
    %v1809 = vpop.f32.mrf.mxu0
    %v1810 = vadd.f32 0.0, %v1809
    %1811 = vdwg.mxu0
    %v1812 = vsel %vm229, %v1810, -inf
    %1813 = vmax.xlane.f32.xlu0 %v1812
    %v1814 = vpop.xlane.xlu0 %1813
    %v1815 = vsub.f32 %v1810, %v1814
    %v1816 = vmul.f32 %v1815, 1.442695
    %v1817 = vpow.pop %v1816
    %v1818 = vsel %vm229, %v1817, 0.0
    %1819 = vadd.xlane.f32.xlu0 %v1818
    %v1820 = vpop.xlane.xlu0 %1819
    %v1821 = vrcp.pop %v1820
    %v1822 = vmul.f32 %v1817, %v1821
    %1823 = vrot.lane.b32.xlu0 %v1711, 112
    %v1824 = vpop.permute.xlu0 %1823
    %v1826 = vsel %vm241, %v1822, 0
    %v1828 = vsel %vm245, %v1824, 0
    %1830 = vmatpush.msra.mxu0 0.0
    %1831 = vmatpush.msra.mxu0 0.0
    %1832 = vmatpush.msra.mxu0 0.0
    %1833 = vmatpush.msra.mxu0 0.0
    %1834 = vmatpush.msra.mxu0 0.0
    %1835 = vmatpush.msra.mxu0 0.0
    %1836 = vmatpush.msra.mxu0 0.0
    %1837 = vmatpush.msra.mxu0 0.0
    %1838 = vmatpush.msra.mxu0 0.0
    %1839 = vmatpush.msra.mxu0 0.0
    %1840 = vmatpush.msra.mxu0 0.0
    %1841 = vmatpush.msra.mxu0 0.0
    %1842 = vmatpush.msra.mxu0 0.0
    %1843 = vmatpush.msra.mxu0 0.0
    %1844 = vmatpush.msra.mxu0 0.0
    %1845 = vmatpush.msra.mxu0 %v1828
    %1846 = vmatmul.f32.gmra.mxu0 %v1826
    %v1847 = vpop.f32.mrf.mxu0
    %v1848 = vadd.f32 0.0, %v1847
    %1849 = vdwg.mxu0
    %v1850 = vld [vmem:[#allocation6 + $0x8] sm:$0xf]
    %v1851 = vld [vmem:[#allocation6 + $0xc] sm:$0xf]
    %v1852 = vunpack.c.l.bf16 %v1850
    %v1853 = vunpack.c.l.bf16 %v1851
    %v1855 = vsel %vm203, %v1848, 0
    %1857 = vmatpush.msra.mxu0 0.0
    %1858 = vmatpush.msra.mxu0 0.0
    %1859 = vmatpush.msra.mxu0 0.0
    %1860 = vmatpush.msra.mxu0 0.0
    %1861 = vmatpush.msra.mxu0 0.0
    %1862 = vmatpush.msra.mxu0 0.0
    %1863 = vmatpush.msra.mxu0 0.0
    %1864 = vmatpush.msra.mxu0 0.0
    %1865 = vmatpush.msra.mxu0 0.0
    %1866 = vmatpush.msra.mxu0 0.0
    %1867 = vmatpush.msra.mxu0 0.0
    %1868 = vmatpush.msra.mxu0 0.0
    %1869 = vmatpush.msra.mxu0 0.0
    %1870 = vmatpush.msra.mxu0 0.0
    %1871 = vmatpush.msra.mxu0 %v1853
    %1872 = vmatpush.msra.mxu0 %v1852
    %1873 = vmatmul.f32.gmra.mxu0 %v1855
    %v1874 = vpop.f32.mrf.mxu0
    %v1875 = vadd.f32 0.0, %v1874
    %1876 = vdwg.mxu0
    %v1878 = vsel %vm203, %v1778, 0
    %1880 = vmatpush.msra.mxu0 0.0
    %1881 = vmatpush.msra.mxu0 0.0
    %1882 = vmatpush.msra.mxu0 0.0
    %1883 = vmatpush.msra.mxu0 0.0
    %1884 = vmatpush.msra.mxu0 0.0
    %1885 = vmatpush.msra.mxu0 0.0
    %1886 = vmatpush.msra.mxu0 0.0
    %1887 = vmatpush.msra.mxu0 0.0
    %1888 = vmatpush.msra.mxu0 0.0
    %1889 = vmatpush.msra.mxu0 0.0
    %1890 = vmatpush.msra.mxu0 0.0
    %1891 = vmatpush.msra.mxu0 0.0
    %1892 = vmatpush.msra.mxu0 0.0
    %1893 = vmatpush.msra.mxu0 0.0
    %1894 = vmatpush.msra.mxu0 %v1783
    %1895 = vmatpush.msra.mxu0 %v1782
    %1896 = vmatmul.f32.gmra.mxu0 %v1878
    %v1897 = vpop.f32.mrf.mxu0
    %v1898 = vadd.f32 %v1875, %v1897
    %1899 = vdwg.mxu0
    %1900 = vrot.lane.b32.xlu0 %v1714, 96
    %v1901 = vpop.permute.xlu0 %1900
    %1902 = vrot.lane.b32.xlu0 %v1698, 32
    %v1903 = vpop.permute.xlu0 %1902
    %v1904 = vsel %vm203, %v1901, 0
    %v1906 = vsel %vm203, %v1903, 0
    %1908 = vmatpush.xpose.msra.mxu0 0.0
    %1909 = vmatpush.xpose.msra.mxu0 0.0
    %1910 = vmatpush.xpose.msra.mxu0 0.0
    %1911 = vmatpush.xpose.msra.mxu0 0.0
    %1912 = vmatpush.xpose.msra.mxu0 0.0
    %1913 = vmatpush.xpose.msra.mxu0 0.0
    %1914 = vmatpush.xpose.msra.mxu0 0.0
    %1915 = vmatpush.xpose.msra.mxu0 0.0
    %1916 = vmatpush.xpose.msra.mxu0 0.0
    %1917 = vmatpush.xpose.msra.mxu0 0.0
    %1918 = vmatpush.xpose.msra.mxu0 0.0
    %1919 = vmatpush.xpose.msra.mxu0 0.0
    %1920 = vmatpush.xpose.msra.mxu0 0.0
    %1921 = vmatpush.xpose.msra.mxu0 0.0
    %1922 = vmatpush.xpose.msra.mxu0 0.0
    %1923 = vmatpush.xpose.msra.mxu0 %v1906
    %1924 = vmatmul.f32.gmra.mxu0 %v1904
    %v1925 = vpop.f32.mrf.mxu0
    %v1926 = vadd.f32 0.0, %v1925
    %1927 = vdwg.mxu0
    %v1928 = vsel %vm229, %v1926, -inf
    %1929 = vmax.xlane.f32.xlu0 %v1928
    %v1930 = vpop.xlane.xlu0 %1929
    %v1931 = vsub.f32 %v1926, %v1930
    %v1932 = vmul.f32 %v1931, 1.442695
    %v1933 = vpow.pop %v1932
    %v1934 = vsel %vm229, %v1933, 0.0
    %1935 = vadd.xlane.f32.xlu0 %v1934
    %v1936 = vpop.xlane.xlu0 %1935
    %v1937 = vrcp.pop %v1936
    %v1938 = vmul.f32 %v1933, %v1937
    %1939 = vrot.lane.b32.xlu0 %v1711, 96
    %v1940 = vpop.permute.xlu0 %1939
    %v1942 = vsel %vm241, %v1938, 0
    %v1944 = vsel %vm245, %v1940, 0
    %1946 = vmatpush.msra.mxu0 0.0
    %1947 = vmatpush.msra.mxu0 0.0
    %1948 = vmatpush.msra.mxu0 0.0
    %1949 = vmatpush.msra.mxu0 0.0
    %1950 = vmatpush.msra.mxu0 0.0
    %1951 = vmatpush.msra.mxu0 0.0
    %1952 = vmatpush.msra.mxu0 0.0
    %1953 = vmatpush.msra.mxu0 0.0
    %1954 = vmatpush.msra.mxu0 0.0
    %1955 = vmatpush.msra.mxu0 0.0
    %1956 = vmatpush.msra.mxu0 0.0
    %1957 = vmatpush.msra.mxu0 0.0
    %1958 = vmatpush.msra.mxu0 0.0
    %1959 = vmatpush.msra.mxu0 0.0
    %1960 = vmatpush.msra.mxu0 0.0
    %1961 = vmatpush.msra.mxu0 %v1944
    %1962 = vmatmul.f32.gmra.mxu0 %v1942
    %v1963 = vpop.f32.mrf.mxu0
    %v1964 = vadd.f32 0.0, %v1963
    %1965 = vdwg.mxu0
    %v1966 = vld [vmem:[#allocation6 + $0x10] sm:$0xf]
    %v1967 = vld [vmem:[#allocation6 + $0x14] sm:$0xf]
    %v1968 = vunpack.c.l.bf16 %v1966
    %v1969 = vunpack.c.l.bf16 %v1967
    %v1971 = vsel %vm203, %v1964, 0
    %1973 = vmatpush.msra.mxu0 0.0
    %1974 = vmatpush.msra.mxu0 0.0
    %1975 = vmatpush.msra.mxu0 0.0
    %1976 = vmatpush.msra.mxu0 0.0
    %1977 = vmatpush.msra.mxu0 0.0
    %1978 = vmatpush.msra.mxu0 0.0
    %1979 = vmatpush.msra.mxu0 0.0
    %1980 = vmatpush.msra.mxu0 0.0
    %1981 = vmatpush.msra.mxu0 0.0
    %1982 = vmatpush.msra.mxu0 0.0
    %1983 = vmatpush.msra.mxu0 0.0
    %1984 = vmatpush.msra.mxu0 0.0
    %1985 = vmatpush.msra.mxu0 0.0
    %1986 = vmatpush.msra.mxu0 0.0
    %1987 = vmatpush.msra.mxu0 %v1969
    %1988 = vmatpush.msra.mxu0 %v1968
    %1989 = vmatmul.f32.gmra.mxu0 %v1971
    %v1990 = vpop.f32.mrf.mxu0
    %v1991 = vadd.f32 0.0, %v1990
    %1992 = vdwg.mxu0
    %v1993 = vadd.f32 %v1898, %v1991
    %1994 = vrot.lane.b32.xlu0 %v1714, 80
    %v1995 = vpop.permute.xlu0 %1994
    %1996 = vrot.lane.b32.xlu0 %v1698, 16
    %v1997 = vpop.permute.xlu0 %1996
    %v1998 = vsel %vm203, %v1995, 0
    %v2000 = vsel %vm203, %v1997, 0
    %2002 = vmatpush.xpose.msra.mxu0 0.0
    %2003 = vmatpush.xpose.msra.mxu0 0.0
    %2004 = vmatpush.xpose.msra.mxu0 0.0
    %2005 = vmatpush.xpose.msra.mxu0 0.0
    %2006 = vmatpush.xpose.msra.mxu0 0.0
    %2007 = vmatpush.xpose.msra.mxu0 0.0
    %2008 = vmatpush.xpose.msra.mxu0 0.0
    %2009 = vmatpush.xpose.msra.mxu0 0.0
    %2010 = vmatpush.xpose.msra.mxu0 0.0
    %2011 = vmatpush.xpose.msra.mxu0 0.0
    %2012 = vmatpush.xpose.msra.mxu0 0.0
    %2013 = vmatpush.xpose.msra.mxu0 0.0
    %2014 = vmatpush.xpose.msra.mxu0 0.0
    %2015 = vmatpush.xpose.msra.mxu0 0.0
    %2016 = vmatpush.xpose.msra.mxu0 0.0
    %2017 = vmatpush.xpose.msra.mxu0 %v2000
    %2018 = vmatmul.f32.gmra.mxu0 %v1998
    %v2019 = vpop.f32.mrf.mxu0
    %v2020 = vadd.f32 0.0, %v2019
    %2021 = vdwg.mxu0
    %v2022 = vsel %vm229, %v2020, -inf
    %2023 = vmax.xlane.f32.xlu0 %v2022
    %v2024 = vpop.xlane.xlu0 %2023
    %v2025 = vsub.f32 %v2020, %v2024
    %v2026 = vmul.f32 %v2025, 1.442695
    %v2027 = vpow.pop %v2026
    %v2028 = vsel %vm229, %v2027, 0.0
    %2029 = vadd.xlane.f32.xlu0 %v2028
    %v2030 = vpop.xlane.xlu0 %2029
    %v2031 = vrcp.pop %v2030
    %v2032 = vmul.f32 %v2027, %v2031
    %2033 = vrot.lane.b32.xlu0 %v1711, 80
    %v2034 = vpop.permute.xlu0 %2033
    %v2036 = vsel %vm241, %v2032, 0
    %v2038 = vsel %vm245, %v2034, 0
    %2040 = vmatpush.msra.mxu0 0.0
    %2041 = vmatpush.msra.mxu0 0.0
    %2042 = vmatpush.msra.mxu0 0.0
    %2043 = vmatpush.msra.mxu0 0.0
    %2044 = vmatpush.msra.mxu0 0.0
    %2045 = vmatpush.msra.mxu0 0.0
    %2046 = vmatpush.msra.mxu0 0.0
    %2047 = vmatpush.msra.mxu0 0.0
    %2048 = vmatpush.msra.mxu0 0.0
    %2049 = vmatpush.msra.mxu0 0.0
    %2050 = vmatpush.msra.mxu0 0.0
    %2051 = vmatpush.msra.mxu0 0.0
    %2052 = vmatpush.msra.mxu0 0.0
    %2053 = vmatpush.msra.mxu0 0.0
    %2054 = vmatpush.msra.mxu0 0.0
    %2055 = vmatpush.msra.mxu0 %v2038
    %2056 = vmatmul.f32.gmra.mxu0 %v2036
    %v2057 = vpop.f32.mrf.mxu0
    %v2058 = vadd.f32 0.0, %v2057
    %2059 = vdwg.mxu0
    %v2060 = vld [vmem:[#allocation6 + $0x18] sm:$0xf]
    %v2061 = vld [vmem:[#allocation6 + $0x1c] sm:$0xf]
    %v2062 = vunpack.c.l.bf16 %v2060
    %v2063 = vunpack.c.l.bf16 %v2061
    %v2065 = vsel %vm203, %v2058, 0
    %2067 = vmatpush.msra.mxu0 0.0
    %2068 = vmatpush.msra.mxu0 0.0
    %2069 = vmatpush.msra.mxu0 0.0
    %2070 = vmatpush.msra.mxu0 0.0
    %2071 = vmatpush.msra.mxu0 0.0
    %2072 = vmatpush.msra.mxu0 0.0
    %2073 = vmatpush.msra.mxu0 0.0
    %2074 = vmatpush.msra.mxu0 0.0
    %2075 = vmatpush.msra.mxu0 0.0
    %2076 = vmatpush.msra.mxu0 0.0
    %2077 = vmatpush.msra.mxu0 0.0
    %2078 = vmatpush.msra.mxu0 0.0
    %2079 = vmatpush.msra.mxu0 0.0
    %2080 = vmatpush.msra.mxu0 0.0
    %2081 = vmatpush.msra.mxu0 %v2063
    %2082 = vmatpush.msra.mxu0 %v2062
    %2083 = vmatmul.f32.gmra.mxu0 %v2065
    %v2084 = vpop.f32.mrf.mxu0
    %v2085 = vadd.f32 0.0, %v2084
    %2086 = vdwg.mxu0
    %v2087 = vadd.f32 %v1993, %v2085
    %v2088 = vld [vmem:[#allocation7] sm:$0x1]
    %v2090 = vperm.slane %v2088, 0
    %v2092 = vadd.f32 %v2087, %v2090
    %v2093 = vadd.f32 %v1630, %v2092
    %v2094 = vsel %vm583, %v2093, 0.0
    %2095 = vadd.xlane.f32.xlu0 %v2094
    %v2096 = vpop.xlane.xlu0 %2095
    %v2097 = vmul.f32 %v2096, %v593
    %v2098 = vsub.f32 %v2093, %v2097
    %v2099 = vmul.f32 %v2098, %v2098
    %v2100 = vsel %vm583, %v2099, 0.0
    %2101 = vadd.xlane.f32.xlu0 %v2100
    %v2102 = vpop.xlane.xlu0 %2101
    %v2103 = vmul.f32 %v2102, %v593
    %v2104 = vadd.f32 %v2103, 1e-05
    %v2105 = vrsqrt.pop %v2104
    %v2106 = vmul.f32 %v2105, %v2104
    %v2107 = vmul.f32 %v2106, %v2105
    %v2108 = vmul.f32 0.5, %v2107
    %v2109 = vsub.f32 1.5, %v2108
    %v2110 = vmul.f32 %v2105, %v2109
    %vm2111 = vweird.f32 %v2104
    %vm2112 = vweird.f32 %v2105
    %vm2113 = vmor %vm2111, %vm2112
    %v2114 = vsel %vm2113, %v2105, %v2110
    %v2115 = vmul.f32 %v2098, %v2114
    %v2116 = vld [vmem:[#allocation9] sm:$0x1]
    %v2118 = vperm.slane %v2116, 0
    %v2120 = vmul.f32 %v2115, %v2118
    %v2121 = vld [vmem:[#allocation10] sm:$0x1]
    %v2123 = vperm.slane %v2121, 0
    %v2125 = vadd.f32 %v2120, %v2123
    %v2126 = vpack.c.bf16 %v2125, %v2125
    %s2127 = scalar_lea.vmem %s7, 3
    %2128 = vst.msk [vmem:[%s2127] sm:$0x1] %vm624, %v2126
    %s2129 = scalar_lea.vmem %s0, 4
    %v2130 = vld [vmem:[%s2129] sm:$0x1]
    %v2131 = vunpack.c.l.bf16 %v2130
    %v2132 = vld [vmem:[#allocation2] sm:$0xff]
    %v2133 = vld [vmem:[#allocation2 + $0x8] sm:$0xff]
    %v2134 = vld [vmem:[#allocation2 + $0x10] sm:$0xff]
    %v2135 = vld [vmem:[#allocation2 + $0x18] sm:$0xff]
    %v2136 = vld [vmem:[#allocation2 + $0x20] sm:$0xff]
    %v2137 = vld [vmem:[#allocation2 + $0x28] sm:$0xff]
    %v2138 = vld [vmem:[#allocation2 + $0x30] sm:$0xff]
    %v2139 = vld [vmem:[#allocation2 + $0x38] sm:$0xff]
    %v2140 = vld [vmem:[#allocation4] sm:$0x3]
    %v2142 = vperm.slane %v2140, 0
    %v2143 = vperm.slane %v2140, 1
    %v2154 = vunpack.c.l.b16 %v2132
    %v2155 = vunpack.c.h.b16 %v2132
    %v2156 = vunpack.c.l.b16 %v2133
    %v2157 = vunpack.c.h.b16 %v2133
    %v2158 = vunpack.c.l.b16 %v2134
    %v2159 = vunpack.c.h.b16 %v2134
    %v2160 = vunpack.c.l.b16 %v2135
    %v2161 = vunpack.c.h.b16 %v2135
    %v2162 = vunpack.c.l.b16 %v2136
    %v2163 = vunpack.c.h.b16 %v2136
    %v2164 = vunpack.c.l.b16 %v2137
    %v2165 = vunpack.c.h.b16 %v2137
    %v2166 = vunpack.c.l.b16 %v2138
    %v2167 = vunpack.c.h.b16 %v2138
    %v2168 = vunpack.c.l.b16 %v2139
    %v2169 = vunpack.c.h.b16 %v2139
    %v2170 = vpack.c.b16 %v2156, %v2154
    %v2171 = vpack.c.b16 %v2157, %v2155
    %v2172 = vpack.c.b16 %v2160, %v2158
    %v2173 = vpack.c.b16 %v2161, %v2159
    %v2174 = vpack.c.b16 %v2164, %v2162
    %v2175 = vpack.c.b16 %v2165, %v2163
    %v2176 = vpack.c.b16 %v2168, %v2166
    %v2177 = vpack.c.b16 %v2169, %v2167
    %v2187 = vsel %vm169, %v2130, 0
    %2189 = vmatpush.bf16.msra.mxu0 0
    %2190 = vmatpush.bf16.msra.mxu0 0
    %2191 = vmatpush.bf16.msra.mxu0 0
    %2192 = vmatpush.bf16.msra.mxu0 0
    %2193 = vmatpush.bf16.msra.mxu0 %v2176
    %2194 = vmatpush.bf16.msra.mxu0 %v2174
    %2195 = vmatpush.bf16.msra.mxu0 %v2172
    %2196 = vmatpush.bf16.msra.mxu0 %v2170
    %2197 = vmatmul.bf16.gmra.mxu0 %v2187
    %v2198 = vpop.f32.mrf.mxu0
    %v2199 = vadd.f32 %v2142, %v2198
    %v2200 = vpop.f32.mrf.mxu0
    %2201 = vdwg.mxu0
    %2202 = vmatpush.bf16.msra.mxu0 0
    %2203 = vmatpush.bf16.msra.mxu0 0
    %2204 = vmatpush.bf16.msra.mxu0 0
    %2205 = vmatpush.bf16.msra.mxu0 0
    %2206 = vmatpush.bf16.msra.mxu0 %v2177
    %2207 = vmatpush.bf16.msra.mxu0 %v2175
    %2208 = vmatpush.bf16.msra.mxu0 %v2173
    %2209 = vmatpush.bf16.msra.mxu0 %v2171
    %2210 = vmatmul.bf16.gmra.mxu0 %v2187
    %v2211 = vpop.f32.mrf.mxu0
    %v2212 = vadd.f32 %v2143, %v2211
    %v2213 = vpop.f32.mrf.mxu0
    %2214 = vdwg.mxu0
    %v2215 = vmul.f32 %v2199, 0.25
    %2217 = vrot.lane.b32.xlu0 %v2199, 64
    %v2218 = vpop.permute.xlu0 %2217
    %v2220 = vsel %vm203, %v2215, 0
    %v2222 = vsel %vm203, %v2218, 0
    %2224 = vmatpush.xpose.msra.mxu0 0.0
    %2225 = vmatpush.xpose.msra.mxu0 0.0
    %2226 = vmatpush.xpose.msra.mxu0 0.0
    %2227 = vmatpush.xpose.msra.mxu0 0.0
    %2228 = vmatpush.xpose.msra.mxu0 0.0
    %2229 = vmatpush.xpose.msra.mxu0 0.0
    %2230 = vmatpush.xpose.msra.mxu0 0.0
    %2231 = vmatpush.xpose.msra.mxu0 0.0
    %2232 = vmatpush.xpose.msra.mxu0 0.0
    %2233 = vmatpush.xpose.msra.mxu0 0.0
    %2234 = vmatpush.xpose.msra.mxu0 0.0
    %2235 = vmatpush.xpose.msra.mxu0 0.0
    %2236 = vmatpush.xpose.msra.mxu0 0.0
    %2237 = vmatpush.xpose.msra.mxu0 0.0
    %2238 = vmatpush.xpose.msra.mxu0 0.0
    %2239 = vmatpush.xpose.msra.mxu0 %v2222
    %2240 = vmatmul.f32.gmra.mxu0 %v2220
    %v2241 = vpop.f32.mrf.mxu0
    %v2242 = vadd.f32 0.0, %v2241
    %2243 = vdwg.mxu0
    %v2244 = vsel %vm229, %v2242, -inf
    %2245 = vmax.xlane.f32.xlu0 %v2244
    %v2246 = vpop.xlane.xlu0 %2245
    %v2247 = vsub.f32 %v2242, %v2246
    %v2248 = vmul.f32 %v2247, 1.442695
    %v2249 = vpow.pop %v2248
    %v2250 = vsel %vm229, %v2249, 0.0
    %2251 = vadd.xlane.f32.xlu0 %v2250
    %v2252 = vpop.xlane.xlu0 %2251
    %v2253 = vrcp.pop %v2252
    %v2254 = vmul.f32 %v2249, %v2253
    %v2256 = vsel %vm241, %v2254, 0
    %v2259 = vsel %vm245, %v2212, 0
    %2261 = vmatpush.msra.mxu0 0.0
    %2262 = vmatpush.msra.mxu0 0.0
    %2263 = vmatpush.msra.mxu0 0.0
    %2264 = vmatpush.msra.mxu0 0.0
    %2265 = vmatpush.msra.mxu0 0.0
    %2266 = vmatpush.msra.mxu0 0.0
    %2267 = vmatpush.msra.mxu0 0.0
    %2268 = vmatpush.msra.mxu0 0.0
    %2269 = vmatpush.msra.mxu0 0.0
    %2270 = vmatpush.msra.mxu0 0.0
    %2271 = vmatpush.msra.mxu0 0.0
    %2272 = vmatpush.msra.mxu0 0.0
    %2273 = vmatpush.msra.mxu0 0.0
    %2274 = vmatpush.msra.mxu0 0.0
    %2275 = vmatpush.msra.mxu0 0.0
    %2276 = vmatpush.msra.mxu0 %v2259
    %2277 = vmatmul.f32.gmra.mxu0 %v2256
    %v2278 = vpop.f32.mrf.mxu0
    %v2279 = vadd.f32 0.0, %v2278
    %2280 = vdwg.mxu0
    %v2281 = vld [vmem:[#allocation6] sm:$0xf]
    %v2282 = vld [vmem:[#allocation6 + $0x4] sm:$0xf]
    %v2283 = vunpack.c.l.bf16 %v2281
    %v2284 = vunpack.c.l.bf16 %v2282
    %2285 = vrot.lane.b32.xlu0 %v2215, 112
    %v2286 = vpop.permute.xlu0 %2285
    %2287 = vrot.lane.b32.xlu0 %v2199, 48
    %v2288 = vpop.permute.xlu0 %2287
    %v2289 = vsel %vm203, %v2286, 0
    %v2291 = vsel %vm203, %v2288, 0
    %2293 = vmatpush.xpose.msra.mxu0 0.0
    %2294 = vmatpush.xpose.msra.mxu0 0.0
    %2295 = vmatpush.xpose.msra.mxu0 0.0
    %2296 = vmatpush.xpose.msra.mxu0 0.0
    %2297 = vmatpush.xpose.msra.mxu0 0.0
    %2298 = vmatpush.xpose.msra.mxu0 0.0
    %2299 = vmatpush.xpose.msra.mxu0 0.0
    %2300 = vmatpush.xpose.msra.mxu0 0.0
    %2301 = vmatpush.xpose.msra.mxu0 0.0
    %2302 = vmatpush.xpose.msra.mxu0 0.0
    %2303 = vmatpush.xpose.msra.mxu0 0.0
    %2304 = vmatpush.xpose.msra.mxu0 0.0
    %2305 = vmatpush.xpose.msra.mxu0 0.0
    %2306 = vmatpush.xpose.msra.mxu0 0.0
    %2307 = vmatpush.xpose.msra.mxu0 0.0
    %2308 = vmatpush.xpose.msra.mxu0 %v2291
    %2309 = vmatmul.f32.gmra.mxu0 %v2289
    %v2310 = vpop.f32.mrf.mxu0
    %v2311 = vadd.f32 0.0, %v2310
    %2312 = vdwg.mxu0
    %v2313 = vsel %vm229, %v2311, -inf
    %2314 = vmax.xlane.f32.xlu0 %v2313
    %v2315 = vpop.xlane.xlu0 %2314
    %v2316 = vsub.f32 %v2311, %v2315
    %v2317 = vmul.f32 %v2316, 1.442695
    %v2318 = vpow.pop %v2317
    %v2319 = vsel %vm229, %v2318, 0.0
    %2320 = vadd.xlane.f32.xlu0 %v2319
    %v2321 = vpop.xlane.xlu0 %2320
    %v2322 = vrcp.pop %v2321
    %v2323 = vmul.f32 %v2318, %v2322
    %2324 = vrot.lane.b32.xlu0 %v2212, 112
    %v2325 = vpop.permute.xlu0 %2324
    %v2327 = vsel %vm241, %v2323, 0
    %v2329 = vsel %vm245, %v2325, 0
    %2331 = vmatpush.msra.mxu0 0.0
    %2332 = vmatpush.msra.mxu0 0.0
    %2333 = vmatpush.msra.mxu0 0.0
    %2334 = vmatpush.msra.mxu0 0.0
    %2335 = vmatpush.msra.mxu0 0.0
    %2336 = vmatpush.msra.mxu0 0.0
    %2337 = vmatpush.msra.mxu0 0.0
    %2338 = vmatpush.msra.mxu0 0.0
    %2339 = vmatpush.msra.mxu0 0.0
    %2340 = vmatpush.msra.mxu0 0.0
    %2341 = vmatpush.msra.mxu0 0.0
    %2342 = vmatpush.msra.mxu0 0.0
    %2343 = vmatpush.msra.mxu0 0.0
    %2344 = vmatpush.msra.mxu0 0.0
    %2345 = vmatpush.msra.mxu0 0.0
    %2346 = vmatpush.msra.mxu0 %v2329
    %2347 = vmatmul.f32.gmra.mxu0 %v2327
    %v2348 = vpop.f32.mrf.mxu0
    %v2349 = vadd.f32 0.0, %v2348
    %2350 = vdwg.mxu0
    %v2351 = vld [vmem:[#allocation6 + $0x8] sm:$0xf]
    %v2352 = vld [vmem:[#allocation6 + $0xc] sm:$0xf]
    %v2353 = vunpack.c.l.bf16 %v2351
    %v2354 = vunpack.c.l.bf16 %v2352
    %v2356 = vsel %vm203, %v2349, 0
    %2358 = vmatpush.msra.mxu0 0.0
    %2359 = vmatpush.msra.mxu0 0.0
    %2360 = vmatpush.msra.mxu0 0.0
    %2361 = vmatpush.msra.mxu0 0.0
    %2362 = vmatpush.msra.mxu0 0.0
    %2363 = vmatpush.msra.mxu0 0.0
    %2364 = vmatpush.msra.mxu0 0.0
    %2365 = vmatpush.msra.mxu0 0.0
    %2366 = vmatpush.msra.mxu0 0.0
    %2367 = vmatpush.msra.mxu0 0.0
    %2368 = vmatpush.msra.mxu0 0.0
    %2369 = vmatpush.msra.mxu0 0.0
    %2370 = vmatpush.msra.mxu0 0.0
    %2371 = vmatpush.msra.mxu0 0.0
    %2372 = vmatpush.msra.mxu0 %v2354
    %2373 = vmatpush.msra.mxu0 %v2353
    %2374 = vmatmul.f32.gmra.mxu0 %v2356
    %v2375 = vpop.f32.mrf.mxu0
    %v2376 = vadd.f32 0.0, %v2375
    %2377 = vdwg.mxu0
    %v2379 = vsel %vm203, %v2279, 0
    %2381 = vmatpush.msra.mxu0 0.0
    %2382 = vmatpush.msra.mxu0 0.0
    %2383 = vmatpush.msra.mxu0 0.0
    %2384 = vmatpush.msra.mxu0 0.0
    %2385 = vmatpush.msra.mxu0 0.0
    %2386 = vmatpush.msra.mxu0 0.0
    %2387 = vmatpush.msra.mxu0 0.0
    %2388 = vmatpush.msra.mxu0 0.0
    %2389 = vmatpush.msra.mxu0 0.0
    %2390 = vmatpush.msra.mxu0 0.0
    %2391 = vmatpush.msra.mxu0 0.0
    %2392 = vmatpush.msra.mxu0 0.0
    %2393 = vmatpush.msra.mxu0 0.0
    %2394 = vmatpush.msra.mxu0 0.0
    %2395 = vmatpush.msra.mxu0 %v2284
    %2396 = vmatpush.msra.mxu0 %v2283
    %2397 = vmatmul.f32.gmra.mxu0 %v2379
    %v2398 = vpop.f32.mrf.mxu0
    %v2399 = vadd.f32 %v2376, %v2398
    %2400 = vdwg.mxu0
    %2401 = vrot.lane.b32.xlu0 %v2215, 96
    %v2402 = vpop.permute.xlu0 %2401
    %2403 = vrot.lane.b32.xlu0 %v2199, 32
    %v2404 = vpop.permute.xlu0 %2403
    %v2405 = vsel %vm203, %v2402, 0
    %v2407 = vsel %vm203, %v2404, 0
    %2409 = vmatpush.xpose.msra.mxu0 0.0
    %2410 = vmatpush.xpose.msra.mxu0 0.0
    %2411 = vmatpush.xpose.msra.mxu0 0.0
    %2412 = vmatpush.xpose.msra.mxu0 0.0
    %2413 = vmatpush.xpose.msra.mxu0 0.0
    %2414 = vmatpush.xpose.msra.mxu0 0.0
    %2415 = vmatpush.xpose.msra.mxu0 0.0
    %2416 = vmatpush.xpose.msra.mxu0 0.0
    %2417 = vmatpush.xpose.msra.mxu0 0.0
    %2418 = vmatpush.xpose.msra.mxu0 0.0
    %2419 = vmatpush.xpose.msra.mxu0 0.0
    %2420 = vmatpush.xpose.msra.mxu0 0.0
    %2421 = vmatpush.xpose.msra.mxu0 0.0
    %2422 = vmatpush.xpose.msra.mxu0 0.0
    %2423 = vmatpush.xpose.msra.mxu0 0.0
    %2424 = vmatpush.xpose.msra.mxu0 %v2407
    %2425 = vmatmul.f32.gmra.mxu0 %v2405
    %v2426 = vpop.f32.mrf.mxu0
    %v2427 = vadd.f32 0.0, %v2426
    %2428 = vdwg.mxu0
    %v2429 = vsel %vm229, %v2427, -inf
    %2430 = vmax.xlane.f32.xlu0 %v2429
    %v2431 = vpop.xlane.xlu0 %2430
    %v2432 = vsub.f32 %v2427, %v2431
    %v2433 = vmul.f32 %v2432, 1.442695
    %v2434 = vpow.pop %v2433
    %v2435 = vsel %vm229, %v2434, 0.0
    %2436 = vadd.xlane.f32.xlu0 %v2435
    %v2437 = vpop.xlane.xlu0 %2436
    %v2438 = vrcp.pop %v2437
    %v2439 = vmul.f32 %v2434, %v2438
    %2440 = vrot.lane.b32.xlu0 %v2212, 96
    %v2441 = vpop.permute.xlu0 %2440
    %v2443 = vsel %vm241, %v2439, 0
    %v2445 = vsel %vm245, %v2441, 0
    %2447 = vmatpush.msra.mxu0 0.0
    %2448 = vmatpush.msra.mxu0 0.0
    %2449 = vmatpush.msra.mxu0 0.0
    %2450 = vmatpush.msra.mxu0 0.0
    %2451 = vmatpush.msra.mxu0 0.0
    %2452 = vmatpush.msra.mxu0 0.0
    %2453 = vmatpush.msra.mxu0 0.0
    %2454 = vmatpush.msra.mxu0 0.0
    %2455 = vmatpush.msra.mxu0 0.0
    %2456 = vmatpush.msra.mxu0 0.0
    %2457 = vmatpush.msra.mxu0 0.0
    %2458 = vmatpush.msra.mxu0 0.0
    %2459 = vmatpush.msra.mxu0 0.0
    %2460 = vmatpush.msra.mxu0 0.0
    %2461 = vmatpush.msra.mxu0 0.0
    %2462 = vmatpush.msra.mxu0 %v2445
    %2463 = vmatmul.f32.gmra.mxu0 %v2443
    %v2464 = vpop.f32.mrf.mxu0
    %v2465 = vadd.f32 0.0, %v2464
    %2466 = vdwg.mxu0
    %v2467 = vld [vmem:[#allocation6 + $0x10] sm:$0xf]
    %v2468 = vld [vmem:[#allocation6 + $0x14] sm:$0xf]
    %v2469 = vunpack.c.l.bf16 %v2467
    %v2470 = vunpack.c.l.bf16 %v2468
    %v2472 = vsel %vm203, %v2465, 0
    %2474 = vmatpush.msra.mxu0 0.0
    %2475 = vmatpush.msra.mxu0 0.0
    %2476 = vmatpush.msra.mxu0 0.0
    %2477 = vmatpush.msra.mxu0 0.0
    %2478 = vmatpush.msra.mxu0 0.0
    %2479 = vmatpush.msra.mxu0 0.0
    %2480 = vmatpush.msra.mxu0 0.0
    %2481 = vmatpush.msra.mxu0 0.0
    %2482 = vmatpush.msra.mxu0 0.0
    %2483 = vmatpush.msra.mxu0 0.0
    %2484 = vmatpush.msra.mxu0 0.0
    %2485 = vmatpush.msra.mxu0 0.0
    %2486 = vmatpush.msra.mxu0 0.0
    %2487 = vmatpush.msra.mxu0 0.0
    %2488 = vmatpush.msra.mxu0 %v2470
    %2489 = vmatpush.msra.mxu0 %v2469
    %2490 = vmatmul.f32.gmra.mxu0 %v2472
    %v2491 = vpop.f32.mrf.mxu0
    %v2492 = vadd.f32 0.0, %v2491
    %2493 = vdwg.mxu0
    %v2494 = vadd.f32 %v2399, %v2492
    %2495 = vrot.lane.b32.xlu0 %v2215, 80
    %v2496 = vpop.permute.xlu0 %2495
    %2497 = vrot.lane.b32.xlu0 %v2199, 16
    %v2498 = vpop.permute.xlu0 %2497
    %v2499 = vsel %vm203, %v2496, 0
    %v2501 = vsel %vm203, %v2498, 0
    %2503 = vmatpush.xpose.msra.mxu0 0.0
    %2504 = vmatpush.xpose.msra.mxu0 0.0
    %2505 = vmatpush.xpose.msra.mxu0 0.0
    %2506 = vmatpush.xpose.msra.mxu0 0.0
    %2507 = vmatpush.xpose.msra.mxu0 0.0
    %2508 = vmatpush.xpose.msra.mxu0 0.0
    %2509 = vmatpush.xpose.msra.mxu0 0.0
    %2510 = vmatpush.xpose.msra.mxu0 0.0
    %2511 = vmatpush.xpose.msra.mxu0 0.0
    %2512 = vmatpush.xpose.msra.mxu0 0.0
    %2513 = vmatpush.xpose.msra.mxu0 0.0
    %2514 = vmatpush.xpose.msra.mxu0 0.0
    %2515 = vmatpush.xpose.msra.mxu0 0.0
    %2516 = vmatpush.xpose.msra.mxu0 0.0
    %2517 = vmatpush.xpose.msra.mxu0 0.0
    %2518 = vmatpush.xpose.msra.mxu0 %v2501
    %2519 = vmatmul.f32.gmra.mxu0 %v2499
    %v2520 = vpop.f32.mrf.mxu0
    %v2521 = vadd.f32 0.0, %v2520
    %2522 = vdwg.mxu0
    %v2523 = vsel %vm229, %v2521, -inf
    %2524 = vmax.xlane.f32.xlu0 %v2523
    %v2525 = vpop.xlane.xlu0 %2524
    %v2526 = vsub.f32 %v2521, %v2525
    %v2527 = vmul.f32 %v2526, 1.442695
    %v2528 = vpow.pop %v2527
    %v2529 = vsel %vm229, %v2528, 0.0
    %2530 = vadd.xlane.f32.xlu0 %v2529
    %v2531 = vpop.xlane.xlu0 %2530
    %v2532 = vrcp.pop %v2531
    %v2533 = vmul.f32 %v2528, %v2532
    %2534 = vrot.lane.b32.xlu0 %v2212, 80
    %v2535 = vpop.permute.xlu0 %2534
    %v2537 = vsel %vm241, %v2533, 0
    %v2539 = vsel %vm245, %v2535, 0
    %2541 = vmatpush.msra.mxu0 0.0
    %2542 = vmatpush.msra.mxu0 0.0
    %2543 = vmatpush.msra.mxu0 0.0
    %2544 = vmatpush.msra.mxu0 0.0
    %2545 = vmatpush.msra.mxu0 0.0
    %2546 = vmatpush.msra.mxu0 0.0
    %2547 = vmatpush.msra.mxu0 0.0
    %2548 = vmatpush.msra.mxu0 0.0
    %2549 = vmatpush.msra.mxu0 0.0
    %2550 = vmatpush.msra.mxu0 0.0
    %2551 = vmatpush.msra.mxu0 0.0
    %2552 = vmatpush.msra.mxu0 0.0
    %2553 = vmatpush.msra.mxu0 0.0
    %2554 = vmatpush.msra.mxu0 0.0
    %2555 = vmatpush.msra.mxu0 0.0
    %2556 = vmatpush.msra.mxu0 %v2539
    %2557 = vmatmul.f32.gmra.mxu0 %v2537
    %v2558 = vpop.f32.mrf.mxu0
    %v2559 = vadd.f32 0.0, %v2558
    %2560 = vdwg.mxu0
    %v2561 = vld [vmem:[#allocation6 + $0x18] sm:$0xf]
    %v2562 = vld [vmem:[#allocation6 + $0x1c] sm:$0xf]
    %v2563 = vunpack.c.l.bf16 %v2561
    %v2564 = vunpack.c.l.bf16 %v2562
    %v2566 = vsel %vm203, %v2559, 0
    %2568 = vmatpush.msra.mxu0 0.0
    %2569 = vmatpush.msra.mxu0 0.0
    %2570 = vmatpush.msra.mxu0 0.0
    %2571 = vmatpush.msra.mxu0 0.0
    %2572 = vmatpush.msra.mxu0 0.0
    %2573 = vmatpush.msra.mxu0 0.0
    %2574 = vmatpush.msra.mxu0 0.0
    %2575 = vmatpush.msra.mxu0 0.0
    %2576 = vmatpush.msra.mxu0 0.0
    %2577 = vmatpush.msra.mxu0 0.0
    %2578 = vmatpush.msra.mxu0 0.0
    %2579 = vmatpush.msra.mxu0 0.0
    %2580 = vmatpush.msra.mxu0 0.0
    %2581 = vmatpush.msra.mxu0 0.0
    %2582 = vmatpush.msra.mxu0 %v2564
    %2583 = vmatpush.msra.mxu0 %v2563
    %2584 = vmatmul.f32.gmra.mxu0 %v2566
    %v2585 = vpop.f32.mrf.mxu0
    %v2586 = vadd.f32 0.0, %v2585
    %2587 = vdwg.mxu0
    %v2588 = vadd.f32 %v2494, %v2586
    %v2589 = vld [vmem:[#allocation7] sm:$0x1]
    %v2591 = vperm.slane %v2589, 0
    %v2593 = vadd.f32 %v2588, %v2591
    %v2594 = vadd.f32 %v2131, %v2593
    %v2595 = vsel %vm583, %v2594, 0.0
    %2596 = vadd.xlane.f32.xlu0 %v2595
    %v2597 = vpop.xlane.xlu0 %2596
    %v2598 = vmul.f32 %v2597, %v593
    %v2599 = vsub.f32 %v2594, %v2598
    %v2600 = vmul.f32 %v2599, %v2599
    %v2601 = vsel %vm583, %v2600, 0.0
    %2602 = vadd.xlane.f32.xlu0 %v2601
    %v2603 = vpop.xlane.xlu0 %2602
    %v2604 = vmul.f32 %v2603, %v593
    %v2605 = vadd.f32 %v2604, 1e-05
    %v2606 = vrsqrt.pop %v2605
    %v2607 = vmul.f32 %v2606, %v2605
    %v2608 = vmul.f32 %v2607, %v2606
    %v2609 = vmul.f32 0.5, %v2608
    %v2610 = vsub.f32 1.5, %v2609
    %v2611 = vmul.f32 %v2606, %v2610
    %vm2612 = vweird.f32 %v2605
    %vm2613 = vweird.f32 %v2606
    %vm2614 = vmor %vm2612, %vm2613
    %v2615 = vsel %vm2614, %v2606, %v2611
    %v2616 = vmul.f32 %v2599, %v2615
    %v2617 = vld [vmem:[#allocation9] sm:$0x1]
    %v2619 = vperm.slane %v2617, 0
    %v2621 = vmul.f32 %v2616, %v2619
    %v2622 = vld [vmem:[#allocation10] sm:$0x1]
    %v2624 = vperm.slane %v2622, 0
    %v2626 = vadd.f32 %v2621, %v2624
    %v2627 = vpack.c.bf16 %v2626, %v2626
    %s2628 = scalar_lea.vmem %s7, 4
    %2629 = vst.msk [vmem:[%s2628] sm:$0x1] %vm624, %v2627
    %s2630 = scalar_lea.vmem %s0, 5
    %v2631 = vld [vmem:[%s2630] sm:$0x1]
    %v2632 = vunpack.c.l.bf16 %v2631
    %v2633 = vld [vmem:[#allocation2] sm:$0xff]
    %v2634 = vld [vmem:[#allocation2 + $0x8] sm:$0xff]
    %v2635 = vld [vmem:[#allocation2 + $0x10] sm:$0xff]
    %v2636 = vld [vmem:[#allocation2 + $0x18] sm:$0xff]
    %v2637 = vld [vmem:[#allocation2 + $0x20] sm:$0xff]
    %v2638 = vld [vmem:[#allocation2 + $0x28] sm:$0xff]
    %v2639 = vld [vmem:[#allocation2 + $0x30] sm:$0xff]
    %v2640 = vld [vmem:[#allocation2 + $0x38] sm:$0xff]
    %v2641 = vld [vmem:[#allocation4] sm:$0x3]
    %v2643 = vperm.slane %v2641, 0
    %v2644 = vperm.slane %v2641, 1
    %v2655 = vunpack.c.l.b16 %v2633
    %v2656 = vunpack.c.h.b16 %v2633
    %v2657 = vunpack.c.l.b16 %v2634
    %v2658 = vunpack.c.h.b16 %v2634
    %v2659 = vunpack.c.l.b16 %v2635
    %v2660 = vunpack.c.h.b16 %v2635
    %v2661 = vunpack.c.l.b16 %v2636
    %v2662 = vunpack.c.h.b16 %v2636
    %v2663 = vunpack.c.l.b16 %v2637
    %v2664 = vunpack.c.h.b16 %v2637
    %v2665 = vunpack.c.l.b16 %v2638
    %v2666 = vunpack.c.h.b16 %v2638
    %v2667 = vunpack.c.l.b16 %v2639
    %v2668 = vunpack.c.h.b16 %v2639
    %v2669 = vunpack.c.l.b16 %v2640
    %v2670 = vunpack.c.h.b16 %v2640
    %v2671 = vpack.c.b16 %v2657, %v2655
    %v2672 = vpack.c.b16 %v2658, %v2656
    %v2673 = vpack.c.b16 %v2661, %v2659
    %v2674 = vpack.c.b16 %v2662, %v2660
    %v2675 = vpack.c.b16 %v2665, %v2663
    %v2676 = vpack.c.b16 %v2666, %v2664
    %v2677 = vpack.c.b16 %v2669, %v2667
    %v2678 = vpack.c.b16 %v2670, %v2668
    %v2688 = vsel %vm169, %v2631, 0
    %2690 = vmatpush.bf16.msra.mxu0 0
    %2691 = vmatpush.bf16.msra.mxu0 0
    %2692 = vmatpush.bf16.msra.mxu0 0
    %2693 = vmatpush.bf16.msra.mxu0 0
    %2694 = vmatpush.bf16.msra.mxu0 %v2677
    %2695 = vmatpush.bf16.msra.mxu0 %v2675
    %2696 = vmatpush.bf16.msra.mxu0 %v2673
    %2697 = vmatpush.bf16.msra.mxu0 %v2671
    %2698 = vmatmul.bf16.gmra.mxu0 %v2688
    %v2699 = vpop.f32.mrf.mxu0
    %v2700 = vadd.f32 %v2643, %v2699
    %v2701 = vpop.f32.mrf.mxu0
    %2702 = vdwg.mxu0
    %2703 = vmatpush.bf16.msra.mxu0 0
    %2704 = vmatpush.bf16.msra.mxu0 0
    %2705 = vmatpush.bf16.msra.mxu0 0
    %2706 = vmatpush.bf16.msra.mxu0 0
    %2707 = vmatpush.bf16.msra.mxu0 %v2678
    %2708 = vmatpush.bf16.msra.mxu0 %v2676
    %2709 = vmatpush.bf16.msra.mxu0 %v2674
    %2710 = vmatpush.bf16.msra.mxu0 %v2672
    %2711 = vmatmul.bf16.gmra.mxu0 %v2688
    %v2712 = vpop.f32.mrf.mxu0
    %v2713 = vadd.f32 %v2644, %v2712
    %v2714 = vpop.f32.mrf.mxu0
    %2715 = vdwg.mxu0
    %v2716 = vmul.f32 %v2700, 0.25
    %2718 = vrot.lane.b32.xlu0 %v2700, 64
    %v2719 = vpop.permute.xlu0 %2718
    %v2721 = vsel %vm203, %v2716, 0
    %v2723 = vsel %vm203, %v2719, 0
    %2725 = vmatpush.xpose.msra.mxu0 0.0
    %2726 = vmatpush.xpose.msra.mxu0 0.0
    %2727 = vmatpush.xpose.msra.mxu0 0.0
    %2728 = vmatpush.xpose.msra.mxu0 0.0
    %2729 = vmatpush.xpose.msra.mxu0 0.0
    %2730 = vmatpush.xpose.msra.mxu0 0.0
    %2731 = vmatpush.xpose.msra.mxu0 0.0
    %2732 = vmatpush.xpose.msra.mxu0 0.0
    %2733 = vmatpush.xpose.msra.mxu0 0.0
    %2734 = vmatpush.xpose.msra.mxu0 0.0
    %2735 = vmatpush.xpose.msra.mxu0 0.0
    %2736 = vmatpush.xpose.msra.mxu0 0.0
    %2737 = vmatpush.xpose.msra.mxu0 0.0
    %2738 = vmatpush.xpose.msra.mxu0 0.0
    %2739 = vmatpush.xpose.msra.mxu0 0.0
    %2740 = vmatpush.xpose.msra.mxu0 %v2723
    %2741 = vmatmul.f32.gmra.mxu0 %v2721
    %v2742 = vpop.f32.mrf.mxu0
    %v2743 = vadd.f32 0.0, %v2742
    %2744 = vdwg.mxu0
    %v2745 = vsel %vm229, %v2743, -inf
    %2746 = vmax.xlane.f32.xlu0 %v2745
    %v2747 = vpop.xlane.xlu0 %2746
    %v2748 = vsub.f32 %v2743, %v2747
    %v2749 = vmul.f32 %v2748, 1.442695
    %v2750 = vpow.pop %v2749
    %v2751 = vsel %vm229, %v2750, 0.0
    %2752 = vadd.xlane.f32.xlu0 %v2751
    %v2753 = vpop.xlane.xlu0 %2752
    %v2754 = vrcp.pop %v2753
    %v2755 = vmul.f32 %v2750, %v2754
    %v2757 = vsel %vm241, %v2755, 0
    %v2760 = vsel %vm245, %v2713, 0
    %2762 = vmatpush.msra.mxu0 0.0
    %2763 = vmatpush.msra.mxu0 0.0
    %2764 = vmatpush.msra.mxu0 0.0
    %2765 = vmatpush.msra.mxu0 0.0
    %2766 = vmatpush.msra.mxu0 0.0
    %2767 = vmatpush.msra.mxu0 0.0
    %2768 = vmatpush.msra.mxu0 0.0
    %2769 = vmatpush.msra.mxu0 0.0
    %2770 = vmatpush.msra.mxu0 0.0
    %2771 = vmatpush.msra.mxu0 0.0
    %2772 = vmatpush.msra.mxu0 0.0
    %2773 = vmatpush.msra.mxu0 0.0
    %2774 = vmatpush.msra.mxu0 0.0
    %2775 = vmatpush.msra.mxu0 0.0
    %2776 = vmatpush.msra.mxu0 0.0
    %2777 = vmatpush.msra.mxu0 %v2760
    %2778 = vmatmul.f32.gmra.mxu0 %v2757
    %v2779 = vpop.f32.mrf.mxu0
    %v2780 = vadd.f32 0.0, %v2779
    %2781 = vdwg.mxu0
    %v2782 = vld [vmem:[#allocation6] sm:$0xf]
    %v2783 = vld [vmem:[#allocation6 + $0x4] sm:$0xf]
    %v2784 = vunpack.c.l.bf16 %v2782
    %v2785 = vunpack.c.l.bf16 %v2783
    %2786 = vrot.lane.b32.xlu0 %v2716, 112
    %v2787 = vpop.permute.xlu0 %2786
    %2788 = vrot.lane.b32.xlu0 %v2700, 48
    %v2789 = vpop.permute.xlu0 %2788
    %v2790 = vsel %vm203, %v2787, 0
    %v2792 = vsel %vm203, %v2789, 0
    %2794 = vmatpush.xpose.msra.mxu0 0.0
    %2795 = vmatpush.xpose.msra.mxu0 0.0
    %2796 = vmatpush.xpose.msra.mxu0 0.0
    %2797 = vmatpush.xpose.msra.mxu0 0.0
    %2798 = vmatpush.xpose.msra.mxu0 0.0
    %2799 = vmatpush.xpose.msra.mxu0 0.0
    %2800 = vmatpush.xpose.msra.mxu0 0.0
    %2801 = vmatpush.xpose.msra.mxu0 0.0
    %2802 = vmatpush.xpose.msra.mxu0 0.0
    %2803 = vmatpush.xpose.msra.mxu0 0.0
    %2804 = vmatpush.xpose.msra.mxu0 0.0
    %2805 = vmatpush.xpose.msra.mxu0 0.0
    %2806 = vmatpush.xpose.msra.mxu0 0.0
    %2807 = vmatpush.xpose.msra.mxu0 0.0
    %2808 = vmatpush.xpose.msra.mxu0 0.0
    %2809 = vmatpush.xpose.msra.mxu0 %v2792
    %2810 = vmatmul.f32.gmra.mxu0 %v2790
    %v2811 = vpop.f32.mrf.mxu0
    %v2812 = vadd.f32 0.0, %v2811
    %2813 = vdwg.mxu0
    %v2814 = vsel %vm229, %v2812, -inf
    %2815 = vmax.xlane.f32.xlu0 %v2814
    %v2816 = vpop.xlane.xlu0 %2815
    %v2817 = vsub.f32 %v2812, %v2816
    %v2818 = vmul.f32 %v2817, 1.442695
    %v2819 = vpow.pop %v2818
    %v2820 = vsel %vm229, %v2819, 0.0
    %2821 = vadd.xlane.f32.xlu0 %v2820
    %v2822 = vpop.xlane.xlu0 %2821
    %v2823 = vrcp.pop %v2822
    %v2824 = vmul.f32 %v2819, %v2823
    %2825 = vrot.lane.b32.xlu0 %v2713, 112
    %v2826 = vpop.permute.xlu0 %2825
    %v2828 = vsel %vm241, %v2824, 0
    %v2830 = vsel %vm245, %v2826, 0
    %2832 = vmatpush.msra.mxu0 0.0
    %2833 = vmatpush.msra.mxu0 0.0
    %2834 = vmatpush.msra.mxu0 0.0
    %2835 = vmatpush.msra.mxu0 0.0
    %2836 = vmatpush.msra.mxu0 0.0
    %2837 = vmatpush.msra.mxu0 0.0
    %2838 = vmatpush.msra.mxu0 0.0
    %2839 = vmatpush.msra.mxu0 0.0
    %2840 = vmatpush.msra.mxu0 0.0
    %2841 = vmatpush.msra.mxu0 0.0
    %2842 = vmatpush.msra.mxu0 0.0
    %2843 = vmatpush.msra.mxu0 0.0
    %2844 = vmatpush.msra.mxu0 0.0
    %2845 = vmatpush.msra.mxu0 0.0
    %2846 = vmatpush.msra.mxu0 0.0
    %2847 = vmatpush.msra.mxu0 %v2830
    %2848 = vmatmul.f32.gmra.mxu0 %v2828
    %v2849 = vpop.f32.mrf.mxu0
    %v2850 = vadd.f32 0.0, %v2849
    %2851 = vdwg.mxu0
    %v2852 = vld [vmem:[#allocation6 + $0x8] sm:$0xf]
    %v2853 = vld [vmem:[#allocation6 + $0xc] sm:$0xf]
    %v2854 = vunpack.c.l.bf16 %v2852
    %v2855 = vunpack.c.l.bf16 %v2853
    %v2857 = vsel %vm203, %v2850, 0
    %2859 = vmatpush.msra.mxu0 0.0
    %2860 = vmatpush.msra.mxu0 0.0
    %2861 = vmatpush.msra.mxu0 0.0
    %2862 = vmatpush.msra.mxu0 0.0
    %2863 = vmatpush.msra.mxu0 0.0
    %2864 = vmatpush.msra.mxu0 0.0
    %2865 = vmatpush.msra.mxu0 0.0
    %2866 = vmatpush.msra.mxu0 0.0
    %2867 = vmatpush.msra.mxu0 0.0
    %2868 = vmatpush.msra.mxu0 0.0
    %2869 = vmatpush.msra.mxu0 0.0
    %2870 = vmatpush.msra.mxu0 0.0
    %2871 = vmatpush.msra.mxu0 0.0
    %2872 = vmatpush.msra.mxu0 0.0
    %2873 = vmatpush.msra.mxu0 %v2855
    %2874 = vmatpush.msra.mxu0 %v2854
    %2875 = vmatmul.f32.gmra.mxu0 %v2857
    %v2876 = vpop.f32.mrf.mxu0
    %v2877 = vadd.f32 0.0, %v2876
    %2878 = vdwg.mxu0
    %v2880 = vsel %vm203, %v2780, 0
    %2882 = vmatpush.msra.mxu0 0.0
    %2883 = vmatpush.msra.mxu0 0.0
    %2884 = vmatpush.msra.mxu0 0.0
    %2885 = vmatpush.msra.mxu0 0.0
    %2886 = vmatpush.msra.mxu0 0.0
    %2887 = vmatpush.msra.mxu0 0.0
    %2888 = vmatpush.msra.mxu0 0.0
    %2889 = vmatpush.msra.mxu0 0.0
    %2890 = vmatpush.msra.mxu0 0.0
    %2891 = vmatpush.msra.mxu0 0.0
    %2892 = vmatpush.msra.mxu0 0.0
    %2893 = vmatpush.msra.mxu0 0.0
    %2894 = vmatpush.msra.mxu0 0.0
    %2895 = vmatpush.msra.mxu0 0.0
    %2896 = vmatpush.msra.mxu0 %v2785
    %2897 = vmatpush.msra.mxu0 %v2784
    %2898 = vmatmul.f32.gmra.mxu0 %v2880
    %v2899 = vpop.f32.mrf.mxu0
    %v2900 = vadd.f32 %v2877, %v2899
    %2901 = vdwg.mxu0
    %2902 = vrot.lane.b32.xlu0 %v2716, 96
    %v2903 = vpop.permute.xlu0 %2902
    %2904 = vrot.lane.b32.xlu0 %v2700, 32
    %v2905 = vpop.permute.xlu0 %2904
    %v2906 = vsel %vm203, %v2903, 0
    %v2908 = vsel %vm203, %v2905, 0
    %2910 = vmatpush.xpose.msra.mxu0 0.0
    %2911 = vmatpush.xpose.msra.mxu0 0.0
    %2912 = vmatpush.xpose.msra.mxu0 0.0
    %2913 = vmatpush.xpose.msra.mxu0 0.0
    %2914 = vmatpush.xpose.msra.mxu0 0.0
    %2915 = vmatpush.xpose.msra.mxu0 0.0
    %2916 = vmatpush.xpose.msra.mxu0 0.0
    %2917 = vmatpush.xpose.msra.mxu0 0.0
    %2918 = vmatpush.xpose.msra.mxu0 0.0
    %2919 = vmatpush.xpose.msra.mxu0 0.0
    %2920 = vmatpush.xpose.msra.mxu0 0.0
    %2921 = vmatpush.xpose.msra.mxu0 0.0
    %2922 = vmatpush.xpose.msra.mxu0 0.0
    %2923 = vmatpush.xpose.msra.mxu0 0.0
    %2924 = vmatpush.xpose.msra.mxu0 0.0
    %2925 = vmatpush.xpose.msra.mxu0 %v2908
    %2926 = vmatmul.f32.gmra.mxu0 %v2906
    %v2927 = vpop.f32.mrf.mxu0
    %v2928 = vadd.f32 0.0, %v2927
    %2929 = vdwg.mxu0
    %v2930 = vsel %vm229, %v2928, -inf
    %2931 = vmax.xlane.f32.xlu0 %v2930
    %v2932 = vpop.xlane.xlu0 %2931
    %v2933 = vsub.f32 %v2928, %v2932
    %v2934 = vmul.f32 %v2933, 1.442695
    %v2935 = vpow.pop %v2934
    %v2936 = vsel %vm229, %v2935, 0.0
    %2937 = vadd.xlane.f32.xlu0 %v2936
    %v2938 = vpop.xlane.xlu0 %2937
    %v2939 = vrcp.pop %v2938
    %v2940 = vmul.f32 %v2935, %v2939
    %2941 = vrot.lane.b32.xlu0 %v2713, 96
    %v2942 = vpop.permute.xlu0 %2941
    %v2944 = vsel %vm241, %v2940, 0
    %v2946 = vsel %vm245, %v2942, 0
    %2948 = vmatpush.msra.mxu0 0.0
    %2949 = vmatpush.msra.mxu0 0.0
    %2950 = vmatpush.msra.mxu0 0.0
    %2951 = vmatpush.msra.mxu0 0.0
    %2952 = vmatpush.msra.mxu0 0.0
    %2953 = vmatpush.msra.mxu0 0.0
    %2954 = vmatpush.msra.mxu0 0.0
    %2955 = vmatpush.msra.mxu0 0.0
    %2956 = vmatpush.msra.mxu0 0.0
    %2957 = vmatpush.msra.mxu0 0.0
    %2958 = vmatpush.msra.mxu0 0.0
    %2959 = vmatpush.msra.mxu0 0.0
    %2960 = vmatpush.msra.mxu0 0.0
    %2961 = vmatpush.msra.mxu0 0.0
    %2962 = vmatpush.msra.mxu0 0.0
    %2963 = vmatpush.msra.mxu0 %v2946
    %2964 = vmatmul.f32.gmra.mxu0 %v2944
    %v2965 = vpop.f32.mrf.mxu0
    %v2966 = vadd.f32 0.0, %v2965
    %2967 = vdwg.mxu0
    %v2968 = vld [vmem:[#allocation6 + $0x10] sm:$0xf]
    %v2969 = vld [vmem:[#allocation6 + $0x14] sm:$0xf]
    %v2970 = vunpack.c.l.bf16 %v2968
    %v2971 = vunpack.c.l.bf16 %v2969
    %v2973 = vsel %vm203, %v2966, 0
    %2975 = vmatpush.msra.mxu0 0.0
    %2976 = vmatpush.msra.mxu0 0.0
    %2977 = vmatpush.msra.mxu0 0.0
    %2978 = vmatpush.msra.mxu0 0.0
    %2979 = vmatpush.msra.mxu0 0.0
    %2980 = vmatpush.msra.mxu0 0.0
    %2981 = vmatpush.msra.mxu0 0.0
    %2982 = vmatpush.msra.mxu0 0.0
    %2983 = vmatpush.msra.mxu0 0.0
    %2984 = vmatpush.msra.mxu0 0.0
    %2985 = vmatpush.msra.mxu0 0.0
    %2986 = vmatpush.msra.mxu0 0.0
    %2987 = vmatpush.msra.mxu0 0.0
    %2988 = vmatpush.msra.mxu0 0.0
    %2989 = vmatpush.msra.mxu0 %v2971
    %2990 = vmatpush.msra.mxu0 %v2970
    %2991 = vmatmul.f32.gmra.mxu0 %v2973
    %v2992 = vpop.f32.mrf.mxu0
    %v2993 = vadd.f32 0.0, %v2992
    %2994 = vdwg.mxu0
    %v2995 = vadd.f32 %v2900, %v2993
    %2996 = vrot.lane.b32.xlu0 %v2716, 80
    %v2997 = vpop.permute.xlu0 %2996
    %2998 = vrot.lane.b32.xlu0 %v2700, 16
    %v2999 = vpop.permute.xlu0 %2998
    %v3000 = vsel %vm203, %v2997, 0
    %v3002 = vsel %vm203, %v2999, 0
    %3004 = vmatpush.xpose.msra.mxu0 0.0
    %3005 = vmatpush.xpose.msra.mxu0 0.0
    %3006 = vmatpush.xpose.msra.mxu0 0.0
    %3007 = vmatpush.xpose.msra.mxu0 0.0
    %3008 = vmatpush.xpose.msra.mxu0 0.0
    %3009 = vmatpush.xpose.msra.mxu0 0.0
    %3010 = vmatpush.xpose.msra.mxu0 0.0
    %3011 = vmatpush.xpose.msra.mxu0 0.0
    %3012 = vmatpush.xpose.msra.mxu0 0.0
    %3013 = vmatpush.xpose.msra.mxu0 0.0
    %3014 = vmatpush.xpose.msra.mxu0 0.0
    %3015 = vmatpush.xpose.msra.mxu0 0.0
    %3016 = vmatpush.xpose.msra.mxu0 0.0
    %3017 = vmatpush.xpose.msra.mxu0 0.0
    %3018 = vmatpush.xpose.msra.mxu0 0.0
    %3019 = vmatpush.xpose.msra.mxu0 %v3002
    %3020 = vmatmul.f32.gmra.mxu0 %v3000
    %v3021 = vpop.f32.mrf.mxu0
    %v3022 = vadd.f32 0.0, %v3021
    %3023 = vdwg.mxu0
    %v3024 = vsel %vm229, %v3022, -inf
    %3025 = vmax.xlane.f32.xlu0 %v3024
    %v3026 = vpop.xlane.xlu0 %3025
    %v3027 = vsub.f32 %v3022, %v3026
    %v3028 = vmul.f32 %v3027, 1.442695
    %v3029 = vpow.pop %v3028
    %v3030 = vsel %vm229, %v3029, 0.0
    %3031 = vadd.xlane.f32.xlu0 %v3030
    %v3032 = vpop.xlane.xlu0 %3031
    %v3033 = vrcp.pop %v3032
    %v3034 = vmul.f32 %v3029, %v3033
    %3035 = vrot.lane.b32.xlu0 %v2713, 80
    %v3036 = vpop.permute.xlu0 %3035
    %v3038 = vsel %vm241, %v3034, 0
    %v3040 = vsel %vm245, %v3036, 0
    %3042 = vmatpush.msra.mxu0 0.0
    %3043 = vmatpush.msra.mxu0 0.0
    %3044 = vmatpush.msra.mxu0 0.0
    %3045 = vmatpush.msra.mxu0 0.0
    %3046 = vmatpush.msra.mxu0 0.0
    %3047 = vmatpush.msra.mxu0 0.0
    %3048 = vmatpush.msra.mxu0 0.0
    %3049 = vmatpush.msra.mxu0 0.0
    %3050 = vmatpush.msra.mxu0 0.0
    %3051 = vmatpush.msra.mxu0 0.0
    %3052 = vmatpush.msra.mxu0 0.0
    %3053 = vmatpush.msra.mxu0 0.0
    %3054 = vmatpush.msra.mxu0 0.0
    %3055 = vmatpush.msra.mxu0 0.0
    %3056 = vmatpush.msra.mxu0 0.0
    %3057 = vmatpush.msra.mxu0 %v3040
    %3058 = vmatmul.f32.gmra.mxu0 %v3038
    %v3059 = vpop.f32.mrf.mxu0
    %v3060 = vadd.f32 0.0, %v3059
    %3061 = vdwg.mxu0
    %v3062 = vld [vmem:[#allocation6 + $0x18] sm:$0xf]
    %v3063 = vld [vmem:[#allocation6 + $0x1c] sm:$0xf]
    %v3064 = vunpack.c.l.bf16 %v3062
    %v3065 = vunpack.c.l.bf16 %v3063
    %v3067 = vsel %vm203, %v3060, 0
    %3069 = vmatpush.msra.mxu0 0.0
    %3070 = vmatpush.msra.mxu0 0.0
    %3071 = vmatpush.msra.mxu0 0.0
    %3072 = vmatpush.msra.mxu0 0.0
    %3073 = vmatpush.msra.mxu0 0.0
    %3074 = vmatpush.msra.mxu0 0.0
    %3075 = vmatpush.msra.mxu0 0.0
    %3076 = vmatpush.msra.mxu0 0.0
    %3077 = vmatpush.msra.mxu0 0.0
    %3078 = vmatpush.msra.mxu0 0.0
    %3079 = vmatpush.msra.mxu0 0.0
    %3080 = vmatpush.msra.mxu0 0.0
    %3081 = vmatpush.msra.mxu0 0.0
    %3082 = vmatpush.msra.mxu0 0.0
    %3083 = vmatpush.msra.mxu0 %v3065
    %3084 = vmatpush.msra.mxu0 %v3064
    %3085 = vmatmul.f32.gmra.mxu0 %v3067
    %v3086 = vpop.f32.mrf.mxu0
    %v3087 = vadd.f32 0.0, %v3086
    %3088 = vdwg.mxu0
    %v3089 = vadd.f32 %v2995, %v3087
    %v3090 = vld [vmem:[#allocation7] sm:$0x1]
    %v3092 = vperm.slane %v3090, 0
    %v3094 = vadd.f32 %v3089, %v3092
    %v3095 = vadd.f32 %v2632, %v3094
    %v3096 = vsel %vm583, %v3095, 0.0
    %3097 = vadd.xlane.f32.xlu0 %v3096
    %v3098 = vpop.xlane.xlu0 %3097
    %v3099 = vmul.f32 %v3098, %v593
    %v3100 = vsub.f32 %v3095, %v3099
    %v3101 = vmul.f32 %v3100, %v3100
    %v3102 = vsel %vm583, %v3101, 0.0
    %3103 = vadd.xlane.f32.xlu0 %v3102
    %v3104 = vpop.xlane.xlu0 %3103
    %v3105 = vmul.f32 %v3104, %v593
    %v3106 = vadd.f32 %v3105, 1e-05
    %v3107 = vrsqrt.pop %v3106
    %v3108 = vmul.f32 %v3107, %v3106
    %v3109 = vmul.f32 %v3108, %v3107
    %v3110 = vmul.f32 0.5, %v3109
    %v3111 = vsub.f32 1.5, %v3110
    %v3112 = vmul.f32 %v3107, %v3111
    %vm3113 = vweird.f32 %v3106
    %vm3114 = vweird.f32 %v3107
    %vm3115 = vmor %vm3113, %vm3114
    %v3116 = vsel %vm3115, %v3107, %v3112
    %v3117 = vmul.f32 %v3100, %v3116
    %v3118 = vld [vmem:[#allocation9] sm:$0x1]
    %v3120 = vperm.slane %v3118, 0
    %v3122 = vmul.f32 %v3117, %v3120
    %v3123 = vld [vmem:[#allocation10] sm:$0x1]
    %v3125 = vperm.slane %v3123, 0
    %v3127 = vadd.f32 %v3122, %v3125
    %v3128 = vpack.c.bf16 %v3127, %v3127
    %s3129 = scalar_lea.vmem %s7, 5
    %3130 = vst.msk [vmem:[%s3129] sm:$0x1] %vm624, %v3128
    %s3131 = scalar_lea.vmem %s0, 6
    %v3132 = vld [vmem:[%s3131] sm:$0x1]
    %v3133 = vunpack.c.l.bf16 %v3132
    %v3134 = vld [vmem:[#allocation2] sm:$0xff]
    %v3135 = vld [vmem:[#allocation2 + $0x8] sm:$0xff]
    %v3136 = vld [vmem:[#allocation2 + $0x10] sm:$0xff]
    %v3137 = vld [vmem:[#allocation2 + $0x18] sm:$0xff]
    %v3138 = vld [vmem:[#allocation2 + $0x20] sm:$0xff]
    %v3139 = vld [vmem:[#allocation2 + $0x28] sm:$0xff]
    %v3140 = vld [vmem:[#allocation2 + $0x30] sm:$0xff]
    %v3141 = vld [vmem:[#allocation2 + $0x38] sm:$0xff]
    %v3142 = vld [vmem:[#allocation4] sm:$0x3]
    %v3144 = vperm.slane %v3142, 0
    %v3145 = vperm.slane %v3142, 1
    %v3156 = vunpack.c.l.b16 %v3134
    %v3157 = vunpack.c.h.b16 %v3134
    %v3158 = vunpack.c.l.b16 %v3135
    %v3159 = vunpack.c.h.b16 %v3135
    %v3160 = vunpack.c.l.b16 %v3136
    %v3161 = vunpack.c.h.b16 %v3136
    %v3162 = vunpack.c.l.b16 %v3137
    %v3163 = vunpack.c.h.b16 %v3137
    %v3164 = vunpack.c.l.b16 %v3138
    %v3165 = vunpack.c.h.b16 %v3138
    %v3166 = vunpack.c.l.b16 %v3139
    %v3167 = vunpack.c.h.b16 %v3139
    %v3168 = vunpack.c.l.b16 %v3140
    %v3169 = vunpack.c.h.b16 %v3140
    %v3170 = vunpack.c.l.b16 %v3141
    %v3171 = vunpack.c.h.b16 %v3141
    %v3172 = vpack.c.b16 %v3158, %v3156
    %v3173 = vpack.c.b16 %v3159, %v3157
    %v3174 = vpack.c.b16 %v3162, %v3160
    %v3175 = vpack.c.b16 %v3163, %v3161
    %v3176 = vpack.c.b16 %v3166, %v3164
    %v3177 = vpack.c.b16 %v3167, %v3165
    %v3178 = vpack.c.b16 %v3170, %v3168
    %v3179 = vpack.c.b16 %v3171, %v3169
    %v3189 = vsel %vm169, %v3132, 0
    %3191 = vmatpush.bf16.msra.mxu0 0
    %3192 = vmatpush.bf16.msra.mxu0 0
    %3193 = vmatpush.bf16.msra.mxu0 0
    %3194 = vmatpush.bf16.msra.mxu0 0
    %3195 = vmatpush.bf16.msra.mxu0 %v3178
    %3196 = vmatpush.bf16.msra.mxu0 %v3176
    %3197 = vmatpush.bf16.msra.mxu0 %v3174
    %3198 = vmatpush.bf16.msra.mxu0 %v3172
    %3199 = vmatmul.bf16.gmra.mxu0 %v3189
    %v3200 = vpop.f32.mrf.mxu0
    %v3201 = vadd.f32 %v3144, %v3200
    %v3202 = vpop.f32.mrf.mxu0
    %3203 = vdwg.mxu0
    %3204 = vmatpush.bf16.msra.mxu0 0
    %3205 = vmatpush.bf16.msra.mxu0 0
    %3206 = vmatpush.bf16.msra.mxu0 0
    %3207 = vmatpush.bf16.msra.mxu0 0
    %3208 = vmatpush.bf16.msra.mxu0 %v3179
    %3209 = vmatpush.bf16.msra.mxu0 %v3177
    %3210 = vmatpush.bf16.msra.mxu0 %v3175
    %3211 = vmatpush.bf16.msra.mxu0 %v3173
    %3212 = vmatmul.bf16.gmra.mxu0 %v3189
    %v3213 = vpop.f32.mrf.mxu0
    %v3214 = vadd.f32 %v3145, %v3213
    %v3215 = vpop.f32.mrf.mxu0
    %3216 = vdwg.mxu0
    %v3217 = vmul.f32 %v3201, 0.25
    %3219 = vrot.lane.b32.xlu0 %v3201, 64
    %v3220 = vpop.permute.xlu0 %3219
    %v3222 = vsel %vm203, %v3217, 0
    %v3224 = vsel %vm203, %v3220, 0
    %3226 = vmatpush.xpose.msra.mxu0 0.0
    %3227 = vmatpush.xpose.msra.mxu0 0.0
    %3228 = vmatpush.xpose.msra.mxu0 0.0
    %3229 = vmatpush.xpose.msra.mxu0 0.0
    %3230 = vmatpush.xpose.msra.mxu0 0.0
    %3231 = vmatpush.xpose.msra.mxu0 0.0
    %3232 = vmatpush.xpose.msra.mxu0 0.0
    %3233 = vmatpush.xpose.msra.mxu0 0.0
    %3234 = vmatpush.xpose.msra.mxu0 0.0
    %3235 = vmatpush.xpose.msra.mxu0 0.0
    %3236 = vmatpush.xpose.msra.mxu0 0.0
    %3237 = vmatpush.xpose.msra.mxu0 0.0
    %3238 = vmatpush.xpose.msra.mxu0 0.0
    %3239 = vmatpush.xpose.msra.mxu0 0.0
    %3240 = vmatpush.xpose.msra.mxu0 0.0
    %3241 = vmatpush.xpose.msra.mxu0 %v3224
    %3242 = vmatmul.f32.gmra.mxu0 %v3222
    %v3243 = vpop.f32.mrf.mxu0
    %v3244 = vadd.f32 0.0, %v3243
    %3245 = vdwg.mxu0
    %v3246 = vsel %vm229, %v3244, -inf
    %3247 = vmax.xlane.f32.xlu0 %v3246
    %v3248 = vpop.xlane.xlu0 %3247
    %v3249 = vsub.f32 %v3244, %v3248
    %v3250 = vmul.f32 %v3249, 1.442695
    %v3251 = vpow.pop %v3250
    %v3252 = vsel %vm229, %v3251, 0.0
    %3253 = vadd.xlane.f32.xlu0 %v3252
    %v3254 = vpop.xlane.xlu0 %3253
    %v3255 = vrcp.pop %v3254
    %v3256 = vmul.f32 %v3251, %v3255
    %v3258 = vsel %vm241, %v3256, 0
    %v3261 = vsel %vm245, %v3214, 0
    %3263 = vmatpush.msra.mxu0 0.0
    %3264 = vmatpush.msra.mxu0 0.0
    %3265 = vmatpush.msra.mxu0 0.0
    %3266 = vmatpush.msra.mxu0 0.0
    %3267 = vmatpush.msra.mxu0 0.0
    %3268 = vmatpush.msra.mxu0 0.0
    %3269 = vmatpush.msra.mxu0 0.0
    %3270 = vmatpush.msra.mxu0 0.0
    %3271 = vmatpush.msra.mxu0 0.0
    %3272 = vmatpush.msra.mxu0 0.0
    %3273 = vmatpush.msra.mxu0 0.0
    %3274 = vmatpush.msra.mxu0 0.0
    %3275 = vmatpush.msra.mxu0 0.0
    %3276 = vmatpush.msra.mxu0 0.0
    %3277 = vmatpush.msra.mxu0 0.0
    %3278 = vmatpush.msra.mxu0 %v3261
    %3279 = vmatmul.f32.gmra.mxu0 %v3258
    %v3280 = vpop.f32.mrf.mxu0
    %v3281 = vadd.f32 0.0, %v3280
    %3282 = vdwg.mxu0
    %v3283 = vld [vmem:[#allocation6] sm:$0xf]
    %v3284 = vld [vmem:[#allocation6 + $0x4] sm:$0xf]
    %v3285 = vunpack.c.l.bf16 %v3283
    %v3286 = vunpack.c.l.bf16 %v3284
    %3287 = vrot.lane.b32.xlu0 %v3217, 112
    %v3288 = vpop.permute.xlu0 %3287
    %3289 = vrot.lane.b32.xlu0 %v3201, 48
    %v3290 = vpop.permute.xlu0 %3289
    %v3291 = vsel %vm203, %v3288, 0
    %v3293 = vsel %vm203, %v3290, 0
    %3295 = vmatpush.xpose.msra.mxu0 0.0
    %3296 = vmatpush.xpose.msra.mxu0 0.0
    %3297 = vmatpush.xpose.msra.mxu0 0.0
    %3298 = vmatpush.xpose.msra.mxu0 0.0
    %3299 = vmatpush.xpose.msra.mxu0 0.0
    %3300 = vmatpush.xpose.msra.mxu0 0.0
    %3301 = vmatpush.xpose.msra.mxu0 0.0
    %3302 = vmatpush.xpose.msra.mxu0 0.0
    %3303 = vmatpush.xpose.msra.mxu0 0.0
    %3304 = vmatpush.xpose.msra.mxu0 0.0
    %3305 = vmatpush.xpose.msra.mxu0 0.0
    %3306 = vmatpush.xpose.msra.mxu0 0.0
    %3307 = vmatpush.xpose.msra.mxu0 0.0
    %3308 = vmatpush.xpose.msra.mxu0 0.0
    %3309 = vmatpush.xpose.msra.mxu0 0.0
    %3310 = vmatpush.xpose.msra.mxu0 %v3293
    %3311 = vmatmul.f32.gmra.mxu0 %v3291
    %v3312 = vpop.f32.mrf.mxu0
    %v3313 = vadd.f32 0.0, %v3312
    %3314 = vdwg.mxu0
    %v3315 = vsel %vm229, %v3313, -inf
    %3316 = vmax.xlane.f32.xlu0 %v3315
    %v3317 = vpop.xlane.xlu0 %3316
    %v3318 = vsub.f32 %v3313, %v3317
    %v3319 = vmul.f32 %v3318, 1.442695
    %v3320 = vpow.pop %v3319
    %v3321 = vsel %vm229, %v3320, 0.0
    %3322 = vadd.xlane.f32.xlu0 %v3321
    %v3323 = vpop.xlane.xlu0 %3322
    %v3324 = vrcp.pop %v3323
    %v3325 = vmul.f32 %v3320, %v3324
    %3326 = vrot.lane.b32.xlu0 %v3214, 112
    %v3327 = vpop.permute.xlu0 %3326
    %v3329 = vsel %vm241, %v3325, 0
    %v3331 = vsel %vm245, %v3327, 0
    %3333 = vmatpush.msra.mxu0 0.0
    %3334 = vmatpush.msra.mxu0 0.0
    %3335 = vmatpush.msra.mxu0 0.0
    %3336 = vmatpush.msra.mxu0 0.0
    %3337 = vmatpush.msra.mxu0 0.0
    %3338 = vmatpush.msra.mxu0 0.0
    %3339 = vmatpush.msra.mxu0 0.0
    %3340 = vmatpush.msra.mxu0 0.0
    %3341 = vmatpush.msra.mxu0 0.0
    %3342 = vmatpush.msra.mxu0 0.0
    %3343 = vmatpush.msra.mxu0 0.0
    %3344 = vmatpush.msra.mxu0 0.0
    %3345 = vmatpush.msra.mxu0 0.0
    %3346 = vmatpush.msra.mxu0 0.0
    %3347 = vmatpush.msra.mxu0 0.0
    %3348 = vmatpush.msra.mxu0 %v3331
    %3349 = vmatmul.f32.gmra.mxu0 %v3329
    %v3350 = vpop.f32.mrf.mxu0
    %v3351 = vadd.f32 0.0, %v3350
    %3352 = vdwg.mxu0
    %v3353 = vld [vmem:[#allocation6 + $0x8] sm:$0xf]
    %v3354 = vld [vmem:[#allocation6 + $0xc] sm:$0xf]
    %v3355 = vunpack.c.l.bf16 %v3353
    %v3356 = vunpack.c.l.bf16 %v3354
    %v3358 = vsel %vm203, %v3351, 0
    %3360 = vmatpush.msra.mxu0 0.0
    %3361 = vmatpush.msra.mxu0 0.0
    %3362 = vmatpush.msra.mxu0 0.0
    %3363 = vmatpush.msra.mxu0 0.0
    %3364 = vmatpush.msra.mxu0 0.0
    %3365 = vmatpush.msra.mxu0 0.0
    %3366 = vmatpush.msra.mxu0 0.0
    %3367 = vmatpush.msra.mxu0 0.0
    %3368 = vmatpush.msra.mxu0 0.0
    %3369 = vmatpush.msra.mxu0 0.0
    %3370 = vmatpush.msra.mxu0 0.0
    %3371 = vmatpush.msra.mxu0 0.0
    %3372 = vmatpush.msra.mxu0 0.0
    %3373 = vmatpush.msra.mxu0 0.0
    %3374 = vmatpush.msra.mxu0 %v3356
    %3375 = vmatpush.msra.mxu0 %v3355
    %3376 = vmatmul.f32.gmra.mxu0 %v3358
    %v3377 = vpop.f32.mrf.mxu0
    %v3378 = vadd.f32 0.0, %v3377
    %3379 = vdwg.mxu0
    %v3381 = vsel %vm203, %v3281, 0
    %3383 = vmatpush.msra.mxu0 0.0
    %3384 = vmatpush.msra.mxu0 0.0
    %3385 = vmatpush.msra.mxu0 0.0
    %3386 = vmatpush.msra.mxu0 0.0
    %3387 = vmatpush.msra.mxu0 0.0
    %3388 = vmatpush.msra.mxu0 0.0
    %3389 = vmatpush.msra.mxu0 0.0
    %3390 = vmatpush.msra.mxu0 0.0
    %3391 = vmatpush.msra.mxu0 0.0
    %3392 = vmatpush.msra.mxu0 0.0
    %3393 = vmatpush.msra.mxu0 0.0
    %3394 = vmatpush.msra.mxu0 0.0
    %3395 = vmatpush.msra.mxu0 0.0
    %3396 = vmatpush.msra.mxu0 0.0
    %3397 = vmatpush.msra.mxu0 %v3286
    %3398 = vmatpush.msra.mxu0 %v3285
    %3399 = vmatmul.f32.gmra.mxu0 %v3381
    %v3400 = vpop.f32.mrf.mxu0
    %v3401 = vadd.f32 %v3378, %v3400
    %3402 = vdwg.mxu0
    %3403 = vrot.lane.b32.xlu0 %v3217, 96
    %v3404 = vpop.permute.xlu0 %3403
    %3405 = vrot.lane.b32.xlu0 %v3201, 32
    %v3406 = vpop.permute.xlu0 %3405
    %v3407 = vsel %vm203, %v3404, 0
    %v3409 = vsel %vm203, %v3406, 0
    %3411 = vmatpush.xpose.msra.mxu0 0.0
    %3412 = vmatpush.xpose.msra.mxu0 0.0
    %3413 = vmatpush.xpose.msra.mxu0 0.0
    %3414 = vmatpush.xpose.msra.mxu0 0.0
    %3415 = vmatpush.xpose.msra.mxu0 0.0
    %3416 = vmatpush.xpose.msra.mxu0 0.0
    %3417 = vmatpush.xpose.msra.mxu0 0.0
    %3418 = vmatpush.xpose.msra.mxu0 0.0
    %3419 = vmatpush.xpose.msra.mxu0 0.0
    %3420 = vmatpush.xpose.msra.mxu0 0.0
    %3421 = vmatpush.xpose.msra.mxu0 0.0
    %3422 = vmatpush.xpose.msra.mxu0 0.0
    %3423 = vmatpush.xpose.msra.mxu0 0.0
    %3424 = vmatpush.xpose.msra.mxu0 0.0
    %3425 = vmatpush.xpose.msra.mxu0 0.0
    %3426 = vmatpush.xpose.msra.mxu0 %v3409
    %3427 = vmatmul.f32.gmra.mxu0 %v3407
    %v3428 = vpop.f32.mrf.mxu0
    %v3429 = vadd.f32 0.0, %v3428
    %3430 = vdwg.mxu0
    %v3431 = vsel %vm229, %v3429, -inf
    %3432 = vmax.xlane.f32.xlu0 %v3431
    %v3433 = vpop.xlane.xlu0 %3432
    %v3434 = vsub.f32 %v3429, %v3433
    %v3435 = vmul.f32 %v3434, 1.442695
    %v3436 = vpow.pop %v3435
    %v3437 = vsel %vm229, %v3436, 0.0
    %3438 = vadd.xlane.f32.xlu0 %v3437
    %v3439 = vpop.xlane.xlu0 %3438
    %v3440 = vrcp.pop %v3439
    %v3441 = vmul.f32 %v3436, %v3440
    %3442 = vrot.lane.b32.xlu0 %v3214, 96
    %v3443 = vpop.permute.xlu0 %3442
    %v3445 = vsel %vm241, %v3441, 0
    %v3447 = vsel %vm245, %v3443, 0
    %3449 = vmatpush.msra.mxu0 0.0
    %3450 = vmatpush.msra.mxu0 0.0
    %3451 = vmatpush.msra.mxu0 0.0
    %3452 = vmatpush.msra.mxu0 0.0
    %3453 = vmatpush.msra.mxu0 0.0
    %3454 = vmatpush.msra.mxu0 0.0
    %3455 = vmatpush.msra.mxu0 0.0
    %3456 = vmatpush.msra.mxu0 0.0
    %3457 = vmatpush.msra.mxu0 0.0
    %3458 = vmatpush.msra.mxu0 0.0
    %3459 = vmatpush.msra.mxu0 0.0
    %3460 = vmatpush.msra.mxu0 0.0
    %3461 = vmatpush.msra.mxu0 0.0
    %3462 = vmatpush.msra.mxu0 0.0
    %3463 = vmatpush.msra.mxu0 0.0
    %3464 = vmatpush.msra.mxu0 %v3447
    %3465 = vmatmul.f32.gmra.mxu0 %v3445
    %v3466 = vpop.f32.mrf.mxu0
    %v3467 = vadd.f32 0.0, %v3466
    %3468 = vdwg.mxu0
    %v3469 = vld [vmem:[#allocation6 + $0x10] sm:$0xf]
    %v3470 = vld [vmem:[#allocation6 + $0x14] sm:$0xf]
    %v3471 = vunpack.c.l.bf16 %v3469
    %v3472 = vunpack.c.l.bf16 %v3470
    %v3474 = vsel %vm203, %v3467, 0
    %3476 = vmatpush.msra.mxu0 0.0
    %3477 = vmatpush.msra.mxu0 0.0
    %3478 = vmatpush.msra.mxu0 0.0
    %3479 = vmatpush.msra.mxu0 0.0
    %3480 = vmatpush.msra.mxu0 0.0
    %3481 = vmatpush.msra.mxu0 0.0
    %3482 = vmatpush.msra.mxu0 0.0
    %3483 = vmatpush.msra.mxu0 0.0
    %3484 = vmatpush.msra.mxu0 0.0
    %3485 = vmatpush.msra.mxu0 0.0
    %3486 = vmatpush.msra.mxu0 0.0
    %3487 = vmatpush.msra.mxu0 0.0
    %3488 = vmatpush.msra.mxu0 0.0
    %3489 = vmatpush.msra.mxu0 0.0
    %3490 = vmatpush.msra.mxu0 %v3472
    %3491 = vmatpush.msra.mxu0 %v3471
    %3492 = vmatmul.f32.gmra.mxu0 %v3474
    %v3493 = vpop.f32.mrf.mxu0
    %v3494 = vadd.f32 0.0, %v3493
    %3495 = vdwg.mxu0
    %v3496 = vadd.f32 %v3401, %v3494
    %3497 = vrot.lane.b32.xlu0 %v3217, 80
    %v3498 = vpop.permute.xlu0 %3497
    %3499 = vrot.lane.b32.xlu0 %v3201, 16
    %v3500 = vpop.permute.xlu0 %3499
    %v3501 = vsel %vm203, %v3498, 0
    %v3503 = vsel %vm203, %v3500, 0
    %3505 = vmatpush.xpose.msra.mxu0 0.0
    %3506 = vmatpush.xpose.msra.mxu0 0.0
    %3507 = vmatpush.xpose.msra.mxu0 0.0
    %3508 = vmatpush.xpose.msra.mxu0 0.0
    %3509 = vmatpush.xpose.msra.mxu0 0.0
    %3510 = vmatpush.xpose.msra.mxu0 0.0
    %3511 = vmatpush.xpose.msra.mxu0 0.0
    %3512 = vmatpush.xpose.msra.mxu0 0.0
    %3513 = vmatpush.xpose.msra.mxu0 0.0
    %3514 = vmatpush.xpose.msra.mxu0 0.0
    %3515 = vmatpush.xpose.msra.mxu0 0.0
    %3516 = vmatpush.xpose.msra.mxu0 0.0
    %3517 = vmatpush.xpose.msra.mxu0 0.0
    %3518 = vmatpush.xpose.msra.mxu0 0.0
    %3519 = vmatpush.xpose.msra.mxu0 0.0
    %3520 = vmatpush.xpose.msra.mxu0 %v3503
    %3521 = vmatmul.f32.gmra.mxu0 %v3501
    %v3522 = vpop.f32.mrf.mxu0
    %v3523 = vadd.f32 0.0, %v3522
    %3524 = vdwg.mxu0
    %v3525 = vsel %vm229, %v3523, -inf
    %3526 = vmax.xlane.f32.xlu0 %v3525
    %v3527 = vpop.xlane.xlu0 %3526
    %v3528 = vsub.f32 %v3523, %v3527
    %v3529 = vmul.f32 %v3528, 1.442695
    %v3530 = vpow.pop %v3529
    %v3531 = vsel %vm229, %v3530, 0.0
    %3532 = vadd.xlane.f32.xlu0 %v3531
    %v3533 = vpop.xlane.xlu0 %3532
    %v3534 = vrcp.pop %v3533
    %v3535 = vmul.f32 %v3530, %v3534
    %3536 = vrot.lane.b32.xlu0 %v3214, 80
    %v3537 = vpop.permute.xlu0 %3536
    %v3539 = vsel %vm241, %v3535, 0
    %v3541 = vsel %vm245, %v3537, 0
    %3543 = vmatpush.msra.mxu0 0.0
    %3544 = vmatpush.msra.mxu0 0.0
    %3545 = vmatpush.msra.mxu0 0.0
    %3546 = vmatpush.msra.mxu0 0.0
    %3547 = vmatpush.msra.mxu0 0.0
    %3548 = vmatpush.msra.mxu0 0.0
    %3549 = vmatpush.msra.mxu0 0.0
    %3550 = vmatpush.msra.mxu0 0.0
    %3551 = vmatpush.msra.mxu0 0.0
    %3552 = vmatpush.msra.mxu0 0.0
    %3553 = vmatpush.msra.mxu0 0.0
    %3554 = vmatpush.msra.mxu0 0.0
    %3555 = vmatpush.msra.mxu0 0.0
    %3556 = vmatpush.msra.mxu0 0.0
    %3557 = vmatpush.msra.mxu0 0.0
    %3558 = vmatpush.msra.mxu0 %v3541
    %3559 = vmatmul.f32.gmra.mxu0 %v3539
    %v3560 = vpop.f32.mrf.mxu0
    %v3561 = vadd.f32 0.0, %v3560
    %3562 = vdwg.mxu0
    %v3563 = vld [vmem:[#allocation6 + $0x18] sm:$0xf]
    %v3564 = vld [vmem:[#allocation6 + $0x1c] sm:$0xf]
    %v3565 = vunpack.c.l.bf16 %v3563
    %v3566 = vunpack.c.l.bf16 %v3564
    %v3568 = vsel %vm203, %v3561, 0
    %3570 = vmatpush.msra.mxu0 0.0
    %3571 = vmatpush.msra.mxu0 0.0
    %3572 = vmatpush.msra.mxu0 0.0
    %3573 = vmatpush.msra.mxu0 0.0
    %3574 = vmatpush.msra.mxu0 0.0
    %3575 = vmatpush.msra.mxu0 0.0
    %3576 = vmatpush.msra.mxu0 0.0
    %3577 = vmatpush.msra.mxu0 0.0
    %3578 = vmatpush.msra.mxu0 0.0
    %3579 = vmatpush.msra.mxu0 0.0
    %3580 = vmatpush.msra.mxu0 0.0
    %3581 = vmatpush.msra.mxu0 0.0
    %3582 = vmatpush.msra.mxu0 0.0
    %3583 = vmatpush.msra.mxu0 0.0
    %3584 = vmatpush.msra.mxu0 %v3566
    %3585 = vmatpush.msra.mxu0 %v3565
    %3586 = vmatmul.f32.gmra.mxu0 %v3568
    %v3587 = vpop.f32.mrf.mxu0
    %v3588 = vadd.f32 0.0, %v3587
    %3589 = vdwg.mxu0
    %v3590 = vadd.f32 %v3496, %v3588
    %v3591 = vld [vmem:[#allocation7] sm:$0x1]
    %v3593 = vperm.slane %v3591, 0
    %v3595 = vadd.f32 %v3590, %v3593
    %v3596 = vadd.f32 %v3133, %v3595
    %v3597 = vsel %vm583, %v3596, 0.0
    %3598 = vadd.xlane.f32.xlu0 %v3597
    %v3599 = vpop.xlane.xlu0 %3598
    %v3600 = vmul.f32 %v3599, %v593
    %v3601 = vsub.f32 %v3596, %v3600
    %v3602 = vmul.f32 %v3601, %v3601
    %v3603 = vsel %vm583, %v3602, 0.0
    %3604 = vadd.xlane.f32.xlu0 %v3603
    %v3605 = vpop.xlane.xlu0 %3604
    %v3606 = vmul.f32 %v3605, %v593
    %v3607 = vadd.f32 %v3606, 1e-05
    %v3608 = vrsqrt.pop %v3607
    %v3609 = vmul.f32 %v3608, %v3607
    %v3610 = vmul.f32 %v3609, %v3608
    %v3611 = vmul.f32 0.5, %v3610
    %v3612 = vsub.f32 1.5, %v3611
    %v3613 = vmul.f32 %v3608, %v3612
    %vm3614 = vweird.f32 %v3607
    %vm3615 = vweird.f32 %v3608
    %vm3616 = vmor %vm3614, %vm3615
    %v3617 = vsel %vm3616, %v3608, %v3613
    %v3618 = vmul.f32 %v3601, %v3617
    %v3619 = vld [vmem:[#allocation9] sm:$0x1]
    %v3621 = vperm.slane %v3619, 0
    %v3623 = vmul.f32 %v3618, %v3621
    %v3624 = vld [vmem:[#allocation10] sm:$0x1]
    %v3626 = vperm.slane %v3624, 0
    %v3628 = vadd.f32 %v3623, %v3626
    %v3629 = vpack.c.bf16 %v3628, %v3628
    %s3630 = scalar_lea.vmem %s7, 6
    %3631 = vst.msk [vmem:[%s3630] sm:$0x1] %vm624, %v3629
    %s3632 = scalar_lea.vmem %s0, 7
    %v3633 = vld [vmem:[%s3632] sm:$0x1]
    %v3634 = vunpack.c.l.bf16 %v3633
    %v3635 = vld [vmem:[#allocation2] sm:$0xff]
    %v3636 = vld [vmem:[#allocation2 + $0x8] sm:$0xff]
    %v3637 = vld [vmem:[#allocation2 + $0x10] sm:$0xff]
    %v3638 = vld [vmem:[#allocation2 + $0x18] sm:$0xff]
    %v3639 = vld [vmem:[#allocation2 + $0x20] sm:$0xff]
    %v3640 = vld [vmem:[#allocation2 + $0x28] sm:$0xff]
    %v3641 = vld [vmem:[#allocation2 + $0x30] sm:$0xff]
    %v3642 = vld [vmem:[#allocation2 + $0x38] sm:$0xff]
    %v3643 = vld [vmem:[#allocation4] sm:$0x3]
    %v3645 = vperm.slane %v3643, 0
    %v3646 = vperm.slane %v3643, 1
    %v3657 = vunpack.c.l.b16 %v3635
    %v3658 = vunpack.c.h.b16 %v3635
    %v3659 = vunpack.c.l.b16 %v3636
    %v3660 = vunpack.c.h.b16 %v3636
    %v3661 = vunpack.c.l.b16 %v3637
    %v3662 = vunpack.c.h.b16 %v3637
    %v3663 = vunpack.c.l.b16 %v3638
    %v3664 = vunpack.c.h.b16 %v3638
    %v3665 = vunpack.c.l.b16 %v3639
    %v3666 = vunpack.c.h.b16 %v3639
    %v3667 = vunpack.c.l.b16 %v3640
    %v3668 = vunpack.c.h.b16 %v3640
    %v3669 = vunpack.c.l.b16 %v3641
    %v3670 = vunpack.c.h.b16 %v3641
    %v3671 = vunpack.c.l.b16 %v3642
    %v3672 = vunpack.c.h.b16 %v3642
    %v3673 = vpack.c.b16 %v3659, %v3657
    %v3674 = vpack.c.b16 %v3660, %v3658
    %v3675 = vpack.c.b16 %v3663, %v3661
    %v3676 = vpack.c.b16 %v3664, %v3662
    %v3677 = vpack.c.b16 %v3667, %v3665
    %v3678 = vpack.c.b16 %v3668, %v3666
    %v3679 = vpack.c.b16 %v3671, %v3669
    %v3680 = vpack.c.b16 %v3672, %v3670
    %v3690 = vsel %vm169, %v3633, 0
    %3692 = vmatpush.bf16.msra.mxu0 0
    %3693 = vmatpush.bf16.msra.mxu0 0
    %3694 = vmatpush.bf16.msra.mxu0 0
    %3695 = vmatpush.bf16.msra.mxu0 0
    %3696 = vmatpush.bf16.msra.mxu0 %v3679
    %3697 = vmatpush.bf16.msra.mxu0 %v3677
    %3698 = vmatpush.bf16.msra.mxu0 %v3675
    %3699 = vmatpush.bf16.msra.mxu0 %v3673
    %3700 = vmatmul.bf16.gmra.mxu0 %v3690
    %v3701 = vpop.f32.mrf.mxu0
    %v3702 = vadd.f32 %v3645, %v3701
    %v3703 = vpop.f32.mrf.mxu0
    %3704 = vdwg.mxu0
    %3705 = vmatpush.bf16.msra.mxu0 0
    %3706 = vmatpush.bf16.msra.mxu0 0
    %3707 = vmatpush.bf16.msra.mxu0 0
    %3708 = vmatpush.bf16.msra.mxu0 0
    %3709 = vmatpush.bf16.msra.mxu0 %v3680
    %3710 = vmatpush.bf16.msra.mxu0 %v3678
    %3711 = vmatpush.bf16.msra.mxu0 %v3676
    %3712 = vmatpush.bf16.msra.mxu0 %v3674
    %3713 = vmatmul.bf16.gmra.mxu0 %v3690
    %v3714 = vpop.f32.mrf.mxu0
    %v3715 = vadd.f32 %v3646, %v3714
    %v3716 = vpop.f32.mrf.mxu0
    %3717 = vdwg.mxu0
    %v3718 = vmul.f32 %v3702, 0.25
    %3720 = vrot.lane.b32.xlu0 %v3702, 64
    %v3721 = vpop.permute.xlu0 %3720
    %v3723 = vsel %vm203, %v3718, 0
    %v3725 = vsel %vm203, %v3721, 0
    %3727 = vmatpush.xpose.msra.mxu0 0.0
    %3728 = vmatpush.xpose.msra.mxu0 0.0
    %3729 = vmatpush.xpose.msra.mxu0 0.0
    %3730 = vmatpush.xpose.msra.mxu0 0.0
    %3731 = vmatpush.xpose.msra.mxu0 0.0
    %3732 = vmatpush.xpose.msra.mxu0 0.0
    %3733 = vmatpush.xpose.msra.mxu0 0.0
    %3734 = vmatpush.xpose.msra.mxu0 0.0
    %3735 = vmatpush.xpose.msra.mxu0 0.0
    %3736 = vmatpush.xpose.msra.mxu0 0.0
    %3737 = vmatpush.xpose.msra.mxu0 0.0
    %3738 = vmatpush.xpose.msra.mxu0 0.0
    %3739 = vmatpush.xpose.msra.mxu0 0.0
    %3740 = vmatpush.xpose.msra.mxu0 0.0
    %3741 = vmatpush.xpose.msra.mxu0 0.0
    %3742 = vmatpush.xpose.msra.mxu0 %v3725
    %3743 = vmatmul.f32.gmra.mxu0 %v3723
    %v3744 = vpop.f32.mrf.mxu0
    %v3745 = vadd.f32 0.0, %v3744
    %3746 = vdwg.mxu0
    %v3747 = vsel %vm229, %v3745, -inf
    %3748 = vmax.xlane.f32.xlu0 %v3747
    %v3749 = vpop.xlane.xlu0 %3748
    %v3750 = vsub.f32 %v3745, %v3749
    %v3751 = vmul.f32 %v3750, 1.442695
    %v3752 = vpow.pop %v3751
    %v3753 = vsel %vm229, %v3752, 0.0
    %3754 = vadd.xlane.f32.xlu0 %v3753
    %v3755 = vpop.xlane.xlu0 %3754
    %v3756 = vrcp.pop %v3755
    %v3757 = vmul.f32 %v3752, %v3756
    %v3759 = vsel %vm241, %v3757, 0
    %v3762 = vsel %vm245, %v3715, 0
    %3764 = vmatpush.msra.mxu0 0.0
    %3765 = vmatpush.msra.mxu0 0.0
    %3766 = vmatpush.msra.mxu0 0.0
    %3767 = vmatpush.msra.mxu0 0.0
    %3768 = vmatpush.msra.mxu0 0.0
    %3769 = vmatpush.msra.mxu0 0.0
    %3770 = vmatpush.msra.mxu0 0.0
    %3771 = vmatpush.msra.mxu0 0.0
    %3772 = vmatpush.msra.mxu0 0.0
    %3773 = vmatpush.msra.mxu0 0.0
    %3774 = vmatpush.msra.mxu0 0.0
    %3775 = vmatpush.msra.mxu0 0.0
    %3776 = vmatpush.msra.mxu0 0.0
    %3777 = vmatpush.msra.mxu0 0.0
    %3778 = vmatpush.msra.mxu0 0.0
    %3779 = vmatpush.msra.mxu0 %v3762
    %3780 = vmatmul.f32.gmra.mxu0 %v3759
    %v3781 = vpop.f32.mrf.mxu0
    %v3782 = vadd.f32 0.0, %v3781
    %3783 = vdwg.mxu0
    %v3784 = vld [vmem:[#allocation6] sm:$0xf]
    %v3785 = vld [vmem:[#allocation6 + $0x4] sm:$0xf]
    %v3786 = vunpack.c.l.bf16 %v3784
    %v3787 = vunpack.c.l.bf16 %v3785
    %3788 = vrot.lane.b32.xlu0 %v3718, 112
    %v3789 = vpop.permute.xlu0 %3788
    %3790 = vrot.lane.b32.xlu0 %v3702, 48
    %v3791 = vpop.permute.xlu0 %3790
    %v3792 = vsel %vm203, %v3789, 0
    %v3794 = vsel %vm203, %v3791, 0
    %3796 = vmatpush.xpose.msra.mxu0 0.0
    %3797 = vmatpush.xpose.msra.mxu0 0.0
    %3798 = vmatpush.xpose.msra.mxu0 0.0
    %3799 = vmatpush.xpose.msra.mxu0 0.0
    %3800 = vmatpush.xpose.msra.mxu0 0.0
    %3801 = vmatpush.xpose.msra.mxu0 0.0
    %3802 = vmatpush.xpose.msra.mxu0 0.0
    %3803 = vmatpush.xpose.msra.mxu0 0.0
    %3804 = vmatpush.xpose.msra.mxu0 0.0
    %3805 = vmatpush.xpose.msra.mxu0 0.0
    %3806 = vmatpush.xpose.msra.mxu0 0.0
    %3807 = vmatpush.xpose.msra.mxu0 0.0
    %3808 = vmatpush.xpose.msra.mxu0 0.0
    %3809 = vmatpush.xpose.msra.mxu0 0.0
    %3810 = vmatpush.xpose.msra.mxu0 0.0
    %3811 = vmatpush.xpose.msra.mxu0 %v3794
    %3812 = vmatmul.f32.gmra.mxu0 %v3792
    %v3813 = vpop.f32.mrf.mxu0
    %v3814 = vadd.f32 0.0, %v3813
    %3815 = vdwg.mxu0
    %v3816 = vsel %vm229, %v3814, -inf
    %3817 = vmax.xlane.f32.xlu0 %v3816
    %v3818 = vpop.xlane.xlu0 %3817
    %v3819 = vsub.f32 %v3814, %v3818
    %v3820 = vmul.f32 %v3819, 1.442695
    %v3821 = vpow.pop %v3820
    %v3822 = vsel %vm229, %v3821, 0.0
    %3823 = vadd.xlane.f32.xlu0 %v3822
    %v3824 = vpop.xlane.xlu0 %3823
    %v3825 = vrcp.pop %v3824
    %v3826 = vmul.f32 %v3821, %v3825
    %3827 = vrot.lane.b32.xlu0 %v3715, 112
    %v3828 = vpop.permute.xlu0 %3827
    %v3830 = vsel %vm241, %v3826, 0
    %v3832 = vsel %vm245, %v3828, 0
    %3834 = vmatpush.msra.mxu0 0.0
    %3835 = vmatpush.msra.mxu0 0.0
    %3836 = vmatpush.msra.mxu0 0.0
    %3837 = vmatpush.msra.mxu0 0.0
    %3838 = vmatpush.msra.mxu0 0.0
    %3839 = vmatpush.msra.mxu0 0.0
    %3840 = vmatpush.msra.mxu0 0.0
    %3841 = vmatpush.msra.mxu0 0.0
    %3842 = vmatpush.msra.mxu0 0.0
    %3843 = vmatpush.msra.mxu0 0.0
    %3844 = vmatpush.msra.mxu0 0.0
    %3845 = vmatpush.msra.mxu0 0.0
    %3846 = vmatpush.msra.mxu0 0.0
    %3847 = vmatpush.msra.mxu0 0.0
    %3848 = vmatpush.msra.mxu0 0.0
    %3849 = vmatpush.msra.mxu0 %v3832
    %3850 = vmatmul.f32.gmra.mxu0 %v3830
    %v3851 = vpop.f32.mrf.mxu0
    %v3852 = vadd.f32 0.0, %v3851
    %3853 = vdwg.mxu0
    %v3854 = vld [vmem:[#allocation6 + $0x8] sm:$0xf]
    %v3855 = vld [vmem:[#allocation6 + $0xc] sm:$0xf]
    %v3856 = vunpack.c.l.bf16 %v3854
    %v3857 = vunpack.c.l.bf16 %v3855
    %v3859 = vsel %vm203, %v3852, 0
    %3861 = vmatpush.msra.mxu0 0.0
    %3862 = vmatpush.msra.mxu0 0.0
    %3863 = vmatpush.msra.mxu0 0.0
    %3864 = vmatpush.msra.mxu0 0.0
    %3865 = vmatpush.msra.mxu0 0.0
    %3866 = vmatpush.msra.mxu0 0.0
    %3867 = vmatpush.msra.mxu0 0.0
    %3868 = vmatpush.msra.mxu0 0.0
    %3869 = vmatpush.msra.mxu0 0.0
    %3870 = vmatpush.msra.mxu0 0.0
    %3871 = vmatpush.msra.mxu0 0.0
    %3872 = vmatpush.msra.mxu0 0.0
    %3873 = vmatpush.msra.mxu0 0.0
    %3874 = vmatpush.msra.mxu0 0.0
    %3875 = vmatpush.msra.mxu0 %v3857
    %3876 = vmatpush.msra.mxu0 %v3856
    %3877 = vmatmul.f32.gmra.mxu0 %v3859
    %v3878 = vpop.f32.mrf.mxu0
    %v3879 = vadd.f32 0.0, %v3878
    %3880 = vdwg.mxu0
    %v3882 = vsel %vm203, %v3782, 0
    %3884 = vmatpush.msra.mxu0 0.0
    %3885 = vmatpush.msra.mxu0 0.0
    %3886 = vmatpush.msra.mxu0 0.0
    %3887 = vmatpush.msra.mxu0 0.0
    %3888 = vmatpush.msra.mxu0 0.0
    %3889 = vmatpush.msra.mxu0 0.0
    %3890 = vmatpush.msra.mxu0 0.0
    %3891 = vmatpush.msra.mxu0 0.0
    %3892 = vmatpush.msra.mxu0 0.0
    %3893 = vmatpush.msra.mxu0 0.0
    %3894 = vmatpush.msra.mxu0 0.0
    %3895 = vmatpush.msra.mxu0 0.0
    %3896 = vmatpush.msra.mxu0 0.0
    %3897 = vmatpush.msra.mxu0 0.0
    %3898 = vmatpush.msra.mxu0 %v3787
    %3899 = vmatpush.msra.mxu0 %v3786
    %3900 = vmatmul.f32.gmra.mxu0 %v3882
    %v3901 = vpop.f32.mrf.mxu0
    %v3902 = vadd.f32 %v3879, %v3901
    %3903 = vdwg.mxu0
    %3904 = vrot.lane.b32.xlu0 %v3718, 96
    %v3905 = vpop.permute.xlu0 %3904
    %3906 = vrot.lane.b32.xlu0 %v3702, 32
    %v3907 = vpop.permute.xlu0 %3906
    %v3908 = vsel %vm203, %v3905, 0
    %v3910 = vsel %vm203, %v3907, 0
    %3912 = vmatpush.xpose.msra.mxu0 0.0
    %3913 = vmatpush.xpose.msra.mxu0 0.0
    %3914 = vmatpush.xpose.msra.mxu0 0.0
    %3915 = vmatpush.xpose.msra.mxu0 0.0
    %3916 = vmatpush.xpose.msra.mxu0 0.0
    %3917 = vmatpush.xpose.msra.mxu0 0.0
    %3918 = vmatpush.xpose.msra.mxu0 0.0
    %3919 = vmatpush.xpose.msra.mxu0 0.0
    %3920 = vmatpush.xpose.msra.mxu0 0.0
    %3921 = vmatpush.xpose.msra.mxu0 0.0
    %3922 = vmatpush.xpose.msra.mxu0 0.0
    %3923 = vmatpush.xpose.msra.mxu0 0.0
    %3924 = vmatpush.xpose.msra.mxu0 0.0
    %3925 = vmatpush.xpose.msra.mxu0 0.0
    %3926 = vmatpush.xpose.msra.mxu0 0.0
    %3927 = vmatpush.xpose.msra.mxu0 %v3910
    %3928 = vmatmul.f32.gmra.mxu0 %v3908
    %v3929 = vpop.f32.mrf.mxu0
    %v3930 = vadd.f32 0.0, %v3929
    %3931 = vdwg.mxu0
    %v3932 = vsel %vm229, %v3930, -inf
    %3933 = vmax.xlane.f32.xlu0 %v3932
    %v3934 = vpop.xlane.xlu0 %3933
    %v3935 = vsub.f32 %v3930, %v3934
    %v3936 = vmul.f32 %v3935, 1.442695
    %v3937 = vpow.pop %v3936
    %v3938 = vsel %vm229, %v3937, 0.0
    %3939 = vadd.xlane.f32.xlu0 %v3938
    %v3940 = vpop.xlane.xlu0 %3939
    %v3941 = vrcp.pop %v3940
    %v3942 = vmul.f32 %v3937, %v3941
    %3943 = vrot.lane.b32.xlu0 %v3715, 96
    %v3944 = vpop.permute.xlu0 %3943
    %v3946 = vsel %vm241, %v3942, 0
    %v3948 = vsel %vm245, %v3944, 0
    %3950 = vmatpush.msra.mxu0 0.0
    %3951 = vmatpush.msra.mxu0 0.0
    %3952 = vmatpush.msra.mxu0 0.0
    %3953 = vmatpush.msra.mxu0 0.0
    %3954 = vmatpush.msra.mxu0 0.0
    %3955 = vmatpush.msra.mxu0 0.0
    %3956 = vmatpush.msra.mxu0 0.0
    %3957 = vmatpush.msra.mxu0 0.0
    %3958 = vmatpush.msra.mxu0 0.0
    %3959 = vmatpush.msra.mxu0 0.0
    %3960 = vmatpush.msra.mxu0 0.0
    %3961 = vmatpush.msra.mxu0 0.0
    %3962 = vmatpush.msra.mxu0 0.0
    %3963 = vmatpush.msra.mxu0 0.0
    %3964 = vmatpush.msra.mxu0 0.0
    %3965 = vmatpush.msra.mxu0 %v3948
    %3966 = vmatmul.f32.gmra.mxu0 %v3946
    %v3967 = vpop.f32.mrf.mxu0
    %v3968 = vadd.f32 0.0, %v3967
    %3969 = vdwg.mxu0
    %v3970 = vld [vmem:[#allocation6 + $0x10] sm:$0xf]
    %v3971 = vld [vmem:[#allocation6 + $0x14] sm:$0xf]
    %v3972 = vunpack.c.l.bf16 %v3970
    %v3973 = vunpack.c.l.bf16 %v3971
    %v3975 = vsel %vm203, %v3968, 0
    %3977 = vmatpush.msra.mxu0 0.0
    %3978 = vmatpush.msra.mxu0 0.0
    %3979 = vmatpush.msra.mxu0 0.0
    %3980 = vmatpush.msra.mxu0 0.0
    %3981 = vmatpush.msra.mxu0 0.0
    %3982 = vmatpush.msra.mxu0 0.0
    %3983 = vmatpush.msra.mxu0 0.0
    %3984 = vmatpush.msra.mxu0 0.0
    %3985 = vmatpush.msra.mxu0 0.0
    %3986 = vmatpush.msra.mxu0 0.0
    %3987 = vmatpush.msra.mxu0 0.0
    %3988 = vmatpush.msra.mxu0 0.0
    %3989 = vmatpush.msra.mxu0 0.0
    %3990 = vmatpush.msra.mxu0 0.0
    %3991 = vmatpush.msra.mxu0 %v3973
    %3992 = vmatpush.msra.mxu0 %v3972
    %3993 = vmatmul.f32.gmra.mxu0 %v3975
    %v3994 = vpop.f32.mrf.mxu0
    %v3995 = vadd.f32 0.0, %v3994
    %3996 = vdwg.mxu0
    %v3997 = vadd.f32 %v3902, %v3995
    %3998 = vrot.lane.b32.xlu0 %v3718, 80
    %v3999 = vpop.permute.xlu0 %3998
    %4000 = vrot.lane.b32.xlu0 %v3702, 16
    %v4001 = vpop.permute.xlu0 %4000
    %v4002 = vsel %vm203, %v3999, 0
    %v4004 = vsel %vm203, %v4001, 0
    %4006 = vmatpush.xpose.msra.mxu0 0.0
    %4007 = vmatpush.xpose.msra.mxu0 0.0
    %4008 = vmatpush.xpose.msra.mxu0 0.0
    %4009 = vmatpush.xpose.msra.mxu0 0.0
    %4010 = vmatpush.xpose.msra.mxu0 0.0
    %4011 = vmatpush.xpose.msra.mxu0 0.0
    %4012 = vmatpush.xpose.msra.mxu0 0.0
    %4013 = vmatpush.xpose.msra.mxu0 0.0
    %4014 = vmatpush.xpose.msra.mxu0 0.0
    %4015 = vmatpush.xpose.msra.mxu0 0.0
    %4016 = vmatpush.xpose.msra.mxu0 0.0
    %4017 = vmatpush.xpose.msra.mxu0 0.0
    %4018 = vmatpush.xpose.msra.mxu0 0.0
    %4019 = vmatpush.xpose.msra.mxu0 0.0
    %4020 = vmatpush.xpose.msra.mxu0 0.0
    %4021 = vmatpush.xpose.msra.mxu0 %v4004
    %4022 = vmatmul.f32.gmra.mxu0 %v4002
    %v4023 = vpop.f32.mrf.mxu0
    %v4024 = vadd.f32 0.0, %v4023
    %4025 = vdwg.mxu0
    %v4026 = vsel %vm229, %v4024, -inf
    %4027 = vmax.xlane.f32.xlu0 %v4026
    %v4028 = vpop.xlane.xlu0 %4027
    %v4029 = vsub.f32 %v4024, %v4028
    %v4030 = vmul.f32 %v4029, 1.442695
    %v4031 = vpow.pop %v4030
    %v4032 = vsel %vm229, %v4031, 0.0
    %4033 = vadd.xlane.f32.xlu0 %v4032
    %v4034 = vpop.xlane.xlu0 %4033
    %v4035 = vrcp.pop %v4034
    %v4036 = vmul.f32 %v4031, %v4035
    %4037 = vrot.lane.b32.xlu0 %v3715, 80
    %v4038 = vpop.permute.xlu0 %4037
    %v4040 = vsel %vm241, %v4036, 0
    %v4042 = vsel %vm245, %v4038, 0
    %4044 = vmatpush.msra.mxu0 0.0
    %4045 = vmatpush.msra.mxu0 0.0
    %4046 = vmatpush.msra.mxu0 0.0
    %4047 = vmatpush.msra.mxu0 0.0
    %4048 = vmatpush.msra.mxu0 0.0
    %4049 = vmatpush.msra.mxu0 0.0
    %4050 = vmatpush.msra.mxu0 0.0
    %4051 = vmatpush.msra.mxu0 0.0
    %4052 = vmatpush.msra.mxu0 0.0
    %4053 = vmatpush.msra.mxu0 0.0
    %4054 = vmatpush.msra.mxu0 0.0
    %4055 = vmatpush.msra.mxu0 0.0
    %4056 = vmatpush.msra.mxu0 0.0
    %4057 = vmatpush.msra.mxu0 0.0
    %4058 = vmatpush.msra.mxu0 0.0
    %4059 = vmatpush.msra.mxu0 %v4042
    %4060 = vmatmul.f32.gmra.mxu0 %v4040
    %v4061 = vpop.f32.mrf.mxu0
    %v4062 = vadd.f32 0.0, %v4061
    %4063 = vdwg.mxu0
    %v4064 = vld [vmem:[#allocation6 + $0x18] sm:$0xf]
    %v4065 = vld [vmem:[#allocation6 + $0x1c] sm:$0xf]
    %v4066 = vunpack.c.l.bf16 %v4064
    %v4067 = vunpack.c.l.bf16 %v4065
    %v4069 = vsel %vm203, %v4062, 0
    %4071 = vmatpush.msra.mxu0 0.0
    %4072 = vmatpush.msra.mxu0 0.0
    %4073 = vmatpush.msra.mxu0 0.0
    %4074 = vmatpush.msra.mxu0 0.0
    %4075 = vmatpush.msra.mxu0 0.0
    %4076 = vmatpush.msra.mxu0 0.0
    %4077 = vmatpush.msra.mxu0 0.0
    %4078 = vmatpush.msra.mxu0 0.0
    %4079 = vmatpush.msra.mxu0 0.0
    %4080 = vmatpush.msra.mxu0 0.0
    %4081 = vmatpush.msra.mxu0 0.0
    %4082 = vmatpush.msra.mxu0 0.0
    %4083 = vmatpush.msra.mxu0 0.0
    %4084 = vmatpush.msra.mxu0 0.0
    %4085 = vmatpush.msra.mxu0 %v4067
    %4086 = vmatpush.msra.mxu0 %v4066
    %4087 = vmatmul.f32.gmra.mxu0 %v4069
    %v4088 = vpop.f32.mrf.mxu0
    %v4089 = vadd.f32 0.0, %v4088
    %4090 = vdwg.mxu0
    %v4091 = vadd.f32 %v3997, %v4089
    %v4092 = vld [vmem:[#allocation7] sm:$0x1]
    %v4094 = vperm.slane %v4092, 0
    %v4096 = vadd.f32 %v4091, %v4094
    %v4097 = vadd.f32 %v3634, %v4096
    %v4098 = vsel %vm583, %v4097, 0.0
    %4099 = vadd.xlane.f32.xlu0 %v4098
    %v4100 = vpop.xlane.xlu0 %4099
    %v4101 = vmul.f32 %v4100, %v593
    %v4102 = vsub.f32 %v4097, %v4101
    %v4103 = vmul.f32 %v4102, %v4102
    %v4104 = vsel %vm583, %v4103, 0.0
    %4105 = vadd.xlane.f32.xlu0 %v4104
    %v4106 = vpop.xlane.xlu0 %4105
    %v4107 = vmul.f32 %v4106, %v593
    %v4108 = vadd.f32 %v4107, 1e-05
    %v4109 = vrsqrt.pop %v4108
    %v4110 = vmul.f32 %v4109, %v4108
    %v4111 = vmul.f32 %v4110, %v4109
    %v4112 = vmul.f32 0.5, %v4111
    %v4113 = vsub.f32 1.5, %v4112
    %v4114 = vmul.f32 %v4109, %v4113
    %vm4115 = vweird.f32 %v4108
    %vm4116 = vweird.f32 %v4109
    %vm4117 = vmor %vm4115, %vm4116
    %v4118 = vsel %vm4117, %v4109, %v4114
    %v4119 = vmul.f32 %v4102, %v4118
    %v4120 = vld [vmem:[#allocation9] sm:$0x1]
    %v4122 = vperm.slane %v4120, 0
    %v4124 = vmul.f32 %v4119, %v4122
    %v4125 = vld [vmem:[#allocation10] sm:$0x1]
    %v4127 = vperm.slane %v4125, 0
    %v4129 = vadd.f32 %v4124, %v4127
    %v4130 = vpack.c.bf16 %v4129, %v4129
    %s4131 = scalar_lea.vmem %s7, 7
    %4132 = vst.msk [vmem:[%s4131] sm:$0x1] %vm624, %v4130
    // Predicated region
    $region54: #{controlnet_forward.13} parent=1 // pred_check
      _
    $region55: #{controlnet_forward.13} parent=1 // pred_check_branch
      %4134 = sbr.rel (0) target = $region57
    $region56: #{controlnet_forward.13} parent=1 // pred_region
      _
    $region57: #{controlnet_forward.13} parent=1 // pred_fallthru
      _
    // Predicated region
    $region58: #{controlnet_forward.13} parent=1 // pred_check
      _
    $region59: #{controlnet_forward.13} parent=1 // pred_check_branch
      %4136 = sbr.rel (0) target = $region61
    $region60: #{controlnet_forward.13} parent=1 // pred_region
      _
    $region61: #{controlnet_forward.13} parent=1 // pred_fallthru
      _
    %4137 = vsyncpa [#allocation3], 1
    %4138 = vsyncpa [#allocation5], 1
    %4139 = vsyncpa [#allocation8], 1
    %4140 = vsyncpa [#allocation11], 1

</llo_original>
